<compile_context>
chip_gen: v7x
topology: tpu7x:2x2x1
jax: 0.10.0
libtpu: 0.0.40
codegen_flags: <defaults>
</compile_context>

<pallas_src>
import functools
import math

import jax
import jax.numpy as jnp
from jax.experimental import pallas as pl
from jax.experimental.pallas import tpu as pltpu

_EPS = 1e-5


def _ln_rows(x, g, b, eps=_EPS):
    """LayerNorm over the last axis. x: [R, D] f32, g/b: [1, D] f32."""
    mu = jnp.mean(x, axis=-1, keepdims=True)
    xc = x - mu
    var = jnp.mean(xc * xc, axis=-1, keepdims=True)
    return xc * jax.lax.rsqrt(var + eps) * g + b


# ----------------------- single fused forward kernel --------------------------

def _fused_forward_kernel(*refs, batch, seq, num_heads, num_layers):
    (x0_ref, x1_ref, x2_ref, res_ref, pe_ref, lng_ref, lnb_ref) = refs[:7]
    lrefs = refs[7:7 + 12 * num_layers]
    fc1w_ref, fc1b_ref, fc2w_ref, fc2b_ref, o_ref = refs[7 + 12 * num_layers:]

    f32 = jnp.float32
    BS = batch * seq
    D = x0_ref.shape[1]
    dh = D // num_heads
    scale = 1.0 / math.sqrt(dh)

    g = lng_ref[...].astype(f32)
    b = lnb_ref[...].astype(f32)

    x0 = x0_ref[...].astype(f32)
    x1 = x1_ref[...].astype(f32)
    x2 = x2_ref[...].astype(f32)
    res = res_ref[...].astype(f32)

    # --- branch 1 prep: dropout(id) -> shared LN (kept as residual_1) -> +PE ---
    res1 = _ln_rows(x0, g, b)
    b1_in = res1 + pe_ref[...].astype(f32)            # PE pre-tiled to [BS, D]

    # --- stack branches 1 & 2 for the shared transformer encoder ---
    x = jnp.concatenate([b1_in, x1], axis=0)          # [2*BS, D]
    R = 2 * BS
    nb = R // seq                                     # independent sequences

    # --- shared encoder (pre-norm MHSA + GELU MLP), layers statically unrolled ---
    # TODO(synk): TransformerEncoderLayer not defined in source; ViT-style
    # pre-norm block with tanh-approx GELU assumed.
    for li in range(num_layers):
        (l1g, l1b, wqkv, bqkv, pw, pb, l2g, l2b,
         w1, b1_, w2, b2_) = lrefs[12 * li:12 * (li + 1)]

        y = _ln_rows(x, l1g[...].astype(f32), l1b[...].astype(f32))
        # Fused QKV projection: single [R, D] @ [D, 3D] GEMM for all heads.
        qkv = jnp.dot(y, wqkv[...], preferred_element_type=f32) + bqkv[...]

        attn = jnp.zeros((R, D), f32)
        for h in range(num_heads):
            q = qkv[:, h * dh:(h + 1) * dh].reshape(nb, seq, dh)
            k = qkv[:, D + h * dh:D + (h + 1) * dh].reshape(nb, seq, dh)
            v = qkv[:, 2 * D + h * dh:2 * D + (h + 1) * dh].reshape(nb, seq, dh)
            s = jnp.einsum("bqd,bkd->bqk", q, k,
                           preferred_element_type=f32) * scale
            m = jnp.max(s, axis=-1, keepdims=True)
            p = jnp.exp(s - m)
            p = p / jnp.sum(p, axis=-1, keepdims=True)        # exact softmax denom
            o = jnp.einsum("bqk,bkd->bqd", p, v,
                           preferred_element_type=f32)        # [nb, S, dh]
            # head-merge + out-proj folded: concat_h(o_h) @ Wp == sum_h o_h @ Wp[h]
            attn = attn + jnp.dot(o.reshape(R, dh), pw[h],
                                  preferred_element_type=f32)
        h1 = x + attn + pb[...]

        y2 = _ln_rows(h1, l2g[...].astype(f32), l2b[...].astype(f32))
        z = jnp.dot(y2, w1[...], preferred_element_type=f32) + b1_[...]
        z = jax.nn.gelu(z, approximate=True)
        z = jnp.dot(z, w2[...], preferred_element_type=f32) + b2_[...]
        x = h1 + z

    # --- residual adds + final shared LayerNorm for all three branches ---
    z_all = jnp.concatenate(
        [x[0:BS] + res1, x[BS:2 * BS] + res, x2 + res], axis=0)     # [3*BS, D]
    z_all = _ln_rows(z_all, g, b)

    # --- head: fc1(+ReLU)+fc2, fc1 accumulated over seq chunks (no flatten) ---
    z3 = z_all.reshape(3 * batch, seq, D)
    F = fc1w_ref.shape[1]
    hacc = jnp.zeros((3 * batch, F), f32)
    for s_idx in range(seq):
        hacc = hacc + jnp.dot(z3[:, s_idx, :],
                              fc1w_ref[s_idx * D:(s_idx + 1) * D, :],
                              preferred_element_type=f32)
    hacc = jnp.maximum(hacc + fc1b_ref[...], 0.0)                   # ReLU, dropout=id
    logits = jnp.dot(hacc, fc2w_ref[...], preferred_element_type=f32) + fc2b_ref[...]
    o_ref[...] = logits.astype(o_ref.dtype)


# ------------------------------ model forward ---------------------------------

@functools.partial(jax.jit, static_argnames=("num_heads",))
def auxiliary_classifier_forward(xs, residual, params, *, num_heads):
    """Mirrors Auxiliary_Classifier.forward (all dropouts = identity)."""
    B, S, D = xs[0].shape
    BS = B * S
    x0 = xs[0].reshape(BS, D)
    x1 = xs[1].reshape(BS, D)
    x2 = xs[2].reshape(BS, D)
    res = residual.reshape(BS, D)
    # PE pre-tiled once in the wrapper so the kernel adds it with one vector op.
    pe_t = jnp.tile(params["pe"][0, :S], (B, 1)).astype(jnp.float32)   # [BS, D]
    g = params["ln_g"].reshape(1, D)
    b = params["ln_b"].reshape(1, D)

    layer_ws = []
    for lp in params["layers"]:
        layer_ws += [lp["ln1_g"], lp["ln1_b"], lp["wqkv"], lp["bqkv"],
                     lp["pw"], lp["pb"], lp["ln2_g"], lp["ln2_b"],
                     lp["w1"], lp["b1"], lp["w2"], lp["b2"]]
    num_layers = len(params["layers"])

    F = params["fc1_w"].shape[1]
    C = params["fc2_w"].shape[1]

    logits = pl.pallas_call(
        functools.partial(_fused_forward_kernel, batch=B, seq=S,
                          num_heads=num_heads, num_layers=num_layers),
        out_shape=jax.ShapeDtypeStruct((3 * B, C), jnp.float32),
        compiler_params=pltpu.CompilerParams(vmem_limit_bytes=32 * 1024 * 1024),
    )(x0, x1, x2, res, pe_t, g, b, *layer_ws,
      params["fc1_w"], params["fc1_b"].reshape(1, F),
      params["fc2_w"], params["fc2_b"].reshape(1, C))

    return [logits[0:B], logits[B:2 * B], logits[2 * B:3 * B]]


# ------------------------------- init / reference -----------------------------

def make_positional_encoding(d_model, max_len=30):
    position = jnp.arange(0.0, max_len, dtype=jnp.float32)[:, None]
    div_term = jnp.exp(
        jnp.arange(0.0, d_model, 2, dtype=jnp.float32) * -(math.log(10000.0) / d_model))
    pe = jnp.zeros((max_len, d_model), dtype=jnp.float32)
    pe = pe.at[:, 0::2].set(jnp.sin(position * div_term))
    pe = pe.at[:, 1::2].set(jnp.cos(position * div_term))
    return pe[None]  # [1, max_len, d_model]


def init_params(key, cfg):
    D = cfg["dim_model"] * 3
    H = cfg["s_num_head"]
    assert D % H == 0, "dim_model*3 must be divisible by s_num_head"
    dh = D // H
    mlp_ratio = cfg["s_forward_hidden"] / cfg["dim_model"]
    Dm = int(D * mlp_ratio)
    flat = cfg["pad_size"] * D

    def dense(k, shape):
        return jax.random.normal(k, shape, jnp.float32) * 0.02

    keys = jax.random.split(key, 2 + 4 * cfg["s_num_encoder_multi"])
    ki = iter(keys)

    layers = []
    for _ in range(cfg["s_num_encoder_multi"]):
        layers.append(dict(
            ln1_g=jnp.ones((1, D), jnp.float32), ln1_b=jnp.zeros((1, D), jnp.float32),
            # fused QKV weight: columns [0:D]=Q, [D:2D]=K, [2D:3D]=V, head-major inside.
            wqkv=dense(next(ki), (D, 3 * D)), bqkv=jnp.zeros((1, 3 * D), jnp.float32),
            # output projection kept head-major [H, dh, D]; kernel folds head-merge
            # into the sum over heads (== concat @ Wp with Wp = pw.reshape(D, D)).
            pw=dense(next(ki), (H, dh, D)), pb=jnp.zeros((1, D), jnp.float32),
            ln2_g=jnp.ones((1, D), jnp.float32), ln2_b=jnp.zeros((1, D), jnp.float32),
            w1=dense(next(ki), (D, Dm)), b1=jnp.zeros((1, Dm), jnp.float32),
            w2=dense(next(ki), (Dm, D)), b2=jnp.zeros((1, D), jnp.float32),
        ))

    return dict(
        ln_g=jnp.ones((D,), jnp.float32),
        ln_b=jnp.zeros((D,), jnp.float32),
        pe=make_positional_encoding(D, max_len=30),
        layers=layers,
        fc1_w=dense(next(ki), (flat, cfg["s_fc_hidden"])),
        fc1_b=jnp.zeros((cfg["s_fc_hidden"],), jnp.float32),
        fc2_w=dense(next(ki), (cfg["s_fc_hidden"], cfg["num_classes"])),
        fc2_b=jnp.zeros((cfg["num_classes"],), jnp.float32),
    )


def _reference_forward(xs, residual, params, *, num_heads):
    """Pure-jnp reference, used only for the self-check in __main__."""
    B, S, D = xs[0].shape
    H = num_heads
    dh = D // H

    def ln(t, gg, bb):
        mu = jnp.mean(t, axis=-1, keepdims=True)
        var = jnp.mean((t - mu) ** 2, axis=-1, keepdims=True)
        return (t - mu) * jax.lax.rsqrt(var + _EPS) * gg.reshape(-1) + bb.reshape(-1)

    def encoder(t):
        for lp in params["layers"]:
            y = ln(t, lp["ln1_g"], lp["ln1_b"])
            qkv = y @ lp["wqkv"] + lp["bqkv"].reshape(-1)
            q = qkv[..., :D].reshape(B, S, H, dh).transpose(0, 2, 1, 3)
            k = qkv[..., D:2 * D].reshape(B, S, H, dh).transpose(0, 2, 1, 3)
            v = qkv[..., 2 * D:].reshape(B, S, H, dh).transpose(0, 2, 1, 3)
            s = jnp.einsum("bhqd,bhkd->bhqk", q, k) / math.sqrt(dh)
            p = jax.nn.softmax(s, axis=-1)
            o = jnp.einsum("bhqk,bhkd->bhqd", p, v).transpose(0, 2, 1, 3).reshape(B, S, D)
            t = t + o @ lp["pw"].reshape(D, D) + lp["pb"].reshape(-1)
            y2 = ln(t, lp["ln2_g"], lp["ln2_b"])
            z = jax.nn.gelu(y2 @ lp["w1"] + lp["b1"].reshape(-1), approximate=True)
            t = t + z @ lp["w2"] + lp["b2"].reshape(-1)
        return t

    def head(t):
        flat = t.reshape(B, S * D)
        h = jnp.maximum(flat @ params["fc1_w"] + params["fc1_b"], 0.0)
        return h @ params["fc2_w"] + params["fc2_b"]

    g, b = params["ln_g"].reshape(1, -1), params["ln_b"].reshape(1, -1)
    pe = params["pe"][0, :S][None]
    x0 = ln(xs[0], g, b)                                   # drop(id) -> LN
    out1 = ln(encoder(x0 + pe) + x0, g, b)                 # residual_1 = post-LN x0
    out2 = ln(encoder(xs[1]) + residual, g, b)
    out3 = ln(xs[2] + residual, g, b)
    return [head(out1), head(out2), head(out3)]


# ------------------------------------ main -------------------------------------

if __name__ == "__main__":
    cfg = dict(
        dim_model=16,            # -> feature dim D = 48
        s_num_head=4,            # head_dim = 12
        s_forward_hidden=32,     # mlp_ratio = 2.0 -> mlp hidden = 96
        dropout=0.1,
        pad_size=8,              # sequence length
        s_fc_hidden=64,
        num_classes=4,
        s_num_encoder_multi=2,
    )
    B = 2
    S = cfg["pad_size"]
    D = cfg["dim_model"] * 3

    key = jax.random.PRNGKey(0)
    kp, k0, k1, k2, kr = jax.random.split(key, 5)
    params = init_params(kp, cfg)

    xs = [
        jax.random.normal(k0, (B, S, D), jnp.float32),
        jax.random.normal(k1, (B, S, D), jnp.float32),
        jax.random.normal(k2, (B, S, D), jnp.float32),
    ]
    residual = jax.random.normal(kr, (B, S, D), jnp.float32)

    logits = auxiliary_classifier_forward(
        xs, residual, params, num_heads=cfg["s_num_head"])
    logits = [jax.block_until_ready(l) for l in logits]

    assert len(logits) == 3
    assert all(l.shape == (B, cfg["num_classes"]) for l in logits)
    assert all(bool(jnp.all(jnp.isfinite(l))) for l in logits)

    # correctness self-check vs. pure-jnp reference
    ref = _reference_forward(xs, residual, params, num_heads=cfg["s_num_head"])
    for lo, re_ in zip(logits, ref):
        assert bool(jnp.allclose(lo, re_, rtol=1e-3, atol=1e-4)), (
            "max abs err", float(jnp.max(jnp.abs(lo - re_))))

    print("KERNEL_OK")
</pallas_src>

<mosaic_0001>
module attributes {stable_mosaic.version = 11 : i64} {
  func.func @_fused_forward_kernel(%arg0: memref<16x48xf32, #tpu.memory_space<vmem>>, %arg1: memref<16x48xf32, #tpu.memory_space<vmem>>, %arg2: memref<16x48xf32, #tpu.memory_space<vmem>>, %arg3: memref<16x48xf32, #tpu.memory_space<vmem>>, %arg4: memref<16x48xf32, #tpu.memory_space<vmem>>, %arg5: memref<1x48xf32, #tpu.memory_space<vmem>>, %arg6: memref<1x48xf32, #tpu.memory_space<vmem>>, %arg7: memref<1x48xf32, #tpu.memory_space<vmem>>, %arg8: memref<1x48xf32, #tpu.memory_space<vmem>>, %arg9: memref<48x144xf32, #tpu.memory_space<vmem>>, %arg10: memref<1x144xf32, #tpu.memory_space<vmem>>, %arg11: memref<4x12x48xf32, #tpu.memory_space<vmem>>, %arg12: memref<1x48xf32, #tpu.memory_space<vmem>>, %arg13: memref<1x48xf32, #tpu.memory_space<vmem>>, %arg14: memref<1x48xf32, #tpu.memory_space<vmem>>, %arg15: memref<48x96xf32, #tpu.memory_space<vmem>>, %arg16: memref<1x96xf32, #tpu.memory_space<vmem>>, %arg17: memref<96x48xf32, #tpu.memory_space<vmem>>, %arg18: memref<1x48xf32, #tpu.memory_space<vmem>>, %arg19: memref<1x48xf32, #tpu.memory_space<vmem>>, %arg20: memref<1x48xf32, #tpu.memory_space<vmem>>, %arg21: memref<48x144xf32, #tpu.memory_space<vmem>>, %arg22: memref<1x144xf32, #tpu.memory_space<vmem>>, %arg23: memref<4x12x48xf32, #tpu.memory_space<vmem>>, %arg24: memref<1x48xf32, #tpu.memory_space<vmem>>, %arg25: memref<1x48xf32, #tpu.memory_space<vmem>>, %arg26: memref<1x48xf32, #tpu.memory_space<vmem>>, %arg27: memref<48x96xf32, #tpu.memory_space<vmem>>, %arg28: memref<1x96xf32, #tpu.memory_space<vmem>>, %arg29: memref<96x48xf32, #tpu.memory_space<vmem>>, %arg30: memref<1x48xf32, #tpu.memory_space<vmem>>, %arg31: memref<384x64xf32, #tpu.memory_space<vmem>>, %arg32: memref<1x64xf32, #tpu.memory_space<vmem>>, %arg33: memref<64x4xf32, #tpu.memory_space<vmem>>, %arg34: memref<1x4xf32, #tpu.memory_space<vmem>>, %arg35: memref<6x4xf32, #tpu.memory_space<vmem>>) attributes {dimension_semantics = [], scalar_prefetch = 0 : i64, scratch_operands = 0 : i64, tpu.core_type = #tpu.core_type<tc>} {
    %c0 = arith.constant 0 : index
    %c0_0 = arith.constant 0 : index
    %0 = vector.load %arg5[%c0, %c0_0] : memref<1x48xf32, #tpu.memory_space<vmem>>, vector<1x48xf32>
    %c0_1 = arith.constant 0 : index
    %c0_2 = arith.constant 0 : index
    %1 = vector.load %arg6[%c0_1, %c0_2] : memref<1x48xf32, #tpu.memory_space<vmem>>, vector<1x48xf32>
    %c0_3 = arith.constant 0 : index
    %c0_4 = arith.constant 0 : index
    %2 = vector.load %arg0[%c0_3, %c0_4] : memref<16x48xf32, #tpu.memory_space<vmem>>, vector<16x48xf32>
    %c0_5 = arith.constant 0 : index
    %c0_6 = arith.constant 0 : index
    %3 = vector.load %arg1[%c0_5, %c0_6] : memref<16x48xf32, #tpu.memory_space<vmem>>, vector<16x48xf32>
    %c0_7 = arith.constant 0 : index
    %c0_8 = arith.constant 0 : index
    %4 = vector.load %arg2[%c0_7, %c0_8] : memref<16x48xf32, #tpu.memory_space<vmem>>, vector<16x48xf32>
    %c0_9 = arith.constant 0 : index
    %c0_10 = arith.constant 0 : index
    %5 = vector.load %arg3[%c0_9, %c0_10] : memref<16x48xf32, #tpu.memory_space<vmem>>, vector<16x48xf32>
    %cst = arith.constant dense<0.000000e+00> : vector<16xf32>
    %6 = vector.multi_reduction <add>, %2, %cst [1] : vector<16x48xf32> to vector<16xf32>
    %7 = vector.shape_cast %6 : vector<16xf32> to vector<16x1xf32>
    %cst_11 = arith.constant 4.800000e+01 : f32
    %8 = vector.broadcast %cst_11 : f32 to vector<16x1xf32>
    %9 = arith.divf %7, %8 : vector<16x1xf32>
    %10 = vector.broadcast %9 : vector<16x1xf32> to vector<16x48xf32>
    %11 = arith.subf %2, %10 : vector<16x48xf32>
    %12 = arith.mulf %11, %11 : vector<16x48xf32>
    %cst_12 = arith.constant dense<0.000000e+00> : vector<16xf32>
    %13 = vector.multi_reduction <add>, %12, %cst_12 [1] : vector<16x48xf32> to vector<16xf32>
    %14 = vector.shape_cast %13 : vector<16xf32> to vector<16x1xf32>
    %cst_13 = arith.constant 4.800000e+01 : f32
    %15 = vector.broadcast %cst_13 : f32 to vector<16x1xf32>
    %16 = arith.divf %14, %15 : vector<16x1xf32>
    %cst_14 = arith.constant 9.99999974E-6 : f32
    %17 = vector.broadcast %cst_14 : f32 to vector<16x1xf32>
    %18 = arith.addf %16, %17 : vector<16x1xf32>
    %19 = math.rsqrt %18 : vector<16x1xf32>
    %20 = vector.broadcast %19 : vector<16x1xf32> to vector<16x48xf32>
    %21 = arith.mulf %11, %20 : vector<16x48xf32>
    %22 = vector.broadcast %0 : vector<1x48xf32> to vector<16x48xf32>
    %23 = arith.mulf %21, %22 : vector<16x48xf32>
    %24 = vector.broadcast %1 : vector<1x48xf32> to vector<16x48xf32>
    %25 = arith.addf %23, %24 : vector<16x48xf32>
    %c0_15 = arith.constant 0 : index
    %c0_16 = arith.constant 0 : index
    %26 = vector.load %arg4[%c0_15, %c0_16] : memref<16x48xf32, #tpu.memory_space<vmem>>, vector<16x48xf32>
    %27 = arith.addf %25, %26 : vector<16x48xf32>
    %28 = tpu.concatenate %27, %3 in 0 : vector<16x48xf32>, vector<16x48xf32> -> vector<32x48xf32>
    %c0_17 = arith.constant 0 : index
    %c0_18 = arith.constant 0 : index
    %29 = vector.load %arg7[%c0_17, %c0_18] : memref<1x48xf32, #tpu.memory_space<vmem>>, vector<1x48xf32>
    %c0_19 = arith.constant 0 : index
    %c0_20 = arith.constant 0 : index
    %30 = vector.load %arg8[%c0_19, %c0_20] : memref<1x48xf32, #tpu.memory_space<vmem>>, vector<1x48xf32>
    %cst_21 = arith.constant dense<0.000000e+00> : vector<32xf32>
    %31 = vector.multi_reduction <add>, %28, %cst_21 [1] : vector<32x48xf32> to vector<32xf32>
    %32 = vector.shape_cast %31 : vector<32xf32> to vector<32x1xf32>
    %cst_22 = arith.constant 4.800000e+01 : f32
    %33 = vector.broadcast %cst_22 : f32 to vector<32x1xf32>
    %34 = arith.divf %32, %33 : vector<32x1xf32>
    %35 = vector.broadcast %34 : vector<32x1xf32> to vector<32x48xf32>
    %36 = arith.subf %28, %35 : vector<32x48xf32>
    %37 = arith.mulf %36, %36 : vector<32x48xf32>
    %cst_23 = arith.constant dense<0.000000e+00> : vector<32xf32>
    %38 = vector.multi_reduction <add>, %37, %cst_23 [1] : vector<32x48xf32> to vector<32xf32>
    %39 = vector.shape_cast %38 : vector<32xf32> to vector<32x1xf32>
    %cst_24 = arith.constant 4.800000e+01 : f32
    %40 = vector.broadcast %cst_24 : f32 to vector<32x1xf32>
    %41 = arith.divf %39, %40 : vector<32x1xf32>
    %cst_25 = arith.constant 9.99999974E-6 : f32
    %42 = vector.broadcast %cst_25 : f32 to vector<32x1xf32>
    %43 = arith.addf %41, %42 : vector<32x1xf32>
    %44 = math.rsqrt %43 : vector<32x1xf32>
    %45 = vector.broadcast %44 : vector<32x1xf32> to vector<32x48xf32>
    %46 = arith.mulf %36, %45 : vector<32x48xf32>
    %47 = vector.broadcast %29 : vector<1x48xf32> to vector<32x48xf32>
    %48 = arith.mulf %46, %47 : vector<32x48xf32>
    %49 = vector.broadcast %30 : vector<1x48xf32> to vector<32x48xf32>
    %50 = arith.addf %48, %49 : vector<32x48xf32>
    %c0_26 = arith.constant 0 : index
    %c0_27 = arith.constant 0 : index
    %51 = vector.load %arg9[%c0_26, %c0_27] : memref<48x144xf32, #tpu.memory_space<vmem>>, vector<48x144xf32>
    %cst_28 = arith.constant dense<0.000000e+00> : vector<32x144xf32>
    %52 = tpu.matmul %50, %51, %cst_28 {dimension_numbers = #tpu.dot_dimension_numbers<[1], [0], [0], [1], [0, 0, 1, 1], [], []>} : vector<32x48xf32>, vector<48x144xf32>, vector<32x144xf32> -> vector<32x144xf32>
    %c0_29 = arith.constant 0 : index
    %c0_30 = arith.constant 0 : index
    %53 = vector.load %arg10[%c0_29, %c0_30] : memref<1x144xf32, #tpu.memory_space<vmem>>, vector<1x144xf32>
    %54 = vector.broadcast %53 : vector<1x144xf32> to vector<32x144xf32>
    %55 = arith.addf %52, %54 : vector<32x144xf32>
    %cst_31 = arith.constant 0.000000e+00 : f32
    %56 = vector.broadcast %cst_31 : f32 to vector<32x48xf32>
    %57 = vector.extract_strided_slice %55 {offsets = [0, 0], sizes = [32, 12], strides = [1, 1]} : vector<32x144xf32> to vector<32x12xf32>
    %58 = vector.shape_cast %57 : vector<32x12xf32> to vector<4x8x12xf32>
    %59 = vector.extract_strided_slice %55 {offsets = [0, 48], sizes = [32, 12], strides = [1, 1]} : vector<32x144xf32> to vector<32x12xf32>
    %60 = vector.shape_cast %59 : vector<32x12xf32> to vector<4x8x12xf32>
    %61 = vector.extract_strided_slice %55 {offsets = [0, 96], sizes = [32, 12], strides = [1, 1]} : vector<32x144xf32> to vector<32x12xf32>
    %62 = vector.shape_cast %61 : vector<32x12xf32> to vector<4x8x12xf32>
    "tpu.trace_start"() <{level = 10 : i32, message = "bqd,bkd->bqk"}> : () -> ()
    %cst_32 = arith.constant dense<0.000000e+00> : vector<4x8x8xf32>
    %63 = tpu.matmul %58, %60, %cst_32 {dimension_numbers = #tpu.dot_dimension_numbers<[2], [2], [1], [1], [0, 0, 0, 1, 1, 1], [0], [0]>} : vector<4x8x12xf32>, vector<4x8x12xf32>, vector<4x8x8xf32> -> vector<4x8x8xf32>
    "tpu.trace_stop"() : () -> ()
    %cst_33 = arith.constant 0.288675129 : f32
    %64 = vector.broadcast %cst_33 : f32 to vector<4x8x8xf32>
    %65 = arith.mulf %63, %64 : vector<4x8x8xf32>
    %cst_34 = arith.constant dense<0xFF800000> : vector<4x8xf32>
    %66 = vector.multi_reduction <maximumf>, %65, %cst_34 [2] : vector<4x8x8xf32> to vector<4x8xf32>
    %67 = vector.shape_cast %66 : vector<4x8xf32> to vector<4x8x1xf32>
    %68 = vector.broadcast %67 : vector<4x8x1xf32> to vector<4x8x8xf32>
    %69 = arith.subf %65, %68 : vector<4x8x8xf32>
    %70 = math.exp %69 : vector<4x8x8xf32>
    %cst_35 = arith.constant dense<0.000000e+00> : vector<4x8xf32>
    %71 = vector.multi_reduction <add>, %70, %cst_35 [2] : vector<4x8x8xf32> to vector<4x8xf32>
    %72 = vector.shape_cast %71 : vector<4x8xf32> to vector<4x8x1xf32>
    %73 = vector.broadcast %72 : vector<4x8x1xf32> to vector<4x8x8xf32>
    %74 = arith.divf %70, %73 : vector<4x8x8xf32>
    "tpu.trace_start"() <{level = 10 : i32, message = "bqk,bkd->bqd"}> : () -> ()
    %cst_36 = arith.constant dense<0.000000e+00> : vector<4x8x12xf32>
    %75 = tpu.matmul %74, %62, %cst_36 {dimension_numbers = #tpu.dot_dimension_numbers<[2], [1], [1], [2], [0, 0, 0, 1, 1, 2], [0], [0]>} : vector<4x8x8xf32>, vector<4x8x12xf32>, vector<4x8x12xf32> -> vector<4x8x12xf32>
    "tpu.trace_stop"() : () -> ()
    %76 = vector.shape_cast %75 : vector<4x8x12xf32> to vector<32x12xf32>
    %c0_37 = arith.constant 0 : index
    %c0_38 = arith.constant 0 : index
    %c0_39 = arith.constant 0 : index
    %77 = vector.load %arg11[%c0_37, %c0_38, %c0_39] : memref<4x12x48xf32, #tpu.memory_space<vmem>>, vector<1x12x48xf32>
    %78 = vector.shape_cast %77 : vector<1x12x48xf32> to vector<12x48xf32>
    %cst_40 = arith.constant dense<0.000000e+00> : vector<32x48xf32>
    %79 = tpu.matmul %76, %78, %cst_40 {dimension_numbers = #tpu.dot_dimension_numbers<[1], [0], [0], [1], [0, 0, 1, 1], [], []>} : vector<32x12xf32>, vector<12x48xf32>, vector<32x48xf32> -> vector<32x48xf32>
    %80 = arith.addf %56, %79 : vector<32x48xf32>
    %81 = vector.extract_strided_slice %55 {offsets = [0, 12], sizes = [32, 12], strides = [1, 1]} : vector<32x144xf32> to vector<32x12xf32>
    %82 = vector.shape_cast %81 : vector<32x12xf32> to vector<4x8x12xf32>
    %83 = vector.extract_strided_slice %55 {offsets = [0, 60], sizes = [32, 12], strides = [1, 1]} : vector<32x144xf32> to vector<32x12xf32>
    %84 = vector.shape_cast %83 : vector<32x12xf32> to vector<4x8x12xf32>
    %85 = vector.extract_strided_slice %55 {offsets = [0, 108], sizes = [32, 12], strides = [1, 1]} : vector<32x144xf32> to vector<32x12xf32>
    %86 = vector.shape_cast %85 : vector<32x12xf32> to vector<4x8x12xf32>
    "tpu.trace_start"() <{level = 10 : i32, message = "bqd,bkd->bqk"}> : () -> ()
    %cst_41 = arith.constant dense<0.000000e+00> : vector<4x8x8xf32>
    %87 = tpu.matmul %82, %84, %cst_41 {dimension_numbers = #tpu.dot_dimension_numbers<[2], [2], [1], [1], [0, 0, 0, 1, 1, 1], [0], [0]>} : vector<4x8x12xf32>, vector<4x8x12xf32>, vector<4x8x8xf32> -> vector<4x8x8xf32>
    "tpu.trace_stop"() : () -> ()
    %cst_42 = arith.constant 0.288675129 : f32
    %88 = vector.broadcast %cst_42 : f32 to vector<4x8x8xf32>
    %89 = arith.mulf %87, %88 : vector<4x8x8xf32>
    %cst_43 = arith.constant dense<0xFF800000> : vector<4x8xf32>
    %90 = vector.multi_reduction <maximumf>, %89, %cst_43 [2] : vector<4x8x8xf32> to vector<4x8xf32>
    %91 = vector.shape_cast %90 : vector<4x8xf32> to vector<4x8x1xf32>
    %92 = vector.broadcast %91 : vector<4x8x1xf32> to vector<4x8x8xf32>
    %93 = arith.subf %89, %92 : vector<4x8x8xf32>
    %94 = math.exp %93 : vector<4x8x8xf32>
    %cst_44 = arith.constant dense<0.000000e+00> : vector<4x8xf32>
    %95 = vector.multi_reduction <add>, %94, %cst_44 [2] : vector<4x8x8xf32> to vector<4x8xf32>
    %96 = vector.shape_cast %95 : vector<4x8xf32> to vector<4x8x1xf32>
    %97 = vector.broadcast %96 : vector<4x8x1xf32> to vector<4x8x8xf32>
    %98 = arith.divf %94, %97 : vector<4x8x8xf32>
    "tpu.trace_start"() <{level = 10 : i32, message = "bqk,bkd->bqd"}> : () -> ()
    %cst_45 = arith.constant dense<0.000000e+00> : vector<4x8x12xf32>
    %99 = tpu.matmul %98, %86, %cst_45 {dimension_numbers = #tpu.dot_dimension_numbers<[2], [1], [1], [2], [0, 0, 0, 1, 1, 2], [0], [0]>} : vector<4x8x8xf32>, vector<4x8x12xf32>, vector<4x8x12xf32> -> vector<4x8x12xf32>
    "tpu.trace_stop"() : () -> ()
    %100 = vector.shape_cast %99 : vector<4x8x12xf32> to vector<32x12xf32>
    %c1 = arith.constant 1 : index
    %c0_46 = arith.constant 0 : index
    %c0_47 = arith.constant 0 : index
    %101 = vector.load %arg11[%c1, %c0_46, %c0_47] : memref<4x12x48xf32, #tpu.memory_space<vmem>>, vector<1x12x48xf32>
    %102 = vector.shape_cast %101 : vector<1x12x48xf32> to vector<12x48xf32>
    %cst_48 = arith.constant dense<0.000000e+00> : vector<32x48xf32>
    %103 = tpu.matmul %100, %102, %cst_48 {dimension_numbers = #tpu.dot_dimension_numbers<[1], [0], [0], [1], [0, 0, 1, 1], [], []>} : vector<32x12xf32>, vector<12x48xf32>, vector<32x48xf32> -> vector<32x48xf32>
    %104 = arith.addf %80, %103 : vector<32x48xf32>
    %105 = vector.extract_strided_slice %55 {offsets = [0, 24], sizes = [32, 12], strides = [1, 1]} : vector<32x144xf32> to vector<32x12xf32>
    %106 = vector.shape_cast %105 : vector<32x12xf32> to vector<4x8x12xf32>
    %107 = vector.extract_strided_slice %55 {offsets = [0, 72], sizes = [32, 12], strides = [1, 1]} : vector<32x144xf32> to vector<32x12xf32>
    %108 = vector.shape_cast %107 : vector<32x12xf32> to vector<4x8x12xf32>
    %109 = vector.extract_strided_slice %55 {offsets = [0, 120], sizes = [32, 12], strides = [1, 1]} : vector<32x144xf32> to vector<32x12xf32>
    %110 = vector.shape_cast %109 : vector<32x12xf32> to vector<4x8x12xf32>
    "tpu.trace_start"() <{level = 10 : i32, message = "bqd,bkd->bqk"}> : () -> ()
    %cst_49 = arith.constant dense<0.000000e+00> : vector<4x8x8xf32>
    %111 = tpu.matmul %106, %108, %cst_49 {dimension_numbers = #tpu.dot_dimension_numbers<[2], [2], [1], [1], [0, 0, 0, 1, 1, 1], [0], [0]>} : vector<4x8x12xf32>, vector<4x8x12xf32>, vector<4x8x8xf32> -> vector<4x8x8xf32>
    "tpu.trace_stop"() : () -> ()
    %cst_50 = arith.constant 0.288675129 : f32
    %112 = vector.broadcast %cst_50 : f32 to vector<4x8x8xf32>
    %113 = arith.mulf %111, %112 : vector<4x8x8xf32>
    %cst_51 = arith.constant dense<0xFF800000> : vector<4x8xf32>
    %114 = vector.multi_reduction <maximumf>, %113, %cst_51 [2] : vector<4x8x8xf32> to vector<4x8xf32>
    %115 = vector.shape_cast %114 : vector<4x8xf32> to vector<4x8x1xf32>
    %116 = vector.broadcast %115 : vector<4x8x1xf32> to vector<4x8x8xf32>
    %117 = arith.subf %113, %116 : vector<4x8x8xf32>
    %118 = math.exp %117 : vector<4x8x8xf32>
    %cst_52 = arith.constant dense<0.000000e+00> : vector<4x8xf32>
    %119 = vector.multi_reduction <add>, %118, %cst_52 [2] : vector<4x8x8xf32> to vector<4x8xf32>
    %120 = vector.shape_cast %119 : vector<4x8xf32> to vector<4x8x1xf32>
    %121 = vector.broadcast %120 : vector<4x8x1xf32> to vector<4x8x8xf32>
    %122 = arith.divf %118, %121 : vector<4x8x8xf32>
    "tpu.trace_start"() <{level = 10 : i32, message = "bqk,bkd->bqd"}> : () -> ()
    %cst_53 = arith.constant dense<0.000000e+00> : vector<4x8x12xf32>
    %123 = tpu.matmul %122, %110, %cst_53 {dimension_numbers = #tpu.dot_dimension_numbers<[2], [1], [1], [2], [0, 0, 0, 1, 1, 2], [0], [0]>} : vector<4x8x8xf32>, vector<4x8x12xf32>, vector<4x8x12xf32> -> vector<4x8x12xf32>
    "tpu.trace_stop"() : () -> ()
    %124 = vector.shape_cast %123 : vector<4x8x12xf32> to vector<32x12xf32>
    %c2 = arith.constant 2 : index
    %c0_54 = arith.constant 0 : index
    %c0_55 = arith.constant 0 : index
    %125 = vector.load %arg11[%c2, %c0_54, %c0_55] : memref<4x12x48xf32, #tpu.memory_space<vmem>>, vector<1x12x48xf32>
    %126 = vector.shape_cast %125 : vector<1x12x48xf32> to vector<12x48xf32>
    %cst_56 = arith.constant dense<0.000000e+00> : vector<32x48xf32>
    %127 = tpu.matmul %124, %126, %cst_56 {dimension_numbers = #tpu.dot_dimension_numbers<[1], [0], [0], [1], [0, 0, 1, 1], [], []>} : vector<32x12xf32>, vector<12x48xf32>, vector<32x48xf32> -> vector<32x48xf32>
    %128 = arith.addf %104, %127 : vector<32x48xf32>
    %129 = vector.extract_strided_slice %55 {offsets = [0, 36], sizes = [32, 12], strides = [1, 1]} : vector<32x144xf32> to vector<32x12xf32>
    %130 = vector.shape_cast %129 : vector<32x12xf32> to vector<4x8x12xf32>
    %131 = vector.extract_strided_slice %55 {offsets = [0, 84], sizes = [32, 12], strides = [1, 1]} : vector<32x144xf32> to vector<32x12xf32>
    %132 = vector.shape_cast %131 : vector<32x12xf32> to vector<4x8x12xf32>
    %133 = vector.extract_strided_slice %55 {offsets = [0, 132], sizes = [32, 12], strides = [1, 1]} : vector<32x144xf32> to vector<32x12xf32>
    %134 = vector.shape_cast %133 : vector<32x12xf32> to vector<4x8x12xf32>
    "tpu.trace_start"() <{level = 10 : i32, message = "bqd,bkd->bqk"}> : () -> ()
    %cst_57 = arith.constant dense<0.000000e+00> : vector<4x8x8xf32>
    %135 = tpu.matmul %130, %132, %cst_57 {dimension_numbers = #tpu.dot_dimension_numbers<[2], [2], [1], [1], [0, 0, 0, 1, 1, 1], [0], [0]>} : vector<4x8x12xf32>, vector<4x8x12xf32>, vector<4x8x8xf32> -> vector<4x8x8xf32>
    "tpu.trace_stop"() : () -> ()
    %cst_58 = arith.constant 0.288675129 : f32
    %136 = vector.broadcast %cst_58 : f32 to vector<4x8x8xf32>
    %137 = arith.mulf %135, %136 : vector<4x8x8xf32>
    %cst_59 = arith.constant dense<0xFF800000> : vector<4x8xf32>
    %138 = vector.multi_reduction <maximumf>, %137, %cst_59 [2] : vector<4x8x8xf32> to vector<4x8xf32>
    %139 = vector.shape_cast %138 : vector<4x8xf32> to vector<4x8x1xf32>
    %140 = vector.broadcast %139 : vector<4x8x1xf32> to vector<4x8x8xf32>
    %141 = arith.subf %137, %140 : vector<4x8x8xf32>
    %142 = math.exp %141 : vector<4x8x8xf32>
    %cst_60 = arith.constant dense<0.000000e+00> : vector<4x8xf32>
    %143 = vector.multi_reduction <add>, %142, %cst_60 [2] : vector<4x8x8xf32> to vector<4x8xf32>
    %144 = vector.shape_cast %143 : vector<4x8xf32> to vector<4x8x1xf32>
    %145 = vector.broadcast %144 : vector<4x8x1xf32> to vector<4x8x8xf32>
    %146 = arith.divf %142, %145 : vector<4x8x8xf32>
    "tpu.trace_start"() <{level = 10 : i32, message = "bqk,bkd->bqd"}> : () -> ()
    %cst_61 = arith.constant dense<0.000000e+00> : vector<4x8x12xf32>
    %147 = tpu.matmul %146, %134, %cst_61 {dimension_numbers = #tpu.dot_dimension_numbers<[2], [1], [1], [2], [0, 0, 0, 1, 1, 2], [0], [0]>} : vector<4x8x8xf32>, vector<4x8x12xf32>, vector<4x8x12xf32> -> vector<4x8x12xf32>
    "tpu.trace_stop"() : () -> ()
    %148 = vector.shape_cast %147 : vector<4x8x12xf32> to vector<32x12xf32>
    %c3 = arith.constant 3 : index
    %c0_62 = arith.constant 0 : index
    %c0_63 = arith.constant 0 : index
    %149 = vector.load %arg11[%c3, %c0_62, %c0_63] : memref<4x12x48xf32, #tpu.memory_space<vmem>>, vector<1x12x48xf32>
    %150 = vector.shape_cast %149 : vector<1x12x48xf32> to vector<12x48xf32>
    %cst_64 = arith.constant dense<0.000000e+00> : vector<32x48xf32>
    %151 = tpu.matmul %148, %150, %cst_64 {dimension_numbers = #tpu.dot_dimension_numbers<[1], [0], [0], [1], [0, 0, 1, 1], [], []>} : vector<32x12xf32>, vector<12x48xf32>, vector<32x48xf32> -> vector<32x48xf32>
    %152 = arith.addf %128, %151 : vector<32x48xf32>
    %153 = arith.addf %28, %152 : vector<32x48xf32>
    %c0_65 = arith.constant 0 : index
    %c0_66 = arith.constant 0 : index
    %154 = vector.load %arg12[%c0_65, %c0_66] : memref<1x48xf32, #tpu.memory_space<vmem>>, vector<1x48xf32>
    %155 = vector.broadcast %154 : vector<1x48xf32> to vector<32x48xf32>
    %156 = arith.addf %153, %155 : vector<32x48xf32>
    %c0_67 = arith.constant 0 : index
    %c0_68 = arith.constant 0 : index
    %157 = vector.load %arg13[%c0_67, %c0_68] : memref<1x48xf32, #tpu.memory_space<vmem>>, vector<1x48xf32>
    %c0_69 = arith.constant 0 : index
    %c0_70 = arith.constant 0 : index
    %158 = vector.load %arg14[%c0_69, %c0_70] : memref<1x48xf32, #tpu.memory_space<vmem>>, vector<1x48xf32>
    %cst_71 = arith.constant dense<0.000000e+00> : vector<32xf32>
    %159 = vector.multi_reduction <add>, %156, %cst_71 [1] : vector<32x48xf32> to vector<32xf32>
    %160 = vector.shape_cast %159 : vector<32xf32> to vector<32x1xf32>
    %cst_72 = arith.constant 4.800000e+01 : f32
    %161 = vector.broadcast %cst_72 : f32 to vector<32x1xf32>
    %162 = arith.divf %160, %161 : vector<32x1xf32>
    %163 = vector.broadcast %162 : vector<32x1xf32> to vector<32x48xf32>
    %164 = arith.subf %156, %163 : vector<32x48xf32>
    %165 = arith.mulf %164, %164 : vector<32x48xf32>
    %cst_73 = arith.constant dense<0.000000e+00> : vector<32xf32>
    %166 = vector.multi_reduction <add>, %165, %cst_73 [1] : vector<32x48xf32> to vector<32xf32>
    %167 = vector.shape_cast %166 : vector<32xf32> to vector<32x1xf32>
    %cst_74 = arith.constant 4.800000e+01 : f32
    %168 = vector.broadcast %cst_74 : f32 to vector<32x1xf32>
    %169 = arith.divf %167, %168 : vector<32x1xf32>
    %cst_75 = arith.constant 9.99999974E-6 : f32
    %170 = vector.broadcast %cst_75 : f32 to vector<32x1xf32>
    %171 = arith.addf %169, %170 : vector<32x1xf32>
    %172 = math.rsqrt %171 : vector<32x1xf32>
    %173 = vector.broadcast %172 : vector<32x1xf32> to vector<32x48xf32>
    %174 = arith.mulf %164, %173 : vector<32x48xf32>
    %175 = vector.broadcast %157 : vector<1x48xf32> to vector<32x48xf32>
    %176 = arith.mulf %174, %175 : vector<32x48xf32>
    %177 = vector.broadcast %158 : vector<1x48xf32> to vector<32x48xf32>
    %178 = arith.addf %176, %177 : vector<32x48xf32>
    %c0_76 = arith.constant 0 : index
    %c0_77 = arith.constant 0 : index
    %179 = vector.load %arg15[%c0_76, %c0_77] : memref<48x96xf32, #tpu.memory_space<vmem>>, vector<48x96xf32>
    %cst_78 = arith.constant dense<0.000000e+00> : vector<32x96xf32>
    %180 = tpu.matmul %178, %179, %cst_78 {dimension_numbers = #tpu.dot_dimension_numbers<[1], [0], [0], [1], [0, 0, 1, 1], [], []>} : vector<32x48xf32>, vector<48x96xf32>, vector<32x96xf32> -> vector<32x96xf32>
    %c0_79 = arith.constant 0 : index
    %c0_80 = arith.constant 0 : index
    %181 = vector.load %arg16[%c0_79, %c0_80] : memref<1x96xf32, #tpu.memory_space<vmem>>, vector<1x96xf32>
    %182 = vector.broadcast %181 : vector<1x96xf32> to vector<32x96xf32>
    %183 = arith.addf %180, %182 : vector<32x96xf32>
    %184 = arith.mulf %183, %183 : vector<32x96xf32>
    %185 = arith.mulf %183, %184 : vector<32x96xf32>
    %cst_81 = arith.constant 4.471500e-02 : f32
    %186 = vector.broadcast %cst_81 : f32 to vector<32x96xf32>
    %187 = arith.mulf %186, %185 : vector<32x96xf32>
    %188 = arith.addf %183, %187 : vector<32x96xf32>
    %cst_82 = arith.constant 0.797884583 : f32
    %189 = vector.broadcast %cst_82 : f32 to vector<32x96xf32>
    %190 = arith.mulf %189, %188 : vector<32x96xf32>
    %191 = math.tanh %190 : vector<32x96xf32>
    %cst_83 = arith.constant 1.000000e+00 : f32
    %192 = vector.broadcast %cst_83 : f32 to vector<32x96xf32>
    %193 = arith.addf %192, %191 : vector<32x96xf32>
    %cst_84 = arith.constant 5.000000e-01 : f32
    %194 = vector.broadcast %cst_84 : f32 to vector<32x96xf32>
    %195 = arith.mulf %194, %193 : vector<32x96xf32>
    %196 = arith.mulf %183, %195 : vector<32x96xf32>
    %c0_85 = arith.constant 0 : index
    %c0_86 = arith.constant 0 : index
    %197 = vector.load %arg17[%c0_85, %c0_86] : memref<96x48xf32, #tpu.memory_space<vmem>>, vector<96x48xf32>
    %cst_87 = arith.constant dense<0.000000e+00> : vector<32x48xf32>
    %198 = tpu.matmul %196, %197, %cst_87 {dimension_numbers = #tpu.dot_dimension_numbers<[1], [0], [0], [1], [0, 0, 1, 1], [], []>} : vector<32x96xf32>, vector<96x48xf32>, vector<32x48xf32> -> vector<32x48xf32>
    %c0_88 = arith.constant 0 : index
    %c0_89 = arith.constant 0 : index
    %199 = vector.load %arg18[%c0_88, %c0_89] : memref<1x48xf32, #tpu.memory_space<vmem>>, vector<1x48xf32>
    %200 = vector.broadcast %199 : vector<1x48xf32> to vector<32x48xf32>
    %201 = arith.addf %198, %200 : vector<32x48xf32>
    %202 = arith.addf %156, %201 : vector<32x48xf32>
    %c0_90 = arith.constant 0 : index
    %c0_91 = arith.constant 0 : index
    %203 = vector.load %arg19[%c0_90, %c0_91] : memref<1x48xf32, #tpu.memory_space<vmem>>, vector<1x48xf32>
    %c0_92 = arith.constant 0 : index
    %c0_93 = arith.constant 0 : index
    %204 = vector.load %arg20[%c0_92, %c0_93] : memref<1x48xf32, #tpu.memory_space<vmem>>, vector<1x48xf32>
    %cst_94 = arith.constant dense<0.000000e+00> : vector<32xf32>
    %205 = vector.multi_reduction <add>, %202, %cst_94 [1] : vector<32x48xf32> to vector<32xf32>
    %206 = vector.shape_cast %205 : vector<32xf32> to vector<32x1xf32>
    %cst_95 = arith.constant 4.800000e+01 : f32
    %207 = vector.broadcast %cst_95 : f32 to vector<32x1xf32>
    %208 = arith.divf %206, %207 : vector<32x1xf32>
    %209 = vector.broadcast %208 : vector<32x1xf32> to vector<32x48xf32>
    %210 = arith.subf %202, %209 : vector<32x48xf32>
    %211 = arith.mulf %210, %210 : vector<32x48xf32>
    %cst_96 = arith.constant dense<0.000000e+00> : vector<32xf32>
    %212 = vector.multi_reduction <add>, %211, %cst_96 [1] : vector<32x48xf32> to vector<32xf32>
    %213 = vector.shape_cast %212 : vector<32xf32> to vector<32x1xf32>
    %cst_97 = arith.constant 4.800000e+01 : f32
    %214 = vector.broadcast %cst_97 : f32 to vector<32x1xf32>
    %215 = arith.divf %213, %214 : vector<32x1xf32>
    %cst_98 = arith.constant 9.99999974E-6 : f32
    %216 = vector.broadcast %cst_98 : f32 to vector<32x1xf32>
    %217 = arith.addf %215, %216 : vector<32x1xf32>
    %218 = math.rsqrt %217 : vector<32x1xf32>
    %219 = vector.broadcast %218 : vector<32x1xf32> to vector<32x48xf32>
    %220 = arith.mulf %210, %219 : vector<32x48xf32>
    %221 = vector.broadcast %203 : vector<1x48xf32> to vector<32x48xf32>
    %222 = arith.mulf %220, %221 : vector<32x48xf32>
    %223 = vector.broadcast %204 : vector<1x48xf32> to vector<32x48xf32>
    %224 = arith.addf %222, %223 : vector<32x48xf32>
    %c0_99 = arith.constant 0 : index
    %c0_100 = arith.constant 0 : index
    %225 = vector.load %arg21[%c0_99, %c0_100] : memref<48x144xf32, #tpu.memory_space<vmem>>, vector<48x144xf32>
    %cst_101 = arith.constant dense<0.000000e+00> : vector<32x144xf32>
    %226 = tpu.matmul %224, %225, %cst_101 {dimension_numbers = #tpu.dot_dimension_numbers<[1], [0], [0], [1], [0, 0, 1, 1], [], []>} : vector<32x48xf32>, vector<48x144xf32>, vector<32x144xf32> -> vector<32x144xf32>
    %c0_102 = arith.constant 0 : index
    %c0_103 = arith.constant 0 : index
    %227 = vector.load %arg22[%c0_102, %c0_103] : memref<1x144xf32, #tpu.memory_space<vmem>>, vector<1x144xf32>
    %228 = vector.broadcast %227 : vector<1x144xf32> to vector<32x144xf32>
    %229 = arith.addf %226, %228 : vector<32x144xf32>
    %cst_104 = arith.constant 0.000000e+00 : f32
    %230 = vector.broadcast %cst_104 : f32 to vector<32x48xf32>
    %231 = vector.extract_strided_slice %229 {offsets = [0, 0], sizes = [32, 12], strides = [1, 1]} : vector<32x144xf32> to vector<32x12xf32>
    %232 = vector.shape_cast %231 : vector<32x12xf32> to vector<4x8x12xf32>
    %233 = vector.extract_strided_slice %229 {offsets = [0, 48], sizes = [32, 12], strides = [1, 1]} : vector<32x144xf32> to vector<32x12xf32>
    %234 = vector.shape_cast %233 : vector<32x12xf32> to vector<4x8x12xf32>
    %235 = vector.extract_strided_slice %229 {offsets = [0, 96], sizes = [32, 12], strides = [1, 1]} : vector<32x144xf32> to vector<32x12xf32>
    %236 = vector.shape_cast %235 : vector<32x12xf32> to vector<4x8x12xf32>
    "tpu.trace_start"() <{level = 10 : i32, message = "bqd,bkd->bqk"}> : () -> ()
    %cst_105 = arith.constant dense<0.000000e+00> : vector<4x8x8xf32>
    %237 = tpu.matmul %232, %234, %cst_105 {dimension_numbers = #tpu.dot_dimension_numbers<[2], [2], [1], [1], [0, 0, 0, 1, 1, 1], [0], [0]>} : vector<4x8x12xf32>, vector<4x8x12xf32>, vector<4x8x8xf32> -> vector<4x8x8xf32>
    "tpu.trace_stop"() : () -> ()
    %cst_106 = arith.constant 0.288675129 : f32
    %238 = vector.broadcast %cst_106 : f32 to vector<4x8x8xf32>
    %239 = arith.mulf %237, %238 : vector<4x8x8xf32>
    %cst_107 = arith.constant dense<0xFF800000> : vector<4x8xf32>
    %240 = vector.multi_reduction <maximumf>, %239, %cst_107 [2] : vector<4x8x8xf32> to vector<4x8xf32>
    %241 = vector.shape_cast %240 : vector<4x8xf32> to vector<4x8x1xf32>
    %242 = vector.broadcast %241 : vector<4x8x1xf32> to vector<4x8x8xf32>
    %243 = arith.subf %239, %242 : vector<4x8x8xf32>
    %244 = math.exp %243 : vector<4x8x8xf32>
    %cst_108 = arith.constant dense<0.000000e+00> : vector<4x8xf32>
    %245 = vector.multi_reduction <add>, %244, %cst_108 [2] : vector<4x8x8xf32> to vector<4x8xf32>
    %246 = vector.shape_cast %245 : vector<4x8xf32> to vector<4x8x1xf32>
    %247 = vector.broadcast %246 : vector<4x8x1xf32> to vector<4x8x8xf32>
    %248 = arith.divf %244, %247 : vector<4x8x8xf32>
    "tpu.trace_start"() <{level = 10 : i32, message = "bqk,bkd->bqd"}> : () -> ()
    %cst_109 = arith.constant dense<0.000000e+00> : vector<4x8x12xf32>
    %249 = tpu.matmul %248, %236, %cst_109 {dimension_numbers = #tpu.dot_dimension_numbers<[2], [1], [1], [2], [0, 0, 0, 1, 1, 2], [0], [0]>} : vector<4x8x8xf32>, vector<4x8x12xf32>, vector<4x8x12xf32> -> vector<4x8x12xf32>
    "tpu.trace_stop"() : () -> ()
    %250 = vector.shape_cast %249 : vector<4x8x12xf32> to vector<32x12xf32>
    %c0_110 = arith.constant 0 : index
    %c0_111 = arith.constant 0 : index
    %c0_112 = arith.constant 0 : index
    %251 = vector.load %arg23[%c0_110, %c0_111, %c0_112] : memref<4x12x48xf32, #tpu.memory_space<vmem>>, vector<1x12x48xf32>
    %252 = vector.shape_cast %251 : vector<1x12x48xf32> to vector<12x48xf32>
    %cst_113 = arith.constant dense<0.000000e+00> : vector<32x48xf32>
    %253 = tpu.matmul %250, %252, %cst_113 {dimension_numbers = #tpu.dot_dimension_numbers<[1], [0], [0], [1], [0, 0, 1, 1], [], []>} : vector<32x12xf32>, vector<12x48xf32>, vector<32x48xf32> -> vector<32x48xf32>
    %254 = arith.addf %230, %253 : vector<32x48xf32>
    %255 = vector.extract_strided_slice %229 {offsets = [0, 12], sizes = [32, 12], strides = [1, 1]} : vector<32x144xf32> to vector<32x12xf32>
    %256 = vector.shape_cast %255 : vector<32x12xf32> to vector<4x8x12xf32>
    %257 = vector.extract_strided_slice %229 {offsets = [0, 60], sizes = [32, 12], strides = [1, 1]} : vector<32x144xf32> to vector<32x12xf32>
    %258 = vector.shape_cast %257 : vector<32x12xf32> to vector<4x8x12xf32>
    %259 = vector.extract_strided_slice %229 {offsets = [0, 108], sizes = [32, 12], strides = [1, 1]} : vector<32x144xf32> to vector<32x12xf32>
    %260 = vector.shape_cast %259 : vector<32x12xf32> to vector<4x8x12xf32>
    "tpu.trace_start"() <{level = 10 : i32, message = "bqd,bkd->bqk"}> : () -> ()
    %cst_114 = arith.constant dense<0.000000e+00> : vector<4x8x8xf32>
    %261 = tpu.matmul %256, %258, %cst_114 {dimension_numbers = #tpu.dot_dimension_numbers<[2], [2], [1], [1], [0, 0, 0, 1, 1, 1], [0], [0]>} : vector<4x8x12xf32>, vector<4x8x12xf32>, vector<4x8x8xf32> -> vector<4x8x8xf32>
    "tpu.trace_stop"() : () -> ()
    %cst_115 = arith.constant 0.288675129 : f32
    %262 = vector.broadcast %cst_115 : f32 to vector<4x8x8xf32>
    %263 = arith.mulf %261, %262 : vector<4x8x8xf32>
    %cst_116 = arith.constant dense<0xFF800000> : vector<4x8xf32>
    %264 = vector.multi_reduction <maximumf>, %263, %cst_116 [2] : vector<4x8x8xf32> to vector<4x8xf32>
    %265 = vector.shape_cast %264 : vector<4x8xf32> to vector<4x8x1xf32>
    %266 = vector.broadcast %265 : vector<4x8x1xf32> to vector<4x8x8xf32>
    %267 = arith.subf %263, %266 : vector<4x8x8xf32>
    %268 = math.exp %267 : vector<4x8x8xf32>
    %cst_117 = arith.constant dense<0.000000e+00> : vector<4x8xf32>
    %269 = vector.multi_reduction <add>, %268, %cst_117 [2] : vector<4x8x8xf32> to vector<4x8xf32>
    %270 = vector.shape_cast %269 : vector<4x8xf32> to vector<4x8x1xf32>
    %271 = vector.broadcast %270 : vector<4x8x1xf32> to vector<4x8x8xf32>
    %272 = arith.divf %268, %271 : vector<4x8x8xf32>
    "tpu.trace_start"() <{level = 10 : i32, message = "bqk,bkd->bqd"}> : () -> ()
    %cst_118 = arith.constant dense<0.000000e+00> : vector<4x8x12xf32>
    %273 = tpu.matmul %272, %260, %cst_118 {dimension_numbers = #tpu.dot_dimension_numbers<[2], [1], [1], [2], [0, 0, 0, 1, 1, 2], [0], [0]>} : vector<4x8x8xf32>, vector<4x8x12xf32>, vector<4x8x12xf32> -> vector<4x8x12xf32>
    "tpu.trace_stop"() : () -> ()
    %274 = vector.shape_cast %273 : vector<4x8x12xf32> to vector<32x12xf32>
    %c1_119 = arith.constant 1 : index
    %c0_120 = arith.constant 0 : index
    %c0_121 = arith.constant 0 : index
    %275 = vector.load %arg23[%c1_119, %c0_120, %c0_121] : memref<4x12x48xf32, #tpu.memory_space<vmem>>, vector<1x12x48xf32>
    %276 = vector.shape_cast %275 : vector<1x12x48xf32> to vector<12x48xf32>
    %cst_122 = arith.constant dense<0.000000e+00> : vector<32x48xf32>
    %277 = tpu.matmul %274, %276, %cst_122 {dimension_numbers = #tpu.dot_dimension_numbers<[1], [0], [0], [1], [0, 0, 1, 1], [], []>} : vector<32x12xf32>, vector<12x48xf32>, vector<32x48xf32> -> vector<32x48xf32>
    %278 = arith.addf %254, %277 : vector<32x48xf32>
    %279 = vector.extract_strided_slice %229 {offsets = [0, 24], sizes = [32, 12], strides = [1, 1]} : vector<32x144xf32> to vector<32x12xf32>
    %280 = vector.shape_cast %279 : vector<32x12xf32> to vector<4x8x12xf32>
    %281 = vector.extract_strided_slice %229 {offsets = [0, 72], sizes = [32, 12], strides = [1, 1]} : vector<32x144xf32> to vector<32x12xf32>
    %282 = vector.shape_cast %281 : vector<32x12xf32> to vector<4x8x12xf32>
    %283 = vector.extract_strided_slice %229 {offsets = [0, 120], sizes = [32, 12], strides = [1, 1]} : vector<32x144xf32> to vector<32x12xf32>
    %284 = vector.shape_cast %283 : vector<32x12xf32> to vector<4x8x12xf32>
    "tpu.trace_start"() <{level = 10 : i32, message = "bqd,bkd->bqk"}> : () -> ()
    %cst_123 = arith.constant dense<0.000000e+00> : vector<4x8x8xf32>
    %285 = tpu.matmul %280, %282, %cst_123 {dimension_numbers = #tpu.dot_dimension_numbers<[2], [2], [1], [1], [0, 0, 0, 1, 1, 1], [0], [0]>} : vector<4x8x12xf32>, vector<4x8x12xf32>, vector<4x8x8xf32> -> vector<4x8x8xf32>
    "tpu.trace_stop"() : () -> ()
    %cst_124 = arith.constant 0.288675129 : f32
    %286 = vector.broadcast %cst_124 : f32 to vector<4x8x8xf32>
    %287 = arith.mulf %285, %286 : vector<4x8x8xf32>
    %cst_125 = arith.constant dense<0xFF800000> : vector<4x8xf32>
    %288 = vector.multi_reduction <maximumf>, %287, %cst_125 [2] : vector<4x8x8xf32> to vector<4x8xf32>
    %289 = vector.shape_cast %288 : vector<4x8xf32> to vector<4x8x1xf32>
    %290 = vector.broadcast %289 : vector<4x8x1xf32> to vector<4x8x8xf32>
    %291 = arith.subf %287, %290 : vector<4x8x8xf32>
    %292 = math.exp %291 : vector<4x8x8xf32>
    %cst_126 = arith.constant dense<0.000000e+00> : vector<4x8xf32>
    %293 = vector.multi_reduction <add>, %292, %cst_126 [2] : vector<4x8x8xf32> to vector<4x8xf32>
    %294 = vector.shape_cast %293 : vector<4x8xf32> to vector<4x8x1xf32>
    %295 = vector.broadcast %294 : vector<4x8x1xf32> to vector<4x8x8xf32>
    %296 = arith.divf %292, %295 : vector<4x8x8xf32>
    "tpu.trace_start"() <{level = 10 : i32, message = "bqk,bkd->bqd"}> : () -> ()
    %cst_127 = arith.constant dense<0.000000e+00> : vector<4x8x12xf32>
    %297 = tpu.matmul %296, %284, %cst_127 {dimension_numbers = #tpu.dot_dimension_numbers<[2], [1], [1], [2], [0, 0, 0, 1, 1, 2], [0], [0]>} : vector<4x8x8xf32>, vector<4x8x12xf32>, vector<4x8x12xf32> -> vector<4x8x12xf32>
    "tpu.trace_stop"() : () -> ()
    %298 = vector.shape_cast %297 : vector<4x8x12xf32> to vector<32x12xf32>
    %c2_128 = arith.constant 2 : index
    %c0_129 = arith.constant 0 : index
    %c0_130 = arith.constant 0 : index
    %299 = vector.load %arg23[%c2_128, %c0_129, %c0_130] : memref<4x12x48xf32, #tpu.memory_space<vmem>>, vector<1x12x48xf32>
    %300 = vector.shape_cast %299 : vector<1x12x48xf32> to vector<12x48xf32>
    %cst_131 = arith.constant dense<0.000000e+00> : vector<32x48xf32>
    %301 = tpu.matmul %298, %300, %cst_131 {dimension_numbers = #tpu.dot_dimension_numbers<[1], [0], [0], [1], [0, 0, 1, 1], [], []>} : vector<32x12xf32>, vector<12x48xf32>, vector<32x48xf32> -> vector<32x48xf32>
    %302 = arith.addf %278, %301 : vector<32x48xf32>
    %303 = vector.extract_strided_slice %229 {offsets = [0, 36], sizes = [32, 12], strides = [1, 1]} : vector<32x144xf32> to vector<32x12xf32>
    %304 = vector.shape_cast %303 : vector<32x12xf32> to vector<4x8x12xf32>
    %305 = vector.extract_strided_slice %229 {offsets = [0, 84], sizes = [32, 12], strides = [1, 1]} : vector<32x144xf32> to vector<32x12xf32>
    %306 = vector.shape_cast %305 : vector<32x12xf32> to vector<4x8x12xf32>
    %307 = vector.extract_strided_slice %229 {offsets = [0, 132], sizes = [32, 12], strides = [1, 1]} : vector<32x144xf32> to vector<32x12xf32>
    %308 = vector.shape_cast %307 : vector<32x12xf32> to vector<4x8x12xf32>
    "tpu.trace_start"() <{level = 10 : i32, message = "bqd,bkd->bqk"}> : () -> ()
    %cst_132 = arith.constant dense<0.000000e+00> : vector<4x8x8xf32>
    %309 = tpu.matmul %304, %306, %cst_132 {dimension_numbers = #tpu.dot_dimension_numbers<[2], [2], [1], [1], [0, 0, 0, 1, 1, 1], [0], [0]>} : vector<4x8x12xf32>, vector<4x8x12xf32>, vector<4x8x8xf32> -> vector<4x8x8xf32>
    "tpu.trace_stop"() : () -> ()
    %cst_133 = arith.constant 0.288675129 : f32
    %310 = vector.broadcast %cst_133 : f32 to vector<4x8x8xf32>
    %311 = arith.mulf %309, %310 : vector<4x8x8xf32>
    %cst_134 = arith.constant dense<0xFF800000> : vector<4x8xf32>
    %312 = vector.multi_reduction <maximumf>, %311, %cst_134 [2] : vector<4x8x8xf32> to vector<4x8xf32>
    %313 = vector.shape_cast %312 : vector<4x8xf32> to vector<4x8x1xf32>
    %314 = vector.broadcast %313 : vector<4x8x1xf32> to vector<4x8x8xf32>
    %315 = arith.subf %311, %314 : vector<4x8x8xf32>
    %316 = math.exp %315 : vector<4x8x8xf32>
    %cst_135 = arith.constant dense<0.000000e+00> : vector<4x8xf32>
    %317 = vector.multi_reduction <add>, %316, %cst_135 [2] : vector<4x8x8xf32> to vector<4x8xf32>
    %318 = vector.shape_cast %317 : vector<4x8xf32> to vector<4x8x1xf32>
    %319 = vector.broadcast %318 : vector<4x8x1xf32> to vector<4x8x8xf32>
    %320 = arith.divf %316, %319 : vector<4x8x8xf32>
    "tpu.trace_start"() <{level = 10 : i32, message = "bqk,bkd->bqd"}> : () -> ()
    %cst_136 = arith.constant dense<0.000000e+00> : vector<4x8x12xf32>
    %321 = tpu.matmul %320, %308, %cst_136 {dimension_numbers = #tpu.dot_dimension_numbers<[2], [1], [1], [2], [0, 0, 0, 1, 1, 2], [0], [0]>} : vector<4x8x8xf32>, vector<4x8x12xf32>, vector<4x8x12xf32> -> vector<4x8x12xf32>
    "tpu.trace_stop"() : () -> ()
    %322 = vector.shape_cast %321 : vector<4x8x12xf32> to vector<32x12xf32>
    %c3_137 = arith.constant 3 : index
    %c0_138 = arith.constant 0 : index
    %c0_139 = arith.constant 0 : index
    %323 = vector.load %arg23[%c3_137, %c0_138, %c0_139] : memref<4x12x48xf32, #tpu.memory_space<vmem>>, vector<1x12x48xf32>
    %324 = vector.shape_cast %323 : vector<1x12x48xf32> to vector<12x48xf32>
    %cst_140 = arith.constant dense<0.000000e+00> : vector<32x48xf32>
    %325 = tpu.matmul %322, %324, %cst_140 {dimension_numbers = #tpu.dot_dimension_numbers<[1], [0], [0], [1], [0, 0, 1, 1], [], []>} : vector<32x12xf32>, vector<12x48xf32>, vector<32x48xf32> -> vector<32x48xf32>
    %326 = arith.addf %302, %325 : vector<32x48xf32>
    %327 = arith.addf %202, %326 : vector<32x48xf32>
    %c0_141 = arith.constant 0 : index
    %c0_142 = arith.constant 0 : index
    %328 = vector.load %arg24[%c0_141, %c0_142] : memref<1x48xf32, #tpu.memory_space<vmem>>, vector<1x48xf32>
    %329 = vector.broadcast %328 : vector<1x48xf32> to vector<32x48xf32>
    %330 = arith.addf %327, %329 : vector<32x48xf32>
    %c0_143 = arith.constant 0 : index
    %c0_144 = arith.constant 0 : index
    %331 = vector.load %arg25[%c0_143, %c0_144] : memref<1x48xf32, #tpu.memory_space<vmem>>, vector<1x48xf32>
    %c0_145 = arith.constant 0 : index
    %c0_146 = arith.constant 0 : index
    %332 = vector.load %arg26[%c0_145, %c0_146] : memref<1x48xf32, #tpu.memory_space<vmem>>, vector<1x48xf32>
    %cst_147 = arith.constant dense<0.000000e+00> : vector<32xf32>
    %333 = vector.multi_reduction <add>, %330, %cst_147 [1] : vector<32x48xf32> to vector<32xf32>
    %334 = vector.shape_cast %333 : vector<32xf32> to vector<32x1xf32>
    %cst_148 = arith.constant 4.800000e+01 : f32
    %335 = vector.broadcast %cst_148 : f32 to vector<32x1xf32>
    %336 = arith.divf %334, %335 : vector<32x1xf32>
    %337 = vector.broadcast %336 : vector<32x1xf32> to vector<32x48xf32>
    %338 = arith.subf %330, %337 : vector<32x48xf32>
    %339 = arith.mulf %338, %338 : vector<32x48xf32>
    %cst_149 = arith.constant dense<0.000000e+00> : vector<32xf32>
    %340 = vector.multi_reduction <add>, %339, %cst_149 [1] : vector<32x48xf32> to vector<32xf32>
    %341 = vector.shape_cast %340 : vector<32xf32> to vector<32x1xf32>
    %cst_150 = arith.constant 4.800000e+01 : f32
    %342 = vector.broadcast %cst_150 : f32 to vector<32x1xf32>
    %343 = arith.divf %341, %342 : vector<32x1xf32>
    %cst_151 = arith.constant 9.99999974E-6 : f32
    %344 = vector.broadcast %cst_151 : f32 to vector<32x1xf32>
    %345 = arith.addf %343, %344 : vector<32x1xf32>
    %346 = math.rsqrt %345 : vector<32x1xf32>
    %347 = vector.broadcast %346 : vector<32x1xf32> to vector<32x48xf32>
    %348 = arith.mulf %338, %347 : vector<32x48xf32>
    %349 = vector.broadcast %331 : vector<1x48xf32> to vector<32x48xf32>
    %350 = arith.mulf %348, %349 : vector<32x48xf32>
    %351 = vector.broadcast %332 : vector<1x48xf32> to vector<32x48xf32>
    %352 = arith.addf %350, %351 : vector<32x48xf32>
    %c0_152 = arith.constant 0 : index
    %c0_153 = arith.constant 0 : index
    %353 = vector.load %arg27[%c0_152, %c0_153] : memref<48x96xf32, #tpu.memory_space<vmem>>, vector<48x96xf32>
    %cst_154 = arith.constant dense<0.000000e+00> : vector<32x96xf32>
    %354 = tpu.matmul %352, %353, %cst_154 {dimension_numbers = #tpu.dot_dimension_numbers<[1], [0], [0], [1], [0, 0, 1, 1], [], []>} : vector<32x48xf32>, vector<48x96xf32>, vector<32x96xf32> -> vector<32x96xf32>
    %c0_155 = arith.constant 0 : index
    %c0_156 = arith.constant 0 : index
    %355 = vector.load %arg28[%c0_155, %c0_156] : memref<1x96xf32, #tpu.memory_space<vmem>>, vector<1x96xf32>
    %356 = vector.broadcast %355 : vector<1x96xf32> to vector<32x96xf32>
    %357 = arith.addf %354, %356 : vector<32x96xf32>
    %358 = arith.mulf %357, %357 : vector<32x96xf32>
    %359 = arith.mulf %357, %358 : vector<32x96xf32>
    %cst_157 = arith.constant 4.471500e-02 : f32
    %360 = vector.broadcast %cst_157 : f32 to vector<32x96xf32>
    %361 = arith.mulf %360, %359 : vector<32x96xf32>
    %362 = arith.addf %357, %361 : vector<32x96xf32>
    %cst_158 = arith.constant 0.797884583 : f32
    %363 = vector.broadcast %cst_158 : f32 to vector<32x96xf32>
    %364 = arith.mulf %363, %362 : vector<32x96xf32>
    %365 = math.tanh %364 : vector<32x96xf32>
    %cst_159 = arith.constant 1.000000e+00 : f32
    %366 = vector.broadcast %cst_159 : f32 to vector<32x96xf32>
    %367 = arith.addf %366, %365 : vector<32x96xf32>
    %cst_160 = arith.constant 5.000000e-01 : f32
    %368 = vector.broadcast %cst_160 : f32 to vector<32x96xf32>
    %369 = arith.mulf %368, %367 : vector<32x96xf32>
    %370 = arith.mulf %357, %369 : vector<32x96xf32>
    %c0_161 = arith.constant 0 : index
    %c0_162 = arith.constant 0 : index
    %371 = vector.load %arg29[%c0_161, %c0_162] : memref<96x48xf32, #tpu.memory_space<vmem>>, vector<96x48xf32>
    %cst_163 = arith.constant dense<0.000000e+00> : vector<32x48xf32>
    %372 = tpu.matmul %370, %371, %cst_163 {dimension_numbers = #tpu.dot_dimension_numbers<[1], [0], [0], [1], [0, 0, 1, 1], [], []>} : vector<32x96xf32>, vector<96x48xf32>, vector<32x48xf32> -> vector<32x48xf32>
    %c0_164 = arith.constant 0 : index
    %c0_165 = arith.constant 0 : index
    %373 = vector.load %arg30[%c0_164, %c0_165] : memref<1x48xf32, #tpu.memory_space<vmem>>, vector<1x48xf32>
    %374 = vector.broadcast %373 : vector<1x48xf32> to vector<32x48xf32>
    %375 = arith.addf %372, %374 : vector<32x48xf32>
    %376 = arith.addf %330, %375 : vector<32x48xf32>
    %377 = vector.extract_strided_slice %376 {offsets = [0, 0], sizes = [16, 48], strides = [1, 1]} : vector<32x48xf32> to vector<16x48xf32>
    %378 = arith.addf %377, %25 : vector<16x48xf32>
    %379 = vector.extract_strided_slice %376 {offsets = [16, 0], sizes = [16, 48], strides = [1, 1]} : vector<32x48xf32> to vector<16x48xf32>
    %380 = arith.addf %379, %5 : vector<16x48xf32>
    %381 = arith.addf %4, %5 : vector<16x48xf32>
    %382 = tpu.concatenate %378, %380, %381 in 0 : vector<16x48xf32>, vector<16x48xf32>, vector<16x48xf32> -> vector<48x48xf32>
    %cst_166 = arith.constant dense<0.000000e+00> : vector<48xf32>
    %383 = vector.multi_reduction <add>, %382, %cst_166 [1] : vector<48x48xf32> to vector<48xf32>
    %384 = vector.shape_cast %383 : vector<48xf32> to vector<48x1xf32>
    %cst_167 = arith.constant 4.800000e+01 : f32
    %385 = vector.broadcast %cst_167 : f32 to vector<48x1xf32>
    %386 = arith.divf %384, %385 : vector<48x1xf32>
    %387 = vector.broadcast %386 : vector<48x1xf32> to vector<48x48xf32>
    %388 = arith.subf %382, %387 : vector<48x48xf32>
    %389 = arith.mulf %388, %388 : vector<48x48xf32>
    %cst_168 = arith.constant dense<0.000000e+00> : vector<48xf32>
    %390 = vector.multi_reduction <add>, %389, %cst_168 [1] : vector<48x48xf32> to vector<48xf32>
    %391 = vector.shape_cast %390 : vector<48xf32> to vector<48x1xf32>
    %cst_169 = arith.constant 4.800000e+01 : f32
    %392 = vector.broadcast %cst_169 : f32 to vector<48x1xf32>
    %393 = arith.divf %391, %392 : vector<48x1xf32>
    %cst_170 = arith.constant 9.99999974E-6 : f32
    %394 = vector.broadcast %cst_170 : f32 to vector<48x1xf32>
    %395 = arith.addf %393, %394 : vector<48x1xf32>
    %396 = math.rsqrt %395 : vector<48x1xf32>
    %397 = vector.broadcast %396 : vector<48x1xf32> to vector<48x48xf32>
    %398 = arith.mulf %388, %397 : vector<48x48xf32>
    %399 = vector.broadcast %0 : vector<1x48xf32> to vector<48x48xf32>
    %400 = arith.mulf %398, %399 : vector<48x48xf32>
    %401 = vector.broadcast %1 : vector<1x48xf32> to vector<48x48xf32>
    %402 = arith.addf %400, %401 : vector<48x48xf32>
    %403 = vector.shape_cast %402 : vector<48x48xf32> to vector<6x8x48xf32>
    %cst_171 = arith.constant 0.000000e+00 : f32
    %404 = vector.broadcast %cst_171 : f32 to vector<6x64xf32>
    %405 = vector.extract_strided_slice %403 {offsets = [0, 0, 0], sizes = [6, 1, 48], strides = [1, 1, 1]} : vector<6x8x48xf32> to vector<6x1x48xf32>
    %406 = vector.shape_cast %405 : vector<6x1x48xf32> to vector<6x48xf32>
    %c0_172 = arith.constant 0 : index
    %c0_173 = arith.constant 0 : index
    %407 = vector.load %arg31[%c0_172, %c0_173] : memref<384x64xf32, #tpu.memory_space<vmem>>, vector<48x64xf32>
    %cst_174 = arith.constant dense<0.000000e+00> : vector<6x64xf32>
    %408 = tpu.matmul %406, %407, %cst_174 {dimension_numbers = #tpu.dot_dimension_numbers<[1], [0], [0], [1], [0, 0, 1, 1], [], []>} : vector<6x48xf32>, vector<48x64xf32>, vector<6x64xf32> -> vector<6x64xf32>
    %409 = arith.addf %404, %408 : vector<6x64xf32>
    %410 = vector.extract_strided_slice %403 {offsets = [0, 1, 0], sizes = [6, 1, 48], strides = [1, 1, 1]} : vector<6x8x48xf32> to vector<6x1x48xf32>
    %411 = vector.shape_cast %410 : vector<6x1x48xf32> to vector<6x48xf32>
    %c48 = arith.constant 48 : index
    %c0_175 = arith.constant 0 : index
    %412 = vector.load %arg31[%c48, %c0_175] : memref<384x64xf32, #tpu.memory_space<vmem>>, vector<48x64xf32>
    %cst_176 = arith.constant dense<0.000000e+00> : vector<6x64xf32>
    %413 = tpu.matmul %411, %412, %cst_176 {dimension_numbers = #tpu.dot_dimension_numbers<[1], [0], [0], [1], [0, 0, 1, 1], [], []>} : vector<6x48xf32>, vector<48x64xf32>, vector<6x64xf32> -> vector<6x64xf32>
    %414 = arith.addf %409, %413 : vector<6x64xf32>
    %415 = vector.extract_strided_slice %403 {offsets = [0, 2, 0], sizes = [6, 1, 48], strides = [1, 1, 1]} : vector<6x8x48xf32> to vector<6x1x48xf32>
    %416 = vector.shape_cast %415 : vector<6x1x48xf32> to vector<6x48xf32>
    %c96 = arith.constant 96 : index
    %c0_177 = arith.constant 0 : index
    %417 = vector.load %arg31[%c96, %c0_177] : memref<384x64xf32, #tpu.memory_space<vmem>>, vector<48x64xf32>
    %cst_178 = arith.constant dense<0.000000e+00> : vector<6x64xf32>
    %418 = tpu.matmul %416, %417, %cst_178 {dimension_numbers = #tpu.dot_dimension_numbers<[1], [0], [0], [1], [0, 0, 1, 1], [], []>} : vector<6x48xf32>, vector<48x64xf32>, vector<6x64xf32> -> vector<6x64xf32>
    %419 = arith.addf %414, %418 : vector<6x64xf32>
    %420 = vector.extract_strided_slice %403 {offsets = [0, 3, 0], sizes = [6, 1, 48], strides = [1, 1, 1]} : vector<6x8x48xf32> to vector<6x1x48xf32>
    %421 = vector.shape_cast %420 : vector<6x1x48xf32> to vector<6x48xf32>
    %c144 = arith.constant 144 : index
    %c0_179 = arith.constant 0 : index
    %422 = vector.load %arg31[%c144, %c0_179] : memref<384x64xf32, #tpu.memory_space<vmem>>, vector<48x64xf32>
    %cst_180 = arith.constant dense<0.000000e+00> : vector<6x64xf32>
    %423 = tpu.matmul %421, %422, %cst_180 {dimension_numbers = #tpu.dot_dimension_numbers<[1], [0], [0], [1], [0, 0, 1, 1], [], []>} : vector<6x48xf32>, vector<48x64xf32>, vector<6x64xf32> -> vector<6x64xf32>
    %424 = arith.addf %419, %423 : vector<6x64xf32>
    %425 = vector.extract_strided_slice %403 {offsets = [0, 4, 0], sizes = [6, 1, 48], strides = [1, 1, 1]} : vector<6x8x48xf32> to vector<6x1x48xf32>
    %426 = vector.shape_cast %425 : vector<6x1x48xf32> to vector<6x48xf32>
    %c192 = arith.constant 192 : index
    %c0_181 = arith.constant 0 : index
    %427 = vector.load %arg31[%c192, %c0_181] : memref<384x64xf32, #tpu.memory_space<vmem>>, vector<48x64xf32>
    %cst_182 = arith.constant dense<0.000000e+00> : vector<6x64xf32>
    %428 = tpu.matmul %426, %427, %cst_182 {dimension_numbers = #tpu.dot_dimension_numbers<[1], [0], [0], [1], [0, 0, 1, 1], [], []>} : vector<6x48xf32>, vector<48x64xf32>, vector<6x64xf32> -> vector<6x64xf32>
    %429 = arith.addf %424, %428 : vector<6x64xf32>
    %430 = vector.extract_strided_slice %403 {offsets = [0, 5, 0], sizes = [6, 1, 48], strides = [1, 1, 1]} : vector<6x8x48xf32> to vector<6x1x48xf32>
    %431 = vector.shape_cast %430 : vector<6x1x48xf32> to vector<6x48xf32>
    %c240 = arith.constant 240 : index
    %c0_183 = arith.constant 0 : index
    %432 = vector.load %arg31[%c240, %c0_183] : memref<384x64xf32, #tpu.memory_space<vmem>>, vector<48x64xf32>
    %cst_184 = arith.constant dense<0.000000e+00> : vector<6x64xf32>
    %433 = tpu.matmul %431, %432, %cst_184 {dimension_numbers = #tpu.dot_dimension_numbers<[1], [0], [0], [1], [0, 0, 1, 1], [], []>} : vector<6x48xf32>, vector<48x64xf32>, vector<6x64xf32> -> vector<6x64xf32>
    %434 = arith.addf %429, %433 : vector<6x64xf32>
    %435 = vector.extract_strided_slice %403 {offsets = [0, 6, 0], sizes = [6, 1, 48], strides = [1, 1, 1]} : vector<6x8x48xf32> to vector<6x1x48xf32>
    %436 = vector.shape_cast %435 : vector<6x1x48xf32> to vector<6x48xf32>
    %c288 = arith.constant 288 : index
    %c0_185 = arith.constant 0 : index
    %437 = vector.load %arg31[%c288, %c0_185] : memref<384x64xf32, #tpu.memory_space<vmem>>, vector<48x64xf32>
    %cst_186 = arith.constant dense<0.000000e+00> : vector<6x64xf32>
    %438 = tpu.matmul %436, %437, %cst_186 {dimension_numbers = #tpu.dot_dimension_numbers<[1], [0], [0], [1], [0, 0, 1, 1], [], []>} : vector<6x48xf32>, vector<48x64xf32>, vector<6x64xf32> -> vector<6x64xf32>
    %439 = arith.addf %434, %438 : vector<6x64xf32>
    %440 = vector.extract_strided_slice %403 {offsets = [0, 7, 0], sizes = [6, 1, 48], strides = [1, 1, 1]} : vector<6x8x48xf32> to vector<6x1x48xf32>
    %441 = vector.shape_cast %440 : vector<6x1x48xf32> to vector<6x48xf32>
    %c336 = arith.constant 336 : index
    %c0_187 = arith.constant 0 : index
    %442 = vector.load %arg31[%c336, %c0_187] : memref<384x64xf32, #tpu.memory_space<vmem>>, vector<48x64xf32>
    %cst_188 = arith.constant dense<0.000000e+00> : vector<6x64xf32>
    %443 = tpu.matmul %441, %442, %cst_188 {dimension_numbers = #tpu.dot_dimension_numbers<[1], [0], [0], [1], [0, 0, 1, 1], [], []>} : vector<6x48xf32>, vector<48x64xf32>, vector<6x64xf32> -> vector<6x64xf32>
    %444 = arith.addf %439, %443 : vector<6x64xf32>
    %c0_189 = arith.constant 0 : index
    %c0_190 = arith.constant 0 : index
    %445 = vector.load %arg32[%c0_189, %c0_190] : memref<1x64xf32, #tpu.memory_space<vmem>>, vector<1x64xf32>
    %446 = vector.broadcast %445 : vector<1x64xf32> to vector<6x64xf32>
    %447 = arith.addf %444, %446 : vector<6x64xf32>
    %cst_191 = arith.constant 0.000000e+00 : f32
    %448 = vector.broadcast %cst_191 : f32 to vector<6x64xf32>
    %449 = arith.maximumf %447, %448 : vector<6x64xf32>
    %c0_192 = arith.constant 0 : index
    %c0_193 = arith.constant 0 : index
    %450 = vector.load %arg33[%c0_192, %c0_193] : memref<64x4xf32, #tpu.memory_space<vmem>>, vector<64x4xf32>
    %cst_194 = arith.constant dense<0.000000e+00> : vector<6x4xf32>
    %451 = tpu.matmul %449, %450, %cst_194 {dimension_numbers = #tpu.dot_dimension_numbers<[1], [0], [0], [1], [0, 0, 1, 1], [], []>} : vector<6x64xf32>, vector<64x4xf32>, vector<6x4xf32> -> vector<6x4xf32>
    %c0_195 = arith.constant 0 : index
    %c0_196 = arith.constant 0 : index
    %452 = vector.load %arg34[%c0_195, %c0_196] : memref<1x4xf32, #tpu.memory_space<vmem>>, vector<1x4xf32>
    %453 = vector.broadcast %452 : vector<1x4xf32> to vector<6x4xf32>
    %454 = arith.addf %451, %453 : vector<6x4xf32>
    %c0_197 = arith.constant 0 : index
    %c0_198 = arith.constant 0 : index
    %455 = vector.load %arg35[%c0_197, %c0_198] : memref<6x4xf32, #tpu.memory_space<vmem>>, vector<6x4xf32>
    tpu.vector_store %arg35[%c0_197, %c0_198], %454 {strides = array<i32>} : memref<6x4xf32, #tpu.memory_space<vmem>>, vector<6x4xf32>,
    return
  }
}

</mosaic_0001>

<llo_original>
// kernel: auxiliary_classifier_forward.1
$region0: #{auxiliary_classifier_forward.1}
  #allocation0 [shape = 'u32[]', space=smem, size = 0x4, offset = 0x4, fixed_abs, tag = 'smem constant byte address 0x4 - core index']
  #allocation1 [shape = 'u32[144,128]{1,0:T(1,128)}', space=vmem, size = 0x12000, scoped, tag = 'internal scratch']
  %s0 = inlined_call_operand.smem [shape: u32[36], index: -1, kind: input, shape index: {}]
  %s1 = sld [smem:[%s0]]
  %s2 = scalar_lea.smem %s0, 1
  %s3 = sld [smem:[%s2]]
  %s4 = scalar_lea.smem %s0, 2
  %s5 = sld [smem:[%s4]]
  %s6 = scalar_lea.smem %s0, 3
  %s7 = sld [smem:[%s6]]
  %s8 = scalar_lea.smem %s0, 4
  %s9 = sld [smem:[%s8]]
  %s10 = scalar_lea.smem %s0, 5
  %s11 = sld [smem:[%s10]]
  %s12 = scalar_lea.smem %s0, 6
  %s13 = sld [smem:[%s12]]
  %s14 = scalar_lea.smem %s0, 7
  %s15 = sld [smem:[%s14]]
  %s16 = scalar_lea.smem %s0, 8
  %s17 = sld [smem:[%s16]]
  %s18 = scalar_lea.smem %s0, 9
  %s19 = sld [smem:[%s18]]
  %s20 = scalar_lea.smem %s0, 10
  %s21 = sld [smem:[%s20]]
  %s22 = scalar_lea.smem %s0, 11
  %s23 = sld [smem:[%s22]]
  %s24 = scalar_lea.smem %s0, 12
  %s25 = sld [smem:[%s24]]
  %s26 = scalar_lea.smem %s0, 13
  %s27 = sld [smem:[%s26]]
  %s28 = scalar_lea.smem %s0, 14
  %s29 = sld [smem:[%s28]]
  %s30 = scalar_lea.smem %s0, 15
  %s31 = sld [smem:[%s30]]
  %s32 = scalar_lea.smem %s0, 16
  %s33 = sld [smem:[%s32]]
  %s34 = scalar_lea.smem %s0, 17
  %s35 = sld [smem:[%s34]]
  %s36 = scalar_lea.smem %s0, 18
  %s37 = sld [smem:[%s36]]
  %s38 = scalar_lea.smem %s0, 19
  %s39 = sld [smem:[%s38]]
  %s40 = scalar_lea.smem %s0, 20
  %s41 = sld [smem:[%s40]]
  %s42 = scalar_lea.smem %s0, 21
  %s43 = sld [smem:[%s42]]
  %s44 = scalar_lea.smem %s0, 22
  %s45 = sld [smem:[%s44]]
  %s46 = scalar_lea.smem %s0, 23
  %s47 = sld [smem:[%s46]]
  %s48 = scalar_lea.smem %s0, 24
  %s49 = sld [smem:[%s48]]
  %s50 = scalar_lea.smem %s0, 25
  %s51 = sld [smem:[%s50]]
  %s52 = scalar_lea.smem %s0, 26
  %s53 = sld [smem:[%s52]]
  %s54 = scalar_lea.smem %s0, 27
  %s55 = sld [smem:[%s54]]
  %s56 = scalar_lea.smem %s0, 28
  %s57 = sld [smem:[%s56]]
  %s58 = scalar_lea.smem %s0, 29
  %s59 = sld [smem:[%s58]]
  %s60 = scalar_lea.smem %s0, 30
  %s61 = sld [smem:[%s60]]
  %s62 = scalar_lea.smem %s0, 31
  %s63 = sld [smem:[%s62]]
  %s64 = scalar_lea.smem %s0, 32
  %s65 = sld [smem:[%s64]]
  %s66 = scalar_lea.smem %s0, 33
  %s67 = sld [smem:[%s66]]
  %s68 = scalar_lea.smem %s0, 34
  %s69 = sld [smem:[%s68]]
  %s70 = scalar_lea.smem %s0, 35
  %s71 = sld [smem:[%s70]]
  %s72 = sld [smem:[#allocation0]]
  $region150: #{auxiliary_classifier_forward.1} parent=0
    _
  %s74 = ssub.s32 1, %s72
  %s75 = scalar_select 0, %s74, %s72
  // Predicated region
  $region2: #{auxiliary_classifier_forward.1} parent=0 // pred_check
    _
  $region3: #{auxiliary_classifier_forward.1} parent=0 // pred_check_branch
    %77 = sbr.rel (0) target = $region5
  $region4: #{auxiliary_classifier_forward.1} parent=0 // pred_region
    _
  $region5: #{auxiliary_classifier_forward.1} parent=0 // pred_fallthru
    _
  // Predicated region
  $region6: #{auxiliary_classifier_forward.1} parent=0 // pred_check
    _
  $region7: #{auxiliary_classifier_forward.1} parent=0 // pred_check_branch
    %79 = sbr.rel (0) target = $region9
  $region8: #{auxiliary_classifier_forward.1} parent=0 // pred_region
    _
  $region9: #{auxiliary_classifier_forward.1} parent=0 // pred_fallthru
    _
  // Predicated region
  $region10: #{auxiliary_classifier_forward.1} parent=0 // pred_check
    _
  $region11: #{auxiliary_classifier_forward.1} parent=0 // pred_check_branch
    %81 = sbr.rel (0) target = $region13
  $region12: #{auxiliary_classifier_forward.1} parent=0 // pred_region
    _
  $region13: #{auxiliary_classifier_forward.1} parent=0 // pred_fallthru
    _
  // Predicated region
  $region14: #{auxiliary_classifier_forward.1} parent=0 // pred_check
    _
  $region15: #{auxiliary_classifier_forward.1} parent=0 // pred_check_branch
    %83 = sbr.rel (0) target = $region17
  $region16: #{auxiliary_classifier_forward.1} parent=0 // pred_region
    _
  $region17: #{auxiliary_classifier_forward.1} parent=0 // pred_fallthru
    _
  // Predicated region
  $region18: #{auxiliary_classifier_forward.1} parent=0 // pred_check
    _
  $region19: #{auxiliary_classifier_forward.1} parent=0 // pred_check_branch
    %85 = sbr.rel (0) target = $region21
  $region20: #{auxiliary_classifier_forward.1} parent=0 // pred_region
    _
  $region21: #{auxiliary_classifier_forward.1} parent=0 // pred_fallthru
    _
  // Predicated region
  $region22: #{auxiliary_classifier_forward.1} parent=0 // pred_check
    _
  $region23: #{auxiliary_classifier_forward.1} parent=0 // pred_check_branch
    %87 = sbr.rel (0) target = $region25
  $region24: #{auxiliary_classifier_forward.1} parent=0 // pred_region
    _
  $region25: #{auxiliary_classifier_forward.1} parent=0 // pred_fallthru
    _
  // Predicated region
  $region26: #{auxiliary_classifier_forward.1} parent=0 // pred_check
    _
  $region27: #{auxiliary_classifier_forward.1} parent=0 // pred_check_branch
    %89 = sbr.rel (0) target = $region29
  $region28: #{auxiliary_classifier_forward.1} parent=0 // pred_region
    _
  $region29: #{auxiliary_classifier_forward.1} parent=0 // pred_fallthru
    _
  // Predicated region
  $region30: #{auxiliary_classifier_forward.1} parent=0 // pred_check
    _
  $region31: #{auxiliary_classifier_forward.1} parent=0 // pred_check_branch
    %91 = sbr.rel (0) target = $region33
  $region32: #{auxiliary_classifier_forward.1} parent=0 // pred_region
    _
  $region33: #{auxiliary_classifier_forward.1} parent=0 // pred_fallthru
    _
  // Predicated region
  $region34: #{auxiliary_classifier_forward.1} parent=0 // pred_check
    _
  $region35: #{auxiliary_classifier_forward.1} parent=0 // pred_check_branch
    %93 = sbr.rel (0) target = $region37
  $region36: #{auxiliary_classifier_forward.1} parent=0 // pred_region
    _
  $region37: #{auxiliary_classifier_forward.1} parent=0 // pred_fallthru
    _
  // Predicated region
  $region38: #{auxiliary_classifier_forward.1} parent=0 // pred_check
    _
  $region39: #{auxiliary_classifier_forward.1} parent=0 // pred_check_branch
    %95 = sbr.rel (0) target = $region41
  $region40: #{auxiliary_classifier_forward.1} parent=0 // pred_region
    _
  $region41: #{auxiliary_classifier_forward.1} parent=0 // pred_fallthru
    _
  // Predicated region
  $region42: #{auxiliary_classifier_forward.1} parent=0 // pred_check
    _
  $region43: #{auxiliary_classifier_forward.1} parent=0 // pred_check_branch
    %97 = sbr.rel (0) target = $region45
  $region44: #{auxiliary_classifier_forward.1} parent=0 // pred_region
    _
  $region45: #{auxiliary_classifier_forward.1} parent=0 // pred_fallthru
    _
  // Predicated region
  $region46: #{auxiliary_classifier_forward.1} parent=0 // pred_check
    _
  $region47: #{auxiliary_classifier_forward.1} parent=0 // pred_check_branch
    %99 = sbr.rel (0) target = $region49
  $region48: #{auxiliary_classifier_forward.1} parent=0 // pred_region
    _
  $region49: #{auxiliary_classifier_forward.1} parent=0 // pred_fallthru
    _
  // Predicated region
  $region50: #{auxiliary_classifier_forward.1} parent=0 // pred_check
    _
  $region51: #{auxiliary_classifier_forward.1} parent=0 // pred_check_branch
    %101 = sbr.rel (0) target = $region53
  $region52: #{auxiliary_classifier_forward.1} parent=0 // pred_region
    _
  $region53: #{auxiliary_classifier_forward.1} parent=0 // pred_fallthru
    _
  // Predicated region
  $region54: #{auxiliary_classifier_forward.1} parent=0 // pred_check
    _
  $region55: #{auxiliary_classifier_forward.1} parent=0 // pred_check_branch
    %103 = sbr.rel (0) target = $region57
  $region56: #{auxiliary_classifier_forward.1} parent=0 // pred_region
    _
  $region57: #{auxiliary_classifier_forward.1} parent=0 // pred_fallthru
    _
  // Predicated region
  $region58: #{auxiliary_classifier_forward.1} parent=0 // pred_check
    _
  $region59: #{auxiliary_classifier_forward.1} parent=0 // pred_check_branch
    %105 = sbr.rel (0) target = $region61
  $region60: #{auxiliary_classifier_forward.1} parent=0 // pred_region
    _
  $region61: #{auxiliary_classifier_forward.1} parent=0 // pred_fallthru
    _
  // Predicated region
  $region62: #{auxiliary_classifier_forward.1} parent=0 // pred_check
    _
  $region63: #{auxiliary_classifier_forward.1} parent=0 // pred_check_branch
    %107 = sbr.rel (0) target = $region65
  $region64: #{auxiliary_classifier_forward.1} parent=0 // pred_region
    _
  $region65: #{auxiliary_classifier_forward.1} parent=0 // pred_fallthru
    _
  // Predicated region
  $region66: #{auxiliary_classifier_forward.1} parent=0 // pred_check
    _
  $region67: #{auxiliary_classifier_forward.1} parent=0 // pred_check_branch
    %109 = sbr.rel (0) target = $region69
  $region68: #{auxiliary_classifier_forward.1} parent=0 // pred_region
    _
  $region69: #{auxiliary_classifier_forward.1} parent=0 // pred_fallthru
    _
  // Predicated region
  $region70: #{auxiliary_classifier_forward.1} parent=0 // pred_check
    _
  $region71: #{auxiliary_classifier_forward.1} parent=0 // pred_check_branch
    %111 = sbr.rel (0) target = $region73
  $region72: #{auxiliary_classifier_forward.1} parent=0 // pred_region
    _
  $region73: #{auxiliary_classifier_forward.1} parent=0 // pred_fallthru
    _
  // Predicated region
  $region74: #{auxiliary_classifier_forward.1} parent=0 // pred_check
    _
  $region75: #{auxiliary_classifier_forward.1} parent=0 // pred_check_branch
    %113 = sbr.rel (0) target = $region77
  $region76: #{auxiliary_classifier_forward.1} parent=0 // pred_region
    _
  $region77: #{auxiliary_classifier_forward.1} parent=0 // pred_fallthru
    _
  // Predicated region
  $region78: #{auxiliary_classifier_forward.1} parent=0 // pred_check
    _
  $region79: #{auxiliary_classifier_forward.1} parent=0 // pred_check_branch
    %115 = sbr.rel (0) target = $region81
  $region80: #{auxiliary_classifier_forward.1} parent=0 // pred_region
    _
  $region81: #{auxiliary_classifier_forward.1} parent=0 // pred_fallthru
    _
  // Predicated region
  $region82: #{auxiliary_classifier_forward.1} parent=0 // pred_check
    _
  $region83: #{auxiliary_classifier_forward.1} parent=0 // pred_check_branch
    %117 = sbr.rel (0) target = $region85
  $region84: #{auxiliary_classifier_forward.1} parent=0 // pred_region
    _
  $region85: #{auxiliary_classifier_forward.1} parent=0 // pred_fallthru
    _
  // Predicated region
  $region86: #{auxiliary_classifier_forward.1} parent=0 // pred_check
    _
  $region87: #{auxiliary_classifier_forward.1} parent=0 // pred_check_branch
    %119 = sbr.rel (0) target = $region89
  $region88: #{auxiliary_classifier_forward.1} parent=0 // pred_region
    _
  $region89: #{auxiliary_classifier_forward.1} parent=0 // pred_fallthru
    _
  // Predicated region
  $region90: #{auxiliary_classifier_forward.1} parent=0 // pred_check
    _
  $region91: #{auxiliary_classifier_forward.1} parent=0 // pred_check_branch
    %121 = sbr.rel (0) target = $region93
  $region92: #{auxiliary_classifier_forward.1} parent=0 // pred_region
    _
  $region93: #{auxiliary_classifier_forward.1} parent=0 // pred_fallthru
    _
  // Predicated region
  $region94: #{auxiliary_classifier_forward.1} parent=0 // pred_check
    _
  $region95: #{auxiliary_classifier_forward.1} parent=0 // pred_check_branch
    %123 = sbr.rel (0) target = $region97
  $region96: #{auxiliary_classifier_forward.1} parent=0 // pred_region
    _
  $region97: #{auxiliary_classifier_forward.1} parent=0 // pred_fallthru
    _
  // Predicated region
  $region98: #{auxiliary_classifier_forward.1} parent=0 // pred_check
    _
  $region99: #{auxiliary_classifier_forward.1} parent=0 // pred_check_branch
    %125 = sbr.rel (0) target = $region101
  $region100: #{auxiliary_classifier_forward.1} parent=0 // pred_region
    _
  $region101: #{auxiliary_classifier_forward.1} parent=0 // pred_fallthru
    _
  // Predicated region
  $region102: #{auxiliary_classifier_forward.1} parent=0 // pred_check
    _
  $region103: #{auxiliary_classifier_forward.1} parent=0 // pred_check_branch
    %127 = sbr.rel (0) target = $region105
  $region104: #{auxiliary_classifier_forward.1} parent=0 // pred_region
    _
  $region105: #{auxiliary_classifier_forward.1} parent=0 // pred_fallthru
    _
  // Predicated region
  $region106: #{auxiliary_classifier_forward.1} parent=0 // pred_check
    _
  $region107: #{auxiliary_classifier_forward.1} parent=0 // pred_check_branch
    %129 = sbr.rel (0) target = $region109
  $region108: #{auxiliary_classifier_forward.1} parent=0 // pred_region
    _
  $region109: #{auxiliary_classifier_forward.1} parent=0 // pred_fallthru
    _
  // Predicated region
  $region110: #{auxiliary_classifier_forward.1} parent=0 // pred_check
    _
  $region111: #{auxiliary_classifier_forward.1} parent=0 // pred_check_branch
    %131 = sbr.rel (0) target = $region113
  $region112: #{auxiliary_classifier_forward.1} parent=0 // pred_region
    _
  $region113: #{auxiliary_classifier_forward.1} parent=0 // pred_fallthru
    _
  // Predicated region
  $region114: #{auxiliary_classifier_forward.1} parent=0 // pred_check
    _
  $region115: #{auxiliary_classifier_forward.1} parent=0 // pred_check_branch
    %133 = sbr.rel (0) target = $region117
  $region116: #{auxiliary_classifier_forward.1} parent=0 // pred_region
    _
  $region117: #{auxiliary_classifier_forward.1} parent=0 // pred_fallthru
    _
  // Predicated region
  $region118: #{auxiliary_classifier_forward.1} parent=0 // pred_check
    _
  $region119: #{auxiliary_classifier_forward.1} parent=0 // pred_check_branch
    %135 = sbr.rel (0) target = $region121
  $region120: #{auxiliary_classifier_forward.1} parent=0 // pred_region
    _
  $region121: #{auxiliary_classifier_forward.1} parent=0 // pred_fallthru
    _
  // Predicated region
  $region122: #{auxiliary_classifier_forward.1} parent=0 // pred_check
    _
  $region123: #{auxiliary_classifier_forward.1} parent=0 // pred_check_branch
    %137 = sbr.rel (0) target = $region125
  $region124: #{auxiliary_classifier_forward.1} parent=0 // pred_region
    _
  $region125: #{auxiliary_classifier_forward.1} parent=0 // pred_fallthru
    _
  // Predicated region
  $region126: #{auxiliary_classifier_forward.1} parent=0 // pred_check
    _
  $region127: #{auxiliary_classifier_forward.1} parent=0 // pred_check_branch
    %139 = sbr.rel (0) target = $region129
  $region128: #{auxiliary_classifier_forward.1} parent=0 // pred_region
    _
  $region129: #{auxiliary_classifier_forward.1} parent=0 // pred_fallthru
    _
  // Predicated region
  $region130: #{auxiliary_classifier_forward.1} parent=0 // pred_check
    _
  $region131: #{auxiliary_classifier_forward.1} parent=0 // pred_check_branch
    %141 = sbr.rel (0) target = $region133
  $region132: #{auxiliary_classifier_forward.1} parent=0 // pred_region
    _
  $region133: #{auxiliary_classifier_forward.1} parent=0 // pred_fallthru
    _
  // Predicated region
  $region134: #{auxiliary_classifier_forward.1} parent=0 // pred_check
    _
  $region135: #{auxiliary_classifier_forward.1} parent=0 // pred_check_branch
    %143 = sbr.rel (0) target = $region137
  $region136: #{auxiliary_classifier_forward.1} parent=0 // pred_region
    _
  $region137: #{auxiliary_classifier_forward.1} parent=0 // pred_fallthru
    _
  // Predicated region
  $region138: #{auxiliary_classifier_forward.1} parent=0 // pred_check
    _
  $region139: #{auxiliary_classifier_forward.1} parent=0 // pred_check_branch
    %145 = sbr.rel (0) target = $region141
  $region140: #{auxiliary_classifier_forward.1} parent=0 // pred_region
    _
  $region141: #{auxiliary_classifier_forward.1} parent=0 // pred_fallthru
    _
  %v146 = vld [vmem:[%s11] sm:$0x1]
  %v147 = vld [vmem:[%s13] sm:$0x1]
  %v148 = vld [vmem:[%s1] sm:$0xff]
  %v149 = vld [vmem:[%s1 + $0x8] sm:$0xff]
  %v150 = vld [vmem:[%s3] sm:$0xff]
  %v151 = vld [vmem:[%s3 + $0x8] sm:$0xff]
  %v152 = vld [vmem:[%s5] sm:$0xff]
  %v153 = vld [vmem:[%s5 + $0x8] sm:$0xff]
  %v154 = vld [vmem:[%s7] sm:$0xff]
  %v155 = vld [vmem:[%s7 + $0x8] sm:$0xff]
  %vm156 = vcmask 392192
  %v157 = vsel %vm156, %v148, 0.0
  %158 = vadd.xlane.f32.xlu0 %v157
  %v159 = vpop.xlane.xlu0 %158
  %v160 = vsel %vm156, %v149, 0.0
  %161 = vadd.xlane.f32.xlu0 %v160
  %v162 = vpop.xlane.xlu0 %161
  %v163 = vrcp.pop 48.0
  %v164 = vmul.f32 %v159, %v163
  %v165 = vmul.f32 %v162, %v163
  %v166 = vsub.f32 %v148, %v164
  %v167 = vsub.f32 %v149, %v165
  %v168 = vmul.f32 %v166, %v166
  %v169 = vmul.f32 %v167, %v167
  %v170 = vsel %vm156, %v168, 0.0
  %171 = vadd.xlane.f32.xlu0 %v170
  %v172 = vpop.xlane.xlu0 %171
  %v173 = vsel %vm156, %v169, 0.0
  %174 = vadd.xlane.f32.xlu0 %v173
  %v175 = vpop.xlane.xlu0 %174
  %v176 = vmul.f32 %v172, %v163
  %v177 = vmul.f32 %v175, %v163
  %v178 = vadd.f32 %v176, 1e-05
  %v179 = vadd.f32 %v177, 1e-05
  %v180 = vrsqrt.pop %v178
  %v181 = vrsqrt.pop %v179
  %v182 = vmul.f32 %v166, %v180
  %v183 = vmul.f32 %v167, %v181
  %v185 = vlaneseq
  %v186 = vshrl.u32 %v185, 7
  %v187 = vsub.s32 0, %v186
  %v188 = vrot.slane %v146, %v187
  %v190 = vmul.f32 %v182, %v188
  %v191 = vmul.f32 %v183, %v188
  %v193 = vlaneseq
  %v194 = vshrl.u32 %v193, 7
  %v195 = vsub.s32 0, %v194
  %v196 = vrot.slane %v147, %v195
  %v198 = vadd.f32 %v190, %v196
  %v199 = vadd.f32 %v191, %v196
  %v200 = vld [vmem:[%s9] sm:$0xff]
  %v201 = vld [vmem:[%s9 + $0x8] sm:$0xff]
  %v202 = vadd.f32 %v198, %v200
  %v203 = vadd.f32 %v199, %v201
  %v204 = vld [vmem:[%s15] sm:$0x1]
  %v205 = vld [vmem:[%s17] sm:$0x1]
  %v206 = vsel %vm156, %v202, 0.0
  %207 = vadd.xlane.f32.xlu0 %v206
  %v208 = vpop.xlane.xlu0 %207
  %v209 = vsel %vm156, %v203, 0.0
  %210 = vadd.xlane.f32.xlu0 %v209
  %v211 = vpop.xlane.xlu0 %210
  %v212 = vsel %vm156, %v150, 0.0
  %213 = vadd.xlane.f32.xlu0 %v212
  %v214 = vpop.xlane.xlu0 %213
  %v215 = vsel %vm156, %v151, 0.0
  %216 = vadd.xlane.f32.xlu0 %v215
  %v217 = vpop.xlane.xlu0 %216
  %v218 = vmul.f32 %v208, %v163
  %v219 = vmul.f32 %v211, %v163
  %v220 = vmul.f32 %v214, %v163
  %v221 = vmul.f32 %v217, %v163
  %v222 = vsub.f32 %v202, %v218
  %v223 = vsub.f32 %v203, %v219
  %v224 = vsub.f32 %v150, %v220
  %v225 = vsub.f32 %v151, %v221
  %v226 = vmul.f32 %v222, %v222
  %v227 = vmul.f32 %v223, %v223
  %v228 = vmul.f32 %v224, %v224
  %v229 = vmul.f32 %v225, %v225
  %v230 = vsel %vm156, %v226, 0.0
  %231 = vadd.xlane.f32.xlu0 %v230
  %v232 = vpop.xlane.xlu0 %231
  %v233 = vsel %vm156, %v227, 0.0
  %234 = vadd.xlane.f32.xlu0 %v233
  %v235 = vpop.xlane.xlu0 %234
  %v236 = vsel %vm156, %v228, 0.0
  %237 = vadd.xlane.f32.xlu0 %v236
  %v238 = vpop.xlane.xlu0 %237
  %v239 = vsel %vm156, %v229, 0.0
  %240 = vadd.xlane.f32.xlu0 %v239
  %v241 = vpop.xlane.xlu0 %240
  %v242 = vmul.f32 %v232, %v163
  %v243 = vmul.f32 %v235, %v163
  %v244 = vmul.f32 %v238, %v163
  %v245 = vmul.f32 %v241, %v163
  %v246 = vadd.f32 %v242, 1e-05
  %v247 = vadd.f32 %v243, 1e-05
  %v248 = vadd.f32 %v244, 1e-05
  %v249 = vadd.f32 %v245, 1e-05
  %v250 = vrsqrt.pop %v246
  %v251 = vrsqrt.pop %v247
  %v252 = vrsqrt.pop %v248
  %v253 = vrsqrt.pop %v249
  %v254 = vmul.f32 %v222, %v250
  %v255 = vmul.f32 %v223, %v251
  %v256 = vmul.f32 %v224, %v252
  %v257 = vmul.f32 %v225, %v253
  %v259 = vlaneseq
  %v260 = vshrl.u32 %v259, 7
  %v261 = vsub.s32 0, %v260
  %v262 = vrot.slane %v204, %v261
  %v264 = vmul.f32 %v254, %v262
  %v265 = vmul.f32 %v255, %v262
  %v266 = vmul.f32 %v256, %v262
  %v267 = vmul.f32 %v257, %v262
  %v269 = vlaneseq
  %v270 = vshrl.u32 %v269, 7
  %v271 = vsub.s32 0, %v270
  %v272 = vrot.slane %v205, %v271
  %v274 = vadd.f32 %v264, %v272
  %v275 = vadd.f32 %v265, %v272
  %v276 = vadd.f32 %v266, %v272
  %v277 = vadd.f32 %v267, %v272
  %v278 = vld [vmem:[%s19] sm:$0xff]
  %v279 = vld [vmem:[%s19 + $0x8] sm:$0xff]
  %v280 = vld [vmem:[%s19 + $0x10] sm:$0xff]
  %v281 = vld [vmem:[%s19 + $0x18] sm:$0xff]
  %v282 = vld [vmem:[%s19 + $0x20] sm:$0xff]
  %v283 = vld [vmem:[%s19 + $0x28] sm:$0xff]
  %v284 = vld [vmem:[%s19 + $0x30] sm:$0xff]
  %v285 = vld [vmem:[%s19 + $0x38] sm:$0xff]
  %v286 = vld [vmem:[%s19 + $0x40] sm:$0xff]
  %v287 = vld [vmem:[%s19 + $0x48] sm:$0xff]
  %v288 = vld [vmem:[%s19 + $0x50] sm:$0xff]
  %v289 = vld [vmem:[%s19 + $0x58] sm:$0xff]
  %v290 = vld [vmem:[%s21] sm:$0x3]
  %v292 = vlaneseq
  %v293 = vshrl.u32 %v292, 7
  %v294 = vsub.s32 0, %v293
  %v295 = vrot.slane %v290, %v294
  %v296 = vlaneseq
  %v297 = vshrl.u32 %v296, 7
  %v298 = vsub.s32 1, %v297
  %v299 = vrot.slane %v290, %v298
  %v303 = vsel %vm156, %v274, 0
  %v306 = vsel %vm156, %v275, 0
  %v309 = vsel %vm156, %v276, 0
  %v312 = vsel %vm156, %v277, 0
  %314 = vmatprep.subr.mxu0 %v279
  %315 = vmatpush1.msra.mxu0 %v278
  %316 = vmatprep.subr.mxu0 %v281
  %317 = vmatpush1.msra.mxu0 %v280
  %318 = vmatprep.subr.mxu0 %v283
  %319 = vmatpush1.msra.mxu0 %v282
  %320 = vmatprep.subr.mxu0 %v285
  %321 = vmatpush1.msra.mxu0 %v284
  %322 = vmatprep.subr.mxu0 %v287
  %323 = vmatpush1.msra.mxu0 %v286
  %324 = vmatprep.subr.mxu0 %v289
  %325 = vmatpush1.msra.mxu0 %v288
  %326 = vmatprep.subr.mxu0 0.0
  %327 = vmatpush1.msra.mxu0 0.0
  %328 = vmatprep.subr.mxu0 0.0
  %329 = vmatpush1.msra.mxu0 0.0
  %330 = vmatprep.subr.mxu0 0.0
  %331 = vmatpush1.msra.mxu0 0.0
  %332 = vmatprep.subr.mxu0 0.0
  %333 = vmatpush1.msra.mxu0 0.0
  %334 = vmatprep.subr.mxu0 0.0
  %335 = vmatpush1.msra.mxu0 0.0
  %336 = vmatprep.subr.mxu0 0.0
  %337 = vmatpush1.msra.mxu0 0.0
  %338 = vmatprep.subr.mxu0 0.0
  %339 = vmatpush1.msra.mxu0 0.0
  %340 = vmatprep.subr.mxu0 0.0
  %341 = vmatpush1.msra.mxu0 0.0
  %342 = vmatprep.subr.mxu0 0.0
  %343 = vmatpush1.msra.mxu0 0.0
  %344 = vmatprep.subr.mxu0 0.0
  %345 = vmatpush1.msra.mxu0 0.0
  %346 = vmatprep.subr.mxu0 0.0
  %347 = vmatpush1.msra.mxu0 0.0
  %348 = vmatprep.subr.mxu0 0.0
  %349 = vmatpush1.msra.mxu0 0.0
  %350 = vmatprep.subr.mxu0 0.0
  %351 = vmatpush1.msra.mxu0 0.0
  %352 = vmatprep.subr.mxu0 0.0
  %353 = vmatpush1.msra.mxu0 0.0
  %354 = vmatprep.subr.mxu0 0.0
  %355 = vmatpush1.msra.mxu0 0.0
  %356 = vmatprep.subr.mxu0 0.0
  %357 = vmatpush1.msra.mxu0 0.0
  %358 = vmatprep.subr.mxu0 0.0
  %359 = vmatpush1.msra.mxu0 0.0
  %360 = vmatprep.subr.mxu0 0.0
  %361 = vmatpush1.msra.mxu0 0.0
  %362 = vmatprep.subr.mxu0 0.0
  %363 = vmatpush1.msra.mxu0 0.0
  %364 = vmatprep.subr.mxu0 0.0
  %365 = vmatpush1.msra.mxu0 0.0
  %366 = vmatprep.subr.mxu0 0.0
  %367 = vmatpush1.msra.mxu0 0.0
  %368 = vmatprep.subr.mxu0 0.0
  %369 = vmatpush1.msra.mxu0 0.0
  %370 = vmatprep.subr.mxu0 0.0
  %371 = vmatpush1.msra.mxu0 0.0
  %372 = vmatprep.subr.mxu0 0.0
  %373 = vmatpush1.msra.mxu0 0.0
  %374 = vmatprep.subr.mxu0 0.0
  %375 = vmatpush1.msra.mxu0 0.0
  %376 = vmatprep.subr.mxu0 0.0
  %377 = vmatpush1.msra.mxu0 0.0
  %378 = vmatprep.mubr.f32.mxu0 0.0
  %379 = vmatmul.mubr.f32.gmra.mrb[0].mxu0 %v303
  %v380 = vpop.f32.mrb[0].mxu0
  %v381 = vadd.f32 %v295, %v380
  %v382 = vpop.f32.mrb[0].mxu0
  %v383 = vadd.f32 %v299, %v382
  %384 = vmatprep.mubr.f32.mxu0 0.0
  %385 = vmatmul.mubr.f32.gmra.mrb[0].mxu0 %v306
  %v386 = vpop.f32.mrb[0].mxu0
  %v387 = vadd.f32 %v295, %v386
  %v388 = vpop.f32.mrb[0].mxu0
  %v389 = vadd.f32 %v299, %v388
  %390 = vmatprep.mubr.f32.mxu0 0.0
  %391 = vmatmul.mubr.f32.gmra.mrb[0].mxu0 %v309
  %v392 = vpop.f32.mrb[0].mxu0
  %v393 = vadd.f32 %v295, %v392
  %v394 = vpop.f32.mrb[0].mxu0
  %v395 = vadd.f32 %v299, %v394
  %396 = vmatprep.mubr.f32.mxu0 0.0
  %397 = vmatmul.mubr.f32.gmra.mrb[0].mxu0 %v312
  %v398 = vpop.f32.mrb[0].mxu0
  %v399 = vadd.f32 %v295, %v398
  %v400 = vpop.f32.mrb[0].mxu0
  %v401 = vadd.f32 %v299, %v400
  %402 = vdwg.mxu0
  %404 = vrot.lane.b32.xlu0 %v381, 80
  %v405 = vpop.permute.xlu0 %404
  %vm406 = vcmask 97280
  %v407 = vsel %vm406, %v381, 0
  %v409 = vsel %vm406, %v405, 0
  %411 = vmatprep.subr.mxu0 0.0
  %412 = vmatpush1.xpose.msra.mxu0 %v409
  %413 = vmatprep.subr.mxu0 0.0
  %414 = vmatpush1.xpose.msra.mxu0 0.0
  %415 = vmatprep.subr.mxu0 0.0
  %416 = vmatpush1.xpose.msra.mxu0 0.0
  %417 = vmatprep.subr.mxu0 0.0
  %418 = vmatpush1.xpose.msra.mxu0 0.0
  %419 = vmatprep.subr.mxu0 0.0
  %420 = vmatpush1.xpose.msra.mxu0 0.0
  %421 = vmatprep.subr.mxu0 0.0
  %422 = vmatpush1.xpose.msra.mxu0 0.0
  %423 = vmatprep.subr.mxu0 0.0
  %424 = vmatpush1.xpose.msra.mxu0 0.0
  %425 = vmatprep.subr.mxu0 0.0
  %426 = vmatpush1.xpose.msra.mxu0 0.0
  %427 = vmatprep.subr.mxu0 0.0
  %428 = vmatpush1.xpose.msra.mxu0 0.0
  %429 = vmatprep.subr.mxu0 0.0
  %430 = vmatpush1.xpose.msra.mxu0 0.0
  %431 = vmatprep.subr.mxu0 0.0
  %432 = vmatpush1.xpose.msra.mxu0 0.0
  %433 = vmatprep.subr.mxu0 0.0
  %434 = vmatpush1.xpose.msra.mxu0 0.0
  %435 = vmatprep.subr.mxu0 0.0
  %436 = vmatpush1.xpose.msra.mxu0 0.0
  %437 = vmatprep.subr.mxu0 0.0
  %438 = vmatpush1.xpose.msra.mxu0 0.0
  %439 = vmatprep.subr.mxu0 0.0
  %440 = vmatpush1.xpose.msra.mxu0 0.0
  %441 = vmatprep.subr.mxu0 0.0
  %442 = vmatpush1.xpose.msra.mxu0 0.0
  %443 = vmatprep.subr.mxu0 0.0
  %444 = vmatpush1.xpose.msra.mxu0 0.0
  %445 = vmatprep.subr.mxu0 0.0
  %446 = vmatpush1.xpose.msra.mxu0 0.0
  %447 = vmatprep.subr.mxu0 0.0
  %448 = vmatpush1.xpose.msra.mxu0 0.0
  %449 = vmatprep.subr.mxu0 0.0
  %450 = vmatpush1.xpose.msra.mxu0 0.0
  %451 = vmatprep.subr.mxu0 0.0
  %452 = vmatpush1.xpose.msra.mxu0 0.0
  %453 = vmatprep.subr.mxu0 0.0
  %454 = vmatpush1.xpose.msra.mxu0 0.0
  %455 = vmatprep.subr.mxu0 0.0
  %456 = vmatpush1.xpose.msra.mxu0 0.0
  %457 = vmatprep.subr.mxu0 0.0
  %458 = vmatpush1.xpose.msra.mxu0 0.0
  %459 = vmatprep.subr.mxu0 0.0
  %460 = vmatpush1.xpose.msra.mxu0 0.0
  %461 = vmatprep.subr.mxu0 0.0
  %462 = vmatpush1.xpose.msra.mxu0 0.0
  %463 = vmatprep.subr.mxu0 0.0
  %464 = vmatpush1.xpose.msra.mxu0 0.0
  %465 = vmatprep.subr.mxu0 0.0
  %466 = vmatpush1.xpose.msra.mxu0 0.0
  %467 = vmatprep.subr.mxu0 0.0
  %468 = vmatpush1.xpose.msra.mxu0 0.0
  %469 = vmatprep.subr.mxu0 0.0
  %470 = vmatpush1.xpose.msra.mxu0 0.0
  %471 = vmatprep.subr.mxu0 0.0
  %472 = vmatpush1.xpose.msra.mxu0 0.0
  %473 = vmatprep.subr.mxu0 0.0
  %474 = vmatpush1.xpose.msra.mxu0 0.0
  %475 = vmatprep.mubr.f32.mxu0 0.0
  %476 = vmatmul.mubr.f32.gmra.mrb[0].mxu0 %v407
  %v477 = vpop.f32.mrb[0].mxu0
  %v478 = vadd.f32 0.0, %v477
  %v479 = vpop.f32.mrb[0].mxu0
  %480 = vdwg.mxu0
  %482 = vrot.lane.b32.xlu0 %v387, 80
  %v483 = vpop.permute.xlu0 %482
  %v484 = vsel %vm406, %v387, 0
  %v486 = vsel %vm406, %v483, 0
  %488 = vmatprep.subr.mxu0 0.0
  %489 = vmatpush1.xpose.msra.mxu0 %v486
  %490 = vmatprep.subr.mxu0 0.0
  %491 = vmatpush1.xpose.msra.mxu0 0.0
  %492 = vmatprep.subr.mxu0 0.0
  %493 = vmatpush1.xpose.msra.mxu0 0.0
  %494 = vmatprep.subr.mxu0 0.0
  %495 = vmatpush1.xpose.msra.mxu0 0.0
  %496 = vmatprep.subr.mxu0 0.0
  %497 = vmatpush1.xpose.msra.mxu0 0.0
  %498 = vmatprep.subr.mxu0 0.0
  %499 = vmatpush1.xpose.msra.mxu0 0.0
  %500 = vmatprep.subr.mxu0 0.0
  %501 = vmatpush1.xpose.msra.mxu0 0.0
  %502 = vmatprep.subr.mxu0 0.0
  %503 = vmatpush1.xpose.msra.mxu0 0.0
  %504 = vmatprep.subr.mxu0 0.0
  %505 = vmatpush1.xpose.msra.mxu0 0.0
  %506 = vmatprep.subr.mxu0 0.0
  %507 = vmatpush1.xpose.msra.mxu0 0.0
  %508 = vmatprep.subr.mxu0 0.0
  %509 = vmatpush1.xpose.msra.mxu0 0.0
  %510 = vmatprep.subr.mxu0 0.0
  %511 = vmatpush1.xpose.msra.mxu0 0.0
  %512 = vmatprep.subr.mxu0 0.0
  %513 = vmatpush1.xpose.msra.mxu0 0.0
  %514 = vmatprep.subr.mxu0 0.0
  %515 = vmatpush1.xpose.msra.mxu0 0.0
  %516 = vmatprep.subr.mxu0 0.0
  %517 = vmatpush1.xpose.msra.mxu0 0.0
  %518 = vmatprep.subr.mxu0 0.0
  %519 = vmatpush1.xpose.msra.mxu0 0.0
  %520 = vmatprep.subr.mxu0 0.0
  %521 = vmatpush1.xpose.msra.mxu0 0.0
  %522 = vmatprep.subr.mxu0 0.0
  %523 = vmatpush1.xpose.msra.mxu0 0.0
  %524 = vmatprep.subr.mxu0 0.0
  %525 = vmatpush1.xpose.msra.mxu0 0.0
  %526 = vmatprep.subr.mxu0 0.0
  %527 = vmatpush1.xpose.msra.mxu0 0.0
  %528 = vmatprep.subr.mxu0 0.0
  %529 = vmatpush1.xpose.msra.mxu0 0.0
  %530 = vmatprep.subr.mxu0 0.0
  %531 = vmatpush1.xpose.msra.mxu0 0.0
  %532 = vmatprep.subr.mxu0 0.0
  %533 = vmatpush1.xpose.msra.mxu0 0.0
  %534 = vmatprep.subr.mxu0 0.0
  %535 = vmatpush1.xpose.msra.mxu0 0.0
  %536 = vmatprep.subr.mxu0 0.0
  %537 = vmatpush1.xpose.msra.mxu0 0.0
  %538 = vmatprep.subr.mxu0 0.0
  %539 = vmatpush1.xpose.msra.mxu0 0.0
  %540 = vmatprep.subr.mxu0 0.0
  %541 = vmatpush1.xpose.msra.mxu0 0.0
  %542 = vmatprep.subr.mxu0 0.0
  %543 = vmatpush1.xpose.msra.mxu0 0.0
  %544 = vmatprep.subr.mxu0 0.0
  %545 = vmatpush1.xpose.msra.mxu0 0.0
  %546 = vmatprep.subr.mxu0 0.0
  %547 = vmatpush1.xpose.msra.mxu0 0.0
  %548 = vmatprep.subr.mxu0 0.0
  %549 = vmatpush1.xpose.msra.mxu0 0.0
  %550 = vmatprep.subr.mxu0 0.0
  %551 = vmatpush1.xpose.msra.mxu0 0.0
  %552 = vmatprep.mubr.f32.mxu0 0.0
  %553 = vmatmul.mubr.f32.gmra.mrb[0].mxu0 %v484
  %v554 = vpop.f32.mrb[0].mxu0
  %v555 = vadd.f32 0.0, %v554
  %v556 = vpop.f32.mrb[0].mxu0
  %557 = vdwg.mxu0
  %559 = vrot.lane.b32.xlu0 %v393, 80
  %v560 = vpop.permute.xlu0 %559
  %v561 = vsel %vm406, %v393, 0
  %v563 = vsel %vm406, %v560, 0
  %565 = vmatprep.subr.mxu0 0.0
  %566 = vmatpush1.xpose.msra.mxu0 %v563
  %567 = vmatprep.subr.mxu0 0.0
  %568 = vmatpush1.xpose.msra.mxu0 0.0
  %569 = vmatprep.subr.mxu0 0.0
  %570 = vmatpush1.xpose.msra.mxu0 0.0
  %571 = vmatprep.subr.mxu0 0.0
  %572 = vmatpush1.xpose.msra.mxu0 0.0
  %573 = vmatprep.subr.mxu0 0.0
  %574 = vmatpush1.xpose.msra.mxu0 0.0
  %575 = vmatprep.subr.mxu0 0.0
  %576 = vmatpush1.xpose.msra.mxu0 0.0
  %577 = vmatprep.subr.mxu0 0.0
  %578 = vmatpush1.xpose.msra.mxu0 0.0
  %579 = vmatprep.subr.mxu0 0.0
  %580 = vmatpush1.xpose.msra.mxu0 0.0
  %581 = vmatprep.subr.mxu0 0.0
  %582 = vmatpush1.xpose.msra.mxu0 0.0
  %583 = vmatprep.subr.mxu0 0.0
  %584 = vmatpush1.xpose.msra.mxu0 0.0
  %585 = vmatprep.subr.mxu0 0.0
  %586 = vmatpush1.xpose.msra.mxu0 0.0
  %587 = vmatprep.subr.mxu0 0.0
  %588 = vmatpush1.xpose.msra.mxu0 0.0
  %589 = vmatprep.subr.mxu0 0.0
  %590 = vmatpush1.xpose.msra.mxu0 0.0
  %591 = vmatprep.subr.mxu0 0.0
  %592 = vmatpush1.xpose.msra.mxu0 0.0
  %593 = vmatprep.subr.mxu0 0.0
  %594 = vmatpush1.xpose.msra.mxu0 0.0
  %595 = vmatprep.subr.mxu0 0.0
  %596 = vmatpush1.xpose.msra.mxu0 0.0
  %597 = vmatprep.subr.mxu0 0.0
  %598 = vmatpush1.xpose.msra.mxu0 0.0
  %599 = vmatprep.subr.mxu0 0.0
  %600 = vmatpush1.xpose.msra.mxu0 0.0
  %601 = vmatprep.subr.mxu0 0.0
  %602 = vmatpush1.xpose.msra.mxu0 0.0
  %603 = vmatprep.subr.mxu0 0.0
  %604 = vmatpush1.xpose.msra.mxu0 0.0
  %605 = vmatprep.subr.mxu0 0.0
  %606 = vmatpush1.xpose.msra.mxu0 0.0
  %607 = vmatprep.subr.mxu0 0.0
  %608 = vmatpush1.xpose.msra.mxu0 0.0
  %609 = vmatprep.subr.mxu0 0.0
  %610 = vmatpush1.xpose.msra.mxu0 0.0
  %611 = vmatprep.subr.mxu0 0.0
  %612 = vmatpush1.xpose.msra.mxu0 0.0
  %613 = vmatprep.subr.mxu0 0.0
  %614 = vmatpush1.xpose.msra.mxu0 0.0
  %615 = vmatprep.subr.mxu0 0.0
  %616 = vmatpush1.xpose.msra.mxu0 0.0
  %617 = vmatprep.subr.mxu0 0.0
  %618 = vmatpush1.xpose.msra.mxu0 0.0
  %619 = vmatprep.subr.mxu0 0.0
  %620 = vmatpush1.xpose.msra.mxu0 0.0
  %621 = vmatprep.subr.mxu0 0.0
  %622 = vmatpush1.xpose.msra.mxu0 0.0
  %623 = vmatprep.subr.mxu0 0.0
  %624 = vmatpush1.xpose.msra.mxu0 0.0
  %625 = vmatprep.subr.mxu0 0.0
  %626 = vmatpush1.xpose.msra.mxu0 0.0
  %627 = vmatprep.subr.mxu0 0.0
  %628 = vmatpush1.xpose.msra.mxu0 0.0
  %629 = vmatprep.mubr.f32.mxu0 0.0
  %630 = vmatmul.mubr.f32.gmra.mrb[0].mxu0 %v561
  %v631 = vpop.f32.mrb[0].mxu0
  %v632 = vadd.f32 0.0, %v631
  %v633 = vpop.f32.mrb[0].mxu0
  %634 = vdwg.mxu0
  %636 = vrot.lane.b32.xlu0 %v399, 80
  %v637 = vpop.permute.xlu0 %636
  %v638 = vsel %vm406, %v399, 0
  %v640 = vsel %vm406, %v637, 0
  %642 = vmatprep.subr.mxu0 0.0
  %643 = vmatpush1.xpose.msra.mxu0 %v640
  %644 = vmatprep.subr.mxu0 0.0
  %645 = vmatpush1.xpose.msra.mxu0 0.0
  %646 = vmatprep.subr.mxu0 0.0
  %647 = vmatpush1.xpose.msra.mxu0 0.0
  %648 = vmatprep.subr.mxu0 0.0
  %649 = vmatpush1.xpose.msra.mxu0 0.0
  %650 = vmatprep.subr.mxu0 0.0
  %651 = vmatpush1.xpose.msra.mxu0 0.0
  %652 = vmatprep.subr.mxu0 0.0
  %653 = vmatpush1.xpose.msra.mxu0 0.0
  %654 = vmatprep.subr.mxu0 0.0
  %655 = vmatpush1.xpose.msra.mxu0 0.0
  %656 = vmatprep.subr.mxu0 0.0
  %657 = vmatpush1.xpose.msra.mxu0 0.0
  %658 = vmatprep.subr.mxu0 0.0
  %659 = vmatpush1.xpose.msra.mxu0 0.0
  %660 = vmatprep.subr.mxu0 0.0
  %661 = vmatpush1.xpose.msra.mxu0 0.0
  %662 = vmatprep.subr.mxu0 0.0
  %663 = vmatpush1.xpose.msra.mxu0 0.0
  %664 = vmatprep.subr.mxu0 0.0
  %665 = vmatpush1.xpose.msra.mxu0 0.0
  %666 = vmatprep.subr.mxu0 0.0
  %667 = vmatpush1.xpose.msra.mxu0 0.0
  %668 = vmatprep.subr.mxu0 0.0
  %669 = vmatpush1.xpose.msra.mxu0 0.0
  %670 = vmatprep.subr.mxu0 0.0
  %671 = vmatpush1.xpose.msra.mxu0 0.0
  %672 = vmatprep.subr.mxu0 0.0
  %673 = vmatpush1.xpose.msra.mxu0 0.0
  %674 = vmatprep.subr.mxu0 0.0
  %675 = vmatpush1.xpose.msra.mxu0 0.0
  %676 = vmatprep.subr.mxu0 0.0
  %677 = vmatpush1.xpose.msra.mxu0 0.0
  %678 = vmatprep.subr.mxu0 0.0
  %679 = vmatpush1.xpose.msra.mxu0 0.0
  %680 = vmatprep.subr.mxu0 0.0
  %681 = vmatpush1.xpose.msra.mxu0 0.0
  %682 = vmatprep.subr.mxu0 0.0
  %683 = vmatpush1.xpose.msra.mxu0 0.0
  %684 = vmatprep.subr.mxu0 0.0
  %685 = vmatpush1.xpose.msra.mxu0 0.0
  %686 = vmatprep.subr.mxu0 0.0
  %687 = vmatpush1.xpose.msra.mxu0 0.0
  %688 = vmatprep.subr.mxu0 0.0
  %689 = vmatpush1.xpose.msra.mxu0 0.0
  %690 = vmatprep.subr.mxu0 0.0
  %691 = vmatpush1.xpose.msra.mxu0 0.0
  %692 = vmatprep.subr.mxu0 0.0
  %693 = vmatpush1.xpose.msra.mxu0 0.0
  %694 = vmatprep.subr.mxu0 0.0
  %695 = vmatpush1.xpose.msra.mxu0 0.0
  %696 = vmatprep.subr.mxu0 0.0
  %697 = vmatpush1.xpose.msra.mxu0 0.0
  %698 = vmatprep.subr.mxu0 0.0
  %699 = vmatpush1.xpose.msra.mxu0 0.0
  %700 = vmatprep.subr.mxu0 0.0
  %701 = vmatpush1.xpose.msra.mxu0 0.0
  %702 = vmatprep.subr.mxu0 0.0
  %703 = vmatpush1.xpose.msra.mxu0 0.0
  %704 = vmatprep.subr.mxu0 0.0
  %705 = vmatpush1.xpose.msra.mxu0 0.0
  %706 = vmatprep.mubr.f32.mxu0 0.0
  %707 = vmatmul.mubr.f32.gmra.mrb[0].mxu0 %v638
  %v708 = vpop.f32.mrb[0].mxu0
  %v709 = vadd.f32 0.0, %v708
  %v710 = vpop.f32.mrb[0].mxu0
  %711 = vdwg.mxu0
  %v712 = vmul.f32 %v478, 0.28867513
  %v713 = vmul.f32 %v555, 0.28867513
  %v714 = vmul.f32 %v632, 0.28867513
  %v715 = vmul.f32 %v709, 0.28867513
  %vm716 = vcmask 64512
  %v717 = vsel %vm716, %v712, -inf
  %718 = vmax.xlane.f32.xlu0 %v717
  %v719 = vpop.xlane.xlu0 %718
  %v720 = vsel %vm716, %v713, -inf
  %721 = vmax.xlane.f32.xlu0 %v720
  %v722 = vpop.xlane.xlu0 %721
  %v723 = vsel %vm716, %v714, -inf
  %724 = vmax.xlane.f32.xlu0 %v723
  %v725 = vpop.xlane.xlu0 %724
  %v726 = vsel %vm716, %v715, -inf
  %727 = vmax.xlane.f32.xlu0 %v726
  %v728 = vpop.xlane.xlu0 %727
  %v729 = vsub.f32 %v712, %v719
  %v730 = vsub.f32 %v713, %v722
  %v731 = vsub.f32 %v714, %v725
  %v732 = vsub.f32 %v715, %v728
  %v733 = vmul.f32 %v729, 1.442695
  %v734 = vpow.pop %v733
  %v735 = vmul.f32 %v730, 1.442695
  %v736 = vpow.pop %v735
  %v737 = vmul.f32 %v731, 1.442695
  %v738 = vpow.pop %v737
  %v739 = vmul.f32 %v732, 1.442695
  %v740 = vpow.pop %v739
  %v741 = vsel %vm716, %v734, 0.0
  %742 = vadd.xlane.f32.xlu0 %v741
  %v743 = vpop.xlane.xlu0 %742
  %v744 = vsel %vm716, %v736, 0.0
  %745 = vadd.xlane.f32.xlu0 %v744
  %v746 = vpop.xlane.xlu0 %745
  %v747 = vsel %vm716, %v738, 0.0
  %748 = vadd.xlane.f32.xlu0 %v747
  %v749 = vpop.xlane.xlu0 %748
  %v750 = vsel %vm716, %v740, 0.0
  %751 = vadd.xlane.f32.xlu0 %v750
  %v752 = vpop.xlane.xlu0 %751
  %v753 = vrcp.pop %v743
  %v754 = vmul.f32 %v734, %v753
  %v755 = vrcp.pop %v746
  %v756 = vmul.f32 %v736, %v755
  %v757 = vrcp.pop %v749
  %v758 = vmul.f32 %v738, %v757
  %v759 = vrcp.pop %v752
  %v760 = vmul.f32 %v740, %v759
  %761 = vrot.lane.b32.xlu0 %v381, 32
  %v762 = vpop.permute.xlu0 %761
  %v765 = vsel %vm716, %v754, 0
  %767 = vmatprep.subr.mxu0 0.0
  %768 = vmatpush1.msra.mxu0 %v762
  %769 = vmatprep.subr.mxu0 0.0
  %770 = vmatpush1.msra.mxu0 0.0
  %771 = vmatprep.subr.mxu0 0.0
  %772 = vmatpush1.msra.mxu0 0.0
  %773 = vmatprep.subr.mxu0 0.0
  %774 = vmatpush1.msra.mxu0 0.0
  %775 = vmatprep.subr.mxu0 0.0
  %776 = vmatpush1.msra.mxu0 0.0
  %777 = vmatprep.subr.mxu0 0.0
  %778 = vmatpush1.msra.mxu0 0.0
  %779 = vmatprep.subr.mxu0 0.0
  %780 = vmatpush1.msra.mxu0 0.0
  %781 = vmatprep.subr.mxu0 0.0
  %782 = vmatpush1.msra.mxu0 0.0
  %783 = vmatprep.subr.mxu0 0.0
  %784 = vmatpush1.msra.mxu0 0.0
  %785 = vmatprep.subr.mxu0 0.0
  %786 = vmatpush1.msra.mxu0 0.0
  %787 = vmatprep.subr.mxu0 0.0
  %788 = vmatpush1.msra.mxu0 0.0
  %789 = vmatprep.subr.mxu0 0.0
  %790 = vmatpush1.msra.mxu0 0.0
  %791 = vmatprep.subr.mxu0 0.0
  %792 = vmatpush1.msra.mxu0 0.0
  %793 = vmatprep.subr.mxu0 0.0
  %794 = vmatpush1.msra.mxu0 0.0
  %795 = vmatprep.subr.mxu0 0.0
  %796 = vmatpush1.msra.mxu0 0.0
  %797 = vmatprep.subr.mxu0 0.0
  %798 = vmatpush1.msra.mxu0 0.0
  %799 = vmatprep.subr.mxu0 0.0
  %800 = vmatpush1.msra.mxu0 0.0
  %801 = vmatprep.subr.mxu0 0.0
  %802 = vmatpush1.msra.mxu0 0.0
  %803 = vmatprep.subr.mxu0 0.0
  %804 = vmatpush1.msra.mxu0 0.0
  %805 = vmatprep.subr.mxu0 0.0
  %806 = vmatpush1.msra.mxu0 0.0
  %807 = vmatprep.subr.mxu0 0.0
  %808 = vmatpush1.msra.mxu0 0.0
  %809 = vmatprep.subr.mxu0 0.0
  %810 = vmatpush1.msra.mxu0 0.0
  %811 = vmatprep.subr.mxu0 0.0
  %812 = vmatpush1.msra.mxu0 0.0
  %813 = vmatprep.subr.mxu0 0.0
  %814 = vmatpush1.msra.mxu0 0.0
  %815 = vmatprep.subr.mxu0 0.0
  %816 = vmatpush1.msra.mxu0 0.0
  %817 = vmatprep.subr.mxu0 0.0
  %818 = vmatpush1.msra.mxu0 0.0
  %819 = vmatprep.subr.mxu0 0.0
  %820 = vmatpush1.msra.mxu0 0.0
  %821 = vmatprep.subr.mxu0 0.0
  %822 = vmatpush1.msra.mxu0 0.0
  %823 = vmatprep.subr.mxu0 0.0
  %824 = vmatpush1.msra.mxu0 0.0
  %825 = vmatprep.subr.mxu0 0.0
  %826 = vmatpush1.msra.mxu0 0.0
  %827 = vmatprep.subr.mxu0 0.0
  %828 = vmatpush1.msra.mxu0 0.0
  %829 = vmatprep.subr.mxu0 0.0
  %830 = vmatpush1.msra.mxu0 0.0
  %831 = vmatprep.mubr.f32.mxu0 0.0
  %832 = vmatmul.mubr.f32.gmra.mrb[0].mxu0 %v765
  %v833 = vpop.f32.mrb[0].mxu0
  %v834 = vadd.f32 0.0, %v833
  %v835 = vpop.f32.mrb[0].mxu0
  %836 = vdwg.mxu0
  %837 = vrot.lane.b32.xlu0 %v387, 32
  %v838 = vpop.permute.xlu0 %837
  %v841 = vsel %vm716, %v756, 0
  %843 = vmatprep.subr.mxu0 0.0
  %844 = vmatpush1.msra.mxu0 %v838
  %845 = vmatprep.subr.mxu0 0.0
  %846 = vmatpush1.msra.mxu0 0.0
  %847 = vmatprep.subr.mxu0 0.0
  %848 = vmatpush1.msra.mxu0 0.0
  %849 = vmatprep.subr.mxu0 0.0
  %850 = vmatpush1.msra.mxu0 0.0
  %851 = vmatprep.subr.mxu0 0.0
  %852 = vmatpush1.msra.mxu0 0.0
  %853 = vmatprep.subr.mxu0 0.0
  %854 = vmatpush1.msra.mxu0 0.0
  %855 = vmatprep.subr.mxu0 0.0
  %856 = vmatpush1.msra.mxu0 0.0
  %857 = vmatprep.subr.mxu0 0.0
  %858 = vmatpush1.msra.mxu0 0.0
  %859 = vmatprep.subr.mxu0 0.0
  %860 = vmatpush1.msra.mxu0 0.0
  %861 = vmatprep.subr.mxu0 0.0
  %862 = vmatpush1.msra.mxu0 0.0
  %863 = vmatprep.subr.mxu0 0.0
  %864 = vmatpush1.msra.mxu0 0.0
  %865 = vmatprep.subr.mxu0 0.0
  %866 = vmatpush1.msra.mxu0 0.0
  %867 = vmatprep.subr.mxu0 0.0
  %868 = vmatpush1.msra.mxu0 0.0
  %869 = vmatprep.subr.mxu0 0.0
  %870 = vmatpush1.msra.mxu0 0.0
  %871 = vmatprep.subr.mxu0 0.0
  %872 = vmatpush1.msra.mxu0 0.0
  %873 = vmatprep.subr.mxu0 0.0
  %874 = vmatpush1.msra.mxu0 0.0
  %875 = vmatprep.subr.mxu0 0.0
  %876 = vmatpush1.msra.mxu0 0.0
  %877 = vmatprep.subr.mxu0 0.0
  %878 = vmatpush1.msra.mxu0 0.0
  %879 = vmatprep.subr.mxu0 0.0
  %880 = vmatpush1.msra.mxu0 0.0
  %881 = vmatprep.subr.mxu0 0.0
  %882 = vmatpush1.msra.mxu0 0.0
  %883 = vmatprep.subr.mxu0 0.0
  %884 = vmatpush1.msra.mxu0 0.0
  %885 = vmatprep.subr.mxu0 0.0
  %886 = vmatpush1.msra.mxu0 0.0
  %887 = vmatprep.subr.mxu0 0.0
  %888 = vmatpush1.msra.mxu0 0.0
  %889 = vmatprep.subr.mxu0 0.0
  %890 = vmatpush1.msra.mxu0 0.0
  %891 = vmatprep.subr.mxu0 0.0
  %892 = vmatpush1.msra.mxu0 0.0
  %893 = vmatprep.subr.mxu0 0.0
  %894 = vmatpush1.msra.mxu0 0.0
  %895 = vmatprep.subr.mxu0 0.0
  %896 = vmatpush1.msra.mxu0 0.0
  %897 = vmatprep.subr.mxu0 0.0
  %898 = vmatpush1.msra.mxu0 0.0
  %899 = vmatprep.subr.mxu0 0.0
  %900 = vmatpush1.msra.mxu0 0.0
  %901 = vmatprep.subr.mxu0 0.0
  %902 = vmatpush1.msra.mxu0 0.0
  %903 = vmatprep.subr.mxu0 0.0
  %904 = vmatpush1.msra.mxu0 0.0
  %905 = vmatprep.subr.mxu0 0.0
  %906 = vmatpush1.msra.mxu0 0.0
  %907 = vmatprep.mubr.f32.mxu0 0.0
  %908 = vmatmul.mubr.f32.gmra.mrb[0].mxu0 %v841
  %v909 = vpop.f32.mrb[0].mxu0
  %v910 = vadd.f32 0.0, %v909
  %v911 = vpop.f32.mrb[0].mxu0
  %912 = vdwg.mxu0
  %913 = vrot.lane.b32.xlu0 %v393, 32
  %v914 = vpop.permute.xlu0 %913
  %v917 = vsel %vm716, %v758, 0
  %919 = vmatprep.subr.mxu0 0.0
  %920 = vmatpush1.msra.mxu0 %v914
  %921 = vmatprep.subr.mxu0 0.0
  %922 = vmatpush1.msra.mxu0 0.0
  %923 = vmatprep.subr.mxu0 0.0
  %924 = vmatpush1.msra.mxu0 0.0
  %925 = vmatprep.subr.mxu0 0.0
  %926 = vmatpush1.msra.mxu0 0.0
  %927 = vmatprep.subr.mxu0 0.0
  %928 = vmatpush1.msra.mxu0 0.0
  %929 = vmatprep.subr.mxu0 0.0
  %930 = vmatpush1.msra.mxu0 0.0
  %931 = vmatprep.subr.mxu0 0.0
  %932 = vmatpush1.msra.mxu0 0.0
  %933 = vmatprep.subr.mxu0 0.0
  %934 = vmatpush1.msra.mxu0 0.0
  %935 = vmatprep.subr.mxu0 0.0
  %936 = vmatpush1.msra.mxu0 0.0
  %937 = vmatprep.subr.mxu0 0.0
  %938 = vmatpush1.msra.mxu0 0.0
  %939 = vmatprep.subr.mxu0 0.0
  %940 = vmatpush1.msra.mxu0 0.0
  %941 = vmatprep.subr.mxu0 0.0
  %942 = vmatpush1.msra.mxu0 0.0
  %943 = vmatprep.subr.mxu0 0.0
  %944 = vmatpush1.msra.mxu0 0.0
  %945 = vmatprep.subr.mxu0 0.0
  %946 = vmatpush1.msra.mxu0 0.0
  %947 = vmatprep.subr.mxu0 0.0
  %948 = vmatpush1.msra.mxu0 0.0
  %949 = vmatprep.subr.mxu0 0.0
  %950 = vmatpush1.msra.mxu0 0.0
  %951 = vmatprep.subr.mxu0 0.0
  %952 = vmatpush1.msra.mxu0 0.0
  %953 = vmatprep.subr.mxu0 0.0
  %954 = vmatpush1.msra.mxu0 0.0
  %955 = vmatprep.subr.mxu0 0.0
  %956 = vmatpush1.msra.mxu0 0.0
  %957 = vmatprep.subr.mxu0 0.0
  %958 = vmatpush1.msra.mxu0 0.0
  %959 = vmatprep.subr.mxu0 0.0
  %960 = vmatpush1.msra.mxu0 0.0
  %961 = vmatprep.subr.mxu0 0.0
  %962 = vmatpush1.msra.mxu0 0.0
  %963 = vmatprep.subr.mxu0 0.0
  %964 = vmatpush1.msra.mxu0 0.0
  %965 = vmatprep.subr.mxu0 0.0
  %966 = vmatpush1.msra.mxu0 0.0
  %967 = vmatprep.subr.mxu0 0.0
  %968 = vmatpush1.msra.mxu0 0.0
  %969 = vmatprep.subr.mxu0 0.0
  %970 = vmatpush1.msra.mxu0 0.0
  %971 = vmatprep.subr.mxu0 0.0
  %972 = vmatpush1.msra.mxu0 0.0
  %973 = vmatprep.subr.mxu0 0.0
  %974 = vmatpush1.msra.mxu0 0.0
  %975 = vmatprep.subr.mxu0 0.0
  %976 = vmatpush1.msra.mxu0 0.0
  %977 = vmatprep.subr.mxu0 0.0
  %978 = vmatpush1.msra.mxu0 0.0
  %979 = vmatprep.subr.mxu0 0.0
  %980 = vmatpush1.msra.mxu0 0.0
  %981 = vmatprep.subr.mxu0 0.0
  %982 = vmatpush1.msra.mxu0 0.0
  %983 = vmatprep.mubr.f32.mxu0 0.0
  %984 = vmatmul.mubr.f32.gmra.mrb[0].mxu0 %v917
  %v985 = vpop.f32.mrb[0].mxu0
  %v986 = vadd.f32 0.0, %v985
  %v987 = vpop.f32.mrb[0].mxu0
  %988 = vdwg.mxu0
  %989 = vrot.lane.b32.xlu0 %v399, 32
  %v990 = vpop.permute.xlu0 %989
  %v993 = vsel %vm716, %v760, 0
  %995 = vmatprep.subr.mxu0 0.0
  %996 = vmatpush1.msra.mxu0 %v990
  %997 = vmatprep.subr.mxu0 0.0
  %998 = vmatpush1.msra.mxu0 0.0
  %999 = vmatprep.subr.mxu0 0.0
  %1000 = vmatpush1.msra.mxu0 0.0
  %1001 = vmatprep.subr.mxu0 0.0
  %1002 = vmatpush1.msra.mxu0 0.0
  %1003 = vmatprep.subr.mxu0 0.0
  %1004 = vmatpush1.msra.mxu0 0.0
  %1005 = vmatprep.subr.mxu0 0.0
  %1006 = vmatpush1.msra.mxu0 0.0
  %1007 = vmatprep.subr.mxu0 0.0
  %1008 = vmatpush1.msra.mxu0 0.0
  %1009 = vmatprep.subr.mxu0 0.0
  %1010 = vmatpush1.msra.mxu0 0.0
  %1011 = vmatprep.subr.mxu0 0.0
  %1012 = vmatpush1.msra.mxu0 0.0
  %1013 = vmatprep.subr.mxu0 0.0
  %1014 = vmatpush1.msra.mxu0 0.0
  %1015 = vmatprep.subr.mxu0 0.0
  %1016 = vmatpush1.msra.mxu0 0.0
  %1017 = vmatprep.subr.mxu0 0.0
  %1018 = vmatpush1.msra.mxu0 0.0
  %1019 = vmatprep.subr.mxu0 0.0
  %1020 = vmatpush1.msra.mxu0 0.0
  %1021 = vmatprep.subr.mxu0 0.0
  %1022 = vmatpush1.msra.mxu0 0.0
  %1023 = vmatprep.subr.mxu0 0.0
  %1024 = vmatpush1.msra.mxu0 0.0
  %1025 = vmatprep.subr.mxu0 0.0
  %1026 = vmatpush1.msra.mxu0 0.0
  %1027 = vmatprep.subr.mxu0 0.0
  %1028 = vmatpush1.msra.mxu0 0.0
  %1029 = vmatprep.subr.mxu0 0.0
  %1030 = vmatpush1.msra.mxu0 0.0
  %1031 = vmatprep.subr.mxu0 0.0
  %1032 = vmatpush1.msra.mxu0 0.0
  %1033 = vmatprep.subr.mxu0 0.0
  %1034 = vmatpush1.msra.mxu0 0.0
  %1035 = vmatprep.subr.mxu0 0.0
  %1036 = vmatpush1.msra.mxu0 0.0
  %1037 = vmatprep.subr.mxu0 0.0
  %1038 = vmatpush1.msra.mxu0 0.0
  %1039 = vmatprep.subr.mxu0 0.0
  %1040 = vmatpush1.msra.mxu0 0.0
  %1041 = vmatprep.subr.mxu0 0.0
  %1042 = vmatpush1.msra.mxu0 0.0
  %1043 = vmatprep.subr.mxu0 0.0
  %1044 = vmatpush1.msra.mxu0 0.0
  %1045 = vmatprep.subr.mxu0 0.0
  %1046 = vmatpush1.msra.mxu0 0.0
  %1047 = vmatprep.subr.mxu0 0.0
  %1048 = vmatpush1.msra.mxu0 0.0
  %1049 = vmatprep.subr.mxu0 0.0
  %1050 = vmatpush1.msra.mxu0 0.0
  %1051 = vmatprep.subr.mxu0 0.0
  %1052 = vmatpush1.msra.mxu0 0.0
  %1053 = vmatprep.subr.mxu0 0.0
  %1054 = vmatpush1.msra.mxu0 0.0
  %1055 = vmatprep.subr.mxu0 0.0
  %1056 = vmatpush1.msra.mxu0 0.0
  %1057 = vmatprep.subr.mxu0 0.0
  %1058 = vmatpush1.msra.mxu0 0.0
  %1059 = vmatprep.mubr.f32.mxu0 0.0
  %1060 = vmatmul.mubr.f32.gmra.mrb[0].mxu0 %v993
  %v1061 = vpop.f32.mrb[0].mxu0
  %v1062 = vadd.f32 0.0, %v1061
  %v1063 = vpop.f32.mrb[0].mxu0
  %1064 = vdwg.mxu0
  %v1065 = vld [vmem:[%s23] sm:$0xff]
  %v1066 = vld [vmem:[%s23 + $0x8] sm:$0xf]
  %1067 = vrot.lane.b32.xlu0 %v381, 116
  %v1068 = vpop.permute.xlu0 %1067
  %1069 = vrot.lane.b32.xlu0 %v381, 68
  %v1070 = vpop.permute.xlu0 %1069
  %v1071 = vsel %vm406, %v1068, 0
  %v1073 = vsel %vm406, %v1070, 0
  %1075 = vmatprep.subr.mxu0 0.0
  %1076 = vmatpush1.xpose.msra.mxu0 %v1073
  %1077 = vmatprep.subr.mxu0 0.0
  %1078 = vmatpush1.xpose.msra.mxu0 0.0
  %1079 = vmatprep.subr.mxu0 0.0
  %1080 = vmatpush1.xpose.msra.mxu0 0.0
  %1081 = vmatprep.subr.mxu0 0.0
  %1082 = vmatpush1.xpose.msra.mxu0 0.0
  %1083 = vmatprep.subr.mxu0 0.0
  %1084 = vmatpush1.xpose.msra.mxu0 0.0
  %1085 = vmatprep.subr.mxu0 0.0
  %1086 = vmatpush1.xpose.msra.mxu0 0.0
  %1087 = vmatprep.subr.mxu0 0.0
  %1088 = vmatpush1.xpose.msra.mxu0 0.0
  %1089 = vmatprep.subr.mxu0 0.0
  %1090 = vmatpush1.xpose.msra.mxu0 0.0
  %1091 = vmatprep.subr.mxu0 0.0
  %1092 = vmatpush1.xpose.msra.mxu0 0.0
  %1093 = vmatprep.subr.mxu0 0.0
  %1094 = vmatpush1.xpose.msra.mxu0 0.0
  %1095 = vmatprep.subr.mxu0 0.0
  %1096 = vmatpush1.xpose.msra.mxu0 0.0
  %1097 = vmatprep.subr.mxu0 0.0
  %1098 = vmatpush1.xpose.msra.mxu0 0.0
  %1099 = vmatprep.subr.mxu0 0.0
  %1100 = vmatpush1.xpose.msra.mxu0 0.0
  %1101 = vmatprep.subr.mxu0 0.0
  %1102 = vmatpush1.xpose.msra.mxu0 0.0
  %1103 = vmatprep.subr.mxu0 0.0
  %1104 = vmatpush1.xpose.msra.mxu0 0.0
  %1105 = vmatprep.subr.mxu0 0.0
  %1106 = vmatpush1.xpose.msra.mxu0 0.0
  %1107 = vmatprep.subr.mxu0 0.0
  %1108 = vmatpush1.xpose.msra.mxu0 0.0
  %1109 = vmatprep.subr.mxu0 0.0
  %1110 = vmatpush1.xpose.msra.mxu0 0.0
  %1111 = vmatprep.subr.mxu0 0.0
  %1112 = vmatpush1.xpose.msra.mxu0 0.0
  %1113 = vmatprep.subr.mxu0 0.0
  %1114 = vmatpush1.xpose.msra.mxu0 0.0
  %1115 = vmatprep.subr.mxu0 0.0
  %1116 = vmatpush1.xpose.msra.mxu0 0.0
  %1117 = vmatprep.subr.mxu0 0.0
  %1118 = vmatpush1.xpose.msra.mxu0 0.0
  %1119 = vmatprep.subr.mxu0 0.0
  %1120 = vmatpush1.xpose.msra.mxu0 0.0
  %1121 = vmatprep.subr.mxu0 0.0
  %1122 = vmatpush1.xpose.msra.mxu0 0.0
  %1123 = vmatprep.subr.mxu0 0.0
  %1124 = vmatpush1.xpose.msra.mxu0 0.0
  %1125 = vmatprep.subr.mxu0 0.0
  %1126 = vmatpush1.xpose.msra.mxu0 0.0
  %1127 = vmatprep.subr.mxu0 0.0
  %1128 = vmatpush1.xpose.msra.mxu0 0.0
  %1129 = vmatprep.subr.mxu0 0.0
  %1130 = vmatpush1.xpose.msra.mxu0 0.0
  %1131 = vmatprep.subr.mxu0 0.0
  %1132 = vmatpush1.xpose.msra.mxu0 0.0
  %1133 = vmatprep.subr.mxu0 0.0
  %1134 = vmatpush1.xpose.msra.mxu0 0.0
  %1135 = vmatprep.subr.mxu0 0.0
  %1136 = vmatpush1.xpose.msra.mxu0 0.0
  %1137 = vmatprep.subr.mxu0 0.0
  %1138 = vmatpush1.xpose.msra.mxu0 0.0
  %1139 = vmatprep.mubr.f32.mxu0 0.0
  %1140 = vmatmul.mubr.f32.gmra.mrb[0].mxu0 %v1071
  %v1141 = vpop.f32.mrb[0].mxu0
  %v1142 = vadd.f32 0.0, %v1141
  %v1143 = vpop.f32.mrb[0].mxu0
  %1144 = vdwg.mxu0
  %1145 = vrot.lane.b32.xlu0 %v387, 116
  %v1146 = vpop.permute.xlu0 %1145
  %1147 = vrot.lane.b32.xlu0 %v387, 68
  %v1148 = vpop.permute.xlu0 %1147
  %v1149 = vsel %vm406, %v1146, 0
  %v1151 = vsel %vm406, %v1148, 0
  %1153 = vmatprep.subr.mxu0 0.0
  %1154 = vmatpush1.xpose.msra.mxu0 %v1151
  %1155 = vmatprep.subr.mxu0 0.0
  %1156 = vmatpush1.xpose.msra.mxu0 0.0
  %1157 = vmatprep.subr.mxu0 0.0
  %1158 = vmatpush1.xpose.msra.mxu0 0.0
  %1159 = vmatprep.subr.mxu0 0.0
  %1160 = vmatpush1.xpose.msra.mxu0 0.0
  %1161 = vmatprep.subr.mxu0 0.0
  %1162 = vmatpush1.xpose.msra.mxu0 0.0
  %1163 = vmatprep.subr.mxu0 0.0
  %1164 = vmatpush1.xpose.msra.mxu0 0.0
  %1165 = vmatprep.subr.mxu0 0.0
  %1166 = vmatpush1.xpose.msra.mxu0 0.0
  %1167 = vmatprep.subr.mxu0 0.0
  %1168 = vmatpush1.xpose.msra.mxu0 0.0
  %1169 = vmatprep.subr.mxu0 0.0
  %1170 = vmatpush1.xpose.msra.mxu0 0.0
  %1171 = vmatprep.subr.mxu0 0.0
  %1172 = vmatpush1.xpose.msra.mxu0 0.0
  %1173 = vmatprep.subr.mxu0 0.0
  %1174 = vmatpush1.xpose.msra.mxu0 0.0
  %1175 = vmatprep.subr.mxu0 0.0
  %1176 = vmatpush1.xpose.msra.mxu0 0.0
  %1177 = vmatprep.subr.mxu0 0.0
  %1178 = vmatpush1.xpose.msra.mxu0 0.0
  %1179 = vmatprep.subr.mxu0 0.0
  %1180 = vmatpush1.xpose.msra.mxu0 0.0
  %1181 = vmatprep.subr.mxu0 0.0
  %1182 = vmatpush1.xpose.msra.mxu0 0.0
  %1183 = vmatprep.subr.mxu0 0.0
  %1184 = vmatpush1.xpose.msra.mxu0 0.0
  %1185 = vmatprep.subr.mxu0 0.0
  %1186 = vmatpush1.xpose.msra.mxu0 0.0
  %1187 = vmatprep.subr.mxu0 0.0
  %1188 = vmatpush1.xpose.msra.mxu0 0.0
  %1189 = vmatprep.subr.mxu0 0.0
  %1190 = vmatpush1.xpose.msra.mxu0 0.0
  %1191 = vmatprep.subr.mxu0 0.0
  %1192 = vmatpush1.xpose.msra.mxu0 0.0
  %1193 = vmatprep.subr.mxu0 0.0
  %1194 = vmatpush1.xpose.msra.mxu0 0.0
  %1195 = vmatprep.subr.mxu0 0.0
  %1196 = vmatpush1.xpose.msra.mxu0 0.0
  %1197 = vmatprep.subr.mxu0 0.0
  %1198 = vmatpush1.xpose.msra.mxu0 0.0
  %1199 = vmatprep.subr.mxu0 0.0
  %1200 = vmatpush1.xpose.msra.mxu0 0.0
  %1201 = vmatprep.subr.mxu0 0.0
  %1202 = vmatpush1.xpose.msra.mxu0 0.0
  %1203 = vmatprep.subr.mxu0 0.0
  %1204 = vmatpush1.xpose.msra.mxu0 0.0
  %1205 = vmatprep.subr.mxu0 0.0
  %1206 = vmatpush1.xpose.msra.mxu0 0.0
  %1207 = vmatprep.subr.mxu0 0.0
  %1208 = vmatpush1.xpose.msra.mxu0 0.0
  %1209 = vmatprep.subr.mxu0 0.0
  %1210 = vmatpush1.xpose.msra.mxu0 0.0
  %1211 = vmatprep.subr.mxu0 0.0
  %1212 = vmatpush1.xpose.msra.mxu0 0.0
  %1213 = vmatprep.subr.mxu0 0.0
  %1214 = vmatpush1.xpose.msra.mxu0 0.0
  %1215 = vmatprep.subr.mxu0 0.0
  %1216 = vmatpush1.xpose.msra.mxu0 0.0
  %1217 = vmatprep.mubr.f32.mxu0 0.0
  %1218 = vmatmul.mubr.f32.gmra.mrb[0].mxu0 %v1149
  %v1219 = vpop.f32.mrb[0].mxu0
  %v1220 = vadd.f32 0.0, %v1219
  %v1221 = vpop.f32.mrb[0].mxu0
  %1222 = vdwg.mxu0
  %1223 = vrot.lane.b32.xlu0 %v393, 116
  %v1224 = vpop.permute.xlu0 %1223
  %1225 = vrot.lane.b32.xlu0 %v393, 68
  %v1226 = vpop.permute.xlu0 %1225
  %v1227 = vsel %vm406, %v1224, 0
  %v1229 = vsel %vm406, %v1226, 0
  %1231 = vmatprep.subr.mxu0 0.0
  %1232 = vmatpush1.xpose.msra.mxu0 %v1229
  %1233 = vmatprep.subr.mxu0 0.0
  %1234 = vmatpush1.xpose.msra.mxu0 0.0
  %1235 = vmatprep.subr.mxu0 0.0
  %1236 = vmatpush1.xpose.msra.mxu0 0.0
  %1237 = vmatprep.subr.mxu0 0.0
  %1238 = vmatpush1.xpose.msra.mxu0 0.0
  %1239 = vmatprep.subr.mxu0 0.0
  %1240 = vmatpush1.xpose.msra.mxu0 0.0
  %1241 = vmatprep.subr.mxu0 0.0
  %1242 = vmatpush1.xpose.msra.mxu0 0.0
  %1243 = vmatprep.subr.mxu0 0.0
  %1244 = vmatpush1.xpose.msra.mxu0 0.0
  %1245 = vmatprep.subr.mxu0 0.0
  %1246 = vmatpush1.xpose.msra.mxu0 0.0
  %1247 = vmatprep.subr.mxu0 0.0
  %1248 = vmatpush1.xpose.msra.mxu0 0.0
  %1249 = vmatprep.subr.mxu0 0.0
  %1250 = vmatpush1.xpose.msra.mxu0 0.0
  %1251 = vmatprep.subr.mxu0 0.0
  %1252 = vmatpush1.xpose.msra.mxu0 0.0
  %1253 = vmatprep.subr.mxu0 0.0
  %1254 = vmatpush1.xpose.msra.mxu0 0.0
  %1255 = vmatprep.subr.mxu0 0.0
  %1256 = vmatpush1.xpose.msra.mxu0 0.0
  %1257 = vmatprep.subr.mxu0 0.0
  %1258 = vmatpush1.xpose.msra.mxu0 0.0
  %1259 = vmatprep.subr.mxu0 0.0
  %1260 = vmatpush1.xpose.msra.mxu0 0.0
  %1261 = vmatprep.subr.mxu0 0.0
  %1262 = vmatpush1.xpose.msra.mxu0 0.0
  %1263 = vmatprep.subr.mxu0 0.0
  %1264 = vmatpush1.xpose.msra.mxu0 0.0
  %1265 = vmatprep.subr.mxu0 0.0
  %1266 = vmatpush1.xpose.msra.mxu0 0.0
  %1267 = vmatprep.subr.mxu0 0.0
  %1268 = vmatpush1.xpose.msra.mxu0 0.0
  %1269 = vmatprep.subr.mxu0 0.0
  %1270 = vmatpush1.xpose.msra.mxu0 0.0
  %1271 = vmatprep.subr.mxu0 0.0
  %1272 = vmatpush1.xpose.msra.mxu0 0.0
  %1273 = vmatprep.subr.mxu0 0.0
  %1274 = vmatpush1.xpose.msra.mxu0 0.0
  %1275 = vmatprep.subr.mxu0 0.0
  %1276 = vmatpush1.xpose.msra.mxu0 0.0
  %1277 = vmatprep.subr.mxu0 0.0
  %1278 = vmatpush1.xpose.msra.mxu0 0.0
  %1279 = vmatprep.subr.mxu0 0.0
  %1280 = vmatpush1.xpose.msra.mxu0 0.0
  %1281 = vmatprep.subr.mxu0 0.0
  %1282 = vmatpush1.xpose.msra.mxu0 0.0
  %1283 = vmatprep.subr.mxu0 0.0
  %1284 = vmatpush1.xpose.msra.mxu0 0.0
  %1285 = vmatprep.subr.mxu0 0.0
  %1286 = vmatpush1.xpose.msra.mxu0 0.0
  %1287 = vmatprep.subr.mxu0 0.0
  %1288 = vmatpush1.xpose.msra.mxu0 0.0
  %1289 = vmatprep.subr.mxu0 0.0
  %1290 = vmatpush1.xpose.msra.mxu0 0.0
  %1291 = vmatprep.subr.mxu0 0.0
  %1292 = vmatpush1.xpose.msra.mxu0 0.0
  %1293 = vmatprep.subr.mxu0 0.0
  %1294 = vmatpush1.xpose.msra.mxu0 0.0
  %1295 = vmatprep.mubr.f32.mxu0 0.0
  %1296 = vmatmul.mubr.f32.gmra.mrb[0].mxu0 %v1227
  %v1297 = vpop.f32.mrb[0].mxu0
  %v1298 = vadd.f32 0.0, %v1297
  %v1299 = vpop.f32.mrb[0].mxu0
  %1300 = vdwg.mxu0
  %1301 = vrot.lane.b32.xlu0 %v399, 116
  %v1302 = vpop.permute.xlu0 %1301
  %1303 = vrot.lane.b32.xlu0 %v399, 68
  %v1304 = vpop.permute.xlu0 %1303
  %v1305 = vsel %vm406, %v1302, 0
  %v1307 = vsel %vm406, %v1304, 0
  %1309 = vmatprep.subr.mxu0 0.0
  %1310 = vmatpush1.xpose.msra.mxu0 %v1307
  %1311 = vmatprep.subr.mxu0 0.0
  %1312 = vmatpush1.xpose.msra.mxu0 0.0
  %1313 = vmatprep.subr.mxu0 0.0
  %1314 = vmatpush1.xpose.msra.mxu0 0.0
  %1315 = vmatprep.subr.mxu0 0.0
  %1316 = vmatpush1.xpose.msra.mxu0 0.0
  %1317 = vmatprep.subr.mxu0 0.0
  %1318 = vmatpush1.xpose.msra.mxu0 0.0
  %1319 = vmatprep.subr.mxu0 0.0
  %1320 = vmatpush1.xpose.msra.mxu0 0.0
  %1321 = vmatprep.subr.mxu0 0.0
  %1322 = vmatpush1.xpose.msra.mxu0 0.0
  %1323 = vmatprep.subr.mxu0 0.0
  %1324 = vmatpush1.xpose.msra.mxu0 0.0
  %1325 = vmatprep.subr.mxu0 0.0
  %1326 = vmatpush1.xpose.msra.mxu0 0.0
  %1327 = vmatprep.subr.mxu0 0.0
  %1328 = vmatpush1.xpose.msra.mxu0 0.0
  %1329 = vmatprep.subr.mxu0 0.0
  %1330 = vmatpush1.xpose.msra.mxu0 0.0
  %1331 = vmatprep.subr.mxu0 0.0
  %1332 = vmatpush1.xpose.msra.mxu0 0.0
  %1333 = vmatprep.subr.mxu0 0.0
  %1334 = vmatpush1.xpose.msra.mxu0 0.0
  %1335 = vmatprep.subr.mxu0 0.0
  %1336 = vmatpush1.xpose.msra.mxu0 0.0
  %1337 = vmatprep.subr.mxu0 0.0
  %1338 = vmatpush1.xpose.msra.mxu0 0.0
  %1339 = vmatprep.subr.mxu0 0.0
  %1340 = vmatpush1.xpose.msra.mxu0 0.0
  %1341 = vmatprep.subr.mxu0 0.0
  %1342 = vmatpush1.xpose.msra.mxu0 0.0
  %1343 = vmatprep.subr.mxu0 0.0
  %1344 = vmatpush1.xpose.msra.mxu0 0.0
  %1345 = vmatprep.subr.mxu0 0.0
  %1346 = vmatpush1.xpose.msra.mxu0 0.0
  %1347 = vmatprep.subr.mxu0 0.0
  %1348 = vmatpush1.xpose.msra.mxu0 0.0
  %1349 = vmatprep.subr.mxu0 0.0
  %1350 = vmatpush1.xpose.msra.mxu0 0.0
  %1351 = vmatprep.subr.mxu0 0.0
  %1352 = vmatpush1.xpose.msra.mxu0 0.0
  %1353 = vmatprep.subr.mxu0 0.0
  %1354 = vmatpush1.xpose.msra.mxu0 0.0
  %1355 = vmatprep.subr.mxu0 0.0
  %1356 = vmatpush1.xpose.msra.mxu0 0.0
  %1357 = vmatprep.subr.mxu0 0.0
  %1358 = vmatpush1.xpose.msra.mxu0 0.0
  %1359 = vmatprep.subr.mxu0 0.0
  %1360 = vmatpush1.xpose.msra.mxu0 0.0
  %1361 = vmatprep.subr.mxu0 0.0
  %1362 = vmatpush1.xpose.msra.mxu0 0.0
  %1363 = vmatprep.subr.mxu0 0.0
  %1364 = vmatpush1.xpose.msra.mxu0 0.0
  %1365 = vmatprep.subr.mxu0 0.0
  %1366 = vmatpush1.xpose.msra.mxu0 0.0
  %1367 = vmatprep.subr.mxu0 0.0
  %1368 = vmatpush1.xpose.msra.mxu0 0.0
  %1369 = vmatprep.subr.mxu0 0.0
  %1370 = vmatpush1.xpose.msra.mxu0 0.0
  %1371 = vmatprep.subr.mxu0 0.0
  %1372 = vmatpush1.xpose.msra.mxu0 0.0
  %1373 = vmatprep.mubr.f32.mxu0 0.0
  %1374 = vmatmul.mubr.f32.gmra.mrb[0].mxu0 %v1305
  %v1375 = vpop.f32.mrb[0].mxu0
  %v1376 = vadd.f32 0.0, %v1375
  %v1377 = vpop.f32.mrb[0].mxu0
  %1378 = vdwg.mxu0
  %v1379 = vmul.f32 %v1142, 0.28867513
  %v1380 = vmul.f32 %v1220, 0.28867513
  %v1381 = vmul.f32 %v1298, 0.28867513
  %v1382 = vmul.f32 %v1376, 0.28867513
  %v1383 = vsel %vm716, %v1379, -inf
  %1384 = vmax.xlane.f32.xlu0 %v1383
  %v1385 = vpop.xlane.xlu0 %1384
  %v1386 = vsel %vm716, %v1380, -inf
  %1387 = vmax.xlane.f32.xlu0 %v1386
  %v1388 = vpop.xlane.xlu0 %1387
  %v1389 = vsel %vm716, %v1381, -inf
  %1390 = vmax.xlane.f32.xlu0 %v1389
  %v1391 = vpop.xlane.xlu0 %1390
  %v1392 = vsel %vm716, %v1382, -inf
  %1393 = vmax.xlane.f32.xlu0 %v1392
  %v1394 = vpop.xlane.xlu0 %1393
  %v1395 = vsub.f32 %v1379, %v1385
  %v1396 = vsub.f32 %v1380, %v1388
  %v1397 = vsub.f32 %v1381, %v1391
  %v1398 = vsub.f32 %v1382, %v1394
  %v1399 = vmul.f32 %v1395, 1.442695
  %v1400 = vpow.pop %v1399
  %v1401 = vmul.f32 %v1396, 1.442695
  %v1402 = vpow.pop %v1401
  %v1403 = vmul.f32 %v1397, 1.442695
  %v1404 = vpow.pop %v1403
  %v1405 = vmul.f32 %v1398, 1.442695
  %v1406 = vpow.pop %v1405
  %v1407 = vsel %vm716, %v1400, 0.0
  %1408 = vadd.xlane.f32.xlu0 %v1407
  %v1409 = vpop.xlane.xlu0 %1408
  %v1410 = vsel %vm716, %v1402, 0.0
  %1411 = vadd.xlane.f32.xlu0 %v1410
  %v1412 = vpop.xlane.xlu0 %1411
  %v1413 = vsel %vm716, %v1404, 0.0
  %1414 = vadd.xlane.f32.xlu0 %v1413
  %v1415 = vpop.xlane.xlu0 %1414
  %v1416 = vsel %vm716, %v1406, 0.0
  %1417 = vadd.xlane.f32.xlu0 %v1416
  %v1418 = vpop.xlane.xlu0 %1417
  %v1419 = vrcp.pop %v1409
  %v1420 = vmul.f32 %v1400, %v1419
  %v1421 = vrcp.pop %v1412
  %v1422 = vmul.f32 %v1402, %v1421
  %v1423 = vrcp.pop %v1415
  %v1424 = vmul.f32 %v1404, %v1423
  %v1425 = vrcp.pop %v1418
  %v1426 = vmul.f32 %v1406, %v1425
  %1427 = vrot.lane.b32.xlu0 %v381, 20
  %v1428 = vpop.permute.xlu0 %1427
  %v1431 = vsel %vm716, %v1420, 0
  %1433 = vmatprep.subr.mxu0 0.0
  %1434 = vmatpush1.msra.mxu0 %v1428
  %1435 = vmatprep.subr.mxu0 0.0
  %1436 = vmatpush1.msra.mxu0 0.0
  %1437 = vmatprep.subr.mxu0 0.0
  %1438 = vmatpush1.msra.mxu0 0.0
  %1439 = vmatprep.subr.mxu0 0.0
  %1440 = vmatpush1.msra.mxu0 0.0
  %1441 = vmatprep.subr.mxu0 0.0
  %1442 = vmatpush1.msra.mxu0 0.0
  %1443 = vmatprep.subr.mxu0 0.0
  %1444 = vmatpush1.msra.mxu0 0.0
  %1445 = vmatprep.subr.mxu0 0.0
  %1446 = vmatpush1.msra.mxu0 0.0
  %1447 = vmatprep.subr.mxu0 0.0
  %1448 = vmatpush1.msra.mxu0 0.0
  %1449 = vmatprep.subr.mxu0 0.0
  %1450 = vmatpush1.msra.mxu0 0.0
  %1451 = vmatprep.subr.mxu0 0.0
  %1452 = vmatpush1.msra.mxu0 0.0
  %1453 = vmatprep.subr.mxu0 0.0
  %1454 = vmatpush1.msra.mxu0 0.0
  %1455 = vmatprep.subr.mxu0 0.0
  %1456 = vmatpush1.msra.mxu0 0.0
  %1457 = vmatprep.subr.mxu0 0.0
  %1458 = vmatpush1.msra.mxu0 0.0
  %1459 = vmatprep.subr.mxu0 0.0
  %1460 = vmatpush1.msra.mxu0 0.0
  %1461 = vmatprep.subr.mxu0 0.0
  %1462 = vmatpush1.msra.mxu0 0.0
  %1463 = vmatprep.subr.mxu0 0.0
  %1464 = vmatpush1.msra.mxu0 0.0
  %1465 = vmatprep.subr.mxu0 0.0
  %1466 = vmatpush1.msra.mxu0 0.0
  %1467 = vmatprep.subr.mxu0 0.0
  %1468 = vmatpush1.msra.mxu0 0.0
  %1469 = vmatprep.subr.mxu0 0.0
  %1470 = vmatpush1.msra.mxu0 0.0
  %1471 = vmatprep.subr.mxu0 0.0
  %1472 = vmatpush1.msra.mxu0 0.0
  %1473 = vmatprep.subr.mxu0 0.0
  %1474 = vmatpush1.msra.mxu0 0.0
  %1475 = vmatprep.subr.mxu0 0.0
  %1476 = vmatpush1.msra.mxu0 0.0
  %1477 = vmatprep.subr.mxu0 0.0
  %1478 = vmatpush1.msra.mxu0 0.0
  %1479 = vmatprep.subr.mxu0 0.0
  %1480 = vmatpush1.msra.mxu0 0.0
  %1481 = vmatprep.subr.mxu0 0.0
  %1482 = vmatpush1.msra.mxu0 0.0
  %1483 = vmatprep.subr.mxu0 0.0
  %1484 = vmatpush1.msra.mxu0 0.0
  %1485 = vmatprep.subr.mxu0 0.0
  %1486 = vmatpush1.msra.mxu0 0.0
  %1487 = vmatprep.subr.mxu0 0.0
  %1488 = vmatpush1.msra.mxu0 0.0
  %1489 = vmatprep.subr.mxu0 0.0
  %1490 = vmatpush1.msra.mxu0 0.0
  %1491 = vmatprep.subr.mxu0 0.0
  %1492 = vmatpush1.msra.mxu0 0.0
  %1493 = vmatprep.subr.mxu0 0.0
  %1494 = vmatpush1.msra.mxu0 0.0
  %1495 = vmatprep.subr.mxu0 0.0
  %1496 = vmatpush1.msra.mxu0 0.0
  %1497 = vmatprep.mubr.f32.mxu0 0.0
  %1498 = vmatmul.mubr.f32.gmra.mrb[0].mxu0 %v1431
  %v1499 = vpop.f32.mrb[0].mxu0
  %v1500 = vadd.f32 0.0, %v1499
  %v1501 = vpop.f32.mrb[0].mxu0
  %1502 = vdwg.mxu0
  %1503 = vrot.lane.b32.xlu0 %v387, 20
  %v1504 = vpop.permute.xlu0 %1503
  %v1507 = vsel %vm716, %v1422, 0
  %1509 = vmatprep.subr.mxu0 0.0
  %1510 = vmatpush1.msra.mxu0 %v1504
  %1511 = vmatprep.subr.mxu0 0.0
  %1512 = vmatpush1.msra.mxu0 0.0
  %1513 = vmatprep.subr.mxu0 0.0
  %1514 = vmatpush1.msra.mxu0 0.0
  %1515 = vmatprep.subr.mxu0 0.0
  %1516 = vmatpush1.msra.mxu0 0.0
  %1517 = vmatprep.subr.mxu0 0.0
  %1518 = vmatpush1.msra.mxu0 0.0
  %1519 = vmatprep.subr.mxu0 0.0
  %1520 = vmatpush1.msra.mxu0 0.0
  %1521 = vmatprep.subr.mxu0 0.0
  %1522 = vmatpush1.msra.mxu0 0.0
  %1523 = vmatprep.subr.mxu0 0.0
  %1524 = vmatpush1.msra.mxu0 0.0
  %1525 = vmatprep.subr.mxu0 0.0
  %1526 = vmatpush1.msra.mxu0 0.0
  %1527 = vmatprep.subr.mxu0 0.0
  %1528 = vmatpush1.msra.mxu0 0.0
  %1529 = vmatprep.subr.mxu0 0.0
  %1530 = vmatpush1.msra.mxu0 0.0
  %1531 = vmatprep.subr.mxu0 0.0
  %1532 = vmatpush1.msra.mxu0 0.0
  %1533 = vmatprep.subr.mxu0 0.0
  %1534 = vmatpush1.msra.mxu0 0.0
  %1535 = vmatprep.subr.mxu0 0.0
  %1536 = vmatpush1.msra.mxu0 0.0
  %1537 = vmatprep.subr.mxu0 0.0
  %1538 = vmatpush1.msra.mxu0 0.0
  %1539 = vmatprep.subr.mxu0 0.0
  %1540 = vmatpush1.msra.mxu0 0.0
  %1541 = vmatprep.subr.mxu0 0.0
  %1542 = vmatpush1.msra.mxu0 0.0
  %1543 = vmatprep.subr.mxu0 0.0
  %1544 = vmatpush1.msra.mxu0 0.0
  %1545 = vmatprep.subr.mxu0 0.0
  %1546 = vmatpush1.msra.mxu0 0.0
  %1547 = vmatprep.subr.mxu0 0.0
  %1548 = vmatpush1.msra.mxu0 0.0
  %1549 = vmatprep.subr.mxu0 0.0
  %1550 = vmatpush1.msra.mxu0 0.0
  %1551 = vmatprep.subr.mxu0 0.0
  %1552 = vmatpush1.msra.mxu0 0.0
  %1553 = vmatprep.subr.mxu0 0.0
  %1554 = vmatpush1.msra.mxu0 0.0
  %1555 = vmatprep.subr.mxu0 0.0
  %1556 = vmatpush1.msra.mxu0 0.0
  %1557 = vmatprep.subr.mxu0 0.0
  %1558 = vmatpush1.msra.mxu0 0.0
  %1559 = vmatprep.subr.mxu0 0.0
  %1560 = vmatpush1.msra.mxu0 0.0
  %1561 = vmatprep.subr.mxu0 0.0
  %1562 = vmatpush1.msra.mxu0 0.0
  %1563 = vmatprep.subr.mxu0 0.0
  %1564 = vmatpush1.msra.mxu0 0.0
  %1565 = vmatprep.subr.mxu0 0.0
  %1566 = vmatpush1.msra.mxu0 0.0
  %1567 = vmatprep.subr.mxu0 0.0
  %1568 = vmatpush1.msra.mxu0 0.0
  %1569 = vmatprep.subr.mxu0 0.0
  %1570 = vmatpush1.msra.mxu0 0.0
  %1571 = vmatprep.subr.mxu0 0.0
  %1572 = vmatpush1.msra.mxu0 0.0
  %1573 = vmatprep.mubr.f32.mxu0 0.0
  %1574 = vmatmul.mubr.f32.gmra.mrb[0].mxu0 %v1507
  %v1575 = vpop.f32.mrb[0].mxu0
  %v1576 = vadd.f32 0.0, %v1575
  %v1577 = vpop.f32.mrb[0].mxu0
  %1578 = vdwg.mxu0
  %1579 = vrot.lane.b32.xlu0 %v393, 20
  %v1580 = vpop.permute.xlu0 %1579
  %v1583 = vsel %vm716, %v1424, 0
  %1585 = vmatprep.subr.mxu0 0.0
  %1586 = vmatpush1.msra.mxu0 %v1580
  %1587 = vmatprep.subr.mxu0 0.0
  %1588 = vmatpush1.msra.mxu0 0.0
  %1589 = vmatprep.subr.mxu0 0.0
  %1590 = vmatpush1.msra.mxu0 0.0
  %1591 = vmatprep.subr.mxu0 0.0
  %1592 = vmatpush1.msra.mxu0 0.0
  %1593 = vmatprep.subr.mxu0 0.0
  %1594 = vmatpush1.msra.mxu0 0.0
  %1595 = vmatprep.subr.mxu0 0.0
  %1596 = vmatpush1.msra.mxu0 0.0
  %1597 = vmatprep.subr.mxu0 0.0
  %1598 = vmatpush1.msra.mxu0 0.0
  %1599 = vmatprep.subr.mxu0 0.0
  %1600 = vmatpush1.msra.mxu0 0.0
  %1601 = vmatprep.subr.mxu0 0.0
  %1602 = vmatpush1.msra.mxu0 0.0
  %1603 = vmatprep.subr.mxu0 0.0
  %1604 = vmatpush1.msra.mxu0 0.0
  %1605 = vmatprep.subr.mxu0 0.0
  %1606 = vmatpush1.msra.mxu0 0.0
  %1607 = vmatprep.subr.mxu0 0.0
  %1608 = vmatpush1.msra.mxu0 0.0
  %1609 = vmatprep.subr.mxu0 0.0
  %1610 = vmatpush1.msra.mxu0 0.0
  %1611 = vmatprep.subr.mxu0 0.0
  %1612 = vmatpush1.msra.mxu0 0.0
  %1613 = vmatprep.subr.mxu0 0.0
  %1614 = vmatpush1.msra.mxu0 0.0
  %1615 = vmatprep.subr.mxu0 0.0
  %1616 = vmatpush1.msra.mxu0 0.0
  %1617 = vmatprep.subr.mxu0 0.0
  %1618 = vmatpush1.msra.mxu0 0.0
  %1619 = vmatprep.subr.mxu0 0.0
  %1620 = vmatpush1.msra.mxu0 0.0
  %1621 = vmatprep.subr.mxu0 0.0
  %1622 = vmatpush1.msra.mxu0 0.0
  %1623 = vmatprep.subr.mxu0 0.0
  %1624 = vmatpush1.msra.mxu0 0.0
  %1625 = vmatprep.subr.mxu0 0.0
  %1626 = vmatpush1.msra.mxu0 0.0
  %1627 = vmatprep.subr.mxu0 0.0
  %1628 = vmatpush1.msra.mxu0 0.0
  %1629 = vmatprep.subr.mxu0 0.0
  %1630 = vmatpush1.msra.mxu0 0.0
  %1631 = vmatprep.subr.mxu0 0.0
  %1632 = vmatpush1.msra.mxu0 0.0
  %1633 = vmatprep.subr.mxu0 0.0
  %1634 = vmatpush1.msra.mxu0 0.0
  %1635 = vmatprep.subr.mxu0 0.0
  %1636 = vmatpush1.msra.mxu0 0.0
  %1637 = vmatprep.subr.mxu0 0.0
  %1638 = vmatpush1.msra.mxu0 0.0
  %1639 = vmatprep.subr.mxu0 0.0
  %1640 = vmatpush1.msra.mxu0 0.0
  %1641 = vmatprep.subr.mxu0 0.0
  %1642 = vmatpush1.msra.mxu0 0.0
  %1643 = vmatprep.subr.mxu0 0.0
  %1644 = vmatpush1.msra.mxu0 0.0
  %1645 = vmatprep.subr.mxu0 0.0
  %1646 = vmatpush1.msra.mxu0 0.0
  %1647 = vmatprep.subr.mxu0 0.0
  %1648 = vmatpush1.msra.mxu0 0.0
  %1649 = vmatprep.mubr.f32.mxu0 0.0
  %1650 = vmatmul.mubr.f32.gmra.mrb[0].mxu0 %v1583
  %v1651 = vpop.f32.mrb[0].mxu0
  %v1652 = vadd.f32 0.0, %v1651
  %v1653 = vpop.f32.mrb[0].mxu0
  %1654 = vdwg.mxu0
  %1655 = vrot.lane.b32.xlu0 %v399, 20
  %v1656 = vpop.permute.xlu0 %1655
  %v1659 = vsel %vm716, %v1426, 0
  %1661 = vmatprep.subr.mxu0 0.0
  %1662 = vmatpush1.msra.mxu0 %v1656
  %1663 = vmatprep.subr.mxu0 0.0
  %1664 = vmatpush1.msra.mxu0 0.0
  %1665 = vmatprep.subr.mxu0 0.0
  %1666 = vmatpush1.msra.mxu0 0.0
  %1667 = vmatprep.subr.mxu0 0.0
  %1668 = vmatpush1.msra.mxu0 0.0
  %1669 = vmatprep.subr.mxu0 0.0
  %1670 = vmatpush1.msra.mxu0 0.0
  %1671 = vmatprep.subr.mxu0 0.0
  %1672 = vmatpush1.msra.mxu0 0.0
  %1673 = vmatprep.subr.mxu0 0.0
  %1674 = vmatpush1.msra.mxu0 0.0
  %1675 = vmatprep.subr.mxu0 0.0
  %1676 = vmatpush1.msra.mxu0 0.0
  %1677 = vmatprep.subr.mxu0 0.0
  %1678 = vmatpush1.msra.mxu0 0.0
  %1679 = vmatprep.subr.mxu0 0.0
  %1680 = vmatpush1.msra.mxu0 0.0
  %1681 = vmatprep.subr.mxu0 0.0
  %1682 = vmatpush1.msra.mxu0 0.0
  %1683 = vmatprep.subr.mxu0 0.0
  %1684 = vmatpush1.msra.mxu0 0.0
  %1685 = vmatprep.subr.mxu0 0.0
  %1686 = vmatpush1.msra.mxu0 0.0
  %1687 = vmatprep.subr.mxu0 0.0
  %1688 = vmatpush1.msra.mxu0 0.0
  %1689 = vmatprep.subr.mxu0 0.0
  %1690 = vmatpush1.msra.mxu0 0.0
  %1691 = vmatprep.subr.mxu0 0.0
  %1692 = vmatpush1.msra.mxu0 0.0
  %1693 = vmatprep.subr.mxu0 0.0
  %1694 = vmatpush1.msra.mxu0 0.0
  %1695 = vmatprep.subr.mxu0 0.0
  %1696 = vmatpush1.msra.mxu0 0.0
  %1697 = vmatprep.subr.mxu0 0.0
  %1698 = vmatpush1.msra.mxu0 0.0
  %1699 = vmatprep.subr.mxu0 0.0
  %1700 = vmatpush1.msra.mxu0 0.0
  %1701 = vmatprep.subr.mxu0 0.0
  %1702 = vmatpush1.msra.mxu0 0.0
  %1703 = vmatprep.subr.mxu0 0.0
  %1704 = vmatpush1.msra.mxu0 0.0
  %1705 = vmatprep.subr.mxu0 0.0
  %1706 = vmatpush1.msra.mxu0 0.0
  %1707 = vmatprep.subr.mxu0 0.0
  %1708 = vmatpush1.msra.mxu0 0.0
  %1709 = vmatprep.subr.mxu0 0.0
  %1710 = vmatpush1.msra.mxu0 0.0
  %1711 = vmatprep.subr.mxu0 0.0
  %1712 = vmatpush1.msra.mxu0 0.0
  %1713 = vmatprep.subr.mxu0 0.0
  %1714 = vmatpush1.msra.mxu0 0.0
  %1715 = vmatprep.subr.mxu0 0.0
  %1716 = vmatpush1.msra.mxu0 0.0
  %1717 = vmatprep.subr.mxu0 0.0
  %1718 = vmatpush1.msra.mxu0 0.0
  %1719 = vmatprep.subr.mxu0 0.0
  %1720 = vmatpush1.msra.mxu0 0.0
  %1721 = vmatprep.subr.mxu0 0.0
  %1722 = vmatpush1.msra.mxu0 0.0
  %1723 = vmatprep.subr.mxu0 0.0
  %1724 = vmatpush1.msra.mxu0 0.0
  %1725 = vmatprep.mubr.f32.mxu0 0.0
  %1726 = vmatmul.mubr.f32.gmra.mrb[0].mxu0 %v1659
  %v1727 = vpop.f32.mrb[0].mxu0
  %v1728 = vadd.f32 0.0, %v1727
  %v1729 = vpop.f32.mrb[0].mxu0
  %1730 = vdwg.mxu0
  %s1731 = scalar_lea.vmem %s23, 16
  %v1732 = vld [vmem:[%s1731] sm:$0xff]
  %v1733 = vld [vmem:[%s1731 + $0x8] sm:$0xf]
  %v1735 = vsel %vm406, %v1500, 0
  %v1738 = vsel %vm406, %v1576, 0
  %v1741 = vsel %vm406, %v1652, 0
  %v1744 = vsel %vm406, %v1728, 0
  %vm1746 = vcmask 1043456
  %v1748 = vsel %vm1746, %v1733, 0
  %1750 = vmatprep.subr.mxu0 0.0
  %1751 = vmatpush1.msra.mxu0 %v1732
  %1752 = vmatprep.subr.mxu0 0.0
  %1753 = vmatpush1.msra.mxu0 %v1748
  %1754 = vmatprep.subr.mxu0 0.0
  %1755 = vmatpush1.msra.mxu0 0.0
  %1756 = vmatprep.subr.mxu0 0.0
  %1757 = vmatpush1.msra.mxu0 0.0
  %1758 = vmatprep.subr.mxu0 0.0
  %1759 = vmatpush1.msra.mxu0 0.0
  %1760 = vmatprep.subr.mxu0 0.0
  %1761 = vmatpush1.msra.mxu0 0.0
  %1762 = vmatprep.subr.mxu0 0.0
  %1763 = vmatpush1.msra.mxu0 0.0
  %1764 = vmatprep.subr.mxu0 0.0
  %1765 = vmatpush1.msra.mxu0 0.0
  %1766 = vmatprep.subr.mxu0 0.0
  %1767 = vmatpush1.msra.mxu0 0.0
  %1768 = vmatprep.subr.mxu0 0.0
  %1769 = vmatpush1.msra.mxu0 0.0
  %1770 = vmatprep.subr.mxu0 0.0
  %1771 = vmatpush1.msra.mxu0 0.0
  %1772 = vmatprep.subr.mxu0 0.0
  %1773 = vmatpush1.msra.mxu0 0.0
  %1774 = vmatprep.subr.mxu0 0.0
  %1775 = vmatpush1.msra.mxu0 0.0
  %1776 = vmatprep.subr.mxu0 0.0
  %1777 = vmatpush1.msra.mxu0 0.0
  %1778 = vmatprep.subr.mxu0 0.0
  %1779 = vmatpush1.msra.mxu0 0.0
  %1780 = vmatprep.subr.mxu0 0.0
  %1781 = vmatpush1.msra.mxu0 0.0
  %1782 = vmatprep.subr.mxu0 0.0
  %1783 = vmatpush1.msra.mxu0 0.0
  %1784 = vmatprep.subr.mxu0 0.0
  %1785 = vmatpush1.msra.mxu0 0.0
  %1786 = vmatprep.subr.mxu0 0.0
  %1787 = vmatpush1.msra.mxu0 0.0
  %1788 = vmatprep.subr.mxu0 0.0
  %1789 = vmatpush1.msra.mxu0 0.0
  %1790 = vmatprep.subr.mxu0 0.0
  %1791 = vmatpush1.msra.mxu0 0.0
  %1792 = vmatprep.subr.mxu0 0.0
  %1793 = vmatpush1.msra.mxu0 0.0
  %1794 = vmatprep.subr.mxu0 0.0
  %1795 = vmatpush1.msra.mxu0 0.0
  %1796 = vmatprep.subr.mxu0 0.0
  %1797 = vmatpush1.msra.mxu0 0.0
  %1798 = vmatprep.subr.mxu0 0.0
  %1799 = vmatpush1.msra.mxu0 0.0
  %1800 = vmatprep.subr.mxu0 0.0
  %1801 = vmatpush1.msra.mxu0 0.0
  %1802 = vmatprep.subr.mxu0 0.0
  %1803 = vmatpush1.msra.mxu0 0.0
  %1804 = vmatprep.subr.mxu0 0.0
  %1805 = vmatpush1.msra.mxu0 0.0
  %1806 = vmatprep.subr.mxu0 0.0
  %1807 = vmatpush1.msra.mxu0 0.0
  %1808 = vmatprep.subr.mxu0 0.0
  %1809 = vmatpush1.msra.mxu0 0.0
  %1810 = vmatprep.subr.mxu0 0.0
  %1811 = vmatpush1.msra.mxu0 0.0
  %1812 = vmatprep.subr.mxu0 0.0
  %1813 = vmatpush1.msra.mxu0 0.0
  %1814 = vmatprep.mubr.f32.mxu0 0.0
  %1815 = vmatmul.mubr.f32.gmra.mrb[0].mxu0 %v1735
  %v1816 = vpop.f32.mrb[0].mxu0
  %v1817 = vadd.f32 0.0, %v1816
  %v1818 = vpop.f32.mrb[0].mxu0
  %1819 = vmatprep.mubr.f32.mxu0 0.0
  %1820 = vmatmul.mubr.f32.gmra.mrb[0].mxu0 %v1738
  %v1821 = vpop.f32.mrb[0].mxu0
  %v1822 = vadd.f32 0.0, %v1821
  %v1823 = vpop.f32.mrb[0].mxu0
  %1824 = vmatprep.mubr.f32.mxu0 0.0
  %1825 = vmatmul.mubr.f32.gmra.mrb[0].mxu0 %v1741
  %v1826 = vpop.f32.mrb[0].mxu0
  %v1827 = vadd.f32 0.0, %v1826
  %v1828 = vpop.f32.mrb[0].mxu0
  %1829 = vmatprep.mubr.f32.mxu0 0.0
  %1830 = vmatmul.mubr.f32.gmra.mrb[0].mxu0 %v1744
  %v1831 = vpop.f32.mrb[0].mxu0
  %v1832 = vadd.f32 0.0, %v1831
  %v1833 = vpop.f32.mrb[0].mxu0
  %1834 = vdwg.mxu0
  %v1836 = vsel %vm406, %v834, 0
  %v1839 = vsel %vm406, %v910, 0
  %v1842 = vsel %vm406, %v986, 0
  %v1845 = vsel %vm406, %v1062, 0
  %v1848 = vsel %vm1746, %v1066, 0
  %1850 = vmatprep.subr.mxu0 0.0
  %1851 = vmatpush1.msra.mxu0 %v1065
  %1852 = vmatprep.subr.mxu0 0.0
  %1853 = vmatpush1.msra.mxu0 %v1848
  %1854 = vmatprep.subr.mxu0 0.0
  %1855 = vmatpush1.msra.mxu0 0.0
  %1856 = vmatprep.subr.mxu0 0.0
  %1857 = vmatpush1.msra.mxu0 0.0
  %1858 = vmatprep.subr.mxu0 0.0
  %1859 = vmatpush1.msra.mxu0 0.0
  %1860 = vmatprep.subr.mxu0 0.0
  %1861 = vmatpush1.msra.mxu0 0.0
  %1862 = vmatprep.subr.mxu0 0.0
  %1863 = vmatpush1.msra.mxu0 0.0
  %1864 = vmatprep.subr.mxu0 0.0
  %1865 = vmatpush1.msra.mxu0 0.0
  %1866 = vmatprep.subr.mxu0 0.0
  %1867 = vmatpush1.msra.mxu0 0.0
  %1868 = vmatprep.subr.mxu0 0.0
  %1869 = vmatpush1.msra.mxu0 0.0
  %1870 = vmatprep.subr.mxu0 0.0
  %1871 = vmatpush1.msra.mxu0 0.0
  %1872 = vmatprep.subr.mxu0 0.0
  %1873 = vmatpush1.msra.mxu0 0.0
  %1874 = vmatprep.subr.mxu0 0.0
  %1875 = vmatpush1.msra.mxu0 0.0
  %1876 = vmatprep.subr.mxu0 0.0
  %1877 = vmatpush1.msra.mxu0 0.0
  %1878 = vmatprep.subr.mxu0 0.0
  %1879 = vmatpush1.msra.mxu0 0.0
  %1880 = vmatprep.subr.mxu0 0.0
  %1881 = vmatpush1.msra.mxu0 0.0
  %1882 = vmatprep.subr.mxu0 0.0
  %1883 = vmatpush1.msra.mxu0 0.0
  %1884 = vmatprep.subr.mxu0 0.0
  %1885 = vmatpush1.msra.mxu0 0.0
  %1886 = vmatprep.subr.mxu0 0.0
  %1887 = vmatpush1.msra.mxu0 0.0
  %1888 = vmatprep.subr.mxu0 0.0
  %1889 = vmatpush1.msra.mxu0 0.0
  %1890 = vmatprep.subr.mxu0 0.0
  %1891 = vmatpush1.msra.mxu0 0.0
  %1892 = vmatprep.subr.mxu0 0.0
  %1893 = vmatpush1.msra.mxu0 0.0
  %1894 = vmatprep.subr.mxu0 0.0
  %1895 = vmatpush1.msra.mxu0 0.0
  %1896 = vmatprep.subr.mxu0 0.0
  %1897 = vmatpush1.msra.mxu0 0.0
  %1898 = vmatprep.subr.mxu0 0.0
  %1899 = vmatpush1.msra.mxu0 0.0
  %1900 = vmatprep.subr.mxu0 0.0
  %1901 = vmatpush1.msra.mxu0 0.0
  %1902 = vmatprep.subr.mxu0 0.0
  %1903 = vmatpush1.msra.mxu0 0.0
  %1904 = vmatprep.subr.mxu0 0.0
  %1905 = vmatpush1.msra.mxu0 0.0
  %1906 = vmatprep.subr.mxu0 0.0
  %1907 = vmatpush1.msra.mxu0 0.0
  %1908 = vmatprep.subr.mxu0 0.0
  %1909 = vmatpush1.msra.mxu0 0.0
  %1910 = vmatprep.subr.mxu0 0.0
  %1911 = vmatpush1.msra.mxu0 0.0
  %1912 = vmatprep.subr.mxu0 0.0
  %1913 = vmatpush1.msra.mxu0 0.0
  %1914 = vmatprep.mubr.f32.mxu0 0.0
  %1915 = vmatmul.mubr.f32.gmra.mrb[0].mxu0 %v1836
  %v1916 = vpop.f32.mrb[0].mxu0
  %v1917 = vadd.f32 %v1817, %v1916
  %v1918 = vpop.f32.mrb[0].mxu0
  %1919 = vmatprep.mubr.f32.mxu0 0.0
  %1920 = vmatmul.mubr.f32.gmra.mrb[0].mxu0 %v1839
  %v1921 = vpop.f32.mrb[0].mxu0
  %v1922 = vadd.f32 %v1822, %v1921
  %v1923 = vpop.f32.mrb[0].mxu0
  %1924 = vmatprep.mubr.f32.mxu0 0.0
  %1925 = vmatmul.mubr.f32.gmra.mrb[0].mxu0 %v1842
  %v1926 = vpop.f32.mrb[0].mxu0
  %v1927 = vadd.f32 %v1827, %v1926
  %v1928 = vpop.f32.mrb[0].mxu0
  %1929 = vmatprep.mubr.f32.mxu0 0.0
  %1930 = vmatmul.mubr.f32.gmra.mrb[0].mxu0 %v1845
  %v1931 = vpop.f32.mrb[0].mxu0
  %v1932 = vadd.f32 %v1832, %v1931
  %v1933 = vpop.f32.mrb[0].mxu0
  %1934 = vdwg.mxu0
  %1935 = vrot.lane.b32.xlu0 %v381, 104
  %v1936 = vpop.permute.xlu0 %1935
  %1937 = vrot.lane.b32.xlu0 %v381, 56
  %v1938 = vpop.permute.xlu0 %1937
  %v1939 = vsel %vm406, %v1936, 0
  %v1941 = vsel %vm406, %v1938, 0
  %1943 = vmatprep.subr.mxu0 0.0
  %1944 = vmatpush1.xpose.msra.mxu0 %v1941
  %1945 = vmatprep.subr.mxu0 0.0
  %1946 = vmatpush1.xpose.msra.mxu0 0.0
  %1947 = vmatprep.subr.mxu0 0.0
  %1948 = vmatpush1.xpose.msra.mxu0 0.0
  %1949 = vmatprep.subr.mxu0 0.0
  %1950 = vmatpush1.xpose.msra.mxu0 0.0
  %1951 = vmatprep.subr.mxu0 0.0
  %1952 = vmatpush1.xpose.msra.mxu0 0.0
  %1953 = vmatprep.subr.mxu0 0.0
  %1954 = vmatpush1.xpose.msra.mxu0 0.0
  %1955 = vmatprep.subr.mxu0 0.0
  %1956 = vmatpush1.xpose.msra.mxu0 0.0
  %1957 = vmatprep.subr.mxu0 0.0
  %1958 = vmatpush1.xpose.msra.mxu0 0.0
  %1959 = vmatprep.subr.mxu0 0.0
  %1960 = vmatpush1.xpose.msra.mxu0 0.0
  %1961 = vmatprep.subr.mxu0 0.0
  %1962 = vmatpush1.xpose.msra.mxu0 0.0
  %1963 = vmatprep.subr.mxu0 0.0
  %1964 = vmatpush1.xpose.msra.mxu0 0.0
  %1965 = vmatprep.subr.mxu0 0.0
  %1966 = vmatpush1.xpose.msra.mxu0 0.0
  %1967 = vmatprep.subr.mxu0 0.0
  %1968 = vmatpush1.xpose.msra.mxu0 0.0
  %1969 = vmatprep.subr.mxu0 0.0
  %1970 = vmatpush1.xpose.msra.mxu0 0.0
  %1971 = vmatprep.subr.mxu0 0.0
  %1972 = vmatpush1.xpose.msra.mxu0 0.0
  %1973 = vmatprep.subr.mxu0 0.0
  %1974 = vmatpush1.xpose.msra.mxu0 0.0
  %1975 = vmatprep.subr.mxu0 0.0
  %1976 = vmatpush1.xpose.msra.mxu0 0.0
  %1977 = vmatprep.subr.mxu0 0.0
  %1978 = vmatpush1.xpose.msra.mxu0 0.0
  %1979 = vmatprep.subr.mxu0 0.0
  %1980 = vmatpush1.xpose.msra.mxu0 0.0
  %1981 = vmatprep.subr.mxu0 0.0
  %1982 = vmatpush1.xpose.msra.mxu0 0.0
  %1983 = vmatprep.subr.mxu0 0.0
  %1984 = vmatpush1.xpose.msra.mxu0 0.0
  %1985 = vmatprep.subr.mxu0 0.0
  %1986 = vmatpush1.xpose.msra.mxu0 0.0
  %1987 = vmatprep.subr.mxu0 0.0
  %1988 = vmatpush1.xpose.msra.mxu0 0.0
  %1989 = vmatprep.subr.mxu0 0.0
  %1990 = vmatpush1.xpose.msra.mxu0 0.0
  %1991 = vmatprep.subr.mxu0 0.0
  %1992 = vmatpush1.xpose.msra.mxu0 0.0
  %1993 = vmatprep.subr.mxu0 0.0
  %1994 = vmatpush1.xpose.msra.mxu0 0.0
  %1995 = vmatprep.subr.mxu0 0.0
  %1996 = vmatpush1.xpose.msra.mxu0 0.0
  %1997 = vmatprep.subr.mxu0 0.0
  %1998 = vmatpush1.xpose.msra.mxu0 0.0
  %1999 = vmatprep.subr.mxu0 0.0
  %2000 = vmatpush1.xpose.msra.mxu0 0.0
  %2001 = vmatprep.subr.mxu0 0.0
  %2002 = vmatpush1.xpose.msra.mxu0 0.0
  %2003 = vmatprep.subr.mxu0 0.0
  %2004 = vmatpush1.xpose.msra.mxu0 0.0
  %2005 = vmatprep.subr.mxu0 0.0
  %2006 = vmatpush1.xpose.msra.mxu0 0.0
  %2007 = vmatprep.mubr.f32.mxu0 0.0
  %2008 = vmatmul.mubr.f32.gmra.mrb[0].mxu0 %v1939
  %v2009 = vpop.f32.mrb[0].mxu0
  %v2010 = vadd.f32 0.0, %v2009
  %v2011 = vpop.f32.mrb[0].mxu0
  %2012 = vdwg.mxu0
  %2013 = vrot.lane.b32.xlu0 %v387, 104
  %v2014 = vpop.permute.xlu0 %2013
  %2015 = vrot.lane.b32.xlu0 %v387, 56
  %v2016 = vpop.permute.xlu0 %2015
  %v2017 = vsel %vm406, %v2014, 0
  %v2019 = vsel %vm406, %v2016, 0
  %2021 = vmatprep.subr.mxu0 0.0
  %2022 = vmatpush1.xpose.msra.mxu0 %v2019
  %2023 = vmatprep.subr.mxu0 0.0
  %2024 = vmatpush1.xpose.msra.mxu0 0.0
  %2025 = vmatprep.subr.mxu0 0.0
  %2026 = vmatpush1.xpose.msra.mxu0 0.0
  %2027 = vmatprep.subr.mxu0 0.0
  %2028 = vmatpush1.xpose.msra.mxu0 0.0
  %2029 = vmatprep.subr.mxu0 0.0
  %2030 = vmatpush1.xpose.msra.mxu0 0.0
  %2031 = vmatprep.subr.mxu0 0.0
  %2032 = vmatpush1.xpose.msra.mxu0 0.0
  %2033 = vmatprep.subr.mxu0 0.0
  %2034 = vmatpush1.xpose.msra.mxu0 0.0
  %2035 = vmatprep.subr.mxu0 0.0
  %2036 = vmatpush1.xpose.msra.mxu0 0.0
  %2037 = vmatprep.subr.mxu0 0.0
  %2038 = vmatpush1.xpose.msra.mxu0 0.0
  %2039 = vmatprep.subr.mxu0 0.0
  %2040 = vmatpush1.xpose.msra.mxu0 0.0
  %2041 = vmatprep.subr.mxu0 0.0
  %2042 = vmatpush1.xpose.msra.mxu0 0.0
  %2043 = vmatprep.subr.mxu0 0.0
  %2044 = vmatpush1.xpose.msra.mxu0 0.0
  %2045 = vmatprep.subr.mxu0 0.0
  %2046 = vmatpush1.xpose.msra.mxu0 0.0
  %2047 = vmatprep.subr.mxu0 0.0
  %2048 = vmatpush1.xpose.msra.mxu0 0.0
  %2049 = vmatprep.subr.mxu0 0.0
  %2050 = vmatpush1.xpose.msra.mxu0 0.0
  %2051 = vmatprep.subr.mxu0 0.0
  %2052 = vmatpush1.xpose.msra.mxu0 0.0
  %2053 = vmatprep.subr.mxu0 0.0
  %2054 = vmatpush1.xpose.msra.mxu0 0.0
  %2055 = vmatprep.subr.mxu0 0.0
  %2056 = vmatpush1.xpose.msra.mxu0 0.0
  %2057 = vmatprep.subr.mxu0 0.0
  %2058 = vmatpush1.xpose.msra.mxu0 0.0
  %2059 = vmatprep.subr.mxu0 0.0
  %2060 = vmatpush1.xpose.msra.mxu0 0.0
  %2061 = vmatprep.subr.mxu0 0.0
  %2062 = vmatpush1.xpose.msra.mxu0 0.0
  %2063 = vmatprep.subr.mxu0 0.0
  %2064 = vmatpush1.xpose.msra.mxu0 0.0
  %2065 = vmatprep.subr.mxu0 0.0
  %2066 = vmatpush1.xpose.msra.mxu0 0.0
  %2067 = vmatprep.subr.mxu0 0.0
  %2068 = vmatpush1.xpose.msra.mxu0 0.0
  %2069 = vmatprep.subr.mxu0 0.0
  %2070 = vmatpush1.xpose.msra.mxu0 0.0
  %2071 = vmatprep.subr.mxu0 0.0
  %2072 = vmatpush1.xpose.msra.mxu0 0.0
  %2073 = vmatprep.subr.mxu0 0.0
  %2074 = vmatpush1.xpose.msra.mxu0 0.0
  %2075 = vmatprep.subr.mxu0 0.0
  %2076 = vmatpush1.xpose.msra.mxu0 0.0
  %2077 = vmatprep.subr.mxu0 0.0
  %2078 = vmatpush1.xpose.msra.mxu0 0.0
  %2079 = vmatprep.subr.mxu0 0.0
  %2080 = vmatpush1.xpose.msra.mxu0 0.0
  %2081 = vmatprep.subr.mxu0 0.0
  %2082 = vmatpush1.xpose.msra.mxu0 0.0
  %2083 = vmatprep.subr.mxu0 0.0
  %2084 = vmatpush1.xpose.msra.mxu0 0.0
  %2085 = vmatprep.mubr.f32.mxu0 0.0
  %2086 = vmatmul.mubr.f32.gmra.mrb[0].mxu0 %v2017
  %v2087 = vpop.f32.mrb[0].mxu0
  %v2088 = vadd.f32 0.0, %v2087
  %v2089 = vpop.f32.mrb[0].mxu0
  %2090 = vdwg.mxu0
  %2091 = vrot.lane.b32.xlu0 %v393, 104
  %v2092 = vpop.permute.xlu0 %2091
  %2093 = vrot.lane.b32.xlu0 %v393, 56
  %v2094 = vpop.permute.xlu0 %2093
  %v2095 = vsel %vm406, %v2092, 0
  %v2097 = vsel %vm406, %v2094, 0
  %2099 = vmatprep.subr.mxu0 0.0
  %2100 = vmatpush1.xpose.msra.mxu0 %v2097
  %2101 = vmatprep.subr.mxu0 0.0
  %2102 = vmatpush1.xpose.msra.mxu0 0.0
  %2103 = vmatprep.subr.mxu0 0.0
  %2104 = vmatpush1.xpose.msra.mxu0 0.0
  %2105 = vmatprep.subr.mxu0 0.0
  %2106 = vmatpush1.xpose.msra.mxu0 0.0
  %2107 = vmatprep.subr.mxu0 0.0
  %2108 = vmatpush1.xpose.msra.mxu0 0.0
  %2109 = vmatprep.subr.mxu0 0.0
  %2110 = vmatpush1.xpose.msra.mxu0 0.0
  %2111 = vmatprep.subr.mxu0 0.0
  %2112 = vmatpush1.xpose.msra.mxu0 0.0
  %2113 = vmatprep.subr.mxu0 0.0
  %2114 = vmatpush1.xpose.msra.mxu0 0.0
  %2115 = vmatprep.subr.mxu0 0.0
  %2116 = vmatpush1.xpose.msra.mxu0 0.0
  %2117 = vmatprep.subr.mxu0 0.0
  %2118 = vmatpush1.xpose.msra.mxu0 0.0
  %2119 = vmatprep.subr.mxu0 0.0
  %2120 = vmatpush1.xpose.msra.mxu0 0.0
  %2121 = vmatprep.subr.mxu0 0.0
  %2122 = vmatpush1.xpose.msra.mxu0 0.0
  %2123 = vmatprep.subr.mxu0 0.0
  %2124 = vmatpush1.xpose.msra.mxu0 0.0
  %2125 = vmatprep.subr.mxu0 0.0
  %2126 = vmatpush1.xpose.msra.mxu0 0.0
  %2127 = vmatprep.subr.mxu0 0.0
  %2128 = vmatpush1.xpose.msra.mxu0 0.0
  %2129 = vmatprep.subr.mxu0 0.0
  %2130 = vmatpush1.xpose.msra.mxu0 0.0
  %2131 = vmatprep.subr.mxu0 0.0
  %2132 = vmatpush1.xpose.msra.mxu0 0.0
  %2133 = vmatprep.subr.mxu0 0.0
  %2134 = vmatpush1.xpose.msra.mxu0 0.0
  %2135 = vmatprep.subr.mxu0 0.0
  %2136 = vmatpush1.xpose.msra.mxu0 0.0
  %2137 = vmatprep.subr.mxu0 0.0
  %2138 = vmatpush1.xpose.msra.mxu0 0.0
  %2139 = vmatprep.subr.mxu0 0.0
  %2140 = vmatpush1.xpose.msra.mxu0 0.0
  %2141 = vmatprep.subr.mxu0 0.0
  %2142 = vmatpush1.xpose.msra.mxu0 0.0
  %2143 = vmatprep.subr.mxu0 0.0
  %2144 = vmatpush1.xpose.msra.mxu0 0.0
  %2145 = vmatprep.subr.mxu0 0.0
  %2146 = vmatpush1.xpose.msra.mxu0 0.0
  %2147 = vmatprep.subr.mxu0 0.0
  %2148 = vmatpush1.xpose.msra.mxu0 0.0
  %2149 = vmatprep.subr.mxu0 0.0
  %2150 = vmatpush1.xpose.msra.mxu0 0.0
  %2151 = vmatprep.subr.mxu0 0.0
  %2152 = vmatpush1.xpose.msra.mxu0 0.0
  %2153 = vmatprep.subr.mxu0 0.0
  %2154 = vmatpush1.xpose.msra.mxu0 0.0
  %2155 = vmatprep.subr.mxu0 0.0
  %2156 = vmatpush1.xpose.msra.mxu0 0.0
  %2157 = vmatprep.subr.mxu0 0.0
  %2158 = vmatpush1.xpose.msra.mxu0 0.0
  %2159 = vmatprep.subr.mxu0 0.0
  %2160 = vmatpush1.xpose.msra.mxu0 0.0
  %2161 = vmatprep.subr.mxu0 0.0
  %2162 = vmatpush1.xpose.msra.mxu0 0.0
  %2163 = vmatprep.mubr.f32.mxu0 0.0
  %2164 = vmatmul.mubr.f32.gmra.mrb[0].mxu0 %v2095
  %v2165 = vpop.f32.mrb[0].mxu0
  %v2166 = vadd.f32 0.0, %v2165
  %v2167 = vpop.f32.mrb[0].mxu0
  %2168 = vdwg.mxu0
  %2169 = vrot.lane.b32.xlu0 %v399, 104
  %v2170 = vpop.permute.xlu0 %2169
  %2171 = vrot.lane.b32.xlu0 %v399, 56
  %v2172 = vpop.permute.xlu0 %2171
  %v2173 = vsel %vm406, %v2170, 0
  %v2175 = vsel %vm406, %v2172, 0
  %2177 = vmatprep.subr.mxu0 0.0
  %2178 = vmatpush1.xpose.msra.mxu0 %v2175
  %2179 = vmatprep.subr.mxu0 0.0
  %2180 = vmatpush1.xpose.msra.mxu0 0.0
  %2181 = vmatprep.subr.mxu0 0.0
  %2182 = vmatpush1.xpose.msra.mxu0 0.0
  %2183 = vmatprep.subr.mxu0 0.0
  %2184 = vmatpush1.xpose.msra.mxu0 0.0
  %2185 = vmatprep.subr.mxu0 0.0
  %2186 = vmatpush1.xpose.msra.mxu0 0.0
  %2187 = vmatprep.subr.mxu0 0.0
  %2188 = vmatpush1.xpose.msra.mxu0 0.0
  %2189 = vmatprep.subr.mxu0 0.0
  %2190 = vmatpush1.xpose.msra.mxu0 0.0
  %2191 = vmatprep.subr.mxu0 0.0
  %2192 = vmatpush1.xpose.msra.mxu0 0.0
  %2193 = vmatprep.subr.mxu0 0.0
  %2194 = vmatpush1.xpose.msra.mxu0 0.0
  %2195 = vmatprep.subr.mxu0 0.0
  %2196 = vmatpush1.xpose.msra.mxu0 0.0
  %2197 = vmatprep.subr.mxu0 0.0
  %2198 = vmatpush1.xpose.msra.mxu0 0.0
  %2199 = vmatprep.subr.mxu0 0.0
  %2200 = vmatpush1.xpose.msra.mxu0 0.0
  %2201 = vmatprep.subr.mxu0 0.0
  %2202 = vmatpush1.xpose.msra.mxu0 0.0
  %2203 = vmatprep.subr.mxu0 0.0
  %2204 = vmatpush1.xpose.msra.mxu0 0.0
  %2205 = vmatprep.subr.mxu0 0.0
  %2206 = vmatpush1.xpose.msra.mxu0 0.0
  %2207 = vmatprep.subr.mxu0 0.0
  %2208 = vmatpush1.xpose.msra.mxu0 0.0
  %2209 = vmatprep.subr.mxu0 0.0
  %2210 = vmatpush1.xpose.msra.mxu0 0.0
  %2211 = vmatprep.subr.mxu0 0.0
  %2212 = vmatpush1.xpose.msra.mxu0 0.0
  %2213 = vmatprep.subr.mxu0 0.0
  %2214 = vmatpush1.xpose.msra.mxu0 0.0
  %2215 = vmatprep.subr.mxu0 0.0
  %2216 = vmatpush1.xpose.msra.mxu0 0.0
  %2217 = vmatprep.subr.mxu0 0.0
  %2218 = vmatpush1.xpose.msra.mxu0 0.0
  %2219 = vmatprep.subr.mxu0 0.0
  %2220 = vmatpush1.xpose.msra.mxu0 0.0
  %2221 = vmatprep.subr.mxu0 0.0
  %2222 = vmatpush1.xpose.msra.mxu0 0.0
  %2223 = vmatprep.subr.mxu0 0.0
  %2224 = vmatpush1.xpose.msra.mxu0 0.0
  %2225 = vmatprep.subr.mxu0 0.0
  %2226 = vmatpush1.xpose.msra.mxu0 0.0
  %2227 = vmatprep.subr.mxu0 0.0
  %2228 = vmatpush1.xpose.msra.mxu0 0.0
  %2229 = vmatprep.subr.mxu0 0.0
  %2230 = vmatpush1.xpose.msra.mxu0 0.0
  %2231 = vmatprep.subr.mxu0 0.0
  %2232 = vmatpush1.xpose.msra.mxu0 0.0
  %2233 = vmatprep.subr.mxu0 0.0
  %2234 = vmatpush1.xpose.msra.mxu0 0.0
  %2235 = vmatprep.subr.mxu0 0.0
  %2236 = vmatpush1.xpose.msra.mxu0 0.0
  %2237 = vmatprep.subr.mxu0 0.0
  %2238 = vmatpush1.xpose.msra.mxu0 0.0
  %2239 = vmatprep.subr.mxu0 0.0
  %2240 = vmatpush1.xpose.msra.mxu0 0.0
  %2241 = vmatprep.mubr.f32.mxu0 0.0
  %2242 = vmatmul.mubr.f32.gmra.mrb[0].mxu0 %v2173
  %v2243 = vpop.f32.mrb[0].mxu0
  %v2244 = vadd.f32 0.0, %v2243
  %v2245 = vpop.f32.mrb[0].mxu0
  %2246 = vdwg.mxu0
  %v2247 = vmul.f32 %v2010, 0.28867513
  %v2248 = vmul.f32 %v2088, 0.28867513
  %v2249 = vmul.f32 %v2166, 0.28867513
  %v2250 = vmul.f32 %v2244, 0.28867513
  %v2251 = vsel %vm716, %v2247, -inf
  %2252 = vmax.xlane.f32.xlu0 %v2251
  %v2253 = vpop.xlane.xlu0 %2252
  %v2254 = vsel %vm716, %v2248, -inf
  %2255 = vmax.xlane.f32.xlu0 %v2254
  %v2256 = vpop.xlane.xlu0 %2255
  %v2257 = vsel %vm716, %v2249, -inf
  %2258 = vmax.xlane.f32.xlu0 %v2257
  %v2259 = vpop.xlane.xlu0 %2258
  %v2260 = vsel %vm716, %v2250, -inf
  %2261 = vmax.xlane.f32.xlu0 %v2260
  %v2262 = vpop.xlane.xlu0 %2261
  %v2263 = vsub.f32 %v2247, %v2253
  %v2264 = vsub.f32 %v2248, %v2256
  %v2265 = vsub.f32 %v2249, %v2259
  %v2266 = vsub.f32 %v2250, %v2262
  %v2267 = vmul.f32 %v2263, 1.442695
  %v2268 = vpow.pop %v2267
  %v2269 = vmul.f32 %v2264, 1.442695
  %v2270 = vpow.pop %v2269
  %v2271 = vmul.f32 %v2265, 1.442695
  %v2272 = vpow.pop %v2271
  %v2273 = vmul.f32 %v2266, 1.442695
  %v2274 = vpow.pop %v2273
  %v2275 = vsel %vm716, %v2268, 0.0
  %2276 = vadd.xlane.f32.xlu0 %v2275
  %v2277 = vpop.xlane.xlu0 %2276
  %v2278 = vsel %vm716, %v2270, 0.0
  %2279 = vadd.xlane.f32.xlu0 %v2278
  %v2280 = vpop.xlane.xlu0 %2279
  %v2281 = vsel %vm716, %v2272, 0.0
  %2282 = vadd.xlane.f32.xlu0 %v2281
  %v2283 = vpop.xlane.xlu0 %2282
  %v2284 = vsel %vm716, %v2274, 0.0
  %2285 = vadd.xlane.f32.xlu0 %v2284
  %v2286 = vpop.xlane.xlu0 %2285
  %v2287 = vrcp.pop %v2277
  %v2288 = vmul.f32 %v2268, %v2287
  %v2289 = vrcp.pop %v2280
  %v2290 = vmul.f32 %v2270, %v2289
  %v2291 = vrcp.pop %v2283
  %v2292 = vmul.f32 %v2272, %v2291
  %v2293 = vrcp.pop %v2286
  %v2294 = vmul.f32 %v2274, %v2293
  %2296 = vrot.lane.b32.xlu0 %v381, 8
  %v2297 = vpop.permute.xlu0 %2296
  %2298 = vrot.lane.b32.xlu0 %v383, 8
  %v2299 = vpop.permute.xlu0 %2298
  %v2300 = vsel %vm716, %v2297, %v2299
  %v2303 = vsel %vm716, %v2288, 0
  %2305 = vmatprep.subr.mxu0 0.0
  %2306 = vmatpush1.msra.mxu0 %v2300
  %2307 = vmatprep.subr.mxu0 0.0
  %2308 = vmatpush1.msra.mxu0 0.0
  %2309 = vmatprep.subr.mxu0 0.0
  %2310 = vmatpush1.msra.mxu0 0.0
  %2311 = vmatprep.subr.mxu0 0.0
  %2312 = vmatpush1.msra.mxu0 0.0
  %2313 = vmatprep.subr.mxu0 0.0
  %2314 = vmatpush1.msra.mxu0 0.0
  %2315 = vmatprep.subr.mxu0 0.0
  %2316 = vmatpush1.msra.mxu0 0.0
  %2317 = vmatprep.subr.mxu0 0.0
  %2318 = vmatpush1.msra.mxu0 0.0
  %2319 = vmatprep.subr.mxu0 0.0
  %2320 = vmatpush1.msra.mxu0 0.0
  %2321 = vmatprep.subr.mxu0 0.0
  %2322 = vmatpush1.msra.mxu0 0.0
  %2323 = vmatprep.subr.mxu0 0.0
  %2324 = vmatpush1.msra.mxu0 0.0
  %2325 = vmatprep.subr.mxu0 0.0
  %2326 = vmatpush1.msra.mxu0 0.0
  %2327 = vmatprep.subr.mxu0 0.0
  %2328 = vmatpush1.msra.mxu0 0.0
  %2329 = vmatprep.subr.mxu0 0.0
  %2330 = vmatpush1.msra.mxu0 0.0
  %2331 = vmatprep.subr.mxu0 0.0
  %2332 = vmatpush1.msra.mxu0 0.0
  %2333 = vmatprep.subr.mxu0 0.0
  %2334 = vmatpush1.msra.mxu0 0.0
  %2335 = vmatprep.subr.mxu0 0.0
  %2336 = vmatpush1.msra.mxu0 0.0
  %2337 = vmatprep.subr.mxu0 0.0
  %2338 = vmatpush1.msra.mxu0 0.0
  %2339 = vmatprep.subr.mxu0 0.0
  %2340 = vmatpush1.msra.mxu0 0.0
  %2341 = vmatprep.subr.mxu0 0.0
  %2342 = vmatpush1.msra.mxu0 0.0
  %2343 = vmatprep.subr.mxu0 0.0
  %2344 = vmatpush1.msra.mxu0 0.0
  %2345 = vmatprep.subr.mxu0 0.0
  %2346 = vmatpush1.msra.mxu0 0.0
  %2347 = vmatprep.subr.mxu0 0.0
  %2348 = vmatpush1.msra.mxu0 0.0
  %2349 = vmatprep.subr.mxu0 0.0
  %2350 = vmatpush1.msra.mxu0 0.0
  %2351 = vmatprep.subr.mxu0 0.0
  %2352 = vmatpush1.msra.mxu0 0.0
  %2353 = vmatprep.subr.mxu0 0.0
  %2354 = vmatpush1.msra.mxu0 0.0
  %2355 = vmatprep.subr.mxu0 0.0
  %2356 = vmatpush1.msra.mxu0 0.0
  %2357 = vmatprep.subr.mxu0 0.0
  %2358 = vmatpush1.msra.mxu0 0.0
  %2359 = vmatprep.subr.mxu0 0.0
  %2360 = vmatpush1.msra.mxu0 0.0
  %2361 = vmatprep.subr.mxu0 0.0
  %2362 = vmatpush1.msra.mxu0 0.0
  %2363 = vmatprep.subr.mxu0 0.0
  %2364 = vmatpush1.msra.mxu0 0.0
  %2365 = vmatprep.subr.mxu0 0.0
  %2366 = vmatpush1.msra.mxu0 0.0
  %2367 = vmatprep.subr.mxu0 0.0
  %2368 = vmatpush1.msra.mxu0 0.0
  %2369 = vmatprep.mubr.f32.mxu0 0.0
  %2370 = vmatmul.mubr.f32.gmra.mrb[0].mxu0 %v2303
  %v2371 = vpop.f32.mrb[0].mxu0
  %v2372 = vadd.f32 0.0, %v2371
  %v2373 = vpop.f32.mrb[0].mxu0
  %2374 = vdwg.mxu0
  %2376 = vrot.lane.b32.xlu0 %v387, 8
  %v2377 = vpop.permute.xlu0 %2376
  %2378 = vrot.lane.b32.xlu0 %v389, 8
  %v2379 = vpop.permute.xlu0 %2378
  %v2380 = vsel %vm716, %v2377, %v2379
  %v2383 = vsel %vm716, %v2290, 0
  %2385 = vmatprep.subr.mxu0 0.0
  %2386 = vmatpush1.msra.mxu0 %v2380
  %2387 = vmatprep.subr.mxu0 0.0
  %2388 = vmatpush1.msra.mxu0 0.0
  %2389 = vmatprep.subr.mxu0 0.0
  %2390 = vmatpush1.msra.mxu0 0.0
  %2391 = vmatprep.subr.mxu0 0.0
  %2392 = vmatpush1.msra.mxu0 0.0
  %2393 = vmatprep.subr.mxu0 0.0
  %2394 = vmatpush1.msra.mxu0 0.0
  %2395 = vmatprep.subr.mxu0 0.0
  %2396 = vmatpush1.msra.mxu0 0.0
  %2397 = vmatprep.subr.mxu0 0.0
  %2398 = vmatpush1.msra.mxu0 0.0
  %2399 = vmatprep.subr.mxu0 0.0
  %2400 = vmatpush1.msra.mxu0 0.0
  %2401 = vmatprep.subr.mxu0 0.0
  %2402 = vmatpush1.msra.mxu0 0.0
  %2403 = vmatprep.subr.mxu0 0.0
  %2404 = vmatpush1.msra.mxu0 0.0
  %2405 = vmatprep.subr.mxu0 0.0
  %2406 = vmatpush1.msra.mxu0 0.0
  %2407 = vmatprep.subr.mxu0 0.0
  %2408 = vmatpush1.msra.mxu0 0.0
  %2409 = vmatprep.subr.mxu0 0.0
  %2410 = vmatpush1.msra.mxu0 0.0
  %2411 = vmatprep.subr.mxu0 0.0
  %2412 = vmatpush1.msra.mxu0 0.0
  %2413 = vmatprep.subr.mxu0 0.0
  %2414 = vmatpush1.msra.mxu0 0.0
  %2415 = vmatprep.subr.mxu0 0.0
  %2416 = vmatpush1.msra.mxu0 0.0
  %2417 = vmatprep.subr.mxu0 0.0
  %2418 = vmatpush1.msra.mxu0 0.0
  %2419 = vmatprep.subr.mxu0 0.0
  %2420 = vmatpush1.msra.mxu0 0.0
  %2421 = vmatprep.subr.mxu0 0.0
  %2422 = vmatpush1.msra.mxu0 0.0
  %2423 = vmatprep.subr.mxu0 0.0
  %2424 = vmatpush1.msra.mxu0 0.0
  %2425 = vmatprep.subr.mxu0 0.0
  %2426 = vmatpush1.msra.mxu0 0.0
  %2427 = vmatprep.subr.mxu0 0.0
  %2428 = vmatpush1.msra.mxu0 0.0
  %2429 = vmatprep.subr.mxu0 0.0
  %2430 = vmatpush1.msra.mxu0 0.0
  %2431 = vmatprep.subr.mxu0 0.0
  %2432 = vmatpush1.msra.mxu0 0.0
  %2433 = vmatprep.subr.mxu0 0.0
  %2434 = vmatpush1.msra.mxu0 0.0
  %2435 = vmatprep.subr.mxu0 0.0
  %2436 = vmatpush1.msra.mxu0 0.0
  %2437 = vmatprep.subr.mxu0 0.0
  %2438 = vmatpush1.msra.mxu0 0.0
  %2439 = vmatprep.subr.mxu0 0.0
  %2440 = vmatpush1.msra.mxu0 0.0
  %2441 = vmatprep.subr.mxu0 0.0
  %2442 = vmatpush1.msra.mxu0 0.0
  %2443 = vmatprep.subr.mxu0 0.0
  %2444 = vmatpush1.msra.mxu0 0.0
  %2445 = vmatprep.subr.mxu0 0.0
  %2446 = vmatpush1.msra.mxu0 0.0
  %2447 = vmatprep.subr.mxu0 0.0
  %2448 = vmatpush1.msra.mxu0 0.0
  %2449 = vmatprep.mubr.f32.mxu0 0.0
  %2450 = vmatmul.mubr.f32.gmra.mrb[0].mxu0 %v2383
  %v2451 = vpop.f32.mrb[0].mxu0
  %v2452 = vadd.f32 0.0, %v2451
  %v2453 = vpop.f32.mrb[0].mxu0
  %2454 = vdwg.mxu0
  %2456 = vrot.lane.b32.xlu0 %v393, 8
  %v2457 = vpop.permute.xlu0 %2456
  %2458 = vrot.lane.b32.xlu0 %v395, 8
  %v2459 = vpop.permute.xlu0 %2458
  %v2460 = vsel %vm716, %v2457, %v2459
  %v2463 = vsel %vm716, %v2292, 0
  %2465 = vmatprep.subr.mxu0 0.0
  %2466 = vmatpush1.msra.mxu0 %v2460
  %2467 = vmatprep.subr.mxu0 0.0
  %2468 = vmatpush1.msra.mxu0 0.0
  %2469 = vmatprep.subr.mxu0 0.0
  %2470 = vmatpush1.msra.mxu0 0.0
  %2471 = vmatprep.subr.mxu0 0.0
  %2472 = vmatpush1.msra.mxu0 0.0
  %2473 = vmatprep.subr.mxu0 0.0
  %2474 = vmatpush1.msra.mxu0 0.0
  %2475 = vmatprep.subr.mxu0 0.0
  %2476 = vmatpush1.msra.mxu0 0.0
  %2477 = vmatprep.subr.mxu0 0.0
  %2478 = vmatpush1.msra.mxu0 0.0
  %2479 = vmatprep.subr.mxu0 0.0
  %2480 = vmatpush1.msra.mxu0 0.0
  %2481 = vmatprep.subr.mxu0 0.0
  %2482 = vmatpush1.msra.mxu0 0.0
  %2483 = vmatprep.subr.mxu0 0.0
  %2484 = vmatpush1.msra.mxu0 0.0
  %2485 = vmatprep.subr.mxu0 0.0
  %2486 = vmatpush1.msra.mxu0 0.0
  %2487 = vmatprep.subr.mxu0 0.0
  %2488 = vmatpush1.msra.mxu0 0.0
  %2489 = vmatprep.subr.mxu0 0.0
  %2490 = vmatpush1.msra.mxu0 0.0
  %2491 = vmatprep.subr.mxu0 0.0
  %2492 = vmatpush1.msra.mxu0 0.0
  %2493 = vmatprep.subr.mxu0 0.0
  %2494 = vmatpush1.msra.mxu0 0.0
  %2495 = vmatprep.subr.mxu0 0.0
  %2496 = vmatpush1.msra.mxu0 0.0
  %2497 = vmatprep.subr.mxu0 0.0
  %2498 = vmatpush1.msra.mxu0 0.0
  %2499 = vmatprep.subr.mxu0 0.0
  %2500 = vmatpush1.msra.mxu0 0.0
  %2501 = vmatprep.subr.mxu0 0.0
  %2502 = vmatpush1.msra.mxu0 0.0
  %2503 = vmatprep.subr.mxu0 0.0
  %2504 = vmatpush1.msra.mxu0 0.0
  %2505 = vmatprep.subr.mxu0 0.0
  %2506 = vmatpush1.msra.mxu0 0.0
  %2507 = vmatprep.subr.mxu0 0.0
  %2508 = vmatpush1.msra.mxu0 0.0
  %2509 = vmatprep.subr.mxu0 0.0
  %2510 = vmatpush1.msra.mxu0 0.0
  %2511 = vmatprep.subr.mxu0 0.0
  %2512 = vmatpush1.msra.mxu0 0.0
  %2513 = vmatprep.subr.mxu0 0.0
  %2514 = vmatpush1.msra.mxu0 0.0
  %2515 = vmatprep.subr.mxu0 0.0
  %2516 = vmatpush1.msra.mxu0 0.0
  %2517 = vmatprep.subr.mxu0 0.0
  %2518 = vmatpush1.msra.mxu0 0.0
  %2519 = vmatprep.subr.mxu0 0.0
  %2520 = vmatpush1.msra.mxu0 0.0
  %2521 = vmatprep.subr.mxu0 0.0
  %2522 = vmatpush1.msra.mxu0 0.0
  %2523 = vmatprep.subr.mxu0 0.0
  %2524 = vmatpush1.msra.mxu0 0.0
  %2525 = vmatprep.subr.mxu0 0.0
  %2526 = vmatpush1.msra.mxu0 0.0
  %2527 = vmatprep.subr.mxu0 0.0
  %2528 = vmatpush1.msra.mxu0 0.0
  %2529 = vmatprep.mubr.f32.mxu0 0.0
  %2530 = vmatmul.mubr.f32.gmra.mrb[0].mxu0 %v2463
  %v2531 = vpop.f32.mrb[0].mxu0
  %v2532 = vadd.f32 0.0, %v2531
  %v2533 = vpop.f32.mrb[0].mxu0
  %2534 = vdwg.mxu0
  %2536 = vrot.lane.b32.xlu0 %v399, 8
  %v2537 = vpop.permute.xlu0 %2536
  %2538 = vrot.lane.b32.xlu0 %v401, 8
  %v2539 = vpop.permute.xlu0 %2538
  %v2540 = vsel %vm716, %v2537, %v2539
  %v2543 = vsel %vm716, %v2294, 0
  %2545 = vmatprep.subr.mxu0 0.0
  %2546 = vmatpush1.msra.mxu0 %v2540
  %2547 = vmatprep.subr.mxu0 0.0
  %2548 = vmatpush1.msra.mxu0 0.0
  %2549 = vmatprep.subr.mxu0 0.0
  %2550 = vmatpush1.msra.mxu0 0.0
  %2551 = vmatprep.subr.mxu0 0.0
  %2552 = vmatpush1.msra.mxu0 0.0
  %2553 = vmatprep.subr.mxu0 0.0
  %2554 = vmatpush1.msra.mxu0 0.0
  %2555 = vmatprep.subr.mxu0 0.0
  %2556 = vmatpush1.msra.mxu0 0.0
  %2557 = vmatprep.subr.mxu0 0.0
  %2558 = vmatpush1.msra.mxu0 0.0
  %2559 = vmatprep.subr.mxu0 0.0
  %2560 = vmatpush1.msra.mxu0 0.0
  %2561 = vmatprep.subr.mxu0 0.0
  %2562 = vmatpush1.msra.mxu0 0.0
  %2563 = vmatprep.subr.mxu0 0.0
  %2564 = vmatpush1.msra.mxu0 0.0
  %2565 = vmatprep.subr.mxu0 0.0
  %2566 = vmatpush1.msra.mxu0 0.0
  %2567 = vmatprep.subr.mxu0 0.0
  %2568 = vmatpush1.msra.mxu0 0.0
  %2569 = vmatprep.subr.mxu0 0.0
  %2570 = vmatpush1.msra.mxu0 0.0
  %2571 = vmatprep.subr.mxu0 0.0
  %2572 = vmatpush1.msra.mxu0 0.0
  %2573 = vmatprep.subr.mxu0 0.0
  %2574 = vmatpush1.msra.mxu0 0.0
  %2575 = vmatprep.subr.mxu0 0.0
  %2576 = vmatpush1.msra.mxu0 0.0
  %2577 = vmatprep.subr.mxu0 0.0
  %2578 = vmatpush1.msra.mxu0 0.0
  %2579 = vmatprep.subr.mxu0 0.0
  %2580 = vmatpush1.msra.mxu0 0.0
  %2581 = vmatprep.subr.mxu0 0.0
  %2582 = vmatpush1.msra.mxu0 0.0
  %2583 = vmatprep.subr.mxu0 0.0
  %2584 = vmatpush1.msra.mxu0 0.0
  %2585 = vmatprep.subr.mxu0 0.0
  %2586 = vmatpush1.msra.mxu0 0.0
  %2587 = vmatprep.subr.mxu0 0.0
  %2588 = vmatpush1.msra.mxu0 0.0
  %2589 = vmatprep.subr.mxu0 0.0
  %2590 = vmatpush1.msra.mxu0 0.0
  %2591 = vmatprep.subr.mxu0 0.0
  %2592 = vmatpush1.msra.mxu0 0.0
  %2593 = vmatprep.subr.mxu0 0.0
  %2594 = vmatpush1.msra.mxu0 0.0
  %2595 = vmatprep.subr.mxu0 0.0
  %2596 = vmatpush1.msra.mxu0 0.0
  %2597 = vmatprep.subr.mxu0 0.0
  %2598 = vmatpush1.msra.mxu0 0.0
  %2599 = vmatprep.subr.mxu0 0.0
  %2600 = vmatpush1.msra.mxu0 0.0
  %2601 = vmatprep.subr.mxu0 0.0
  %2602 = vmatpush1.msra.mxu0 0.0
  %2603 = vmatprep.subr.mxu0 0.0
  %2604 = vmatpush1.msra.mxu0 0.0
  %2605 = vmatprep.subr.mxu0 0.0
  %2606 = vmatpush1.msra.mxu0 0.0
  %2607 = vmatprep.subr.mxu0 0.0
  %2608 = vmatpush1.msra.mxu0 0.0
  %2609 = vmatprep.mubr.f32.mxu0 0.0
  %2610 = vmatmul.mubr.f32.gmra.mrb[0].mxu0 %v2543
  %v2611 = vpop.f32.mrb[0].mxu0
  %v2612 = vadd.f32 0.0, %v2611
  %v2613 = vpop.f32.mrb[0].mxu0
  %2614 = vdwg.mxu0
  %s2615 = scalar_lea.vmem %s23, 32
  %v2616 = vld [vmem:[%s2615] sm:$0xff]
  %v2617 = vld [vmem:[%s2615 + $0x8] sm:$0xf]
  %v2619 = vsel %vm406, %v2372, 0
  %v2622 = vsel %vm406, %v2452, 0
  %v2625 = vsel %vm406, %v2532, 0
  %v2628 = vsel %vm406, %v2612, 0
  %v2631 = vsel %vm1746, %v2617, 0
  %2633 = vmatprep.subr.mxu0 0.0
  %2634 = vmatpush1.msra.mxu0 %v2616
  %2635 = vmatprep.subr.mxu0 0.0
  %2636 = vmatpush1.msra.mxu0 %v2631
  %2637 = vmatprep.subr.mxu0 0.0
  %2638 = vmatpush1.msra.mxu0 0.0
  %2639 = vmatprep.subr.mxu0 0.0
  %2640 = vmatpush1.msra.mxu0 0.0
  %2641 = vmatprep.subr.mxu0 0.0
  %2642 = vmatpush1.msra.mxu0 0.0
  %2643 = vmatprep.subr.mxu0 0.0
  %2644 = vmatpush1.msra.mxu0 0.0
  %2645 = vmatprep.subr.mxu0 0.0
  %2646 = vmatpush1.msra.mxu0 0.0
  %2647 = vmatprep.subr.mxu0 0.0
  %2648 = vmatpush1.msra.mxu0 0.0
  %2649 = vmatprep.subr.mxu0 0.0
  %2650 = vmatpush1.msra.mxu0 0.0
  %2651 = vmatprep.subr.mxu0 0.0
  %2652 = vmatpush1.msra.mxu0 0.0
  %2653 = vmatprep.subr.mxu0 0.0
  %2654 = vmatpush1.msra.mxu0 0.0
  %2655 = vmatprep.subr.mxu0 0.0
  %2656 = vmatpush1.msra.mxu0 0.0
  %2657 = vmatprep.subr.mxu0 0.0
  %2658 = vmatpush1.msra.mxu0 0.0
  %2659 = vmatprep.subr.mxu0 0.0
  %2660 = vmatpush1.msra.mxu0 0.0
  %2661 = vmatprep.subr.mxu0 0.0
  %2662 = vmatpush1.msra.mxu0 0.0
  %2663 = vmatprep.subr.mxu0 0.0
  %2664 = vmatpush1.msra.mxu0 0.0
  %2665 = vmatprep.subr.mxu0 0.0
  %2666 = vmatpush1.msra.mxu0 0.0
  %2667 = vmatprep.subr.mxu0 0.0
  %2668 = vmatpush1.msra.mxu0 0.0
  %2669 = vmatprep.subr.mxu0 0.0
  %2670 = vmatpush1.msra.mxu0 0.0
  %2671 = vmatprep.subr.mxu0 0.0
  %2672 = vmatpush1.msra.mxu0 0.0
  %2673 = vmatprep.subr.mxu0 0.0
  %2674 = vmatpush1.msra.mxu0 0.0
  %2675 = vmatprep.subr.mxu0 0.0
  %2676 = vmatpush1.msra.mxu0 0.0
  %2677 = vmatprep.subr.mxu0 0.0
  %2678 = vmatpush1.msra.mxu0 0.0
  %2679 = vmatprep.subr.mxu0 0.0
  %2680 = vmatpush1.msra.mxu0 0.0
  %2681 = vmatprep.subr.mxu0 0.0
  %2682 = vmatpush1.msra.mxu0 0.0
  %2683 = vmatprep.subr.mxu0 0.0
  %2684 = vmatpush1.msra.mxu0 0.0
  %2685 = vmatprep.subr.mxu0 0.0
  %2686 = vmatpush1.msra.mxu0 0.0
  %2687 = vmatprep.subr.mxu0 0.0
  %2688 = vmatpush1.msra.mxu0 0.0
  %2689 = vmatprep.subr.mxu0 0.0
  %2690 = vmatpush1.msra.mxu0 0.0
  %2691 = vmatprep.subr.mxu0 0.0
  %2692 = vmatpush1.msra.mxu0 0.0
  %2693 = vmatprep.subr.mxu0 0.0
  %2694 = vmatpush1.msra.mxu0 0.0
  %2695 = vmatprep.subr.mxu0 0.0
  %2696 = vmatpush1.msra.mxu0 0.0
  %2697 = vmatprep.mubr.f32.mxu0 0.0
  %2698 = vmatmul.mubr.f32.gmra.mrb[0].mxu0 %v2619
  %v2699 = vpop.f32.mrb[0].mxu0
  %v2700 = vadd.f32 0.0, %v2699
  %v2701 = vpop.f32.mrb[0].mxu0
  %2702 = vmatprep.mubr.f32.mxu0 0.0
  %2703 = vmatmul.mubr.f32.gmra.mrb[0].mxu0 %v2622
  %v2704 = vpop.f32.mrb[0].mxu0
  %v2705 = vadd.f32 0.0, %v2704
  %v2706 = vpop.f32.mrb[0].mxu0
  %2707 = vmatprep.mubr.f32.mxu0 0.0
  %2708 = vmatmul.mubr.f32.gmra.mrb[0].mxu0 %v2625
  %v2709 = vpop.f32.mrb[0].mxu0
  %v2710 = vadd.f32 0.0, %v2709
  %v2711 = vpop.f32.mrb[0].mxu0
  %2712 = vmatprep.mubr.f32.mxu0 0.0
  %2713 = vmatmul.mubr.f32.gmra.mrb[0].mxu0 %v2628
  %v2714 = vpop.f32.mrb[0].mxu0
  %v2715 = vadd.f32 0.0, %v2714
  %v2716 = vpop.f32.mrb[0].mxu0
  %2717 = vdwg.mxu0
  %v2718 = vadd.f32 %v1917, %v2700
  %v2719 = vadd.f32 %v1922, %v2705
  %v2720 = vadd.f32 %v1927, %v2710
  %v2721 = vadd.f32 %v1932, %v2715
  %2722 = vrot.lane.b32.xlu0 %v381, 92
  %v2723 = vpop.permute.xlu0 %2722
  %2724 = vrot.lane.b32.xlu0 %v381, 44
  %v2725 = vpop.permute.xlu0 %2724
  %v2726 = vsel %vm406, %v2723, 0
  %v2728 = vsel %vm406, %v2725, 0
  %2730 = vmatprep.subr.mxu0 0.0
  %2731 = vmatpush1.xpose.msra.mxu0 %v2728
  %2732 = vmatprep.subr.mxu0 0.0
  %2733 = vmatpush1.xpose.msra.mxu0 0.0
  %2734 = vmatprep.subr.mxu0 0.0
  %2735 = vmatpush1.xpose.msra.mxu0 0.0
  %2736 = vmatprep.subr.mxu0 0.0
  %2737 = vmatpush1.xpose.msra.mxu0 0.0
  %2738 = vmatprep.subr.mxu0 0.0
  %2739 = vmatpush1.xpose.msra.mxu0 0.0
  %2740 = vmatprep.subr.mxu0 0.0
  %2741 = vmatpush1.xpose.msra.mxu0 0.0
  %2742 = vmatprep.subr.mxu0 0.0
  %2743 = vmatpush1.xpose.msra.mxu0 0.0
  %2744 = vmatprep.subr.mxu0 0.0
  %2745 = vmatpush1.xpose.msra.mxu0 0.0
  %2746 = vmatprep.subr.mxu0 0.0
  %2747 = vmatpush1.xpose.msra.mxu0 0.0
  %2748 = vmatprep.subr.mxu0 0.0
  %2749 = vmatpush1.xpose.msra.mxu0 0.0
  %2750 = vmatprep.subr.mxu0 0.0
  %2751 = vmatpush1.xpose.msra.mxu0 0.0
  %2752 = vmatprep.subr.mxu0 0.0
  %2753 = vmatpush1.xpose.msra.mxu0 0.0
  %2754 = vmatprep.subr.mxu0 0.0
  %2755 = vmatpush1.xpose.msra.mxu0 0.0
  %2756 = vmatprep.subr.mxu0 0.0
  %2757 = vmatpush1.xpose.msra.mxu0 0.0
  %2758 = vmatprep.subr.mxu0 0.0
  %2759 = vmatpush1.xpose.msra.mxu0 0.0
  %2760 = vmatprep.subr.mxu0 0.0
  %2761 = vmatpush1.xpose.msra.mxu0 0.0
  %2762 = vmatprep.subr.mxu0 0.0
  %2763 = vmatpush1.xpose.msra.mxu0 0.0
  %2764 = vmatprep.subr.mxu0 0.0
  %2765 = vmatpush1.xpose.msra.mxu0 0.0
  %2766 = vmatprep.subr.mxu0 0.0
  %2767 = vmatpush1.xpose.msra.mxu0 0.0
  %2768 = vmatprep.subr.mxu0 0.0
  %2769 = vmatpush1.xpose.msra.mxu0 0.0
  %2770 = vmatprep.subr.mxu0 0.0
  %2771 = vmatpush1.xpose.msra.mxu0 0.0
  %2772 = vmatprep.subr.mxu0 0.0
  %2773 = vmatpush1.xpose.msra.mxu0 0.0
  %2774 = vmatprep.subr.mxu0 0.0
  %2775 = vmatpush1.xpose.msra.mxu0 0.0
  %2776 = vmatprep.subr.mxu0 0.0
  %2777 = vmatpush1.xpose.msra.mxu0 0.0
  %2778 = vmatprep.subr.mxu0 0.0
  %2779 = vmatpush1.xpose.msra.mxu0 0.0
  %2780 = vmatprep.subr.mxu0 0.0
  %2781 = vmatpush1.xpose.msra.mxu0 0.0
  %2782 = vmatprep.subr.mxu0 0.0
  %2783 = vmatpush1.xpose.msra.mxu0 0.0
  %2784 = vmatprep.subr.mxu0 0.0
  %2785 = vmatpush1.xpose.msra.mxu0 0.0
  %2786 = vmatprep.subr.mxu0 0.0
  %2787 = vmatpush1.xpose.msra.mxu0 0.0
  %2788 = vmatprep.subr.mxu0 0.0
  %2789 = vmatpush1.xpose.msra.mxu0 0.0
  %2790 = vmatprep.subr.mxu0 0.0
  %2791 = vmatpush1.xpose.msra.mxu0 0.0
  %2792 = vmatprep.subr.mxu0 0.0
  %2793 = vmatpush1.xpose.msra.mxu0 0.0
  %2794 = vmatprep.mubr.f32.mxu0 0.0
  %2795 = vmatmul.mubr.f32.gmra.mrb[0].mxu0 %v2726
  %v2796 = vpop.f32.mrb[0].mxu0
  %v2797 = vadd.f32 0.0, %v2796
  %v2798 = vpop.f32.mrb[0].mxu0
  %2799 = vdwg.mxu0
  %2800 = vrot.lane.b32.xlu0 %v387, 92
  %v2801 = vpop.permute.xlu0 %2800
  %2802 = vrot.lane.b32.xlu0 %v387, 44
  %v2803 = vpop.permute.xlu0 %2802
  %v2804 = vsel %vm406, %v2801, 0
  %v2806 = vsel %vm406, %v2803, 0
  %2808 = vmatprep.subr.mxu0 0.0
  %2809 = vmatpush1.xpose.msra.mxu0 %v2806
  %2810 = vmatprep.subr.mxu0 0.0
  %2811 = vmatpush1.xpose.msra.mxu0 0.0
  %2812 = vmatprep.subr.mxu0 0.0
  %2813 = vmatpush1.xpose.msra.mxu0 0.0
  %2814 = vmatprep.subr.mxu0 0.0
  %2815 = vmatpush1.xpose.msra.mxu0 0.0
  %2816 = vmatprep.subr.mxu0 0.0
  %2817 = vmatpush1.xpose.msra.mxu0 0.0
  %2818 = vmatprep.subr.mxu0 0.0
  %2819 = vmatpush1.xpose.msra.mxu0 0.0
  %2820 = vmatprep.subr.mxu0 0.0
  %2821 = vmatpush1.xpose.msra.mxu0 0.0
  %2822 = vmatprep.subr.mxu0 0.0
  %2823 = vmatpush1.xpose.msra.mxu0 0.0
  %2824 = vmatprep.subr.mxu0 0.0
  %2825 = vmatpush1.xpose.msra.mxu0 0.0
  %2826 = vmatprep.subr.mxu0 0.0
  %2827 = vmatpush1.xpose.msra.mxu0 0.0
  %2828 = vmatprep.subr.mxu0 0.0
  %2829 = vmatpush1.xpose.msra.mxu0 0.0
  %2830 = vmatprep.subr.mxu0 0.0
  %2831 = vmatpush1.xpose.msra.mxu0 0.0
  %2832 = vmatprep.subr.mxu0 0.0
  %2833 = vmatpush1.xpose.msra.mxu0 0.0
  %2834 = vmatprep.subr.mxu0 0.0
  %2835 = vmatpush1.xpose.msra.mxu0 0.0
  %2836 = vmatprep.subr.mxu0 0.0
  %2837 = vmatpush1.xpose.msra.mxu0 0.0
  %2838 = vmatprep.subr.mxu0 0.0
  %2839 = vmatpush1.xpose.msra.mxu0 0.0
  %2840 = vmatprep.subr.mxu0 0.0
  %2841 = vmatpush1.xpose.msra.mxu0 0.0
  %2842 = vmatprep.subr.mxu0 0.0
  %2843 = vmatpush1.xpose.msra.mxu0 0.0
  %2844 = vmatprep.subr.mxu0 0.0
  %2845 = vmatpush1.xpose.msra.mxu0 0.0
  %2846 = vmatprep.subr.mxu0 0.0
  %2847 = vmatpush1.xpose.msra.mxu0 0.0
  %2848 = vmatprep.subr.mxu0 0.0
  %2849 = vmatpush1.xpose.msra.mxu0 0.0
  %2850 = vmatprep.subr.mxu0 0.0
  %2851 = vmatpush1.xpose.msra.mxu0 0.0
  %2852 = vmatprep.subr.mxu0 0.0
  %2853 = vmatpush1.xpose.msra.mxu0 0.0
  %2854 = vmatprep.subr.mxu0 0.0
  %2855 = vmatpush1.xpose.msra.mxu0 0.0
  %2856 = vmatprep.subr.mxu0 0.0
  %2857 = vmatpush1.xpose.msra.mxu0 0.0
  %2858 = vmatprep.subr.mxu0 0.0
  %2859 = vmatpush1.xpose.msra.mxu0 0.0
  %2860 = vmatprep.subr.mxu0 0.0
  %2861 = vmatpush1.xpose.msra.mxu0 0.0
  %2862 = vmatprep.subr.mxu0 0.0
  %2863 = vmatpush1.xpose.msra.mxu0 0.0
  %2864 = vmatprep.subr.mxu0 0.0
  %2865 = vmatpush1.xpose.msra.mxu0 0.0
  %2866 = vmatprep.subr.mxu0 0.0
  %2867 = vmatpush1.xpose.msra.mxu0 0.0
  %2868 = vmatprep.subr.mxu0 0.0
  %2869 = vmatpush1.xpose.msra.mxu0 0.0
  %2870 = vmatprep.subr.mxu0 0.0
  %2871 = vmatpush1.xpose.msra.mxu0 0.0
  %2872 = vmatprep.mubr.f32.mxu0 0.0
  %2873 = vmatmul.mubr.f32.gmra.mrb[0].mxu0 %v2804
  %v2874 = vpop.f32.mrb[0].mxu0
  %v2875 = vadd.f32 0.0, %v2874
  %v2876 = vpop.f32.mrb[0].mxu0
  %2877 = vdwg.mxu0
  %2878 = vrot.lane.b32.xlu0 %v393, 92
  %v2879 = vpop.permute.xlu0 %2878
  %2880 = vrot.lane.b32.xlu0 %v393, 44
  %v2881 = vpop.permute.xlu0 %2880
  %v2882 = vsel %vm406, %v2879, 0
  %v2884 = vsel %vm406, %v2881, 0
  %2886 = vmatprep.subr.mxu0 0.0
  %2887 = vmatpush1.xpose.msra.mxu0 %v2884
  %2888 = vmatprep.subr.mxu0 0.0
  %2889 = vmatpush1.xpose.msra.mxu0 0.0
  %2890 = vmatprep.subr.mxu0 0.0
  %2891 = vmatpush1.xpose.msra.mxu0 0.0
  %2892 = vmatprep.subr.mxu0 0.0
  %2893 = vmatpush1.xpose.msra.mxu0 0.0
  %2894 = vmatprep.subr.mxu0 0.0
  %2895 = vmatpush1.xpose.msra.mxu0 0.0
  %2896 = vmatprep.subr.mxu0 0.0
  %2897 = vmatpush1.xpose.msra.mxu0 0.0
  %2898 = vmatprep.subr.mxu0 0.0
  %2899 = vmatpush1.xpose.msra.mxu0 0.0
  %2900 = vmatprep.subr.mxu0 0.0
  %2901 = vmatpush1.xpose.msra.mxu0 0.0
  %2902 = vmatprep.subr.mxu0 0.0
  %2903 = vmatpush1.xpose.msra.mxu0 0.0
  %2904 = vmatprep.subr.mxu0 0.0
  %2905 = vmatpush1.xpose.msra.mxu0 0.0
  %2906 = vmatprep.subr.mxu0 0.0
  %2907 = vmatpush1.xpose.msra.mxu0 0.0
  %2908 = vmatprep.subr.mxu0 0.0
  %2909 = vmatpush1.xpose.msra.mxu0 0.0
  %2910 = vmatprep.subr.mxu0 0.0
  %2911 = vmatpush1.xpose.msra.mxu0 0.0
  %2912 = vmatprep.subr.mxu0 0.0
  %2913 = vmatpush1.xpose.msra.mxu0 0.0
  %2914 = vmatprep.subr.mxu0 0.0
  %2915 = vmatpush1.xpose.msra.mxu0 0.0
  %2916 = vmatprep.subr.mxu0 0.0
  %2917 = vmatpush1.xpose.msra.mxu0 0.0
  %2918 = vmatprep.subr.mxu0 0.0
  %2919 = vmatpush1.xpose.msra.mxu0 0.0
  %2920 = vmatprep.subr.mxu0 0.0
  %2921 = vmatpush1.xpose.msra.mxu0 0.0
  %2922 = vmatprep.subr.mxu0 0.0
  %2923 = vmatpush1.xpose.msra.mxu0 0.0
  %2924 = vmatprep.subr.mxu0 0.0
  %2925 = vmatpush1.xpose.msra.mxu0 0.0
  %2926 = vmatprep.subr.mxu0 0.0
  %2927 = vmatpush1.xpose.msra.mxu0 0.0
  %2928 = vmatprep.subr.mxu0 0.0
  %2929 = vmatpush1.xpose.msra.mxu0 0.0
  %2930 = vmatprep.subr.mxu0 0.0
  %2931 = vmatpush1.xpose.msra.mxu0 0.0
  %2932 = vmatprep.subr.mxu0 0.0
  %2933 = vmatpush1.xpose.msra.mxu0 0.0
  %2934 = vmatprep.subr.mxu0 0.0
  %2935 = vmatpush1.xpose.msra.mxu0 0.0
  %2936 = vmatprep.subr.mxu0 0.0
  %2937 = vmatpush1.xpose.msra.mxu0 0.0
  %2938 = vmatprep.subr.mxu0 0.0
  %2939 = vmatpush1.xpose.msra.mxu0 0.0
  %2940 = vmatprep.subr.mxu0 0.0
  %2941 = vmatpush1.xpose.msra.mxu0 0.0
  %2942 = vmatprep.subr.mxu0 0.0
  %2943 = vmatpush1.xpose.msra.mxu0 0.0
  %2944 = vmatprep.subr.mxu0 0.0
  %2945 = vmatpush1.xpose.msra.mxu0 0.0
  %2946 = vmatprep.subr.mxu0 0.0
  %2947 = vmatpush1.xpose.msra.mxu0 0.0
  %2948 = vmatprep.subr.mxu0 0.0
  %2949 = vmatpush1.xpose.msra.mxu0 0.0
  %2950 = vmatprep.mubr.f32.mxu0 0.0
  %2951 = vmatmul.mubr.f32.gmra.mrb[0].mxu0 %v2882
  %v2952 = vpop.f32.mrb[0].mxu0
  %v2953 = vadd.f32 0.0, %v2952
  %v2954 = vpop.f32.mrb[0].mxu0
  %2955 = vdwg.mxu0
  %2956 = vrot.lane.b32.xlu0 %v399, 92
  %v2957 = vpop.permute.xlu0 %2956
  %2958 = vrot.lane.b32.xlu0 %v399, 44
  %v2959 = vpop.permute.xlu0 %2958
  %v2960 = vsel %vm406, %v2957, 0
  %v2962 = vsel %vm406, %v2959, 0
  %2964 = vmatprep.subr.mxu0 0.0
  %2965 = vmatpush1.xpose.msra.mxu0 %v2962
  %2966 = vmatprep.subr.mxu0 0.0
  %2967 = vmatpush1.xpose.msra.mxu0 0.0
  %2968 = vmatprep.subr.mxu0 0.0
  %2969 = vmatpush1.xpose.msra.mxu0 0.0
  %2970 = vmatprep.subr.mxu0 0.0
  %2971 = vmatpush1.xpose.msra.mxu0 0.0
  %2972 = vmatprep.subr.mxu0 0.0
  %2973 = vmatpush1.xpose.msra.mxu0 0.0
  %2974 = vmatprep.subr.mxu0 0.0
  %2975 = vmatpush1.xpose.msra.mxu0 0.0
  %2976 = vmatprep.subr.mxu0 0.0
  %2977 = vmatpush1.xpose.msra.mxu0 0.0
  %2978 = vmatprep.subr.mxu0 0.0
  %2979 = vmatpush1.xpose.msra.mxu0 0.0
  %2980 = vmatprep.subr.mxu0 0.0
  %2981 = vmatpush1.xpose.msra.mxu0 0.0
  %2982 = vmatprep.subr.mxu0 0.0
  %2983 = vmatpush1.xpose.msra.mxu0 0.0
  %2984 = vmatprep.subr.mxu0 0.0
  %2985 = vmatpush1.xpose.msra.mxu0 0.0
  %2986 = vmatprep.subr.mxu0 0.0
  %2987 = vmatpush1.xpose.msra.mxu0 0.0
  %2988 = vmatprep.subr.mxu0 0.0
  %2989 = vmatpush1.xpose.msra.mxu0 0.0
  %2990 = vmatprep.subr.mxu0 0.0
  %2991 = vmatpush1.xpose.msra.mxu0 0.0
  %2992 = vmatprep.subr.mxu0 0.0
  %2993 = vmatpush1.xpose.msra.mxu0 0.0
  %2994 = vmatprep.subr.mxu0 0.0
  %2995 = vmatpush1.xpose.msra.mxu0 0.0
  %2996 = vmatprep.subr.mxu0 0.0
  %2997 = vmatpush1.xpose.msra.mxu0 0.0
  %2998 = vmatprep.subr.mxu0 0.0
  %2999 = vmatpush1.xpose.msra.mxu0 0.0
  %3000 = vmatprep.subr.mxu0 0.0
  %3001 = vmatpush1.xpose.msra.mxu0 0.0
  %3002 = vmatprep.subr.mxu0 0.0
  %3003 = vmatpush1.xpose.msra.mxu0 0.0
  %3004 = vmatprep.subr.mxu0 0.0
  %3005 = vmatpush1.xpose.msra.mxu0 0.0
  %3006 = vmatprep.subr.mxu0 0.0
  %3007 = vmatpush1.xpose.msra.mxu0 0.0
  %3008 = vmatprep.subr.mxu0 0.0
  %3009 = vmatpush1.xpose.msra.mxu0 0.0
  %3010 = vmatprep.subr.mxu0 0.0
  %3011 = vmatpush1.xpose.msra.mxu0 0.0
  %3012 = vmatprep.subr.mxu0 0.0
  %3013 = vmatpush1.xpose.msra.mxu0 0.0
  %3014 = vmatprep.subr.mxu0 0.0
  %3015 = vmatpush1.xpose.msra.mxu0 0.0
  %3016 = vmatprep.subr.mxu0 0.0
  %3017 = vmatpush1.xpose.msra.mxu0 0.0
  %3018 = vmatprep.subr.mxu0 0.0
  %3019 = vmatpush1.xpose.msra.mxu0 0.0
  %3020 = vmatprep.subr.mxu0 0.0
  %3021 = vmatpush1.xpose.msra.mxu0 0.0
  %3022 = vmatprep.subr.mxu0 0.0
  %3023 = vmatpush1.xpose.msra.mxu0 0.0
  %3024 = vmatprep.subr.mxu0 0.0
  %3025 = vmatpush1.xpose.msra.mxu0 0.0
  %3026 = vmatprep.subr.mxu0 0.0
  %3027 = vmatpush1.xpose.msra.mxu0 0.0
  %3028 = vmatprep.mubr.f32.mxu0 0.0
  %3029 = vmatmul.mubr.f32.gmra.mrb[0].mxu0 %v2960
  %v3030 = vpop.f32.mrb[0].mxu0
  %v3031 = vadd.f32 0.0, %v3030
  %v3032 = vpop.f32.mrb[0].mxu0
  %3033 = vdwg.mxu0
  %v3034 = vmul.f32 %v2797, 0.28867513
  %v3035 = vmul.f32 %v2875, 0.28867513
  %v3036 = vmul.f32 %v2953, 0.28867513
  %v3037 = vmul.f32 %v3031, 0.28867513
  %v3038 = vsel %vm716, %v3034, -inf
  %3039 = vmax.xlane.f32.xlu0 %v3038
  %v3040 = vpop.xlane.xlu0 %3039
  %v3041 = vsel %vm716, %v3035, -inf
  %3042 = vmax.xlane.f32.xlu0 %v3041
  %v3043 = vpop.xlane.xlu0 %3042
  %v3044 = vsel %vm716, %v3036, -inf
  %3045 = vmax.xlane.f32.xlu0 %v3044
  %v3046 = vpop.xlane.xlu0 %3045
  %v3047 = vsel %vm716, %v3037, -inf
  %3048 = vmax.xlane.f32.xlu0 %v3047
  %v3049 = vpop.xlane.xlu0 %3048
  %v3050 = vsub.f32 %v3034, %v3040
  %v3051 = vsub.f32 %v3035, %v3043
  %v3052 = vsub.f32 %v3036, %v3046
  %v3053 = vsub.f32 %v3037, %v3049
  %v3054 = vmul.f32 %v3050, 1.442695
  %v3055 = vpow.pop %v3054
  %v3056 = vmul.f32 %v3051, 1.442695
  %v3057 = vpow.pop %v3056
  %v3058 = vmul.f32 %v3052, 1.442695
  %v3059 = vpow.pop %v3058
  %v3060 = vmul.f32 %v3053, 1.442695
  %v3061 = vpow.pop %v3060
  %v3062 = vsel %vm716, %v3055, 0.0
  %3063 = vadd.xlane.f32.xlu0 %v3062
  %v3064 = vpop.xlane.xlu0 %3063
  %v3065 = vsel %vm716, %v3057, 0.0
  %3066 = vadd.xlane.f32.xlu0 %v3065
  %v3067 = vpop.xlane.xlu0 %3066
  %v3068 = vsel %vm716, %v3059, 0.0
  %3069 = vadd.xlane.f32.xlu0 %v3068
  %v3070 = vpop.xlane.xlu0 %3069
  %v3071 = vsel %vm716, %v3061, 0.0
  %3072 = vadd.xlane.f32.xlu0 %v3071
  %v3073 = vpop.xlane.xlu0 %3072
  %v3074 = vrcp.pop %v3064
  %v3075 = vmul.f32 %v3055, %v3074
  %v3076 = vrcp.pop %v3067
  %v3077 = vmul.f32 %v3057, %v3076
  %v3078 = vrcp.pop %v3070
  %v3079 = vmul.f32 %v3059, %v3078
  %v3080 = vrcp.pop %v3073
  %v3081 = vmul.f32 %v3061, %v3080
  %3082 = vrot.lane.b32.xlu0 %v383, 124
  %v3083 = vpop.permute.xlu0 %3082
  %v3086 = vsel %vm716, %v3075, 0
  %3088 = vmatprep.subr.mxu0 0.0
  %3089 = vmatpush1.msra.mxu0 %v3083
  %3090 = vmatprep.subr.mxu0 0.0
  %3091 = vmatpush1.msra.mxu0 0.0
  %3092 = vmatprep.subr.mxu0 0.0
  %3093 = vmatpush1.msra.mxu0 0.0
  %3094 = vmatprep.subr.mxu0 0.0
  %3095 = vmatpush1.msra.mxu0 0.0
  %3096 = vmatprep.subr.mxu0 0.0
  %3097 = vmatpush1.msra.mxu0 0.0
  %3098 = vmatprep.subr.mxu0 0.0
  %3099 = vmatpush1.msra.mxu0 0.0
  %3100 = vmatprep.subr.mxu0 0.0
  %3101 = vmatpush1.msra.mxu0 0.0
  %3102 = vmatprep.subr.mxu0 0.0
  %3103 = vmatpush1.msra.mxu0 0.0
  %3104 = vmatprep.subr.mxu0 0.0
  %3105 = vmatpush1.msra.mxu0 0.0
  %3106 = vmatprep.subr.mxu0 0.0
  %3107 = vmatpush1.msra.mxu0 0.0
  %3108 = vmatprep.subr.mxu0 0.0
  %3109 = vmatpush1.msra.mxu0 0.0
  %3110 = vmatprep.subr.mxu0 0.0
  %3111 = vmatpush1.msra.mxu0 0.0
  %3112 = vmatprep.subr.mxu0 0.0
  %3113 = vmatpush1.msra.mxu0 0.0
  %3114 = vmatprep.subr.mxu0 0.0
  %3115 = vmatpush1.msra.mxu0 0.0
  %3116 = vmatprep.subr.mxu0 0.0
  %3117 = vmatpush1.msra.mxu0 0.0
  %3118 = vmatprep.subr.mxu0 0.0
  %3119 = vmatpush1.msra.mxu0 0.0
  %3120 = vmatprep.subr.mxu0 0.0
  %3121 = vmatpush1.msra.mxu0 0.0
  %3122 = vmatprep.subr.mxu0 0.0
  %3123 = vmatpush1.msra.mxu0 0.0
  %3124 = vmatprep.subr.mxu0 0.0
  %3125 = vmatpush1.msra.mxu0 0.0
  %3126 = vmatprep.subr.mxu0 0.0
  %3127 = vmatpush1.msra.mxu0 0.0
  %3128 = vmatprep.subr.mxu0 0.0
  %3129 = vmatpush1.msra.mxu0 0.0
  %3130 = vmatprep.subr.mxu0 0.0
  %3131 = vmatpush1.msra.mxu0 0.0
  %3132 = vmatprep.subr.mxu0 0.0
  %3133 = vmatpush1.msra.mxu0 0.0
  %3134 = vmatprep.subr.mxu0 0.0
  %3135 = vmatpush1.msra.mxu0 0.0
  %3136 = vmatprep.subr.mxu0 0.0
  %3137 = vmatpush1.msra.mxu0 0.0
  %3138 = vmatprep.subr.mxu0 0.0
  %3139 = vmatpush1.msra.mxu0 0.0
  %3140 = vmatprep.subr.mxu0 0.0
  %3141 = vmatpush1.msra.mxu0 0.0
  %3142 = vmatprep.subr.mxu0 0.0
  %3143 = vmatpush1.msra.mxu0 0.0
  %3144 = vmatprep.subr.mxu0 0.0
  %3145 = vmatpush1.msra.mxu0 0.0
  %3146 = vmatprep.subr.mxu0 0.0
  %3147 = vmatpush1.msra.mxu0 0.0
  %3148 = vmatprep.subr.mxu0 0.0
  %3149 = vmatpush1.msra.mxu0 0.0
  %3150 = vmatprep.subr.mxu0 0.0
  %3151 = vmatpush1.msra.mxu0 0.0
  %3152 = vmatprep.mubr.f32.mxu0 0.0
  %3153 = vmatmul.mubr.f32.gmra.mrb[0].mxu0 %v3086
  %v3154 = vpop.f32.mrb[0].mxu0
  %v3155 = vadd.f32 0.0, %v3154
  %v3156 = vpop.f32.mrb[0].mxu0
  %3157 = vdwg.mxu0
  %3158 = vrot.lane.b32.xlu0 %v389, 124
  %v3159 = vpop.permute.xlu0 %3158
  %v3162 = vsel %vm716, %v3077, 0
  %3164 = vmatprep.subr.mxu0 0.0
  %3165 = vmatpush1.msra.mxu0 %v3159
  %3166 = vmatprep.subr.mxu0 0.0
  %3167 = vmatpush1.msra.mxu0 0.0
  %3168 = vmatprep.subr.mxu0 0.0
  %3169 = vmatpush1.msra.mxu0 0.0
  %3170 = vmatprep.subr.mxu0 0.0
  %3171 = vmatpush1.msra.mxu0 0.0
  %3172 = vmatprep.subr.mxu0 0.0
  %3173 = vmatpush1.msra.mxu0 0.0
  %3174 = vmatprep.subr.mxu0 0.0
  %3175 = vmatpush1.msra.mxu0 0.0
  %3176 = vmatprep.subr.mxu0 0.0
  %3177 = vmatpush1.msra.mxu0 0.0
  %3178 = vmatprep.subr.mxu0 0.0
  %3179 = vmatpush1.msra.mxu0 0.0
  %3180 = vmatprep.subr.mxu0 0.0
  %3181 = vmatpush1.msra.mxu0 0.0
  %3182 = vmatprep.subr.mxu0 0.0
  %3183 = vmatpush1.msra.mxu0 0.0
  %3184 = vmatprep.subr.mxu0 0.0
  %3185 = vmatpush1.msra.mxu0 0.0
  %3186 = vmatprep.subr.mxu0 0.0
  %3187 = vmatpush1.msra.mxu0 0.0
  %3188 = vmatprep.subr.mxu0 0.0
  %3189 = vmatpush1.msra.mxu0 0.0
  %3190 = vmatprep.subr.mxu0 0.0
  %3191 = vmatpush1.msra.mxu0 0.0
  %3192 = vmatprep.subr.mxu0 0.0
  %3193 = vmatpush1.msra.mxu0 0.0
  %3194 = vmatprep.subr.mxu0 0.0
  %3195 = vmatpush1.msra.mxu0 0.0
  %3196 = vmatprep.subr.mxu0 0.0
  %3197 = vmatpush1.msra.mxu0 0.0
  %3198 = vmatprep.subr.mxu0 0.0
  %3199 = vmatpush1.msra.mxu0 0.0
  %3200 = vmatprep.subr.mxu0 0.0
  %3201 = vmatpush1.msra.mxu0 0.0
  %3202 = vmatprep.subr.mxu0 0.0
  %3203 = vmatpush1.msra.mxu0 0.0
  %3204 = vmatprep.subr.mxu0 0.0
  %3205 = vmatpush1.msra.mxu0 0.0
  %3206 = vmatprep.subr.mxu0 0.0
  %3207 = vmatpush1.msra.mxu0 0.0
  %3208 = vmatprep.subr.mxu0 0.0
  %3209 = vmatpush1.msra.mxu0 0.0
  %3210 = vmatprep.subr.mxu0 0.0
  %3211 = vmatpush1.msra.mxu0 0.0
  %3212 = vmatprep.subr.mxu0 0.0
  %3213 = vmatpush1.msra.mxu0 0.0
  %3214 = vmatprep.subr.mxu0 0.0
  %3215 = vmatpush1.msra.mxu0 0.0
  %3216 = vmatprep.subr.mxu0 0.0
  %3217 = vmatpush1.msra.mxu0 0.0
  %3218 = vmatprep.subr.mxu0 0.0
  %3219 = vmatpush1.msra.mxu0 0.0
  %3220 = vmatprep.subr.mxu0 0.0
  %3221 = vmatpush1.msra.mxu0 0.0
  %3222 = vmatprep.subr.mxu0 0.0
  %3223 = vmatpush1.msra.mxu0 0.0
  %3224 = vmatprep.subr.mxu0 0.0
  %3225 = vmatpush1.msra.mxu0 0.0
  %3226 = vmatprep.subr.mxu0 0.0
  %3227 = vmatpush1.msra.mxu0 0.0
  %3228 = vmatprep.mubr.f32.mxu0 0.0
  %3229 = vmatmul.mubr.f32.gmra.mrb[0].mxu0 %v3162
  %v3230 = vpop.f32.mrb[0].mxu0
  %v3231 = vadd.f32 0.0, %v3230
  %v3232 = vpop.f32.mrb[0].mxu0
  %3233 = vdwg.mxu0
  %3234 = vrot.lane.b32.xlu0 %v395, 124
  %v3235 = vpop.permute.xlu0 %3234
  %v3238 = vsel %vm716, %v3079, 0
  %3240 = vmatprep.subr.mxu0 0.0
  %3241 = vmatpush1.msra.mxu0 %v3235
  %3242 = vmatprep.subr.mxu0 0.0
  %3243 = vmatpush1.msra.mxu0 0.0
  %3244 = vmatprep.subr.mxu0 0.0
  %3245 = vmatpush1.msra.mxu0 0.0
  %3246 = vmatprep.subr.mxu0 0.0
  %3247 = vmatpush1.msra.mxu0 0.0
  %3248 = vmatprep.subr.mxu0 0.0
  %3249 = vmatpush1.msra.mxu0 0.0
  %3250 = vmatprep.subr.mxu0 0.0
  %3251 = vmatpush1.msra.mxu0 0.0
  %3252 = vmatprep.subr.mxu0 0.0
  %3253 = vmatpush1.msra.mxu0 0.0
  %3254 = vmatprep.subr.mxu0 0.0
  %3255 = vmatpush1.msra.mxu0 0.0
  %3256 = vmatprep.subr.mxu0 0.0
  %3257 = vmatpush1.msra.mxu0 0.0
  %3258 = vmatprep.subr.mxu0 0.0
  %3259 = vmatpush1.msra.mxu0 0.0
  %3260 = vmatprep.subr.mxu0 0.0
  %3261 = vmatpush1.msra.mxu0 0.0
  %3262 = vmatprep.subr.mxu0 0.0
  %3263 = vmatpush1.msra.mxu0 0.0
  %3264 = vmatprep.subr.mxu0 0.0
  %3265 = vmatpush1.msra.mxu0 0.0
  %3266 = vmatprep.subr.mxu0 0.0
  %3267 = vmatpush1.msra.mxu0 0.0
  %3268 = vmatprep.subr.mxu0 0.0
  %3269 = vmatpush1.msra.mxu0 0.0
  %3270 = vmatprep.subr.mxu0 0.0
  %3271 = vmatpush1.msra.mxu0 0.0
  %3272 = vmatprep.subr.mxu0 0.0
  %3273 = vmatpush1.msra.mxu0 0.0
  %3274 = vmatprep.subr.mxu0 0.0
  %3275 = vmatpush1.msra.mxu0 0.0
  %3276 = vmatprep.subr.mxu0 0.0
  %3277 = vmatpush1.msra.mxu0 0.0
  %3278 = vmatprep.subr.mxu0 0.0
  %3279 = vmatpush1.msra.mxu0 0.0
  %3280 = vmatprep.subr.mxu0 0.0
  %3281 = vmatpush1.msra.mxu0 0.0
  %3282 = vmatprep.subr.mxu0 0.0
  %3283 = vmatpush1.msra.mxu0 0.0
  %3284 = vmatprep.subr.mxu0 0.0
  %3285 = vmatpush1.msra.mxu0 0.0
  %3286 = vmatprep.subr.mxu0 0.0
  %3287 = vmatpush1.msra.mxu0 0.0
  %3288 = vmatprep.subr.mxu0 0.0
  %3289 = vmatpush1.msra.mxu0 0.0
  %3290 = vmatprep.subr.mxu0 0.0
  %3291 = vmatpush1.msra.mxu0 0.0
  %3292 = vmatprep.subr.mxu0 0.0
  %3293 = vmatpush1.msra.mxu0 0.0
  %3294 = vmatprep.subr.mxu0 0.0
  %3295 = vmatpush1.msra.mxu0 0.0
  %3296 = vmatprep.subr.mxu0 0.0
  %3297 = vmatpush1.msra.mxu0 0.0
  %3298 = vmatprep.subr.mxu0 0.0
  %3299 = vmatpush1.msra.mxu0 0.0
  %3300 = vmatprep.subr.mxu0 0.0
  %3301 = vmatpush1.msra.mxu0 0.0
  %3302 = vmatprep.subr.mxu0 0.0
  %3303 = vmatpush1.msra.mxu0 0.0
  %3304 = vmatprep.mubr.f32.mxu0 0.0
  %3305 = vmatmul.mubr.f32.gmra.mrb[0].mxu0 %v3238
  %v3306 = vpop.f32.mrb[0].mxu0
  %v3307 = vadd.f32 0.0, %v3306
  %v3308 = vpop.f32.mrb[0].mxu0
  %3309 = vdwg.mxu0
  %3310 = vrot.lane.b32.xlu0 %v401, 124
  %v3311 = vpop.permute.xlu0 %3310
  %v3314 = vsel %vm716, %v3081, 0
  %3316 = vmatprep.subr.mxu0 0.0
  %3317 = vmatpush1.msra.mxu0 %v3311
  %3318 = vmatprep.subr.mxu0 0.0
  %3319 = vmatpush1.msra.mxu0 0.0
  %3320 = vmatprep.subr.mxu0 0.0
  %3321 = vmatpush1.msra.mxu0 0.0
  %3322 = vmatprep.subr.mxu0 0.0
  %3323 = vmatpush1.msra.mxu0 0.0
  %3324 = vmatprep.subr.mxu0 0.0
  %3325 = vmatpush1.msra.mxu0 0.0
  %3326 = vmatprep.subr.mxu0 0.0
  %3327 = vmatpush1.msra.mxu0 0.0
  %3328 = vmatprep.subr.mxu0 0.0
  %3329 = vmatpush1.msra.mxu0 0.0
  %3330 = vmatprep.subr.mxu0 0.0
  %3331 = vmatpush1.msra.mxu0 0.0
  %3332 = vmatprep.subr.mxu0 0.0
  %3333 = vmatpush1.msra.mxu0 0.0
  %3334 = vmatprep.subr.mxu0 0.0
  %3335 = vmatpush1.msra.mxu0 0.0
  %3336 = vmatprep.subr.mxu0 0.0
  %3337 = vmatpush1.msra.mxu0 0.0
  %3338 = vmatprep.subr.mxu0 0.0
  %3339 = vmatpush1.msra.mxu0 0.0
  %3340 = vmatprep.subr.mxu0 0.0
  %3341 = vmatpush1.msra.mxu0 0.0
  %3342 = vmatprep.subr.mxu0 0.0
  %3343 = vmatpush1.msra.mxu0 0.0
  %3344 = vmatprep.subr.mxu0 0.0
  %3345 = vmatpush1.msra.mxu0 0.0
  %3346 = vmatprep.subr.mxu0 0.0
  %3347 = vmatpush1.msra.mxu0 0.0
  %3348 = vmatprep.subr.mxu0 0.0
  %3349 = vmatpush1.msra.mxu0 0.0
  %3350 = vmatprep.subr.mxu0 0.0
  %3351 = vmatpush1.msra.mxu0 0.0
  %3352 = vmatprep.subr.mxu0 0.0
  %3353 = vmatpush1.msra.mxu0 0.0
  %3354 = vmatprep.subr.mxu0 0.0
  %3355 = vmatpush1.msra.mxu0 0.0
  %3356 = vmatprep.subr.mxu0 0.0
  %3357 = vmatpush1.msra.mxu0 0.0
  %3358 = vmatprep.subr.mxu0 0.0
  %3359 = vmatpush1.msra.mxu0 0.0
  %3360 = vmatprep.subr.mxu0 0.0
  %3361 = vmatpush1.msra.mxu0 0.0
  %3362 = vmatprep.subr.mxu0 0.0
  %3363 = vmatpush1.msra.mxu0 0.0
  %3364 = vmatprep.subr.mxu0 0.0
  %3365 = vmatpush1.msra.mxu0 0.0
  %3366 = vmatprep.subr.mxu0 0.0
  %3367 = vmatpush1.msra.mxu0 0.0
  %3368 = vmatprep.subr.mxu0 0.0
  %3369 = vmatpush1.msra.mxu0 0.0
  %3370 = vmatprep.subr.mxu0 0.0
  %3371 = vmatpush1.msra.mxu0 0.0
  %3372 = vmatprep.subr.mxu0 0.0
  %3373 = vmatpush1.msra.mxu0 0.0
  %3374 = vmatprep.subr.mxu0 0.0
  %3375 = vmatpush1.msra.mxu0 0.0
  %3376 = vmatprep.subr.mxu0 0.0
  %3377 = vmatpush1.msra.mxu0 0.0
  %3378 = vmatprep.subr.mxu0 0.0
  %3379 = vmatpush1.msra.mxu0 0.0
  %3380 = vmatprep.mubr.f32.mxu0 0.0
  %3381 = vmatmul.mubr.f32.gmra.mrb[0].mxu0 %v3314
  %v3382 = vpop.f32.mrb[0].mxu0
  %v3383 = vadd.f32 0.0, %v3382
  %v3384 = vpop.f32.mrb[0].mxu0
  %3385 = vdwg.mxu0
  %s3386 = scalar_lea.vmem %s23, 48
  %v3387 = vld [vmem:[%s3386] sm:$0xff]
  %v3388 = vld [vmem:[%s3386 + $0x8] sm:$0xf]
  %v3390 = vsel %vm406, %v3155, 0
  %v3393 = vsel %vm406, %v3231, 0
  %v3396 = vsel %vm406, %v3307, 0
  %v3399 = vsel %vm406, %v3383, 0
  %v3402 = vsel %vm1746, %v3388, 0
  %3404 = vmatprep.subr.mxu0 0.0
  %3405 = vmatpush1.msra.mxu0 %v3387
  %3406 = vmatprep.subr.mxu0 0.0
  %3407 = vmatpush1.msra.mxu0 %v3402
  %3408 = vmatprep.subr.mxu0 0.0
  %3409 = vmatpush1.msra.mxu0 0.0
  %3410 = vmatprep.subr.mxu0 0.0
  %3411 = vmatpush1.msra.mxu0 0.0
  %3412 = vmatprep.subr.mxu0 0.0
  %3413 = vmatpush1.msra.mxu0 0.0
  %3414 = vmatprep.subr.mxu0 0.0
  %3415 = vmatpush1.msra.mxu0 0.0
  %3416 = vmatprep.subr.mxu0 0.0
  %3417 = vmatpush1.msra.mxu0 0.0
  %3418 = vmatprep.subr.mxu0 0.0
  %3419 = vmatpush1.msra.mxu0 0.0
  %3420 = vmatprep.subr.mxu0 0.0
  %3421 = vmatpush1.msra.mxu0 0.0
  %3422 = vmatprep.subr.mxu0 0.0
  %3423 = vmatpush1.msra.mxu0 0.0
  %3424 = vmatprep.subr.mxu0 0.0
  %3425 = vmatpush1.msra.mxu0 0.0
  %3426 = vmatprep.subr.mxu0 0.0
  %3427 = vmatpush1.msra.mxu0 0.0
  %3428 = vmatprep.subr.mxu0 0.0
  %3429 = vmatpush1.msra.mxu0 0.0
  %3430 = vmatprep.subr.mxu0 0.0
  %3431 = vmatpush1.msra.mxu0 0.0
  %3432 = vmatprep.subr.mxu0 0.0
  %3433 = vmatpush1.msra.mxu0 0.0
  %3434 = vmatprep.subr.mxu0 0.0
  %3435 = vmatpush1.msra.mxu0 0.0
  %3436 = vmatprep.subr.mxu0 0.0
  %3437 = vmatpush1.msra.mxu0 0.0
  %3438 = vmatprep.subr.mxu0 0.0
  %3439 = vmatpush1.msra.mxu0 0.0
  %3440 = vmatprep.subr.mxu0 0.0
  %3441 = vmatpush1.msra.mxu0 0.0
  %3442 = vmatprep.subr.mxu0 0.0
  %3443 = vmatpush1.msra.mxu0 0.0
  %3444 = vmatprep.subr.mxu0 0.0
  %3445 = vmatpush1.msra.mxu0 0.0
  %3446 = vmatprep.subr.mxu0 0.0
  %3447 = vmatpush1.msra.mxu0 0.0
  %3448 = vmatprep.subr.mxu0 0.0
  %3449 = vmatpush1.msra.mxu0 0.0
  %3450 = vmatprep.subr.mxu0 0.0
  %3451 = vmatpush1.msra.mxu0 0.0
  %3452 = vmatprep.subr.mxu0 0.0
  %3453 = vmatpush1.msra.mxu0 0.0
  %3454 = vmatprep.subr.mxu0 0.0
  %3455 = vmatpush1.msra.mxu0 0.0
  %3456 = vmatprep.subr.mxu0 0.0
  %3457 = vmatpush1.msra.mxu0 0.0
  %3458 = vmatprep.subr.mxu0 0.0
  %3459 = vmatpush1.msra.mxu0 0.0
  %3460 = vmatprep.subr.mxu0 0.0
  %3461 = vmatpush1.msra.mxu0 0.0
  %3462 = vmatprep.subr.mxu0 0.0
  %3463 = vmatpush1.msra.mxu0 0.0
  %3464 = vmatprep.subr.mxu0 0.0
  %3465 = vmatpush1.msra.mxu0 0.0
  %3466 = vmatprep.subr.mxu0 0.0
  %3467 = vmatpush1.msra.mxu0 0.0
  %3468 = vmatprep.mubr.f32.mxu0 0.0
  %3469 = vmatmul.mubr.f32.gmra.mrb[0].mxu0 %v3390
  %v3470 = vpop.f32.mrb[0].mxu0
  %v3471 = vadd.f32 0.0, %v3470
  %v3472 = vpop.f32.mrb[0].mxu0
  %3473 = vmatprep.mubr.f32.mxu0 0.0
  %3474 = vmatmul.mubr.f32.gmra.mrb[0].mxu0 %v3393
  %v3475 = vpop.f32.mrb[0].mxu0
  %v3476 = vadd.f32 0.0, %v3475
  %v3477 = vpop.f32.mrb[0].mxu0
  %3478 = vmatprep.mubr.f32.mxu0 0.0
  %3479 = vmatmul.mubr.f32.gmra.mrb[0].mxu0 %v3396
  %v3480 = vpop.f32.mrb[0].mxu0
  %v3481 = vadd.f32 0.0, %v3480
  %v3482 = vpop.f32.mrb[0].mxu0
  %3483 = vmatprep.mubr.f32.mxu0 0.0
  %3484 = vmatmul.mubr.f32.gmra.mrb[0].mxu0 %v3399
  %v3485 = vpop.f32.mrb[0].mxu0
  %v3486 = vadd.f32 0.0, %v3485
  %v3487 = vpop.f32.mrb[0].mxu0
  %3488 = vdwg.mxu0
  %v3489 = vadd.f32 %v2718, %v3471
  %v3490 = vadd.f32 %v2719, %v3476
  %v3491 = vadd.f32 %v2720, %v3481
  %v3492 = vadd.f32 %v2721, %v3486
  %v3493 = vadd.f32 %v202, %v3489
  %v3494 = vadd.f32 %v203, %v3490
  %v3495 = vadd.f32 %v150, %v3491
  %v3496 = vadd.f32 %v151, %v3492
  %v3497 = vld [vmem:[%s25] sm:$0x1]
  %v3499 = vlaneseq
  %v3500 = vshrl.u32 %v3499, 7
  %v3501 = vsub.s32 0, %v3500
  %v3502 = vrot.slane %v3497, %v3501
  %v3504 = vadd.f32 %v3493, %v3502
  %v3505 = vadd.f32 %v3494, %v3502
  %v3506 = vadd.f32 %v3495, %v3502
  %v3507 = vadd.f32 %v3496, %v3502
  %v3508 = vld [vmem:[%s27] sm:$0x1]
  %v3509 = vld [vmem:[%s29] sm:$0x1]
  %v3510 = vsel %vm156, %v3504, 0.0
  %3511 = vadd.xlane.f32.xlu0 %v3510
  %v3512 = vpop.xlane.xlu0 %3511
  %v3513 = vsel %vm156, %v3505, 0.0
  %3514 = vadd.xlane.f32.xlu0 %v3513
  %v3515 = vpop.xlane.xlu0 %3514
  %v3516 = vsel %vm156, %v3506, 0.0
  %3517 = vadd.xlane.f32.xlu0 %v3516
  %v3518 = vpop.xlane.xlu0 %3517
  %v3519 = vsel %vm156, %v3507, 0.0
  %3520 = vadd.xlane.f32.xlu0 %v3519
  %v3521 = vpop.xlane.xlu0 %3520
  %v3522 = vmul.f32 %v3512, %v163
  %v3523 = vmul.f32 %v3515, %v163
  %v3524 = vmul.f32 %v3518, %v163
  %v3525 = vmul.f32 %v3521, %v163
  %v3526 = vsub.f32 %v3504, %v3522
  %v3527 = vsub.f32 %v3505, %v3523
  %v3528 = vsub.f32 %v3506, %v3524
  %v3529 = vsub.f32 %v3507, %v3525
  %v3530 = vmul.f32 %v3526, %v3526
  %v3531 = vmul.f32 %v3527, %v3527
  %v3532 = vmul.f32 %v3528, %v3528
  %v3533 = vmul.f32 %v3529, %v3529
  %v3534 = vsel %vm156, %v3530, 0.0
  %3535 = vadd.xlane.f32.xlu0 %v3534
  %v3536 = vpop.xlane.xlu0 %3535
  %v3537 = vsel %vm156, %v3531, 0.0
  %3538 = vadd.xlane.f32.xlu0 %v3537
  %v3539 = vpop.xlane.xlu0 %3538
  %v3540 = vsel %vm156, %v3532, 0.0
  %3541 = vadd.xlane.f32.xlu0 %v3540
  %v3542 = vpop.xlane.xlu0 %3541
  %v3543 = vsel %vm156, %v3533, 0.0
  %3544 = vadd.xlane.f32.xlu0 %v3543
  %v3545 = vpop.xlane.xlu0 %3544
  %v3546 = vmul.f32 %v3536, %v163
  %v3547 = vmul.f32 %v3539, %v163
  %v3548 = vmul.f32 %v3542, %v163
  %v3549 = vmul.f32 %v3545, %v163
  %v3550 = vadd.f32 %v3546, 1e-05
  %v3551 = vadd.f32 %v3547, 1e-05
  %v3552 = vadd.f32 %v3548, 1e-05
  %v3553 = vadd.f32 %v3549, 1e-05
  %v3554 = vrsqrt.pop %v3550
  %v3555 = vrsqrt.pop %v3551
  %v3556 = vrsqrt.pop %v3552
  %v3557 = vrsqrt.pop %v3553
  %v3558 = vmul.f32 %v3526, %v3554
  %v3559 = vmul.f32 %v3527, %v3555
  %v3560 = vmul.f32 %v3528, %v3556
  %v3561 = vmul.f32 %v3529, %v3557
  %v3563 = vlaneseq
  %v3564 = vshrl.u32 %v3563, 7
  %v3565 = vsub.s32 0, %v3564
  %v3566 = vrot.slane %v3508, %v3565
  %v3568 = vmul.f32 %v3558, %v3566
  %v3569 = vmul.f32 %v3559, %v3566
  %v3570 = vmul.f32 %v3560, %v3566
  %v3571 = vmul.f32 %v3561, %v3566
  %v3573 = vlaneseq
  %v3574 = vshrl.u32 %v3573, 7
  %v3575 = vsub.s32 0, %v3574
  %v3576 = vrot.slane %v3509, %v3575
  %v3578 = vadd.f32 %v3568, %v3576
  %v3579 = vadd.f32 %v3569, %v3576
  %v3580 = vadd.f32 %v3570, %v3576
  %v3581 = vadd.f32 %v3571, %v3576
  %v3582 = vld [vmem:[%s31] sm:$0xff]
  %v3583 = vld [vmem:[%s31 + $0x8] sm:$0xff]
  %v3584 = vld [vmem:[%s31 + $0x10] sm:$0xff]
  %v3585 = vld [vmem:[%s31 + $0x18] sm:$0xff]
  %v3586 = vld [vmem:[%s31 + $0x20] sm:$0xff]
  %v3587 = vld [vmem:[%s31 + $0x28] sm:$0xff]
  %v3588 = vld [vmem:[%s33] sm:$0x1]
  %v3590 = vlaneseq
  %v3591 = vshrl.u32 %v3590, 7
  %v3592 = vsub.s32 0, %v3591
  %v3593 = vrot.slane %v3588, %v3592
  %v3596 = vsel %vm156, %v3578, 0
  %v3599 = vsel %vm156, %v3579, 0
  %v3602 = vsel %vm156, %v3580, 0
  %v3605 = vsel %vm156, %v3581, 0
  %3607 = vmatprep.subr.mxu0 0.0
  %3608 = vmatpush1.msra.mxu0 %v3582
  %3609 = vmatprep.subr.mxu0 0.0
  %3610 = vmatpush1.msra.mxu0 %v3583
  %3611 = vmatprep.subr.mxu0 0.0
  %3612 = vmatpush1.msra.mxu0 %v3584
  %3613 = vmatprep.subr.mxu0 0.0
  %3614 = vmatpush1.msra.mxu0 %v3585
  %3615 = vmatprep.subr.mxu0 0.0
  %3616 = vmatpush1.msra.mxu0 %v3586
  %3617 = vmatprep.subr.mxu0 0.0
  %3618 = vmatpush1.msra.mxu0 %v3587
  %3619 = vmatprep.subr.mxu0 0.0
  %3620 = vmatpush1.msra.mxu0 0.0
  %3621 = vmatprep.subr.mxu0 0.0
  %3622 = vmatpush1.msra.mxu0 0.0
  %3623 = vmatprep.subr.mxu0 0.0
  %3624 = vmatpush1.msra.mxu0 0.0
  %3625 = vmatprep.subr.mxu0 0.0
  %3626 = vmatpush1.msra.mxu0 0.0
  %3627 = vmatprep.subr.mxu0 0.0
  %3628 = vmatpush1.msra.mxu0 0.0
  %3629 = vmatprep.subr.mxu0 0.0
  %3630 = vmatpush1.msra.mxu0 0.0
  %3631 = vmatprep.subr.mxu0 0.0
  %3632 = vmatpush1.msra.mxu0 0.0
  %3633 = vmatprep.subr.mxu0 0.0
  %3634 = vmatpush1.msra.mxu0 0.0
  %3635 = vmatprep.subr.mxu0 0.0
  %3636 = vmatpush1.msra.mxu0 0.0
  %3637 = vmatprep.subr.mxu0 0.0
  %3638 = vmatpush1.msra.mxu0 0.0
  %3639 = vmatprep.subr.mxu0 0.0
  %3640 = vmatpush1.msra.mxu0 0.0
  %3641 = vmatprep.subr.mxu0 0.0
  %3642 = vmatpush1.msra.mxu0 0.0
  %3643 = vmatprep.subr.mxu0 0.0
  %3644 = vmatpush1.msra.mxu0 0.0
  %3645 = vmatprep.subr.mxu0 0.0
  %3646 = vmatpush1.msra.mxu0 0.0
  %3647 = vmatprep.subr.mxu0 0.0
  %3648 = vmatpush1.msra.mxu0 0.0
  %3649 = vmatprep.subr.mxu0 0.0
  %3650 = vmatpush1.msra.mxu0 0.0
  %3651 = vmatprep.subr.mxu0 0.0
  %3652 = vmatpush1.msra.mxu0 0.0
  %3653 = vmatprep.subr.mxu0 0.0
  %3654 = vmatpush1.msra.mxu0 0.0
  %3655 = vmatprep.subr.mxu0 0.0
  %3656 = vmatpush1.msra.mxu0 0.0
  %3657 = vmatprep.subr.mxu0 0.0
  %3658 = vmatpush1.msra.mxu0 0.0
  %3659 = vmatprep.subr.mxu0 0.0
  %3660 = vmatpush1.msra.mxu0 0.0
  %3661 = vmatprep.subr.mxu0 0.0
  %3662 = vmatpush1.msra.mxu0 0.0
  %3663 = vmatprep.subr.mxu0 0.0
  %3664 = vmatpush1.msra.mxu0 0.0
  %3665 = vmatprep.subr.mxu0 0.0
  %3666 = vmatpush1.msra.mxu0 0.0
  %3667 = vmatprep.subr.mxu0 0.0
  %3668 = vmatpush1.msra.mxu0 0.0
  %3669 = vmatprep.subr.mxu0 0.0
  %3670 = vmatpush1.msra.mxu0 0.0
  %3671 = vmatprep.mubr.f32.mxu0 0.0
  %3672 = vmatmul.mubr.f32.gmra.mrb[0].mxu0 %v3596
  %v3673 = vpop.f32.mrb[0].mxu0
  %v3674 = vadd.f32 %v3593, %v3673
  %v3675 = vpop.f32.mrb[0].mxu0
  %3676 = vmatprep.mubr.f32.mxu0 0.0
  %3677 = vmatmul.mubr.f32.gmra.mrb[0].mxu0 %v3599
  %v3678 = vpop.f32.mrb[0].mxu0
  %v3679 = vadd.f32 %v3593, %v3678
  %v3680 = vpop.f32.mrb[0].mxu0
  %3681 = vmatprep.mubr.f32.mxu0 0.0
  %3682 = vmatmul.mubr.f32.gmra.mrb[0].mxu0 %v3602
  %v3683 = vpop.f32.mrb[0].mxu0
  %v3684 = vadd.f32 %v3593, %v3683
  %v3685 = vpop.f32.mrb[0].mxu0
  %3686 = vmatprep.mubr.f32.mxu0 0.0
  %3687 = vmatmul.mubr.f32.gmra.mrb[0].mxu0 %v3605
  %v3688 = vpop.f32.mrb[0].mxu0
  %v3689 = vadd.f32 %v3593, %v3688
  %v3690 = vpop.f32.mrb[0].mxu0
  %3691 = vdwg.mxu0
  %v3692 = vmul.f32 %v3674, %v3674
  %v3693 = vmul.f32 %v3679, %v3679
  %v3694 = vmul.f32 %v3684, %v3684
  %v3695 = vmul.f32 %v3689, %v3689
  %v3696 = vmul.f32 %v3674, %v3692
  %v3697 = vmul.f32 %v3679, %v3693
  %v3698 = vmul.f32 %v3684, %v3694
  %v3699 = vmul.f32 %v3689, %v3695
  %v3700 = vmul.f32 %v3696, 0.044715
  %v3701 = vmul.f32 %v3697, 0.044715
  %v3702 = vmul.f32 %v3698, 0.044715
  %v3703 = vmul.f32 %v3699, 0.044715
  %v3704 = vadd.f32 %v3674, %v3700
  %v3705 = vadd.f32 %v3679, %v3701
  %v3706 = vadd.f32 %v3684, %v3702
  %v3707 = vadd.f32 %v3689, %v3703
  %v3708 = vmul.f32 %v3704, 0.7978846
  %v3709 = vmul.f32 %v3705, 0.7978846
  %v3710 = vmul.f32 %v3706, 0.7978846
  %v3711 = vmul.f32 %v3707, 0.7978846
  %v3712 = vtanh.pop %v3708
  %v3713 = vtanh.pop %v3709
  %v3714 = vtanh.pop %v3710
  %v3715 = vtanh.pop %v3711
  %v3716 = vadd.f32 %v3712, 1.0
  %v3717 = vadd.f32 %v3713, 1.0
  %v3718 = vadd.f32 %v3714, 1.0
  %v3719 = vadd.f32 %v3715, 1.0
  %v3720 = vmul.f32 %v3716, 0.5
  %v3721 = vmul.f32 %v3717, 0.5
  %v3722 = vmul.f32 %v3718, 0.5
  %v3723 = vmul.f32 %v3719, 0.5
  %v3724 = vmul.f32 %v3674, %v3720
  %v3725 = vmul.f32 %v3679, %v3721
  %v3726 = vmul.f32 %v3684, %v3722
  %v3727 = vmul.f32 %v3689, %v3723
  %v3728 = vld [vmem:[%s35] sm:$0xff]
  %v3729 = vld [vmem:[%s35 + $0x8] sm:$0xff]
  %v3730 = vld [vmem:[%s35 + $0x10] sm:$0xff]
  %v3731 = vld [vmem:[%s35 + $0x18] sm:$0xff]
  %v3732 = vld [vmem:[%s35 + $0x20] sm:$0xff]
  %v3733 = vld [vmem:[%s35 + $0x28] sm:$0xff]
  %v3734 = vld [vmem:[%s35 + $0x30] sm:$0xff]
  %v3735 = vld [vmem:[%s35 + $0x38] sm:$0xff]
  %v3736 = vld [vmem:[%s35 + $0x40] sm:$0xff]
  %v3737 = vld [vmem:[%s35 + $0x48] sm:$0xff]
  %v3738 = vld [vmem:[%s35 + $0x50] sm:$0xff]
  %v3739 = vld [vmem:[%s35 + $0x58] sm:$0xff]
  %v3740 = vld [vmem:[%s37] sm:$0x1]
  %v3742 = vlaneseq
  %v3743 = vshrl.u32 %v3742, 7
  %v3744 = vsub.s32 0, %v3743
  %v3745 = vrot.slane %v3740, %v3744
  %vm3747 = vcmask 785408
  %v3749 = vsel %vm3747, %v3724, 0
  %v3752 = vsel %vm3747, %v3725, 0
  %v3755 = vsel %vm3747, %v3726, 0
  %v3758 = vsel %vm3747, %v3727, 0
  %3760 = vmatprep.subr.mxu0 0.0
  %3761 = vmatpush1.msra.mxu0 %v3728
  %3762 = vmatprep.subr.mxu0 0.0
  %3763 = vmatpush1.msra.mxu0 %v3729
  %3764 = vmatprep.subr.mxu0 0.0
  %3765 = vmatpush1.msra.mxu0 %v3730
  %3766 = vmatprep.subr.mxu0 0.0
  %3767 = vmatpush1.msra.mxu0 %v3731
  %3768 = vmatprep.subr.mxu0 0.0
  %3769 = vmatpush1.msra.mxu0 %v3732
  %3770 = vmatprep.subr.mxu0 0.0
  %3771 = vmatpush1.msra.mxu0 %v3733
  %3772 = vmatprep.subr.mxu0 0.0
  %3773 = vmatpush1.msra.mxu0 %v3734
  %3774 = vmatprep.subr.mxu0 0.0
  %3775 = vmatpush1.msra.mxu0 %v3735
  %3776 = vmatprep.subr.mxu0 0.0
  %3777 = vmatpush1.msra.mxu0 %v3736
  %3778 = vmatprep.subr.mxu0 0.0
  %3779 = vmatpush1.msra.mxu0 %v3737
  %3780 = vmatprep.subr.mxu0 0.0
  %3781 = vmatpush1.msra.mxu0 %v3738
  %3782 = vmatprep.subr.mxu0 0.0
  %3783 = vmatpush1.msra.mxu0 %v3739
  %3784 = vmatprep.subr.mxu0 0.0
  %3785 = vmatpush1.msra.mxu0 0.0
  %3786 = vmatprep.subr.mxu0 0.0
  %3787 = vmatpush1.msra.mxu0 0.0
  %3788 = vmatprep.subr.mxu0 0.0
  %3789 = vmatpush1.msra.mxu0 0.0
  %3790 = vmatprep.subr.mxu0 0.0
  %3791 = vmatpush1.msra.mxu0 0.0
  %3792 = vmatprep.subr.mxu0 0.0
  %3793 = vmatpush1.msra.mxu0 0.0
  %3794 = vmatprep.subr.mxu0 0.0
  %3795 = vmatpush1.msra.mxu0 0.0
  %3796 = vmatprep.subr.mxu0 0.0
  %3797 = vmatpush1.msra.mxu0 0.0
  %3798 = vmatprep.subr.mxu0 0.0
  %3799 = vmatpush1.msra.mxu0 0.0
  %3800 = vmatprep.subr.mxu0 0.0
  %3801 = vmatpush1.msra.mxu0 0.0
  %3802 = vmatprep.subr.mxu0 0.0
  %3803 = vmatpush1.msra.mxu0 0.0
  %3804 = vmatprep.subr.mxu0 0.0
  %3805 = vmatpush1.msra.mxu0 0.0
  %3806 = vmatprep.subr.mxu0 0.0
  %3807 = vmatpush1.msra.mxu0 0.0
  %3808 = vmatprep.subr.mxu0 0.0
  %3809 = vmatpush1.msra.mxu0 0.0
  %3810 = vmatprep.subr.mxu0 0.0
  %3811 = vmatpush1.msra.mxu0 0.0
  %3812 = vmatprep.subr.mxu0 0.0
  %3813 = vmatpush1.msra.mxu0 0.0
  %3814 = vmatprep.subr.mxu0 0.0
  %3815 = vmatpush1.msra.mxu0 0.0
  %3816 = vmatprep.subr.mxu0 0.0
  %3817 = vmatpush1.msra.mxu0 0.0
  %3818 = vmatprep.subr.mxu0 0.0
  %3819 = vmatpush1.msra.mxu0 0.0
  %3820 = vmatprep.subr.mxu0 0.0
  %3821 = vmatpush1.msra.mxu0 0.0
  %3822 = vmatprep.subr.mxu0 0.0
  %3823 = vmatpush1.msra.mxu0 0.0
  %3824 = vmatprep.mubr.f32.mxu0 0.0
  %3825 = vmatmul.mubr.f32.gmra.mrb[0].mxu0 %v3749
  %v3826 = vpop.f32.mrb[0].mxu0
  %v3827 = vadd.f32 %v3745, %v3826
  %v3828 = vpop.f32.mrb[0].mxu0
  %3829 = vmatprep.mubr.f32.mxu0 0.0
  %3830 = vmatmul.mubr.f32.gmra.mrb[0].mxu0 %v3752
  %v3831 = vpop.f32.mrb[0].mxu0
  %v3832 = vadd.f32 %v3745, %v3831
  %v3833 = vpop.f32.mrb[0].mxu0
  %3834 = vmatprep.mubr.f32.mxu0 0.0
  %3835 = vmatmul.mubr.f32.gmra.mrb[0].mxu0 %v3755
  %v3836 = vpop.f32.mrb[0].mxu0
  %v3837 = vadd.f32 %v3745, %v3836
  %v3838 = vpop.f32.mrb[0].mxu0
  %3839 = vmatprep.mubr.f32.mxu0 0.0
  %3840 = vmatmul.mubr.f32.gmra.mrb[0].mxu0 %v3758
  %v3841 = vpop.f32.mrb[0].mxu0
  %v3842 = vadd.f32 %v3745, %v3841
  %v3843 = vpop.f32.mrb[0].mxu0
  %3844 = vdwg.mxu0
  %v3845 = vadd.f32 %v3504, %v3827
  %v3846 = vadd.f32 %v3505, %v3832
  %v3847 = vadd.f32 %v3506, %v3837
  %v3848 = vadd.f32 %v3507, %v3842
  %v3849 = vld [vmem:[%s39] sm:$0x1]
  %v3850 = vld [vmem:[%s41] sm:$0x1]
  %v3851 = vsel %vm156, %v3845, 0.0
  %3852 = vadd.xlane.f32.xlu0 %v3851
  %v3853 = vpop.xlane.xlu0 %3852
  %v3854 = vsel %vm156, %v3846, 0.0
  %3855 = vadd.xlane.f32.xlu0 %v3854
  %v3856 = vpop.xlane.xlu0 %3855
  %v3857 = vsel %vm156, %v3847, 0.0
  %3858 = vadd.xlane.f32.xlu0 %v3857
  %v3859 = vpop.xlane.xlu0 %3858
  %v3860 = vsel %vm156, %v3848, 0.0
  %3861 = vadd.xlane.f32.xlu0 %v3860
  %v3862 = vpop.xlane.xlu0 %3861
  %v3863 = vmul.f32 %v3853, %v163
  %v3864 = vmul.f32 %v3856, %v163
  %v3865 = vmul.f32 %v3859, %v163
  %v3866 = vmul.f32 %v3862, %v163
  %v3867 = vsub.f32 %v3845, %v3863
  %v3868 = vsub.f32 %v3846, %v3864
  %v3869 = vsub.f32 %v3847, %v3865
  %v3870 = vsub.f32 %v3848, %v3866
  %v3871 = vmul.f32 %v3867, %v3867
  %v3872 = vmul.f32 %v3868, %v3868
  %v3873 = vmul.f32 %v3869, %v3869
  %v3874 = vmul.f32 %v3870, %v3870
  %v3875 = vsel %vm156, %v3871, 0.0
  %3876 = vadd.xlane.f32.xlu0 %v3875
  %v3877 = vpop.xlane.xlu0 %3876
  %v3878 = vsel %vm156, %v3872, 0.0
  %3879 = vadd.xlane.f32.xlu0 %v3878
  %v3880 = vpop.xlane.xlu0 %3879
  %v3881 = vsel %vm156, %v3873, 0.0
  %3882 = vadd.xlane.f32.xlu0 %v3881
  %v3883 = vpop.xlane.xlu0 %3882
  %v3884 = vsel %vm156, %v3874, 0.0
  %3885 = vadd.xlane.f32.xlu0 %v3884
  %v3886 = vpop.xlane.xlu0 %3885
  %v3887 = vmul.f32 %v3877, %v163
  %v3888 = vmul.f32 %v3880, %v163
  %v3889 = vmul.f32 %v3883, %v163
  %v3890 = vmul.f32 %v3886, %v163
  %v3891 = vadd.f32 %v3887, 1e-05
  %v3892 = vadd.f32 %v3888, 1e-05
  %v3893 = vadd.f32 %v3889, 1e-05
  %v3894 = vadd.f32 %v3890, 1e-05
  %v3895 = vrsqrt.pop %v3891
  %v3896 = vrsqrt.pop %v3892
  %v3897 = vrsqrt.pop %v3893
  %v3898 = vrsqrt.pop %v3894
  %v3899 = vmul.f32 %v3867, %v3895
  %v3900 = vmul.f32 %v3868, %v3896
  %v3901 = vmul.f32 %v3869, %v3897
  %v3902 = vmul.f32 %v3870, %v3898
  %v3904 = vlaneseq
  %v3905 = vshrl.u32 %v3904, 7
  %v3906 = vsub.s32 0, %v3905
  %v3907 = vrot.slane %v3849, %v3906
  %v3909 = vmul.f32 %v3899, %v3907
  %v3910 = vmul.f32 %v3900, %v3907
  %v3911 = vmul.f32 %v3901, %v3907
  %v3912 = vmul.f32 %v3902, %v3907
  %v3914 = vlaneseq
  %v3915 = vshrl.u32 %v3914, 7
  %v3916 = vsub.s32 0, %v3915
  %v3917 = vrot.slane %v3850, %v3916
  %v3919 = vadd.f32 %v3909, %v3917
  %v3920 = vadd.f32 %v3910, %v3917
  %v3921 = vadd.f32 %v3911, %v3917
  %v3922 = vadd.f32 %v3912, %v3917
  %v3923 = vld [vmem:[%s43] sm:$0xff]
  %v3924 = vld [vmem:[%s43 + $0x8] sm:$0xff]
  %v3925 = vld [vmem:[%s43 + $0x10] sm:$0xff]
  %v3926 = vld [vmem:[%s43 + $0x18] sm:$0xff]
  %v3927 = vld [vmem:[%s43 + $0x20] sm:$0xff]
  %v3928 = vld [vmem:[%s43 + $0x28] sm:$0xff]
  %v3929 = vld [vmem:[%s43 + $0x30] sm:$0xff]
  %v3930 = vld [vmem:[%s43 + $0x38] sm:$0xff]
  %v3931 = vld [vmem:[%s43 + $0x40] sm:$0xff]
  %v3932 = vld [vmem:[%s43 + $0x48] sm:$0xff]
  %v3933 = vld [vmem:[%s43 + $0x50] sm:$0xff]
  %v3934 = vld [vmem:[%s43 + $0x58] sm:$0xff]
  %v3935 = vld [vmem:[%s45] sm:$0x3]
  %v3937 = vlaneseq
  %v3938 = vshrl.u32 %v3937, 7
  %v3939 = vsub.s32 0, %v3938
  %v3940 = vrot.slane %v3935, %v3939
  %v3941 = vlaneseq
  %v3942 = vshrl.u32 %v3941, 7
  %v3943 = vsub.s32 1, %v3942
  %v3944 = vrot.slane %v3935, %v3943
  %v3948 = vsel %vm156, %v3919, 0
  %v3951 = vsel %vm156, %v3920, 0
  %v3954 = vsel %vm156, %v3921, 0
  %v3957 = vsel %vm156, %v3922, 0
  %3959 = vmatprep.subr.mxu0 %v3924
  %3960 = vmatpush1.msra.mxu0 %v3923
  %3961 = vmatprep.subr.mxu0 %v3926
  %3962 = vmatpush1.msra.mxu0 %v3925
  %3963 = vmatprep.subr.mxu0 %v3928
  %3964 = vmatpush1.msra.mxu0 %v3927
  %3965 = vmatprep.subr.mxu0 %v3930
  %3966 = vmatpush1.msra.mxu0 %v3929
  %3967 = vmatprep.subr.mxu0 %v3932
  %3968 = vmatpush1.msra.mxu0 %v3931
  %3969 = vmatprep.subr.mxu0 %v3934
  %3970 = vmatpush1.msra.mxu0 %v3933
  %3971 = vmatprep.subr.mxu0 0.0
  %3972 = vmatpush1.msra.mxu0 0.0
  %3973 = vmatprep.subr.mxu0 0.0
  %3974 = vmatpush1.msra.mxu0 0.0
  %3975 = vmatprep.subr.mxu0 0.0
  %3976 = vmatpush1.msra.mxu0 0.0
  %3977 = vmatprep.subr.mxu0 0.0
  %3978 = vmatpush1.msra.mxu0 0.0
  %3979 = vmatprep.subr.mxu0 0.0
  %3980 = vmatpush1.msra.mxu0 0.0
  %3981 = vmatprep.subr.mxu0 0.0
  %3982 = vmatpush1.msra.mxu0 0.0
  %3983 = vmatprep.subr.mxu0 0.0
  %3984 = vmatpush1.msra.mxu0 0.0
  %3985 = vmatprep.subr.mxu0 0.0
  %3986 = vmatpush1.msra.mxu0 0.0
  %3987 = vmatprep.subr.mxu0 0.0
  %3988 = vmatpush1.msra.mxu0 0.0
  %3989 = vmatprep.subr.mxu0 0.0
  %3990 = vmatpush1.msra.mxu0 0.0
  %3991 = vmatprep.subr.mxu0 0.0
  %3992 = vmatpush1.msra.mxu0 0.0
  %3993 = vmatprep.subr.mxu0 0.0
  %3994 = vmatpush1.msra.mxu0 0.0
  %3995 = vmatprep.subr.mxu0 0.0
  %3996 = vmatpush1.msra.mxu0 0.0
  %3997 = vmatprep.subr.mxu0 0.0
  %3998 = vmatpush1.msra.mxu0 0.0
  %3999 = vmatprep.subr.mxu0 0.0
  %4000 = vmatpush1.msra.mxu0 0.0
  %4001 = vmatprep.subr.mxu0 0.0
  %4002 = vmatpush1.msra.mxu0 0.0
  %4003 = vmatprep.subr.mxu0 0.0
  %4004 = vmatpush1.msra.mxu0 0.0
  %4005 = vmatprep.subr.mxu0 0.0
  %4006 = vmatpush1.msra.mxu0 0.0
  %4007 = vmatprep.subr.mxu0 0.0
  %4008 = vmatpush1.msra.mxu0 0.0
  %4009 = vmatprep.subr.mxu0 0.0
  %4010 = vmatpush1.msra.mxu0 0.0
  %4011 = vmatprep.subr.mxu0 0.0
  %4012 = vmatpush1.msra.mxu0 0.0
  %4013 = vmatprep.subr.mxu0 0.0
  %4014 = vmatpush1.msra.mxu0 0.0
  %4015 = vmatprep.subr.mxu0 0.0
  %4016 = vmatpush1.msra.mxu0 0.0
  %4017 = vmatprep.subr.mxu0 0.0
  %4018 = vmatpush1.msra.mxu0 0.0
  %4019 = vmatprep.subr.mxu0 0.0
  %4020 = vmatpush1.msra.mxu0 0.0
  %4021 = vmatprep.subr.mxu0 0.0
  %4022 = vmatpush1.msra.mxu0 0.0
  %4023 = vmatprep.mubr.f32.mxu0 0.0
  %4024 = vmatmul.mubr.f32.gmra.mrb[0].mxu0 %v3948
  %v4025 = vpop.f32.mrb[0].mxu0
  %v4026 = vadd.f32 %v3940, %v4025
  %v4027 = vpop.f32.mrb[0].mxu0
  %v4028 = vadd.f32 %v3944, %v4027
  %4029 = vmatprep.mubr.f32.mxu0 0.0
  %4030 = vmatmul.mubr.f32.gmra.mrb[0].mxu0 %v3951
  %v4031 = vpop.f32.mrb[0].mxu0
  %v4032 = vadd.f32 %v3940, %v4031
  %v4033 = vpop.f32.mrb[0].mxu0
  %v4034 = vadd.f32 %v3944, %v4033
  %4035 = vmatprep.mubr.f32.mxu0 0.0
  %4036 = vmatmul.mubr.f32.gmra.mrb[0].mxu0 %v3954
  %v4037 = vpop.f32.mrb[0].mxu0
  %v4038 = vadd.f32 %v3940, %v4037
  %v4039 = vpop.f32.mrb[0].mxu0
  %v4040 = vadd.f32 %v3944, %v4039
  %4041 = vmatprep.mubr.f32.mxu0 0.0
  %4042 = vmatmul.mubr.f32.gmra.mrb[0].mxu0 %v3957
  %v4043 = vpop.f32.mrb[0].mxu0
  %v4044 = vadd.f32 %v3940, %v4043
  %v4045 = vpop.f32.mrb[0].mxu0
  %v4046 = vadd.f32 %v3944, %v4045
  %4047 = vdwg.mxu0
  %4049 = vrot.lane.b32.xlu0 %v4026, 80
  %v4050 = vpop.permute.xlu0 %4049
  %v4051 = vsel %vm406, %v4026, 0
  %v4053 = vsel %vm406, %v4050, 0
  %4055 = vmatprep.subr.mxu0 0.0
  %4056 = vmatpush1.xpose.msra.mxu0 %v4053
  %4057 = vmatprep.subr.mxu0 0.0
  %4058 = vmatpush1.xpose.msra.mxu0 0.0
  %4059 = vmatprep.subr.mxu0 0.0
  %4060 = vmatpush1.xpose.msra.mxu0 0.0
  %4061 = vmatprep.subr.mxu0 0.0
  %4062 = vmatpush1.xpose.msra.mxu0 0.0
  %4063 = vmatprep.subr.mxu0 0.0
  %4064 = vmatpush1.xpose.msra.mxu0 0.0
  %4065 = vmatprep.subr.mxu0 0.0
  %4066 = vmatpush1.xpose.msra.mxu0 0.0
  %4067 = vmatprep.subr.mxu0 0.0
  %4068 = vmatpush1.xpose.msra.mxu0 0.0
  %4069 = vmatprep.subr.mxu0 0.0
  %4070 = vmatpush1.xpose.msra.mxu0 0.0
  %4071 = vmatprep.subr.mxu0 0.0
  %4072 = vmatpush1.xpose.msra.mxu0 0.0
  %4073 = vmatprep.subr.mxu0 0.0
  %4074 = vmatpush1.xpose.msra.mxu0 0.0
  %4075 = vmatprep.subr.mxu0 0.0
  %4076 = vmatpush1.xpose.msra.mxu0 0.0
  %4077 = vmatprep.subr.mxu0 0.0
  %4078 = vmatpush1.xpose.msra.mxu0 0.0
  %4079 = vmatprep.subr.mxu0 0.0
  %4080 = vmatpush1.xpose.msra.mxu0 0.0
  %4081 = vmatprep.subr.mxu0 0.0
  %4082 = vmatpush1.xpose.msra.mxu0 0.0
  %4083 = vmatprep.subr.mxu0 0.0
  %4084 = vmatpush1.xpose.msra.mxu0 0.0
  %4085 = vmatprep.subr.mxu0 0.0
  %4086 = vmatpush1.xpose.msra.mxu0 0.0
  %4087 = vmatprep.subr.mxu0 0.0
  %4088 = vmatpush1.xpose.msra.mxu0 0.0
  %4089 = vmatprep.subr.mxu0 0.0
  %4090 = vmatpush1.xpose.msra.mxu0 0.0
  %4091 = vmatprep.subr.mxu0 0.0
  %4092 = vmatpush1.xpose.msra.mxu0 0.0
  %4093 = vmatprep.subr.mxu0 0.0
  %4094 = vmatpush1.xpose.msra.mxu0 0.0
  %4095 = vmatprep.subr.mxu0 0.0
  %4096 = vmatpush1.xpose.msra.mxu0 0.0
  %4097 = vmatprep.subr.mxu0 0.0
  %4098 = vmatpush1.xpose.msra.mxu0 0.0
  %4099 = vmatprep.subr.mxu0 0.0
  %4100 = vmatpush1.xpose.msra.mxu0 0.0
  %4101 = vmatprep.subr.mxu0 0.0
  %4102 = vmatpush1.xpose.msra.mxu0 0.0
  %4103 = vmatprep.subr.mxu0 0.0
  %4104 = vmatpush1.xpose.msra.mxu0 0.0
  %4105 = vmatprep.subr.mxu0 0.0
  %4106 = vmatpush1.xpose.msra.mxu0 0.0
  %4107 = vmatprep.subr.mxu0 0.0
  %4108 = vmatpush1.xpose.msra.mxu0 0.0
  %4109 = vmatprep.subr.mxu0 0.0
  %4110 = vmatpush1.xpose.msra.mxu0 0.0
  %4111 = vmatprep.subr.mxu0 0.0
  %4112 = vmatpush1.xpose.msra.mxu0 0.0
  %4113 = vmatprep.subr.mxu0 0.0
  %4114 = vmatpush1.xpose.msra.mxu0 0.0
  %4115 = vmatprep.subr.mxu0 0.0
  %4116 = vmatpush1.xpose.msra.mxu0 0.0
  %4117 = vmatprep.subr.mxu0 0.0
  %4118 = vmatpush1.xpose.msra.mxu0 0.0
  %4119 = vmatprep.mubr.f32.mxu0 0.0
  %4120 = vmatmul.mubr.f32.gmra.mrb[0].mxu0 %v4051
  %v4121 = vpop.f32.mrb[0].mxu0
  %v4122 = vadd.f32 0.0, %v4121
  %v4123 = vpop.f32.mrb[0].mxu0
  %4124 = vdwg.mxu0
  %4126 = vrot.lane.b32.xlu0 %v4032, 80
  %v4127 = vpop.permute.xlu0 %4126
  %v4128 = vsel %vm406, %v4032, 0
  %v4130 = vsel %vm406, %v4127, 0
  %4132 = vmatprep.subr.mxu0 0.0
  %4133 = vmatpush1.xpose.msra.mxu0 %v4130
  %4134 = vmatprep.subr.mxu0 0.0
  %4135 = vmatpush1.xpose.msra.mxu0 0.0
  %4136 = vmatprep.subr.mxu0 0.0
  %4137 = vmatpush1.xpose.msra.mxu0 0.0
  %4138 = vmatprep.subr.mxu0 0.0
  %4139 = vmatpush1.xpose.msra.mxu0 0.0
  %4140 = vmatprep.subr.mxu0 0.0
  %4141 = vmatpush1.xpose.msra.mxu0 0.0
  %4142 = vmatprep.subr.mxu0 0.0
  %4143 = vmatpush1.xpose.msra.mxu0 0.0
  %4144 = vmatprep.subr.mxu0 0.0
  %4145 = vmatpush1.xpose.msra.mxu0 0.0
  %4146 = vmatprep.subr.mxu0 0.0
  %4147 = vmatpush1.xpose.msra.mxu0 0.0
  %4148 = vmatprep.subr.mxu0 0.0
  %4149 = vmatpush1.xpose.msra.mxu0 0.0
  %4150 = vmatprep.subr.mxu0 0.0
  %4151 = vmatpush1.xpose.msra.mxu0 0.0
  %4152 = vmatprep.subr.mxu0 0.0
  %4153 = vmatpush1.xpose.msra.mxu0 0.0
  %4154 = vmatprep.subr.mxu0 0.0
  %4155 = vmatpush1.xpose.msra.mxu0 0.0
  %4156 = vmatprep.subr.mxu0 0.0
  %4157 = vmatpush1.xpose.msra.mxu0 0.0
  %4158 = vmatprep.subr.mxu0 0.0
  %4159 = vmatpush1.xpose.msra.mxu0 0.0
  %4160 = vmatprep.subr.mxu0 0.0
  %4161 = vmatpush1.xpose.msra.mxu0 0.0
  %4162 = vmatprep.subr.mxu0 0.0
  %4163 = vmatpush1.xpose.msra.mxu0 0.0
  %4164 = vmatprep.subr.mxu0 0.0
  %4165 = vmatpush1.xpose.msra.mxu0 0.0
  %4166 = vmatprep.subr.mxu0 0.0
  %4167 = vmatpush1.xpose.msra.mxu0 0.0
  %4168 = vmatprep.subr.mxu0 0.0
  %4169 = vmatpush1.xpose.msra.mxu0 0.0
  %4170 = vmatprep.subr.mxu0 0.0
  %4171 = vmatpush1.xpose.msra.mxu0 0.0
  %4172 = vmatprep.subr.mxu0 0.0
  %4173 = vmatpush1.xpose.msra.mxu0 0.0
  %4174 = vmatprep.subr.mxu0 0.0
  %4175 = vmatpush1.xpose.msra.mxu0 0.0
  %4176 = vmatprep.subr.mxu0 0.0
  %4177 = vmatpush1.xpose.msra.mxu0 0.0
  %4178 = vmatprep.subr.mxu0 0.0
  %4179 = vmatpush1.xpose.msra.mxu0 0.0
  %4180 = vmatprep.subr.mxu0 0.0
  %4181 = vmatpush1.xpose.msra.mxu0 0.0
  %4182 = vmatprep.subr.mxu0 0.0
  %4183 = vmatpush1.xpose.msra.mxu0 0.0
  %4184 = vmatprep.subr.mxu0 0.0
  %4185 = vmatpush1.xpose.msra.mxu0 0.0
  %4186 = vmatprep.subr.mxu0 0.0
  %4187 = vmatpush1.xpose.msra.mxu0 0.0
  %4188 = vmatprep.subr.mxu0 0.0
  %4189 = vmatpush1.xpose.msra.mxu0 0.0
  %4190 = vmatprep.subr.mxu0 0.0
  %4191 = vmatpush1.xpose.msra.mxu0 0.0
  %4192 = vmatprep.subr.mxu0 0.0
  %4193 = vmatpush1.xpose.msra.mxu0 0.0
  %4194 = vmatprep.subr.mxu0 0.0
  %4195 = vmatpush1.xpose.msra.mxu0 0.0
  %4196 = vmatprep.mubr.f32.mxu0 0.0
  %4197 = vmatmul.mubr.f32.gmra.mrb[0].mxu0 %v4128
  %v4198 = vpop.f32.mrb[0].mxu0
  %v4199 = vadd.f32 0.0, %v4198
  %v4200 = vpop.f32.mrb[0].mxu0
  %4201 = vdwg.mxu0
  %4203 = vrot.lane.b32.xlu0 %v4038, 80
  %v4204 = vpop.permute.xlu0 %4203
  %v4205 = vsel %vm406, %v4038, 0
  %v4207 = vsel %vm406, %v4204, 0
  %4209 = vmatprep.subr.mxu0 0.0
  %4210 = vmatpush1.xpose.msra.mxu0 %v4207
  %4211 = vmatprep.subr.mxu0 0.0
  %4212 = vmatpush1.xpose.msra.mxu0 0.0
  %4213 = vmatprep.subr.mxu0 0.0
  %4214 = vmatpush1.xpose.msra.mxu0 0.0
  %4215 = vmatprep.subr.mxu0 0.0
  %4216 = vmatpush1.xpose.msra.mxu0 0.0
  %4217 = vmatprep.subr.mxu0 0.0
  %4218 = vmatpush1.xpose.msra.mxu0 0.0
  %4219 = vmatprep.subr.mxu0 0.0
  %4220 = vmatpush1.xpose.msra.mxu0 0.0
  %4221 = vmatprep.subr.mxu0 0.0
  %4222 = vmatpush1.xpose.msra.mxu0 0.0
  %4223 = vmatprep.subr.mxu0 0.0
  %4224 = vmatpush1.xpose.msra.mxu0 0.0
  %4225 = vmatprep.subr.mxu0 0.0
  %4226 = vmatpush1.xpose.msra.mxu0 0.0
  %4227 = vmatprep.subr.mxu0 0.0
  %4228 = vmatpush1.xpose.msra.mxu0 0.0
  %4229 = vmatprep.subr.mxu0 0.0
  %4230 = vmatpush1.xpose.msra.mxu0 0.0
  %4231 = vmatprep.subr.mxu0 0.0
  %4232 = vmatpush1.xpose.msra.mxu0 0.0
  %4233 = vmatprep.subr.mxu0 0.0
  %4234 = vmatpush1.xpose.msra.mxu0 0.0
  %4235 = vmatprep.subr.mxu0 0.0
  %4236 = vmatpush1.xpose.msra.mxu0 0.0
  %4237 = vmatprep.subr.mxu0 0.0
  %4238 = vmatpush1.xpose.msra.mxu0 0.0
  %4239 = vmatprep.subr.mxu0 0.0
  %4240 = vmatpush1.xpose.msra.mxu0 0.0
  %4241 = vmatprep.subr.mxu0 0.0
  %4242 = vmatpush1.xpose.msra.mxu0 0.0
  %4243 = vmatprep.subr.mxu0 0.0
  %4244 = vmatpush1.xpose.msra.mxu0 0.0
  %4245 = vmatprep.subr.mxu0 0.0
  %4246 = vmatpush1.xpose.msra.mxu0 0.0
  %4247 = vmatprep.subr.mxu0 0.0
  %4248 = vmatpush1.xpose.msra.mxu0 0.0
  %4249 = vmatprep.subr.mxu0 0.0
  %4250 = vmatpush1.xpose.msra.mxu0 0.0
  %4251 = vmatprep.subr.mxu0 0.0
  %4252 = vmatpush1.xpose.msra.mxu0 0.0
  %4253 = vmatprep.subr.mxu0 0.0
  %4254 = vmatpush1.xpose.msra.mxu0 0.0
  %4255 = vmatprep.subr.mxu0 0.0
  %4256 = vmatpush1.xpose.msra.mxu0 0.0
  %4257 = vmatprep.subr.mxu0 0.0
  %4258 = vmatpush1.xpose.msra.mxu0 0.0
  %4259 = vmatprep.subr.mxu0 0.0
  %4260 = vmatpush1.xpose.msra.mxu0 0.0
  %4261 = vmatprep.subr.mxu0 0.0
  %4262 = vmatpush1.xpose.msra.mxu0 0.0
  %4263 = vmatprep.subr.mxu0 0.0
  %4264 = vmatpush1.xpose.msra.mxu0 0.0
  %4265 = vmatprep.subr.mxu0 0.0
  %4266 = vmatpush1.xpose.msra.mxu0 0.0
  %4267 = vmatprep.subr.mxu0 0.0
  %4268 = vmatpush1.xpose.msra.mxu0 0.0
  %4269 = vmatprep.subr.mxu0 0.0
  %4270 = vmatpush1.xpose.msra.mxu0 0.0
  %4271 = vmatprep.subr.mxu0 0.0
  %4272 = vmatpush1.xpose.msra.mxu0 0.0
  %4273 = vmatprep.mubr.f32.mxu0 0.0
  %4274 = vmatmul.mubr.f32.gmra.mrb[0].mxu0 %v4205
  %v4275 = vpop.f32.mrb[0].mxu0
  %v4276 = vadd.f32 0.0, %v4275
  %v4277 = vpop.f32.mrb[0].mxu0
  %4278 = vdwg.mxu0
  %4280 = vrot.lane.b32.xlu0 %v4044, 80
  %v4281 = vpop.permute.xlu0 %4280
  %v4282 = vsel %vm406, %v4044, 0
  %v4284 = vsel %vm406, %v4281, 0
  %4286 = vmatprep.subr.mxu0 0.0
  %4287 = vmatpush1.xpose.msra.mxu0 %v4284
  %4288 = vmatprep.subr.mxu0 0.0
  %4289 = vmatpush1.xpose.msra.mxu0 0.0
  %4290 = vmatprep.subr.mxu0 0.0
  %4291 = vmatpush1.xpose.msra.mxu0 0.0
  %4292 = vmatprep.subr.mxu0 0.0
  %4293 = vmatpush1.xpose.msra.mxu0 0.0
  %4294 = vmatprep.subr.mxu0 0.0
  %4295 = vmatpush1.xpose.msra.mxu0 0.0
  %4296 = vmatprep.subr.mxu0 0.0
  %4297 = vmatpush1.xpose.msra.mxu0 0.0
  %4298 = vmatprep.subr.mxu0 0.0
  %4299 = vmatpush1.xpose.msra.mxu0 0.0
  %4300 = vmatprep.subr.mxu0 0.0
  %4301 = vmatpush1.xpose.msra.mxu0 0.0
  %4302 = vmatprep.subr.mxu0 0.0
  %4303 = vmatpush1.xpose.msra.mxu0 0.0
  %4304 = vmatprep.subr.mxu0 0.0
  %4305 = vmatpush1.xpose.msra.mxu0 0.0
  %4306 = vmatprep.subr.mxu0 0.0
  %4307 = vmatpush1.xpose.msra.mxu0 0.0
  %4308 = vmatprep.subr.mxu0 0.0
  %4309 = vmatpush1.xpose.msra.mxu0 0.0
  %4310 = vmatprep.subr.mxu0 0.0
  %4311 = vmatpush1.xpose.msra.mxu0 0.0
  %4312 = vmatprep.subr.mxu0 0.0
  %4313 = vmatpush1.xpose.msra.mxu0 0.0
  %4314 = vmatprep.subr.mxu0 0.0
  %4315 = vmatpush1.xpose.msra.mxu0 0.0
  %4316 = vmatprep.subr.mxu0 0.0
  %4317 = vmatpush1.xpose.msra.mxu0 0.0
  %4318 = vmatprep.subr.mxu0 0.0
  %4319 = vmatpush1.xpose.msra.mxu0 0.0
  %4320 = vmatprep.subr.mxu0 0.0
  %4321 = vmatpush1.xpose.msra.mxu0 0.0
  %4322 = vmatprep.subr.mxu0 0.0
  %4323 = vmatpush1.xpose.msra.mxu0 0.0
  %4324 = vmatprep.subr.mxu0 0.0
  %4325 = vmatpush1.xpose.msra.mxu0 0.0
  %4326 = vmatprep.subr.mxu0 0.0
  %4327 = vmatpush1.xpose.msra.mxu0 0.0
  %4328 = vmatprep.subr.mxu0 0.0
  %4329 = vmatpush1.xpose.msra.mxu0 0.0
  %4330 = vmatprep.subr.mxu0 0.0
  %4331 = vmatpush1.xpose.msra.mxu0 0.0
  %4332 = vmatprep.subr.mxu0 0.0
  %4333 = vmatpush1.xpose.msra.mxu0 0.0
  %4334 = vmatprep.subr.mxu0 0.0
  %4335 = vmatpush1.xpose.msra.mxu0 0.0
  %4336 = vmatprep.subr.mxu0 0.0
  %4337 = vmatpush1.xpose.msra.mxu0 0.0
  %4338 = vmatprep.subr.mxu0 0.0
  %4339 = vmatpush1.xpose.msra.mxu0 0.0
  %4340 = vmatprep.subr.mxu0 0.0
  %4341 = vmatpush1.xpose.msra.mxu0 0.0
  %4342 = vmatprep.subr.mxu0 0.0
  %4343 = vmatpush1.xpose.msra.mxu0 0.0
  %4344 = vmatprep.subr.mxu0 0.0
  %4345 = vmatpush1.xpose.msra.mxu0 0.0
  %4346 = vmatprep.subr.mxu0 0.0
  %4347 = vmatpush1.xpose.msra.mxu0 0.0
  %4348 = vmatprep.subr.mxu0 0.0
  %4349 = vmatpush1.xpose.msra.mxu0 0.0
  %4350 = vmatprep.mubr.f32.mxu0 0.0
  %4351 = vmatmul.mubr.f32.gmra.mrb[0].mxu0 %v4282
  %v4352 = vpop.f32.mrb[0].mxu0
  %v4353 = vadd.f32 0.0, %v4352
  %v4354 = vpop.f32.mrb[0].mxu0
  %4355 = vdwg.mxu0
  %v4356 = vmul.f32 %v4122, 0.28867513
  %v4357 = vmul.f32 %v4199, 0.28867513
  %v4358 = vmul.f32 %v4276, 0.28867513
  %v4359 = vmul.f32 %v4353, 0.28867513
  %v4360 = vsel %vm716, %v4356, -inf
  %4361 = vmax.xlane.f32.xlu0 %v4360
  %v4362 = vpop.xlane.xlu0 %4361
  %v4363 = vsel %vm716, %v4357, -inf
  %4364 = vmax.xlane.f32.xlu0 %v4363
  %v4365 = vpop.xlane.xlu0 %4364
  %v4366 = vsel %vm716, %v4358, -inf
  %4367 = vmax.xlane.f32.xlu0 %v4366
  %v4368 = vpop.xlane.xlu0 %4367
  %v4369 = vsel %vm716, %v4359, -inf
  %4370 = vmax.xlane.f32.xlu0 %v4369
  %v4371 = vpop.xlane.xlu0 %4370
  %v4372 = vsub.f32 %v4356, %v4362
  %v4373 = vsub.f32 %v4357, %v4365
  %v4374 = vsub.f32 %v4358, %v4368
  %v4375 = vsub.f32 %v4359, %v4371
  %v4376 = vmul.f32 %v4372, 1.442695
  %v4377 = vpow.pop %v4376
  %v4378 = vmul.f32 %v4373, 1.442695
  %v4379 = vpow.pop %v4378
  %v4380 = vmul.f32 %v4374, 1.442695
  %v4381 = vpow.pop %v4380
  %v4382 = vmul.f32 %v4375, 1.442695
  %v4383 = vpow.pop %v4382
  %v4384 = vsel %vm716, %v4377, 0.0
  %4385 = vadd.xlane.f32.xlu0 %v4384
  %v4386 = vpop.xlane.xlu0 %4385
  %v4387 = vsel %vm716, %v4379, 0.0
  %4388 = vadd.xlane.f32.xlu0 %v4387
  %v4389 = vpop.xlane.xlu0 %4388
  %v4390 = vsel %vm716, %v4381, 0.0
  %4391 = vadd.xlane.f32.xlu0 %v4390
  %v4392 = vpop.xlane.xlu0 %4391
  %v4393 = vsel %vm716, %v4383, 0.0
  %4394 = vadd.xlane.f32.xlu0 %v4393
  %v4395 = vpop.xlane.xlu0 %4394
  %v4396 = vrcp.pop %v4386
  %v4397 = vmul.f32 %v4377, %v4396
  %v4398 = vrcp.pop %v4389
  %v4399 = vmul.f32 %v4379, %v4398
  %v4400 = vrcp.pop %v4392
  %v4401 = vmul.f32 %v4381, %v4400
  %v4402 = vrcp.pop %v4395
  %v4403 = vmul.f32 %v4383, %v4402
  %4404 = vrot.lane.b32.xlu0 %v4026, 32
  %v4405 = vpop.permute.xlu0 %4404
  %v4408 = vsel %vm716, %v4397, 0
  %4410 = vmatprep.subr.mxu0 0.0
  %4411 = vmatpush1.msra.mxu0 %v4405
  %4412 = vmatprep.subr.mxu0 0.0
  %4413 = vmatpush1.msra.mxu0 0.0
  %4414 = vmatprep.subr.mxu0 0.0
  %4415 = vmatpush1.msra.mxu0 0.0
  %4416 = vmatprep.subr.mxu0 0.0
  %4417 = vmatpush1.msra.mxu0 0.0
  %4418 = vmatprep.subr.mxu0 0.0
  %4419 = vmatpush1.msra.mxu0 0.0
  %4420 = vmatprep.subr.mxu0 0.0
  %4421 = vmatpush1.msra.mxu0 0.0
  %4422 = vmatprep.subr.mxu0 0.0
  %4423 = vmatpush1.msra.mxu0 0.0
  %4424 = vmatprep.subr.mxu0 0.0
  %4425 = vmatpush1.msra.mxu0 0.0
  %4426 = vmatprep.subr.mxu0 0.0
  %4427 = vmatpush1.msra.mxu0 0.0
  %4428 = vmatprep.subr.mxu0 0.0
  %4429 = vmatpush1.msra.mxu0 0.0
  %4430 = vmatprep.subr.mxu0 0.0
  %4431 = vmatpush1.msra.mxu0 0.0
  %4432 = vmatprep.subr.mxu0 0.0
  %4433 = vmatpush1.msra.mxu0 0.0
  %4434 = vmatprep.subr.mxu0 0.0
  %4435 = vmatpush1.msra.mxu0 0.0
  %4436 = vmatprep.subr.mxu0 0.0
  %4437 = vmatpush1.msra.mxu0 0.0
  %4438 = vmatprep.subr.mxu0 0.0
  %4439 = vmatpush1.msra.mxu0 0.0
  %4440 = vmatprep.subr.mxu0 0.0
  %4441 = vmatpush1.msra.mxu0 0.0
  %4442 = vmatprep.subr.mxu0 0.0
  %4443 = vmatpush1.msra.mxu0 0.0
  %4444 = vmatprep.subr.mxu0 0.0
  %4445 = vmatpush1.msra.mxu0 0.0
  %4446 = vmatprep.subr.mxu0 0.0
  %4447 = vmatpush1.msra.mxu0 0.0
  %4448 = vmatprep.subr.mxu0 0.0
  %4449 = vmatpush1.msra.mxu0 0.0
  %4450 = vmatprep.subr.mxu0 0.0
  %4451 = vmatpush1.msra.mxu0 0.0
  %4452 = vmatprep.subr.mxu0 0.0
  %4453 = vmatpush1.msra.mxu0 0.0
  %4454 = vmatprep.subr.mxu0 0.0
  %4455 = vmatpush1.msra.mxu0 0.0
  %4456 = vmatprep.subr.mxu0 0.0
  %4457 = vmatpush1.msra.mxu0 0.0
  %4458 = vmatprep.subr.mxu0 0.0
  %4459 = vmatpush1.msra.mxu0 0.0
  %4460 = vmatprep.subr.mxu0 0.0
  %4461 = vmatpush1.msra.mxu0 0.0
  %4462 = vmatprep.subr.mxu0 0.0
  %4463 = vmatpush1.msra.mxu0 0.0
  %4464 = vmatprep.subr.mxu0 0.0
  %4465 = vmatpush1.msra.mxu0 0.0
  %4466 = vmatprep.subr.mxu0 0.0
  %4467 = vmatpush1.msra.mxu0 0.0
  %4468 = vmatprep.subr.mxu0 0.0
  %4469 = vmatpush1.msra.mxu0 0.0
  %4470 = vmatprep.subr.mxu0 0.0
  %4471 = vmatpush1.msra.mxu0 0.0
  %4472 = vmatprep.subr.mxu0 0.0
  %4473 = vmatpush1.msra.mxu0 0.0
  %4474 = vmatprep.mubr.f32.mxu0 0.0
  %4475 = vmatmul.mubr.f32.gmra.mrb[0].mxu0 %v4408
  %v4476 = vpop.f32.mrb[0].mxu0
  %v4477 = vadd.f32 0.0, %v4476
  %v4478 = vpop.f32.mrb[0].mxu0
  %4479 = vdwg.mxu0
  %4480 = vrot.lane.b32.xlu0 %v4032, 32
  %v4481 = vpop.permute.xlu0 %4480
  %v4484 = vsel %vm716, %v4399, 0
  %4486 = vmatprep.subr.mxu0 0.0
  %4487 = vmatpush1.msra.mxu0 %v4481
  %4488 = vmatprep.subr.mxu0 0.0
  %4489 = vmatpush1.msra.mxu0 0.0
  %4490 = vmatprep.subr.mxu0 0.0
  %4491 = vmatpush1.msra.mxu0 0.0
  %4492 = vmatprep.subr.mxu0 0.0
  %4493 = vmatpush1.msra.mxu0 0.0
  %4494 = vmatprep.subr.mxu0 0.0
  %4495 = vmatpush1.msra.mxu0 0.0
  %4496 = vmatprep.subr.mxu0 0.0
  %4497 = vmatpush1.msra.mxu0 0.0
  %4498 = vmatprep.subr.mxu0 0.0
  %4499 = vmatpush1.msra.mxu0 0.0
  %4500 = vmatprep.subr.mxu0 0.0
  %4501 = vmatpush1.msra.mxu0 0.0
  %4502 = vmatprep.subr.mxu0 0.0
  %4503 = vmatpush1.msra.mxu0 0.0
  %4504 = vmatprep.subr.mxu0 0.0
  %4505 = vmatpush1.msra.mxu0 0.0
  %4506 = vmatprep.subr.mxu0 0.0
  %4507 = vmatpush1.msra.mxu0 0.0
  %4508 = vmatprep.subr.mxu0 0.0
  %4509 = vmatpush1.msra.mxu0 0.0
  %4510 = vmatprep.subr.mxu0 0.0
  %4511 = vmatpush1.msra.mxu0 0.0
  %4512 = vmatprep.subr.mxu0 0.0
  %4513 = vmatpush1.msra.mxu0 0.0
  %4514 = vmatprep.subr.mxu0 0.0
  %4515 = vmatpush1.msra.mxu0 0.0
  %4516 = vmatprep.subr.mxu0 0.0
  %4517 = vmatpush1.msra.mxu0 0.0
  %4518 = vmatprep.subr.mxu0 0.0
  %4519 = vmatpush1.msra.mxu0 0.0
  %4520 = vmatprep.subr.mxu0 0.0
  %4521 = vmatpush1.msra.mxu0 0.0
  %4522 = vmatprep.subr.mxu0 0.0
  %4523 = vmatpush1.msra.mxu0 0.0
  %4524 = vmatprep.subr.mxu0 0.0
  %4525 = vmatpush1.msra.mxu0 0.0
  %4526 = vmatprep.subr.mxu0 0.0
  %4527 = vmatpush1.msra.mxu0 0.0
  %4528 = vmatprep.subr.mxu0 0.0
  %4529 = vmatpush1.msra.mxu0 0.0
  %4530 = vmatprep.subr.mxu0 0.0
  %4531 = vmatpush1.msra.mxu0 0.0
  %4532 = vmatprep.subr.mxu0 0.0
  %4533 = vmatpush1.msra.mxu0 0.0
  %4534 = vmatprep.subr.mxu0 0.0
  %4535 = vmatpush1.msra.mxu0 0.0
  %4536 = vmatprep.subr.mxu0 0.0
  %4537 = vmatpush1.msra.mxu0 0.0
  %4538 = vmatprep.subr.mxu0 0.0
  %4539 = vmatpush1.msra.mxu0 0.0
  %4540 = vmatprep.subr.mxu0 0.0
  %4541 = vmatpush1.msra.mxu0 0.0
  %4542 = vmatprep.subr.mxu0 0.0
  %4543 = vmatpush1.msra.mxu0 0.0
  %4544 = vmatprep.subr.mxu0 0.0
  %4545 = vmatpush1.msra.mxu0 0.0
  %4546 = vmatprep.subr.mxu0 0.0
  %4547 = vmatpush1.msra.mxu0 0.0
  %4548 = vmatprep.subr.mxu0 0.0
  %4549 = vmatpush1.msra.mxu0 0.0
  %4550 = vmatprep.mubr.f32.mxu0 0.0
  %4551 = vmatmul.mubr.f32.gmra.mrb[0].mxu0 %v4484
  %v4552 = vpop.f32.mrb[0].mxu0
  %v4553 = vadd.f32 0.0, %v4552
  %v4554 = vpop.f32.mrb[0].mxu0
  %4555 = vdwg.mxu0
  %4556 = vrot.lane.b32.xlu0 %v4038, 32
  %v4557 = vpop.permute.xlu0 %4556
  %v4560 = vsel %vm716, %v4401, 0
  %4562 = vmatprep.subr.mxu0 0.0
  %4563 = vmatpush1.msra.mxu0 %v4557
  %4564 = vmatprep.subr.mxu0 0.0
  %4565 = vmatpush1.msra.mxu0 0.0
  %4566 = vmatprep.subr.mxu0 0.0
  %4567 = vmatpush1.msra.mxu0 0.0
  %4568 = vmatprep.subr.mxu0 0.0
  %4569 = vmatpush1.msra.mxu0 0.0
  %4570 = vmatprep.subr.mxu0 0.0
  %4571 = vmatpush1.msra.mxu0 0.0
  %4572 = vmatprep.subr.mxu0 0.0
  %4573 = vmatpush1.msra.mxu0 0.0
  %4574 = vmatprep.subr.mxu0 0.0
  %4575 = vmatpush1.msra.mxu0 0.0
  %4576 = vmatprep.subr.mxu0 0.0
  %4577 = vmatpush1.msra.mxu0 0.0
  %4578 = vmatprep.subr.mxu0 0.0
  %4579 = vmatpush1.msra.mxu0 0.0
  %4580 = vmatprep.subr.mxu0 0.0
  %4581 = vmatpush1.msra.mxu0 0.0
  %4582 = vmatprep.subr.mxu0 0.0
  %4583 = vmatpush1.msra.mxu0 0.0
  %4584 = vmatprep.subr.mxu0 0.0
  %4585 = vmatpush1.msra.mxu0 0.0
  %4586 = vmatprep.subr.mxu0 0.0
  %4587 = vmatpush1.msra.mxu0 0.0
  %4588 = vmatprep.subr.mxu0 0.0
  %4589 = vmatpush1.msra.mxu0 0.0
  %4590 = vmatprep.subr.mxu0 0.0
  %4591 = vmatpush1.msra.mxu0 0.0
  %4592 = vmatprep.subr.mxu0 0.0
  %4593 = vmatpush1.msra.mxu0 0.0
  %4594 = vmatprep.subr.mxu0 0.0
  %4595 = vmatpush1.msra.mxu0 0.0
  %4596 = vmatprep.subr.mxu0 0.0
  %4597 = vmatpush1.msra.mxu0 0.0
  %4598 = vmatprep.subr.mxu0 0.0
  %4599 = vmatpush1.msra.mxu0 0.0
  %4600 = vmatprep.subr.mxu0 0.0
  %4601 = vmatpush1.msra.mxu0 0.0
  %4602 = vmatprep.subr.mxu0 0.0
  %4603 = vmatpush1.msra.mxu0 0.0
  %4604 = vmatprep.subr.mxu0 0.0
  %4605 = vmatpush1.msra.mxu0 0.0
  %4606 = vmatprep.subr.mxu0 0.0
  %4607 = vmatpush1.msra.mxu0 0.0
  %4608 = vmatprep.subr.mxu0 0.0
  %4609 = vmatpush1.msra.mxu0 0.0
  %4610 = vmatprep.subr.mxu0 0.0
  %4611 = vmatpush1.msra.mxu0 0.0
  %4612 = vmatprep.subr.mxu0 0.0
  %4613 = vmatpush1.msra.mxu0 0.0
  %4614 = vmatprep.subr.mxu0 0.0
  %4615 = vmatpush1.msra.mxu0 0.0
  %4616 = vmatprep.subr.mxu0 0.0
  %4617 = vmatpush1.msra.mxu0 0.0
  %4618 = vmatprep.subr.mxu0 0.0
  %4619 = vmatpush1.msra.mxu0 0.0
  %4620 = vmatprep.subr.mxu0 0.0
  %4621 = vmatpush1.msra.mxu0 0.0
  %4622 = vmatprep.subr.mxu0 0.0
  %4623 = vmatpush1.msra.mxu0 0.0
  %4624 = vmatprep.subr.mxu0 0.0
  %4625 = vmatpush1.msra.mxu0 0.0
  %4626 = vmatprep.mubr.f32.mxu0 0.0
  %4627 = vmatmul.mubr.f32.gmra.mrb[0].mxu0 %v4560
  %v4628 = vpop.f32.mrb[0].mxu0
  %v4629 = vadd.f32 0.0, %v4628
  %v4630 = vpop.f32.mrb[0].mxu0
  %4631 = vdwg.mxu0
  %4632 = vrot.lane.b32.xlu0 %v4044, 32
  %v4633 = vpop.permute.xlu0 %4632
  %v4636 = vsel %vm716, %v4403, 0
  %4638 = vmatprep.subr.mxu0 0.0
  %4639 = vmatpush1.msra.mxu0 %v4633
  %4640 = vmatprep.subr.mxu0 0.0
  %4641 = vmatpush1.msra.mxu0 0.0
  %4642 = vmatprep.subr.mxu0 0.0
  %4643 = vmatpush1.msra.mxu0 0.0
  %4644 = vmatprep.subr.mxu0 0.0
  %4645 = vmatpush1.msra.mxu0 0.0
  %4646 = vmatprep.subr.mxu0 0.0
  %4647 = vmatpush1.msra.mxu0 0.0
  %4648 = vmatprep.subr.mxu0 0.0
  %4649 = vmatpush1.msra.mxu0 0.0
  %4650 = vmatprep.subr.mxu0 0.0
  %4651 = vmatpush1.msra.mxu0 0.0
  %4652 = vmatprep.subr.mxu0 0.0
  %4653 = vmatpush1.msra.mxu0 0.0
  %4654 = vmatprep.subr.mxu0 0.0
  %4655 = vmatpush1.msra.mxu0 0.0
  %4656 = vmatprep.subr.mxu0 0.0
  %4657 = vmatpush1.msra.mxu0 0.0
  %4658 = vmatprep.subr.mxu0 0.0
  %4659 = vmatpush1.msra.mxu0 0.0
  %4660 = vmatprep.subr.mxu0 0.0
  %4661 = vmatpush1.msra.mxu0 0.0
  %4662 = vmatprep.subr.mxu0 0.0
  %4663 = vmatpush1.msra.mxu0 0.0
  %4664 = vmatprep.subr.mxu0 0.0
  %4665 = vmatpush1.msra.mxu0 0.0
  %4666 = vmatprep.subr.mxu0 0.0
  %4667 = vmatpush1.msra.mxu0 0.0
  %4668 = vmatprep.subr.mxu0 0.0
  %4669 = vmatpush1.msra.mxu0 0.0
  %4670 = vmatprep.subr.mxu0 0.0
  %4671 = vmatpush1.msra.mxu0 0.0
  %4672 = vmatprep.subr.mxu0 0.0
  %4673 = vmatpush1.msra.mxu0 0.0
  %4674 = vmatprep.subr.mxu0 0.0
  %4675 = vmatpush1.msra.mxu0 0.0
  %4676 = vmatprep.subr.mxu0 0.0
  %4677 = vmatpush1.msra.mxu0 0.0
  %4678 = vmatprep.subr.mxu0 0.0
  %4679 = vmatpush1.msra.mxu0 0.0
  %4680 = vmatprep.subr.mxu0 0.0
  %4681 = vmatpush1.msra.mxu0 0.0
  %4682 = vmatprep.subr.mxu0 0.0
  %4683 = vmatpush1.msra.mxu0 0.0
  %4684 = vmatprep.subr.mxu0 0.0
  %4685 = vmatpush1.msra.mxu0 0.0
  %4686 = vmatprep.subr.mxu0 0.0
  %4687 = vmatpush1.msra.mxu0 0.0
  %4688 = vmatprep.subr.mxu0 0.0
  %4689 = vmatpush1.msra.mxu0 0.0
  %4690 = vmatprep.subr.mxu0 0.0
  %4691 = vmatpush1.msra.mxu0 0.0
  %4692 = vmatprep.subr.mxu0 0.0
  %4693 = vmatpush1.msra.mxu0 0.0
  %4694 = vmatprep.subr.mxu0 0.0
  %4695 = vmatpush1.msra.mxu0 0.0
  %4696 = vmatprep.subr.mxu0 0.0
  %4697 = vmatpush1.msra.mxu0 0.0
  %4698 = vmatprep.subr.mxu0 0.0
  %4699 = vmatpush1.msra.mxu0 0.0
  %4700 = vmatprep.subr.mxu0 0.0
  %4701 = vmatpush1.msra.mxu0 0.0
  %4702 = vmatprep.mubr.f32.mxu0 0.0
  %4703 = vmatmul.mubr.f32.gmra.mrb[0].mxu0 %v4636
  %v4704 = vpop.f32.mrb[0].mxu0
  %v4705 = vadd.f32 0.0, %v4704
  %v4706 = vpop.f32.mrb[0].mxu0
  %4707 = vdwg.mxu0
  %v4708 = vld [vmem:[%s47] sm:$0xff]
  %v4709 = vld [vmem:[%s47 + $0x8] sm:$0xf]
  %4710 = vrot.lane.b32.xlu0 %v4026, 116
  %v4711 = vpop.permute.xlu0 %4710
  %4712 = vrot.lane.b32.xlu0 %v4026, 68
  %v4713 = vpop.permute.xlu0 %4712
  %v4714 = vsel %vm406, %v4711, 0
  %v4716 = vsel %vm406, %v4713, 0
  %4718 = vmatprep.subr.mxu0 0.0
  %4719 = vmatpush1.xpose.msra.mxu0 %v4716
  %4720 = vmatprep.subr.mxu0 0.0
  %4721 = vmatpush1.xpose.msra.mxu0 0.0
  %4722 = vmatprep.subr.mxu0 0.0
  %4723 = vmatpush1.xpose.msra.mxu0 0.0
  %4724 = vmatprep.subr.mxu0 0.0
  %4725 = vmatpush1.xpose.msra.mxu0 0.0
  %4726 = vmatprep.subr.mxu0 0.0
  %4727 = vmatpush1.xpose.msra.mxu0 0.0
  %4728 = vmatprep.subr.mxu0 0.0
  %4729 = vmatpush1.xpose.msra.mxu0 0.0
  %4730 = vmatprep.subr.mxu0 0.0
  %4731 = vmatpush1.xpose.msra.mxu0 0.0
  %4732 = vmatprep.subr.mxu0 0.0
  %4733 = vmatpush1.xpose.msra.mxu0 0.0
  %4734 = vmatprep.subr.mxu0 0.0
  %4735 = vmatpush1.xpose.msra.mxu0 0.0
  %4736 = vmatprep.subr.mxu0 0.0
  %4737 = vmatpush1.xpose.msra.mxu0 0.0
  %4738 = vmatprep.subr.mxu0 0.0
  %4739 = vmatpush1.xpose.msra.mxu0 0.0
  %4740 = vmatprep.subr.mxu0 0.0
  %4741 = vmatpush1.xpose.msra.mxu0 0.0
  %4742 = vmatprep.subr.mxu0 0.0
  %4743 = vmatpush1.xpose.msra.mxu0 0.0
  %4744 = vmatprep.subr.mxu0 0.0
  %4745 = vmatpush1.xpose.msra.mxu0 0.0
  %4746 = vmatprep.subr.mxu0 0.0
  %4747 = vmatpush1.xpose.msra.mxu0 0.0
  %4748 = vmatprep.subr.mxu0 0.0
  %4749 = vmatpush1.xpose.msra.mxu0 0.0
  %4750 = vmatprep.subr.mxu0 0.0
  %4751 = vmatpush1.xpose.msra.mxu0 0.0
  %4752 = vmatprep.subr.mxu0 0.0
  %4753 = vmatpush1.xpose.msra.mxu0 0.0
  %4754 = vmatprep.subr.mxu0 0.0
  %4755 = vmatpush1.xpose.msra.mxu0 0.0
  %4756 = vmatprep.subr.mxu0 0.0
  %4757 = vmatpush1.xpose.msra.mxu0 0.0
  %4758 = vmatprep.subr.mxu0 0.0
  %4759 = vmatpush1.xpose.msra.mxu0 0.0
  %4760 = vmatprep.subr.mxu0 0.0
  %4761 = vmatpush1.xpose.msra.mxu0 0.0
  %4762 = vmatprep.subr.mxu0 0.0
  %4763 = vmatpush1.xpose.msra.mxu0 0.0
  %4764 = vmatprep.subr.mxu0 0.0
  %4765 = vmatpush1.xpose.msra.mxu0 0.0
  %4766 = vmatprep.subr.mxu0 0.0
  %4767 = vmatpush1.xpose.msra.mxu0 0.0
  %4768 = vmatprep.subr.mxu0 0.0
  %4769 = vmatpush1.xpose.msra.mxu0 0.0
  %4770 = vmatprep.subr.mxu0 0.0
  %4771 = vmatpush1.xpose.msra.mxu0 0.0
  %4772 = vmatprep.subr.mxu0 0.0
  %4773 = vmatpush1.xpose.msra.mxu0 0.0
  %4774 = vmatprep.subr.mxu0 0.0
  %4775 = vmatpush1.xpose.msra.mxu0 0.0
  %4776 = vmatprep.subr.mxu0 0.0
  %4777 = vmatpush1.xpose.msra.mxu0 0.0
  %4778 = vmatprep.subr.mxu0 0.0
  %4779 = vmatpush1.xpose.msra.mxu0 0.0
  %4780 = vmatprep.subr.mxu0 0.0
  %4781 = vmatpush1.xpose.msra.mxu0 0.0
  %4782 = vmatprep.mubr.f32.mxu0 0.0
  %4783 = vmatmul.mubr.f32.gmra.mrb[0].mxu0 %v4714
  %v4784 = vpop.f32.mrb[0].mxu0
  %v4785 = vadd.f32 0.0, %v4784
  %v4786 = vpop.f32.mrb[0].mxu0
  %4787 = vdwg.mxu0
  %4788 = vrot.lane.b32.xlu0 %v4032, 116
  %v4789 = vpop.permute.xlu0 %4788
  %4790 = vrot.lane.b32.xlu0 %v4032, 68
  %v4791 = vpop.permute.xlu0 %4790
  %v4792 = vsel %vm406, %v4789, 0
  %v4794 = vsel %vm406, %v4791, 0
  %4796 = vmatprep.subr.mxu0 0.0
  %4797 = vmatpush1.xpose.msra.mxu0 %v4794
  %4798 = vmatprep.subr.mxu0 0.0
  %4799 = vmatpush1.xpose.msra.mxu0 0.0
  %4800 = vmatprep.subr.mxu0 0.0
  %4801 = vmatpush1.xpose.msra.mxu0 0.0
  %4802 = vmatprep.subr.mxu0 0.0
  %4803 = vmatpush1.xpose.msra.mxu0 0.0
  %4804 = vmatprep.subr.mxu0 0.0
  %4805 = vmatpush1.xpose.msra.mxu0 0.0
  %4806 = vmatprep.subr.mxu0 0.0
  %4807 = vmatpush1.xpose.msra.mxu0 0.0
  %4808 = vmatprep.subr.mxu0 0.0
  %4809 = vmatpush1.xpose.msra.mxu0 0.0
  %4810 = vmatprep.subr.mxu0 0.0
  %4811 = vmatpush1.xpose.msra.mxu0 0.0
  %4812 = vmatprep.subr.mxu0 0.0
  %4813 = vmatpush1.xpose.msra.mxu0 0.0
  %4814 = vmatprep.subr.mxu0 0.0
  %4815 = vmatpush1.xpose.msra.mxu0 0.0
  %4816 = vmatprep.subr.mxu0 0.0
  %4817 = vmatpush1.xpose.msra.mxu0 0.0
  %4818 = vmatprep.subr.mxu0 0.0
  %4819 = vmatpush1.xpose.msra.mxu0 0.0
  %4820 = vmatprep.subr.mxu0 0.0
  %4821 = vmatpush1.xpose.msra.mxu0 0.0
  %4822 = vmatprep.subr.mxu0 0.0
  %4823 = vmatpush1.xpose.msra.mxu0 0.0
  %4824 = vmatprep.subr.mxu0 0.0
  %4825 = vmatpush1.xpose.msra.mxu0 0.0
  %4826 = vmatprep.subr.mxu0 0.0
  %4827 = vmatpush1.xpose.msra.mxu0 0.0
  %4828 = vmatprep.subr.mxu0 0.0
  %4829 = vmatpush1.xpose.msra.mxu0 0.0
  %4830 = vmatprep.subr.mxu0 0.0
  %4831 = vmatpush1.xpose.msra.mxu0 0.0
  %4832 = vmatprep.subr.mxu0 0.0
  %4833 = vmatpush1.xpose.msra.mxu0 0.0
  %4834 = vmatprep.subr.mxu0 0.0
  %4835 = vmatpush1.xpose.msra.mxu0 0.0
  %4836 = vmatprep.subr.mxu0 0.0
  %4837 = vmatpush1.xpose.msra.mxu0 0.0
  %4838 = vmatprep.subr.mxu0 0.0
  %4839 = vmatpush1.xpose.msra.mxu0 0.0
  %4840 = vmatprep.subr.mxu0 0.0
  %4841 = vmatpush1.xpose.msra.mxu0 0.0
  %4842 = vmatprep.subr.mxu0 0.0
  %4843 = vmatpush1.xpose.msra.mxu0 0.0
  %4844 = vmatprep.subr.mxu0 0.0
  %4845 = vmatpush1.xpose.msra.mxu0 0.0
  %4846 = vmatprep.subr.mxu0 0.0
  %4847 = vmatpush1.xpose.msra.mxu0 0.0
  %4848 = vmatprep.subr.mxu0 0.0
  %4849 = vmatpush1.xpose.msra.mxu0 0.0
  %4850 = vmatprep.subr.mxu0 0.0
  %4851 = vmatpush1.xpose.msra.mxu0 0.0
  %4852 = vmatprep.subr.mxu0 0.0
  %4853 = vmatpush1.xpose.msra.mxu0 0.0
  %4854 = vmatprep.subr.mxu0 0.0
  %4855 = vmatpush1.xpose.msra.mxu0 0.0
  %4856 = vmatprep.subr.mxu0 0.0
  %4857 = vmatpush1.xpose.msra.mxu0 0.0
  %4858 = vmatprep.subr.mxu0 0.0
  %4859 = vmatpush1.xpose.msra.mxu0 0.0
  %4860 = vmatprep.mubr.f32.mxu0 0.0
  %4861 = vmatmul.mubr.f32.gmra.mrb[0].mxu0 %v4792
  %v4862 = vpop.f32.mrb[0].mxu0
  %v4863 = vadd.f32 0.0, %v4862
  %v4864 = vpop.f32.mrb[0].mxu0
  %4865 = vdwg.mxu0
  %4866 = vrot.lane.b32.xlu0 %v4038, 116
  %v4867 = vpop.permute.xlu0 %4866
  %4868 = vrot.lane.b32.xlu0 %v4038, 68
  %v4869 = vpop.permute.xlu0 %4868
  %v4870 = vsel %vm406, %v4867, 0
  %v4872 = vsel %vm406, %v4869, 0
  %4874 = vmatprep.subr.mxu0 0.0
  %4875 = vmatpush1.xpose.msra.mxu0 %v4872
  %4876 = vmatprep.subr.mxu0 0.0
  %4877 = vmatpush1.xpose.msra.mxu0 0.0
  %4878 = vmatprep.subr.mxu0 0.0
  %4879 = vmatpush1.xpose.msra.mxu0 0.0
  %4880 = vmatprep.subr.mxu0 0.0
  %4881 = vmatpush1.xpose.msra.mxu0 0.0
  %4882 = vmatprep.subr.mxu0 0.0
  %4883 = vmatpush1.xpose.msra.mxu0 0.0
  %4884 = vmatprep.subr.mxu0 0.0
  %4885 = vmatpush1.xpose.msra.mxu0 0.0
  %4886 = vmatprep.subr.mxu0 0.0
  %4887 = vmatpush1.xpose.msra.mxu0 0.0
  %4888 = vmatprep.subr.mxu0 0.0
  %4889 = vmatpush1.xpose.msra.mxu0 0.0
  %4890 = vmatprep.subr.mxu0 0.0
  %4891 = vmatpush1.xpose.msra.mxu0 0.0
  %4892 = vmatprep.subr.mxu0 0.0
  %4893 = vmatpush1.xpose.msra.mxu0 0.0
  %4894 = vmatprep.subr.mxu0 0.0
  %4895 = vmatpush1.xpose.msra.mxu0 0.0
  %4896 = vmatprep.subr.mxu0 0.0
  %4897 = vmatpush1.xpose.msra.mxu0 0.0
  %4898 = vmatprep.subr.mxu0 0.0
  %4899 = vmatpush1.xpose.msra.mxu0 0.0
  %4900 = vmatprep.subr.mxu0 0.0
  %4901 = vmatpush1.xpose.msra.mxu0 0.0
  %4902 = vmatprep.subr.mxu0 0.0
  %4903 = vmatpush1.xpose.msra.mxu0 0.0
  %4904 = vmatprep.subr.mxu0 0.0
  %4905 = vmatpush1.xpose.msra.mxu0 0.0
  %4906 = vmatprep.subr.mxu0 0.0
  %4907 = vmatpush1.xpose.msra.mxu0 0.0
  %4908 = vmatprep.subr.mxu0 0.0
  %4909 = vmatpush1.xpose.msra.mxu0 0.0
  %4910 = vmatprep.subr.mxu0 0.0
  %4911 = vmatpush1.xpose.msra.mxu0 0.0
  %4912 = vmatprep.subr.mxu0 0.0
  %4913 = vmatpush1.xpose.msra.mxu0 0.0
  %4914 = vmatprep.subr.mxu0 0.0
  %4915 = vmatpush1.xpose.msra.mxu0 0.0
  %4916 = vmatprep.subr.mxu0 0.0
  %4917 = vmatpush1.xpose.msra.mxu0 0.0
  %4918 = vmatprep.subr.mxu0 0.0
  %4919 = vmatpush1.xpose.msra.mxu0 0.0
  %4920 = vmatprep.subr.mxu0 0.0
  %4921 = vmatpush1.xpose.msra.mxu0 0.0
  %4922 = vmatprep.subr.mxu0 0.0
  %4923 = vmatpush1.xpose.msra.mxu0 0.0
  %4924 = vmatprep.subr.mxu0 0.0
  %4925 = vmatpush1.xpose.msra.mxu0 0.0
  %4926 = vmatprep.subr.mxu0 0.0
  %4927 = vmatpush1.xpose.msra.mxu0 0.0
  %4928 = vmatprep.subr.mxu0 0.0
  %4929 = vmatpush1.xpose.msra.mxu0 0.0
  %4930 = vmatprep.subr.mxu0 0.0
  %4931 = vmatpush1.xpose.msra.mxu0 0.0
  %4932 = vmatprep.subr.mxu0 0.0
  %4933 = vmatpush1.xpose.msra.mxu0 0.0
  %4934 = vmatprep.subr.mxu0 0.0
  %4935 = vmatpush1.xpose.msra.mxu0 0.0
  %4936 = vmatprep.subr.mxu0 0.0
  %4937 = vmatpush1.xpose.msra.mxu0 0.0
  %4938 = vmatprep.mubr.f32.mxu0 0.0
  %4939 = vmatmul.mubr.f32.gmra.mrb[0].mxu0 %v4870
  %v4940 = vpop.f32.mrb[0].mxu0
  %v4941 = vadd.f32 0.0, %v4940
  %v4942 = vpop.f32.mrb[0].mxu0
  %4943 = vdwg.mxu0
  %4944 = vrot.lane.b32.xlu0 %v4044, 116
  %v4945 = vpop.permute.xlu0 %4944
  %4946 = vrot.lane.b32.xlu0 %v4044, 68
  %v4947 = vpop.permute.xlu0 %4946
  %v4948 = vsel %vm406, %v4945, 0
  %v4950 = vsel %vm406, %v4947, 0
  %4952 = vmatprep.subr.mxu0 0.0
  %4953 = vmatpush1.xpose.msra.mxu0 %v4950
  %4954 = vmatprep.subr.mxu0 0.0
  %4955 = vmatpush1.xpose.msra.mxu0 0.0
  %4956 = vmatprep.subr.mxu0 0.0
  %4957 = vmatpush1.xpose.msra.mxu0 0.0
  %4958 = vmatprep.subr.mxu0 0.0
  %4959 = vmatpush1.xpose.msra.mxu0 0.0
  %4960 = vmatprep.subr.mxu0 0.0
  %4961 = vmatpush1.xpose.msra.mxu0 0.0
  %4962 = vmatprep.subr.mxu0 0.0
  %4963 = vmatpush1.xpose.msra.mxu0 0.0
  %4964 = vmatprep.subr.mxu0 0.0
  %4965 = vmatpush1.xpose.msra.mxu0 0.0
  %4966 = vmatprep.subr.mxu0 0.0
  %4967 = vmatpush1.xpose.msra.mxu0 0.0
  %4968 = vmatprep.subr.mxu0 0.0
  %4969 = vmatpush1.xpose.msra.mxu0 0.0
  %4970 = vmatprep.subr.mxu0 0.0
  %4971 = vmatpush1.xpose.msra.mxu0 0.0
  %4972 = vmatprep.subr.mxu0 0.0
  %4973 = vmatpush1.xpose.msra.mxu0 0.0
  %4974 = vmatprep.subr.mxu0 0.0
  %4975 = vmatpush1.xpose.msra.mxu0 0.0
  %4976 = vmatprep.subr.mxu0 0.0
  %4977 = vmatpush1.xpose.msra.mxu0 0.0
  %4978 = vmatprep.subr.mxu0 0.0
  %4979 = vmatpush1.xpose.msra.mxu0 0.0
  %4980 = vmatprep.subr.mxu0 0.0
  %4981 = vmatpush1.xpose.msra.mxu0 0.0
  %4982 = vmatprep.subr.mxu0 0.0
  %4983 = vmatpush1.xpose.msra.mxu0 0.0
  %4984 = vmatprep.subr.mxu0 0.0
  %4985 = vmatpush1.xpose.msra.mxu0 0.0
  %4986 = vmatprep.subr.mxu0 0.0
  %4987 = vmatpush1.xpose.msra.mxu0 0.0
  %4988 = vmatprep.subr.mxu0 0.0
  %4989 = vmatpush1.xpose.msra.mxu0 0.0
  %4990 = vmatprep.subr.mxu0 0.0
  %4991 = vmatpush1.xpose.msra.mxu0 0.0
  %4992 = vmatprep.subr.mxu0 0.0
  %4993 = vmatpush1.xpose.msra.mxu0 0.0
  %4994 = vmatprep.subr.mxu0 0.0
  %4995 = vmatpush1.xpose.msra.mxu0 0.0
  %4996 = vmatprep.subr.mxu0 0.0
  %4997 = vmatpush1.xpose.msra.mxu0 0.0
  %4998 = vmatprep.subr.mxu0 0.0
  %4999 = vmatpush1.xpose.msra.mxu0 0.0
  %5000 = vmatprep.subr.mxu0 0.0
  %5001 = vmatpush1.xpose.msra.mxu0 0.0
  %5002 = vmatprep.subr.mxu0 0.0
  %5003 = vmatpush1.xpose.msra.mxu0 0.0
  %5004 = vmatprep.subr.mxu0 0.0
  %5005 = vmatpush1.xpose.msra.mxu0 0.0
  %5006 = vmatprep.subr.mxu0 0.0
  %5007 = vmatpush1.xpose.msra.mxu0 0.0
  %5008 = vmatprep.subr.mxu0 0.0
  %5009 = vmatpush1.xpose.msra.mxu0 0.0
  %5010 = vmatprep.subr.mxu0 0.0
  %5011 = vmatpush1.xpose.msra.mxu0 0.0
  %5012 = vmatprep.subr.mxu0 0.0
  %5013 = vmatpush1.xpose.msra.mxu0 0.0
  %5014 = vmatprep.subr.mxu0 0.0
  %5015 = vmatpush1.xpose.msra.mxu0 0.0
  %5016 = vmatprep.mubr.f32.mxu0 0.0
  %5017 = vmatmul.mubr.f32.gmra.mrb[0].mxu0 %v4948
  %v5018 = vpop.f32.mrb[0].mxu0
  %v5019 = vadd.f32 0.0, %v5018
  %v5020 = vpop.f32.mrb[0].mxu0
  %5021 = vdwg.mxu0
  %v5022 = vmul.f32 %v4785, 0.28867513
  %v5023 = vmul.f32 %v4863, 0.28867513
  %v5024 = vmul.f32 %v4941, 0.28867513
  %v5025 = vmul.f32 %v5019, 0.28867513
  %v5026 = vsel %vm716, %v5022, -inf
  %5027 = vmax.xlane.f32.xlu0 %v5026
  %v5028 = vpop.xlane.xlu0 %5027
  %v5029 = vsel %vm716, %v5023, -inf
  %5030 = vmax.xlane.f32.xlu0 %v5029
  %v5031 = vpop.xlane.xlu0 %5030
  %v5032 = vsel %vm716, %v5024, -inf
  %5033 = vmax.xlane.f32.xlu0 %v5032
  %v5034 = vpop.xlane.xlu0 %5033
  %v5035 = vsel %vm716, %v5025, -inf
  %5036 = vmax.xlane.f32.xlu0 %v5035
  %v5037 = vpop.xlane.xlu0 %5036
  %v5038 = vsub.f32 %v5022, %v5028
  %v5039 = vsub.f32 %v5023, %v5031
  %v5040 = vsub.f32 %v5024, %v5034
  %v5041 = vsub.f32 %v5025, %v5037
  %v5042 = vmul.f32 %v5038, 1.442695
  %v5043 = vpow.pop %v5042
  %v5044 = vmul.f32 %v5039, 1.442695
  %v5045 = vpow.pop %v5044
  %v5046 = vmul.f32 %v5040, 1.442695
  %v5047 = vpow.pop %v5046
  %v5048 = vmul.f32 %v5041, 1.442695
  %v5049 = vpow.pop %v5048
  %v5050 = vsel %vm716, %v5043, 0.0
  %5051 = vadd.xlane.f32.xlu0 %v5050
  %v5052 = vpop.xlane.xlu0 %5051
  %v5053 = vsel %vm716, %v5045, 0.0
  %5054 = vadd.xlane.f32.xlu0 %v5053
  %v5055 = vpop.xlane.xlu0 %5054
  %v5056 = vsel %vm716, %v5047, 0.0
  %5057 = vadd.xlane.f32.xlu0 %v5056
  %v5058 = vpop.xlane.xlu0 %5057
  %v5059 = vsel %vm716, %v5049, 0.0
  %5060 = vadd.xlane.f32.xlu0 %v5059
  %v5061 = vpop.xlane.xlu0 %5060
  %v5062 = vrcp.pop %v5052
  %v5063 = vmul.f32 %v5043, %v5062
  %v5064 = vrcp.pop %v5055
  %v5065 = vmul.f32 %v5045, %v5064
  %v5066 = vrcp.pop %v5058
  %v5067 = vmul.f32 %v5047, %v5066
  %v5068 = vrcp.pop %v5061
  %v5069 = vmul.f32 %v5049, %v5068
  %5070 = vrot.lane.b32.xlu0 %v4026, 20
  %v5071 = vpop.permute.xlu0 %5070
  %v5074 = vsel %vm716, %v5063, 0
  %5076 = vmatprep.subr.mxu0 0.0
  %5077 = vmatpush1.msra.mxu0 %v5071
  %5078 = vmatprep.subr.mxu0 0.0
  %5079 = vmatpush1.msra.mxu0 0.0
  %5080 = vmatprep.subr.mxu0 0.0
  %5081 = vmatpush1.msra.mxu0 0.0
  %5082 = vmatprep.subr.mxu0 0.0
  %5083 = vmatpush1.msra.mxu0 0.0
  %5084 = vmatprep.subr.mxu0 0.0
  %5085 = vmatpush1.msra.mxu0 0.0
  %5086 = vmatprep.subr.mxu0 0.0
  %5087 = vmatpush1.msra.mxu0 0.0
  %5088 = vmatprep.subr.mxu0 0.0
  %5089 = vmatpush1.msra.mxu0 0.0
  %5090 = vmatprep.subr.mxu0 0.0
  %5091 = vmatpush1.msra.mxu0 0.0
  %5092 = vmatprep.subr.mxu0 0.0
  %5093 = vmatpush1.msra.mxu0 0.0
  %5094 = vmatprep.subr.mxu0 0.0
  %5095 = vmatpush1.msra.mxu0 0.0
  %5096 = vmatprep.subr.mxu0 0.0
  %5097 = vmatpush1.msra.mxu0 0.0
  %5098 = vmatprep.subr.mxu0 0.0
  %5099 = vmatpush1.msra.mxu0 0.0
  %5100 = vmatprep.subr.mxu0 0.0
  %5101 = vmatpush1.msra.mxu0 0.0
  %5102 = vmatprep.subr.mxu0 0.0
  %5103 = vmatpush1.msra.mxu0 0.0
  %5104 = vmatprep.subr.mxu0 0.0
  %5105 = vmatpush1.msra.mxu0 0.0
  %5106 = vmatprep.subr.mxu0 0.0
  %5107 = vmatpush1.msra.mxu0 0.0
  %5108 = vmatprep.subr.mxu0 0.0
  %5109 = vmatpush1.msra.mxu0 0.0
  %5110 = vmatprep.subr.mxu0 0.0
  %5111 = vmatpush1.msra.mxu0 0.0
  %5112 = vmatprep.subr.mxu0 0.0
  %5113 = vmatpush1.msra.mxu0 0.0
  %5114 = vmatprep.subr.mxu0 0.0
  %5115 = vmatpush1.msra.mxu0 0.0
  %5116 = vmatprep.subr.mxu0 0.0
  %5117 = vmatpush1.msra.mxu0 0.0
  %5118 = vmatprep.subr.mxu0 0.0
  %5119 = vmatpush1.msra.mxu0 0.0
  %5120 = vmatprep.subr.mxu0 0.0
  %5121 = vmatpush1.msra.mxu0 0.0
  %5122 = vmatprep.subr.mxu0 0.0
  %5123 = vmatpush1.msra.mxu0 0.0
  %5124 = vmatprep.subr.mxu0 0.0
  %5125 = vmatpush1.msra.mxu0 0.0
  %5126 = vmatprep.subr.mxu0 0.0
  %5127 = vmatpush1.msra.mxu0 0.0
  %5128 = vmatprep.subr.mxu0 0.0
  %5129 = vmatpush1.msra.mxu0 0.0
  %5130 = vmatprep.subr.mxu0 0.0
  %5131 = vmatpush1.msra.mxu0 0.0
  %5132 = vmatprep.subr.mxu0 0.0
  %5133 = vmatpush1.msra.mxu0 0.0
  %5134 = vmatprep.subr.mxu0 0.0
  %5135 = vmatpush1.msra.mxu0 0.0
  %5136 = vmatprep.subr.mxu0 0.0
  %5137 = vmatpush1.msra.mxu0 0.0
  %5138 = vmatprep.subr.mxu0 0.0
  %5139 = vmatpush1.msra.mxu0 0.0
  %5140 = vmatprep.mubr.f32.mxu0 0.0
  %5141 = vmatmul.mubr.f32.gmra.mrb[0].mxu0 %v5074
  %v5142 = vpop.f32.mrb[0].mxu0
  %v5143 = vadd.f32 0.0, %v5142
  %v5144 = vpop.f32.mrb[0].mxu0
  %5145 = vdwg.mxu0
  %5146 = vrot.lane.b32.xlu0 %v4032, 20
  %v5147 = vpop.permute.xlu0 %5146
  %v5150 = vsel %vm716, %v5065, 0
  %5152 = vmatprep.subr.mxu0 0.0
  %5153 = vmatpush1.msra.mxu0 %v5147
  %5154 = vmatprep.subr.mxu0 0.0
  %5155 = vmatpush1.msra.mxu0 0.0
  %5156 = vmatprep.subr.mxu0 0.0
  %5157 = vmatpush1.msra.mxu0 0.0
  %5158 = vmatprep.subr.mxu0 0.0
  %5159 = vmatpush1.msra.mxu0 0.0
  %5160 = vmatprep.subr.mxu0 0.0
  %5161 = vmatpush1.msra.mxu0 0.0
  %5162 = vmatprep.subr.mxu0 0.0
  %5163 = vmatpush1.msra.mxu0 0.0
  %5164 = vmatprep.subr.mxu0 0.0
  %5165 = vmatpush1.msra.mxu0 0.0
  %5166 = vmatprep.subr.mxu0 0.0
  %5167 = vmatpush1.msra.mxu0 0.0
  %5168 = vmatprep.subr.mxu0 0.0
  %5169 = vmatpush1.msra.mxu0 0.0
  %5170 = vmatprep.subr.mxu0 0.0
  %5171 = vmatpush1.msra.mxu0 0.0
  %5172 = vmatprep.subr.mxu0 0.0
  %5173 = vmatpush1.msra.mxu0 0.0
  %5174 = vmatprep.subr.mxu0 0.0
  %5175 = vmatpush1.msra.mxu0 0.0
  %5176 = vmatprep.subr.mxu0 0.0
  %5177 = vmatpush1.msra.mxu0 0.0
  %5178 = vmatprep.subr.mxu0 0.0
  %5179 = vmatpush1.msra.mxu0 0.0
  %5180 = vmatprep.subr.mxu0 0.0
  %5181 = vmatpush1.msra.mxu0 0.0
  %5182 = vmatprep.subr.mxu0 0.0
  %5183 = vmatpush1.msra.mxu0 0.0
  %5184 = vmatprep.subr.mxu0 0.0
  %5185 = vmatpush1.msra.mxu0 0.0
  %5186 = vmatprep.subr.mxu0 0.0
  %5187 = vmatpush1.msra.mxu0 0.0
  %5188 = vmatprep.subr.mxu0 0.0
  %5189 = vmatpush1.msra.mxu0 0.0
  %5190 = vmatprep.subr.mxu0 0.0
  %5191 = vmatpush1.msra.mxu0 0.0
  %5192 = vmatprep.subr.mxu0 0.0
  %5193 = vmatpush1.msra.mxu0 0.0
  %5194 = vmatprep.subr.mxu0 0.0
  %5195 = vmatpush1.msra.mxu0 0.0
  %5196 = vmatprep.subr.mxu0 0.0
  %5197 = vmatpush1.msra.mxu0 0.0
  %5198 = vmatprep.subr.mxu0 0.0
  %5199 = vmatpush1.msra.mxu0 0.0
  %5200 = vmatprep.subr.mxu0 0.0
  %5201 = vmatpush1.msra.mxu0 0.0
  %5202 = vmatprep.subr.mxu0 0.0
  %5203 = vmatpush1.msra.mxu0 0.0
  %5204 = vmatprep.subr.mxu0 0.0
  %5205 = vmatpush1.msra.mxu0 0.0
  %5206 = vmatprep.subr.mxu0 0.0
  %5207 = vmatpush1.msra.mxu0 0.0
  %5208 = vmatprep.subr.mxu0 0.0
  %5209 = vmatpush1.msra.mxu0 0.0
  %5210 = vmatprep.subr.mxu0 0.0
  %5211 = vmatpush1.msra.mxu0 0.0
  %5212 = vmatprep.subr.mxu0 0.0
  %5213 = vmatpush1.msra.mxu0 0.0
  %5214 = vmatprep.subr.mxu0 0.0
  %5215 = vmatpush1.msra.mxu0 0.0
  %5216 = vmatprep.mubr.f32.mxu0 0.0
  %5217 = vmatmul.mubr.f32.gmra.mrb[0].mxu0 %v5150
  %v5218 = vpop.f32.mrb[0].mxu0
  %v5219 = vadd.f32 0.0, %v5218
  %v5220 = vpop.f32.mrb[0].mxu0
  %5221 = vdwg.mxu0
  %5222 = vrot.lane.b32.xlu0 %v4038, 20
  %v5223 = vpop.permute.xlu0 %5222
  %v5226 = vsel %vm716, %v5067, 0
  %5228 = vmatprep.subr.mxu0 0.0
  %5229 = vmatpush1.msra.mxu0 %v5223
  %5230 = vmatprep.subr.mxu0 0.0
  %5231 = vmatpush1.msra.mxu0 0.0
  %5232 = vmatprep.subr.mxu0 0.0
  %5233 = vmatpush1.msra.mxu0 0.0
  %5234 = vmatprep.subr.mxu0 0.0
  %5235 = vmatpush1.msra.mxu0 0.0
  %5236 = vmatprep.subr.mxu0 0.0
  %5237 = vmatpush1.msra.mxu0 0.0
  %5238 = vmatprep.subr.mxu0 0.0
  %5239 = vmatpush1.msra.mxu0 0.0
  %5240 = vmatprep.subr.mxu0 0.0
  %5241 = vmatpush1.msra.mxu0 0.0
  %5242 = vmatprep.subr.mxu0 0.0
  %5243 = vmatpush1.msra.mxu0 0.0
  %5244 = vmatprep.subr.mxu0 0.0
  %5245 = vmatpush1.msra.mxu0 0.0
  %5246 = vmatprep.subr.mxu0 0.0
  %5247 = vmatpush1.msra.mxu0 0.0
  %5248 = vmatprep.subr.mxu0 0.0
  %5249 = vmatpush1.msra.mxu0 0.0
  %5250 = vmatprep.subr.mxu0 0.0
  %5251 = vmatpush1.msra.mxu0 0.0
  %5252 = vmatprep.subr.mxu0 0.0
  %5253 = vmatpush1.msra.mxu0 0.0
  %5254 = vmatprep.subr.mxu0 0.0
  %5255 = vmatpush1.msra.mxu0 0.0
  %5256 = vmatprep.subr.mxu0 0.0
  %5257 = vmatpush1.msra.mxu0 0.0
  %5258 = vmatprep.subr.mxu0 0.0
  %5259 = vmatpush1.msra.mxu0 0.0
  %5260 = vmatprep.subr.mxu0 0.0
  %5261 = vmatpush1.msra.mxu0 0.0
  %5262 = vmatprep.subr.mxu0 0.0
  %5263 = vmatpush1.msra.mxu0 0.0
  %5264 = vmatprep.subr.mxu0 0.0
  %5265 = vmatpush1.msra.mxu0 0.0
  %5266 = vmatprep.subr.mxu0 0.0
  %5267 = vmatpush1.msra.mxu0 0.0
  %5268 = vmatprep.subr.mxu0 0.0
  %5269 = vmatpush1.msra.mxu0 0.0
  %5270 = vmatprep.subr.mxu0 0.0
  %5271 = vmatpush1.msra.mxu0 0.0
  %5272 = vmatprep.subr.mxu0 0.0
  %5273 = vmatpush1.msra.mxu0 0.0
  %5274 = vmatprep.subr.mxu0 0.0
  %5275 = vmatpush1.msra.mxu0 0.0
  %5276 = vmatprep.subr.mxu0 0.0
  %5277 = vmatpush1.msra.mxu0 0.0
  %5278 = vmatprep.subr.mxu0 0.0
  %5279 = vmatpush1.msra.mxu0 0.0
  %5280 = vmatprep.subr.mxu0 0.0
  %5281 = vmatpush1.msra.mxu0 0.0
  %5282 = vmatprep.subr.mxu0 0.0
  %5283 = vmatpush1.msra.mxu0 0.0
  %5284 = vmatprep.subr.mxu0 0.0
  %5285 = vmatpush1.msra.mxu0 0.0
  %5286 = vmatprep.subr.mxu0 0.0
  %5287 = vmatpush1.msra.mxu0 0.0
  %5288 = vmatprep.subr.mxu0 0.0
  %5289 = vmatpush1.msra.mxu0 0.0
  %5290 = vmatprep.subr.mxu0 0.0
  %5291 = vmatpush1.msra.mxu0 0.0
  %5292 = vmatprep.mubr.f32.mxu0 0.0
  %5293 = vmatmul.mubr.f32.gmra.mrb[0].mxu0 %v5226
  %v5294 = vpop.f32.mrb[0].mxu0
  %v5295 = vadd.f32 0.0, %v5294
  %v5296 = vpop.f32.mrb[0].mxu0
  %5297 = vdwg.mxu0
  %5298 = vrot.lane.b32.xlu0 %v4044, 20
  %v5299 = vpop.permute.xlu0 %5298
  %v5302 = vsel %vm716, %v5069, 0
  %5304 = vmatprep.subr.mxu0 0.0
  %5305 = vmatpush1.msra.mxu0 %v5299
  %5306 = vmatprep.subr.mxu0 0.0
  %5307 = vmatpush1.msra.mxu0 0.0
  %5308 = vmatprep.subr.mxu0 0.0
  %5309 = vmatpush1.msra.mxu0 0.0
  %5310 = vmatprep.subr.mxu0 0.0
  %5311 = vmatpush1.msra.mxu0 0.0
  %5312 = vmatprep.subr.mxu0 0.0
  %5313 = vmatpush1.msra.mxu0 0.0
  %5314 = vmatprep.subr.mxu0 0.0
  %5315 = vmatpush1.msra.mxu0 0.0
  %5316 = vmatprep.subr.mxu0 0.0
  %5317 = vmatpush1.msra.mxu0 0.0
  %5318 = vmatprep.subr.mxu0 0.0
  %5319 = vmatpush1.msra.mxu0 0.0
  %5320 = vmatprep.subr.mxu0 0.0
  %5321 = vmatpush1.msra.mxu0 0.0
  %5322 = vmatprep.subr.mxu0 0.0
  %5323 = vmatpush1.msra.mxu0 0.0
  %5324 = vmatprep.subr.mxu0 0.0
  %5325 = vmatpush1.msra.mxu0 0.0
  %5326 = vmatprep.subr.mxu0 0.0
  %5327 = vmatpush1.msra.mxu0 0.0
  %5328 = vmatprep.subr.mxu0 0.0
  %5329 = vmatpush1.msra.mxu0 0.0
  %5330 = vmatprep.subr.mxu0 0.0
  %5331 = vmatpush1.msra.mxu0 0.0
  %5332 = vmatprep.subr.mxu0 0.0
  %5333 = vmatpush1.msra.mxu0 0.0
  %5334 = vmatprep.subr.mxu0 0.0
  %5335 = vmatpush1.msra.mxu0 0.0
  %5336 = vmatprep.subr.mxu0 0.0
  %5337 = vmatpush1.msra.mxu0 0.0
  %5338 = vmatprep.subr.mxu0 0.0
  %5339 = vmatpush1.msra.mxu0 0.0
  %5340 = vmatprep.subr.mxu0 0.0
  %5341 = vmatpush1.msra.mxu0 0.0
  %5342 = vmatprep.subr.mxu0 0.0
  %5343 = vmatpush1.msra.mxu0 0.0
  %5344 = vmatprep.subr.mxu0 0.0
  %5345 = vmatpush1.msra.mxu0 0.0
  %5346 = vmatprep.subr.mxu0 0.0
  %5347 = vmatpush1.msra.mxu0 0.0
  %5348 = vmatprep.subr.mxu0 0.0
  %5349 = vmatpush1.msra.mxu0 0.0
  %5350 = vmatprep.subr.mxu0 0.0
  %5351 = vmatpush1.msra.mxu0 0.0
  %5352 = vmatprep.subr.mxu0 0.0
  %5353 = vmatpush1.msra.mxu0 0.0
  %5354 = vmatprep.subr.mxu0 0.0
  %5355 = vmatpush1.msra.mxu0 0.0
  %5356 = vmatprep.subr.mxu0 0.0
  %5357 = vmatpush1.msra.mxu0 0.0
  %5358 = vmatprep.subr.mxu0 0.0
  %5359 = vmatpush1.msra.mxu0 0.0
  %5360 = vmatprep.subr.mxu0 0.0
  %5361 = vmatpush1.msra.mxu0 0.0
  %5362 = vmatprep.subr.mxu0 0.0
  %5363 = vmatpush1.msra.mxu0 0.0
  %5364 = vmatprep.subr.mxu0 0.0
  %5365 = vmatpush1.msra.mxu0 0.0
  %5366 = vmatprep.subr.mxu0 0.0
  %5367 = vmatpush1.msra.mxu0 0.0
  %5368 = vmatprep.mubr.f32.mxu0 0.0
  %5369 = vmatmul.mubr.f32.gmra.mrb[0].mxu0 %v5302
  %v5370 = vpop.f32.mrb[0].mxu0
  %v5371 = vadd.f32 0.0, %v5370
  %v5372 = vpop.f32.mrb[0].mxu0
  %5373 = vdwg.mxu0
  %s5374 = scalar_lea.vmem %s47, 16
  %v5375 = vld [vmem:[%s5374] sm:$0xff]
  %v5376 = vld [vmem:[%s5374 + $0x8] sm:$0xf]
  %v5378 = vsel %vm406, %v5143, 0
  %v5381 = vsel %vm406, %v5219, 0
  %v5384 = vsel %vm406, %v5295, 0
  %v5387 = vsel %vm406, %v5371, 0
  %v5390 = vsel %vm1746, %v5376, 0
  %5392 = vmatprep.subr.mxu0 0.0
  %5393 = vmatpush1.msra.mxu0 %v5375
  %5394 = vmatprep.subr.mxu0 0.0
  %5395 = vmatpush1.msra.mxu0 %v5390
  %5396 = vmatprep.subr.mxu0 0.0
  %5397 = vmatpush1.msra.mxu0 0.0
  %5398 = vmatprep.subr.mxu0 0.0
  %5399 = vmatpush1.msra.mxu0 0.0
  %5400 = vmatprep.subr.mxu0 0.0
  %5401 = vmatpush1.msra.mxu0 0.0
  %5402 = vmatprep.subr.mxu0 0.0
  %5403 = vmatpush1.msra.mxu0 0.0
  %5404 = vmatprep.subr.mxu0 0.0
  %5405 = vmatpush1.msra.mxu0 0.0
  %5406 = vmatprep.subr.mxu0 0.0
  %5407 = vmatpush1.msra.mxu0 0.0
  %5408 = vmatprep.subr.mxu0 0.0
  %5409 = vmatpush1.msra.mxu0 0.0
  %5410 = vmatprep.subr.mxu0 0.0
  %5411 = vmatpush1.msra.mxu0 0.0
  %5412 = vmatprep.subr.mxu0 0.0
  %5413 = vmatpush1.msra.mxu0 0.0
  %5414 = vmatprep.subr.mxu0 0.0
  %5415 = vmatpush1.msra.mxu0 0.0
  %5416 = vmatprep.subr.mxu0 0.0
  %5417 = vmatpush1.msra.mxu0 0.0
  %5418 = vmatprep.subr.mxu0 0.0
  %5419 = vmatpush1.msra.mxu0 0.0
  %5420 = vmatprep.subr.mxu0 0.0
  %5421 = vmatpush1.msra.mxu0 0.0
  %5422 = vmatprep.subr.mxu0 0.0
  %5423 = vmatpush1.msra.mxu0 0.0
  %5424 = vmatprep.subr.mxu0 0.0
  %5425 = vmatpush1.msra.mxu0 0.0
  %5426 = vmatprep.subr.mxu0 0.0
  %5427 = vmatpush1.msra.mxu0 0.0
  %5428 = vmatprep.subr.mxu0 0.0
  %5429 = vmatpush1.msra.mxu0 0.0
  %5430 = vmatprep.subr.mxu0 0.0
  %5431 = vmatpush1.msra.mxu0 0.0
  %5432 = vmatprep.subr.mxu0 0.0
  %5433 = vmatpush1.msra.mxu0 0.0
  %5434 = vmatprep.subr.mxu0 0.0
  %5435 = vmatpush1.msra.mxu0 0.0
  %5436 = vmatprep.subr.mxu0 0.0
  %5437 = vmatpush1.msra.mxu0 0.0
  %5438 = vmatprep.subr.mxu0 0.0
  %5439 = vmatpush1.msra.mxu0 0.0
  %5440 = vmatprep.subr.mxu0 0.0
  %5441 = vmatpush1.msra.mxu0 0.0
  %5442 = vmatprep.subr.mxu0 0.0
  %5443 = vmatpush1.msra.mxu0 0.0
  %5444 = vmatprep.subr.mxu0 0.0
  %5445 = vmatpush1.msra.mxu0 0.0
  %5446 = vmatprep.subr.mxu0 0.0
  %5447 = vmatpush1.msra.mxu0 0.0
  %5448 = vmatprep.subr.mxu0 0.0
  %5449 = vmatpush1.msra.mxu0 0.0
  %5450 = vmatprep.subr.mxu0 0.0
  %5451 = vmatpush1.msra.mxu0 0.0
  %5452 = vmatprep.subr.mxu0 0.0
  %5453 = vmatpush1.msra.mxu0 0.0
  %5454 = vmatprep.subr.mxu0 0.0
  %5455 = vmatpush1.msra.mxu0 0.0
  %5456 = vmatprep.mubr.f32.mxu0 0.0
  %5457 = vmatmul.mubr.f32.gmra.mrb[0].mxu0 %v5378
  %v5458 = vpop.f32.mrb[0].mxu0
  %v5459 = vadd.f32 0.0, %v5458
  %v5460 = vpop.f32.mrb[0].mxu0
  %5461 = vmatprep.mubr.f32.mxu0 0.0
  %5462 = vmatmul.mubr.f32.gmra.mrb[0].mxu0 %v5381
  %v5463 = vpop.f32.mrb[0].mxu0
  %v5464 = vadd.f32 0.0, %v5463
  %v5465 = vpop.f32.mrb[0].mxu0
  %5466 = vmatprep.mubr.f32.mxu0 0.0
  %5467 = vmatmul.mubr.f32.gmra.mrb[0].mxu0 %v5384
  %v5468 = vpop.f32.mrb[0].mxu0
  %v5469 = vadd.f32 0.0, %v5468
  %v5470 = vpop.f32.mrb[0].mxu0
  %5471 = vmatprep.mubr.f32.mxu0 0.0
  %5472 = vmatmul.mubr.f32.gmra.mrb[0].mxu0 %v5387
  %v5473 = vpop.f32.mrb[0].mxu0
  %v5474 = vadd.f32 0.0, %v5473
  %v5475 = vpop.f32.mrb[0].mxu0
  %5476 = vdwg.mxu0
  %v5478 = vsel %vm406, %v4477, 0
  %v5481 = vsel %vm406, %v4553, 0
  %v5484 = vsel %vm406, %v4629, 0
  %v5487 = vsel %vm406, %v4705, 0
  %v5490 = vsel %vm1746, %v4709, 0
  %5492 = vmatprep.subr.mxu0 0.0
  %5493 = vmatpush1.msra.mxu0 %v4708
  %5494 = vmatprep.subr.mxu0 0.0
  %5495 = vmatpush1.msra.mxu0 %v5490
  %5496 = vmatprep.subr.mxu0 0.0
  %5497 = vmatpush1.msra.mxu0 0.0
  %5498 = vmatprep.subr.mxu0 0.0
  %5499 = vmatpush1.msra.mxu0 0.0
  %5500 = vmatprep.subr.mxu0 0.0
  %5501 = vmatpush1.msra.mxu0 0.0
  %5502 = vmatprep.subr.mxu0 0.0
  %5503 = vmatpush1.msra.mxu0 0.0
  %5504 = vmatprep.subr.mxu0 0.0
  %5505 = vmatpush1.msra.mxu0 0.0
  %5506 = vmatprep.subr.mxu0 0.0
  %5507 = vmatpush1.msra.mxu0 0.0
  %5508 = vmatprep.subr.mxu0 0.0
  %5509 = vmatpush1.msra.mxu0 0.0
  %5510 = vmatprep.subr.mxu0 0.0
  %5511 = vmatpush1.msra.mxu0 0.0
  %5512 = vmatprep.subr.mxu0 0.0
  %5513 = vmatpush1.msra.mxu0 0.0
  %5514 = vmatprep.subr.mxu0 0.0
  %5515 = vmatpush1.msra.mxu0 0.0
  %5516 = vmatprep.subr.mxu0 0.0
  %5517 = vmatpush1.msra.mxu0 0.0
  %5518 = vmatprep.subr.mxu0 0.0
  %5519 = vmatpush1.msra.mxu0 0.0
  %5520 = vmatprep.subr.mxu0 0.0
  %5521 = vmatpush1.msra.mxu0 0.0
  %5522 = vmatprep.subr.mxu0 0.0
  %5523 = vmatpush1.msra.mxu0 0.0
  %5524 = vmatprep.subr.mxu0 0.0
  %5525 = vmatpush1.msra.mxu0 0.0
  %5526 = vmatprep.subr.mxu0 0.0
  %5527 = vmatpush1.msra.mxu0 0.0
  %5528 = vmatprep.subr.mxu0 0.0
  %5529 = vmatpush1.msra.mxu0 0.0
  %5530 = vmatprep.subr.mxu0 0.0
  %5531 = vmatpush1.msra.mxu0 0.0
  %5532 = vmatprep.subr.mxu0 0.0
  %5533 = vmatpush1.msra.mxu0 0.0
  %5534 = vmatprep.subr.mxu0 0.0
  %5535 = vmatpush1.msra.mxu0 0.0
  %5536 = vmatprep.subr.mxu0 0.0
  %5537 = vmatpush1.msra.mxu0 0.0
  %5538 = vmatprep.subr.mxu0 0.0
  %5539 = vmatpush1.msra.mxu0 0.0
  %5540 = vmatprep.subr.mxu0 0.0
  %5541 = vmatpush1.msra.mxu0 0.0
  %5542 = vmatprep.subr.mxu0 0.0
  %5543 = vmatpush1.msra.mxu0 0.0
  %5544 = vmatprep.subr.mxu0 0.0
  %5545 = vmatpush1.msra.mxu0 0.0
  %5546 = vmatprep.subr.mxu0 0.0
  %5547 = vmatpush1.msra.mxu0 0.0
  %5548 = vmatprep.subr.mxu0 0.0
  %5549 = vmatpush1.msra.mxu0 0.0
  %5550 = vmatprep.subr.mxu0 0.0
  %5551 = vmatpush1.msra.mxu0 0.0
  %5552 = vmatprep.subr.mxu0 0.0
  %5553 = vmatpush1.msra.mxu0 0.0
  %5554 = vmatprep.subr.mxu0 0.0
  %5555 = vmatpush1.msra.mxu0 0.0
  %5556 = vmatprep.mubr.f32.mxu0 0.0
  %5557 = vmatmul.mubr.f32.gmra.mrb[0].mxu0 %v5478
  %v5558 = vpop.f32.mrb[0].mxu0
  %v5559 = vadd.f32 %v5459, %v5558
  %v5560 = vpop.f32.mrb[0].mxu0
  %5561 = vmatprep.mubr.f32.mxu0 0.0
  %5562 = vmatmul.mubr.f32.gmra.mrb[0].mxu0 %v5481
  %v5563 = vpop.f32.mrb[0].mxu0
  %v5564 = vadd.f32 %v5464, %v5563
  %v5565 = vpop.f32.mrb[0].mxu0
  %5566 = vmatprep.mubr.f32.mxu0 0.0
  %5567 = vmatmul.mubr.f32.gmra.mrb[0].mxu0 %v5484
  %v5568 = vpop.f32.mrb[0].mxu0
  %v5569 = vadd.f32 %v5469, %v5568
  %v5570 = vpop.f32.mrb[0].mxu0
  %5571 = vmatprep.mubr.f32.mxu0 0.0
  %5572 = vmatmul.mubr.f32.gmra.mrb[0].mxu0 %v5487
  %v5573 = vpop.f32.mrb[0].mxu0
  %v5574 = vadd.f32 %v5474, %v5573
  %v5575 = vpop.f32.mrb[0].mxu0
  %5576 = vdwg.mxu0
  %5577 = vrot.lane.b32.xlu0 %v4026, 104
  %v5578 = vpop.permute.xlu0 %5577
  %5579 = vrot.lane.b32.xlu0 %v4026, 56
  %v5580 = vpop.permute.xlu0 %5579
  %v5581 = vsel %vm406, %v5578, 0
  %v5583 = vsel %vm406, %v5580, 0
  %5585 = vmatprep.subr.mxu0 0.0
  %5586 = vmatpush1.xpose.msra.mxu0 %v5583
  %5587 = vmatprep.subr.mxu0 0.0
  %5588 = vmatpush1.xpose.msra.mxu0 0.0
  %5589 = vmatprep.subr.mxu0 0.0
  %5590 = vmatpush1.xpose.msra.mxu0 0.0
  %5591 = vmatprep.subr.mxu0 0.0
  %5592 = vmatpush1.xpose.msra.mxu0 0.0
  %5593 = vmatprep.subr.mxu0 0.0
  %5594 = vmatpush1.xpose.msra.mxu0 0.0
  %5595 = vmatprep.subr.mxu0 0.0
  %5596 = vmatpush1.xpose.msra.mxu0 0.0
  %5597 = vmatprep.subr.mxu0 0.0
  %5598 = vmatpush1.xpose.msra.mxu0 0.0
  %5599 = vmatprep.subr.mxu0 0.0
  %5600 = vmatpush1.xpose.msra.mxu0 0.0
  %5601 = vmatprep.subr.mxu0 0.0
  %5602 = vmatpush1.xpose.msra.mxu0 0.0
  %5603 = vmatprep.subr.mxu0 0.0
  %5604 = vmatpush1.xpose.msra.mxu0 0.0
  %5605 = vmatprep.subr.mxu0 0.0
  %5606 = vmatpush1.xpose.msra.mxu0 0.0
  %5607 = vmatprep.subr.mxu0 0.0
  %5608 = vmatpush1.xpose.msra.mxu0 0.0
  %5609 = vmatprep.subr.mxu0 0.0
  %5610 = vmatpush1.xpose.msra.mxu0 0.0
  %5611 = vmatprep.subr.mxu0 0.0
  %5612 = vmatpush1.xpose.msra.mxu0 0.0
  %5613 = vmatprep.subr.mxu0 0.0
  %5614 = vmatpush1.xpose.msra.mxu0 0.0
  %5615 = vmatprep.subr.mxu0 0.0
  %5616 = vmatpush1.xpose.msra.mxu0 0.0
  %5617 = vmatprep.subr.mxu0 0.0
  %5618 = vmatpush1.xpose.msra.mxu0 0.0
  %5619 = vmatprep.subr.mxu0 0.0
  %5620 = vmatpush1.xpose.msra.mxu0 0.0
  %5621 = vmatprep.subr.mxu0 0.0
  %5622 = vmatpush1.xpose.msra.mxu0 0.0
  %5623 = vmatprep.subr.mxu0 0.0
  %5624 = vmatpush1.xpose.msra.mxu0 0.0
  %5625 = vmatprep.subr.mxu0 0.0
  %5626 = vmatpush1.xpose.msra.mxu0 0.0
  %5627 = vmatprep.subr.mxu0 0.0
  %5628 = vmatpush1.xpose.msra.mxu0 0.0
  %5629 = vmatprep.subr.mxu0 0.0
  %5630 = vmatpush1.xpose.msra.mxu0 0.0
  %5631 = vmatprep.subr.mxu0 0.0
  %5632 = vmatpush1.xpose.msra.mxu0 0.0
  %5633 = vmatprep.subr.mxu0 0.0
  %5634 = vmatpush1.xpose.msra.mxu0 0.0
  %5635 = vmatprep.subr.mxu0 0.0
  %5636 = vmatpush1.xpose.msra.mxu0 0.0
  %5637 = vmatprep.subr.mxu0 0.0
  %5638 = vmatpush1.xpose.msra.mxu0 0.0
  %5639 = vmatprep.subr.mxu0 0.0
  %5640 = vmatpush1.xpose.msra.mxu0 0.0
  %5641 = vmatprep.subr.mxu0 0.0
  %5642 = vmatpush1.xpose.msra.mxu0 0.0
  %5643 = vmatprep.subr.mxu0 0.0
  %5644 = vmatpush1.xpose.msra.mxu0 0.0
  %5645 = vmatprep.subr.mxu0 0.0
  %5646 = vmatpush1.xpose.msra.mxu0 0.0
  %5647 = vmatprep.subr.mxu0 0.0
  %5648 = vmatpush1.xpose.msra.mxu0 0.0
  %5649 = vmatprep.mubr.f32.mxu0 0.0
  %5650 = vmatmul.mubr.f32.gmra.mrb[0].mxu0 %v5581
  %v5651 = vpop.f32.mrb[0].mxu0
  %v5652 = vadd.f32 0.0, %v5651
  %v5653 = vpop.f32.mrb[0].mxu0
  %5654 = vdwg.mxu0
  %5655 = vrot.lane.b32.xlu0 %v4032, 104
  %v5656 = vpop.permute.xlu0 %5655
  %5657 = vrot.lane.b32.xlu0 %v4032, 56
  %v5658 = vpop.permute.xlu0 %5657
  %v5659 = vsel %vm406, %v5656, 0
  %v5661 = vsel %vm406, %v5658, 0
  %5663 = vmatprep.subr.mxu0 0.0
  %5664 = vmatpush1.xpose.msra.mxu0 %v5661
  %5665 = vmatprep.subr.mxu0 0.0
  %5666 = vmatpush1.xpose.msra.mxu0 0.0
  %5667 = vmatprep.subr.mxu0 0.0
  %5668 = vmatpush1.xpose.msra.mxu0 0.0
  %5669 = vmatprep.subr.mxu0 0.0
  %5670 = vmatpush1.xpose.msra.mxu0 0.0
  %5671 = vmatprep.subr.mxu0 0.0
  %5672 = vmatpush1.xpose.msra.mxu0 0.0
  %5673 = vmatprep.subr.mxu0 0.0
  %5674 = vmatpush1.xpose.msra.mxu0 0.0
  %5675 = vmatprep.subr.mxu0 0.0
  %5676 = vmatpush1.xpose.msra.mxu0 0.0
  %5677 = vmatprep.subr.mxu0 0.0
  %5678 = vmatpush1.xpose.msra.mxu0 0.0
  %5679 = vmatprep.subr.mxu0 0.0
  %5680 = vmatpush1.xpose.msra.mxu0 0.0
  %5681 = vmatprep.subr.mxu0 0.0
  %5682 = vmatpush1.xpose.msra.mxu0 0.0
  %5683 = vmatprep.subr.mxu0 0.0
  %5684 = vmatpush1.xpose.msra.mxu0 0.0
  %5685 = vmatprep.subr.mxu0 0.0
  %5686 = vmatpush1.xpose.msra.mxu0 0.0
  %5687 = vmatprep.subr.mxu0 0.0
  %5688 = vmatpush1.xpose.msra.mxu0 0.0
  %5689 = vmatprep.subr.mxu0 0.0
  %5690 = vmatpush1.xpose.msra.mxu0 0.0
  %5691 = vmatprep.subr.mxu0 0.0
  %5692 = vmatpush1.xpose.msra.mxu0 0.0
  %5693 = vmatprep.subr.mxu0 0.0
  %5694 = vmatpush1.xpose.msra.mxu0 0.0
  %5695 = vmatprep.subr.mxu0 0.0
  %5696 = vmatpush1.xpose.msra.mxu0 0.0
  %5697 = vmatprep.subr.mxu0 0.0
  %5698 = vmatpush1.xpose.msra.mxu0 0.0
  %5699 = vmatprep.subr.mxu0 0.0
  %5700 = vmatpush1.xpose.msra.mxu0 0.0
  %5701 = vmatprep.subr.mxu0 0.0
  %5702 = vmatpush1.xpose.msra.mxu0 0.0
  %5703 = vmatprep.subr.mxu0 0.0
  %5704 = vmatpush1.xpose.msra.mxu0 0.0
  %5705 = vmatprep.subr.mxu0 0.0
  %5706 = vmatpush1.xpose.msra.mxu0 0.0
  %5707 = vmatprep.subr.mxu0 0.0
  %5708 = vmatpush1.xpose.msra.mxu0 0.0
  %5709 = vmatprep.subr.mxu0 0.0
  %5710 = vmatpush1.xpose.msra.mxu0 0.0
  %5711 = vmatprep.subr.mxu0 0.0
  %5712 = vmatpush1.xpose.msra.mxu0 0.0
  %5713 = vmatprep.subr.mxu0 0.0
  %5714 = vmatpush1.xpose.msra.mxu0 0.0
  %5715 = vmatprep.subr.mxu0 0.0
  %5716 = vmatpush1.xpose.msra.mxu0 0.0
  %5717 = vmatprep.subr.mxu0 0.0
  %5718 = vmatpush1.xpose.msra.mxu0 0.0
  %5719 = vmatprep.subr.mxu0 0.0
  %5720 = vmatpush1.xpose.msra.mxu0 0.0
  %5721 = vmatprep.subr.mxu0 0.0
  %5722 = vmatpush1.xpose.msra.mxu0 0.0
  %5723 = vmatprep.subr.mxu0 0.0
  %5724 = vmatpush1.xpose.msra.mxu0 0.0
  %5725 = vmatprep.subr.mxu0 0.0
  %5726 = vmatpush1.xpose.msra.mxu0 0.0
  %5727 = vmatprep.mubr.f32.mxu0 0.0
  %5728 = vmatmul.mubr.f32.gmra.mrb[0].mxu0 %v5659
  %v5729 = vpop.f32.mrb[0].mxu0
  %v5730 = vadd.f32 0.0, %v5729
  %v5731 = vpop.f32.mrb[0].mxu0
  %5732 = vdwg.mxu0
  %5733 = vrot.lane.b32.xlu0 %v4038, 104
  %v5734 = vpop.permute.xlu0 %5733
  %5735 = vrot.lane.b32.xlu0 %v4038, 56
  %v5736 = vpop.permute.xlu0 %5735
  %v5737 = vsel %vm406, %v5734, 0
  %v5739 = vsel %vm406, %v5736, 0
  %5741 = vmatprep.subr.mxu0 0.0
  %5742 = vmatpush1.xpose.msra.mxu0 %v5739
  %5743 = vmatprep.subr.mxu0 0.0
  %5744 = vmatpush1.xpose.msra.mxu0 0.0
  %5745 = vmatprep.subr.mxu0 0.0
  %5746 = vmatpush1.xpose.msra.mxu0 0.0
  %5747 = vmatprep.subr.mxu0 0.0
  %5748 = vmatpush1.xpose.msra.mxu0 0.0
  %5749 = vmatprep.subr.mxu0 0.0
  %5750 = vmatpush1.xpose.msra.mxu0 0.0
  %5751 = vmatprep.subr.mxu0 0.0
  %5752 = vmatpush1.xpose.msra.mxu0 0.0
  %5753 = vmatprep.subr.mxu0 0.0
  %5754 = vmatpush1.xpose.msra.mxu0 0.0
  %5755 = vmatprep.subr.mxu0 0.0
  %5756 = vmatpush1.xpose.msra.mxu0 0.0
  %5757 = vmatprep.subr.mxu0 0.0
  %5758 = vmatpush1.xpose.msra.mxu0 0.0
  %5759 = vmatprep.subr.mxu0 0.0
  %5760 = vmatpush1.xpose.msra.mxu0 0.0
  %5761 = vmatprep.subr.mxu0 0.0
  %5762 = vmatpush1.xpose.msra.mxu0 0.0
  %5763 = vmatprep.subr.mxu0 0.0
  %5764 = vmatpush1.xpose.msra.mxu0 0.0
  %5765 = vmatprep.subr.mxu0 0.0
  %5766 = vmatpush1.xpose.msra.mxu0 0.0
  %5767 = vmatprep.subr.mxu0 0.0
  %5768 = vmatpush1.xpose.msra.mxu0 0.0
  %5769 = vmatprep.subr.mxu0 0.0
  %5770 = vmatpush1.xpose.msra.mxu0 0.0
  %5771 = vmatprep.subr.mxu0 0.0
  %5772 = vmatpush1.xpose.msra.mxu0 0.0
  %5773 = vmatprep.subr.mxu0 0.0
  %5774 = vmatpush1.xpose.msra.mxu0 0.0
  %5775 = vmatprep.subr.mxu0 0.0
  %5776 = vmatpush1.xpose.msra.mxu0 0.0
  %5777 = vmatprep.subr.mxu0 0.0
  %5778 = vmatpush1.xpose.msra.mxu0 0.0
  %5779 = vmatprep.subr.mxu0 0.0
  %5780 = vmatpush1.xpose.msra.mxu0 0.0
  %5781 = vmatprep.subr.mxu0 0.0
  %5782 = vmatpush1.xpose.msra.mxu0 0.0
  %5783 = vmatprep.subr.mxu0 0.0
  %5784 = vmatpush1.xpose.msra.mxu0 0.0
  %5785 = vmatprep.subr.mxu0 0.0
  %5786 = vmatpush1.xpose.msra.mxu0 0.0
  %5787 = vmatprep.subr.mxu0 0.0
  %5788 = vmatpush1.xpose.msra.mxu0 0.0
  %5789 = vmatprep.subr.mxu0 0.0
  %5790 = vmatpush1.xpose.msra.mxu0 0.0
  %5791 = vmatprep.subr.mxu0 0.0
  %5792 = vmatpush1.xpose.msra.mxu0 0.0
  %5793 = vmatprep.subr.mxu0 0.0
  %5794 = vmatpush1.xpose.msra.mxu0 0.0
  %5795 = vmatprep.subr.mxu0 0.0
  %5796 = vmatpush1.xpose.msra.mxu0 0.0
  %5797 = vmatprep.subr.mxu0 0.0
  %5798 = vmatpush1.xpose.msra.mxu0 0.0
  %5799 = vmatprep.subr.mxu0 0.0
  %5800 = vmatpush1.xpose.msra.mxu0 0.0
  %5801 = vmatprep.subr.mxu0 0.0
  %5802 = vmatpush1.xpose.msra.mxu0 0.0
  %5803 = vmatprep.subr.mxu0 0.0
  %5804 = vmatpush1.xpose.msra.mxu0 0.0
  %5805 = vmatprep.mubr.f32.mxu0 0.0
  %5806 = vmatmul.mubr.f32.gmra.mrb[0].mxu0 %v5737
  %v5807 = vpop.f32.mrb[0].mxu0
  %v5808 = vadd.f32 0.0, %v5807
  %v5809 = vpop.f32.mrb[0].mxu0
  %5810 = vdwg.mxu0
  %5811 = vrot.lane.b32.xlu0 %v4044, 104
  %v5812 = vpop.permute.xlu0 %5811
  %5813 = vrot.lane.b32.xlu0 %v4044, 56
  %v5814 = vpop.permute.xlu0 %5813
  %v5815 = vsel %vm406, %v5812, 0
  %v5817 = vsel %vm406, %v5814, 0
  %5819 = vmatprep.subr.mxu0 0.0
  %5820 = vmatpush1.xpose.msra.mxu0 %v5817
  %5821 = vmatprep.subr.mxu0 0.0
  %5822 = vmatpush1.xpose.msra.mxu0 0.0
  %5823 = vmatprep.subr.mxu0 0.0
  %5824 = vmatpush1.xpose.msra.mxu0 0.0
  %5825 = vmatprep.subr.mxu0 0.0
  %5826 = vmatpush1.xpose.msra.mxu0 0.0
  %5827 = vmatprep.subr.mxu0 0.0
  %5828 = vmatpush1.xpose.msra.mxu0 0.0
  %5829 = vmatprep.subr.mxu0 0.0
  %5830 = vmatpush1.xpose.msra.mxu0 0.0
  %5831 = vmatprep.subr.mxu0 0.0
  %5832 = vmatpush1.xpose.msra.mxu0 0.0
  %5833 = vmatprep.subr.mxu0 0.0
  %5834 = vmatpush1.xpose.msra.mxu0 0.0
  %5835 = vmatprep.subr.mxu0 0.0
  %5836 = vmatpush1.xpose.msra.mxu0 0.0
  %5837 = vmatprep.subr.mxu0 0.0
  %5838 = vmatpush1.xpose.msra.mxu0 0.0
  %5839 = vmatprep.subr.mxu0 0.0
  %5840 = vmatpush1.xpose.msra.mxu0 0.0
  %5841 = vmatprep.subr.mxu0 0.0
  %5842 = vmatpush1.xpose.msra.mxu0 0.0
  %5843 = vmatprep.subr.mxu0 0.0
  %5844 = vmatpush1.xpose.msra.mxu0 0.0
  %5845 = vmatprep.subr.mxu0 0.0
  %5846 = vmatpush1.xpose.msra.mxu0 0.0
  %5847 = vmatprep.subr.mxu0 0.0
  %5848 = vmatpush1.xpose.msra.mxu0 0.0
  %5849 = vmatprep.subr.mxu0 0.0
  %5850 = vmatpush1.xpose.msra.mxu0 0.0
  %5851 = vmatprep.subr.mxu0 0.0
  %5852 = vmatpush1.xpose.msra.mxu0 0.0
  %5853 = vmatprep.subr.mxu0 0.0
  %5854 = vmatpush1.xpose.msra.mxu0 0.0
  %5855 = vmatprep.subr.mxu0 0.0
  %5856 = vmatpush1.xpose.msra.mxu0 0.0
  %5857 = vmatprep.subr.mxu0 0.0
  %5858 = vmatpush1.xpose.msra.mxu0 0.0
  %5859 = vmatprep.subr.mxu0 0.0
  %5860 = vmatpush1.xpose.msra.mxu0 0.0
  %5861 = vmatprep.subr.mxu0 0.0
  %5862 = vmatpush1.xpose.msra.mxu0 0.0
  %5863 = vmatprep.subr.mxu0 0.0
  %5864 = vmatpush1.xpose.msra.mxu0 0.0
  %5865 = vmatprep.subr.mxu0 0.0
  %5866 = vmatpush1.xpose.msra.mxu0 0.0
  %5867 = vmatprep.subr.mxu0 0.0
  %5868 = vmatpush1.xpose.msra.mxu0 0.0
  %5869 = vmatprep.subr.mxu0 0.0
  %5870 = vmatpush1.xpose.msra.mxu0 0.0
  %5871 = vmatprep.subr.mxu0 0.0
  %5872 = vmatpush1.xpose.msra.mxu0 0.0
  %5873 = vmatprep.subr.mxu0 0.0
  %5874 = vmatpush1.xpose.msra.mxu0 0.0
  %5875 = vmatprep.subr.mxu0 0.0
  %5876 = vmatpush1.xpose.msra.mxu0 0.0
  %5877 = vmatprep.subr.mxu0 0.0
  %5878 = vmatpush1.xpose.msra.mxu0 0.0
  %5879 = vmatprep.subr.mxu0 0.0
  %5880 = vmatpush1.xpose.msra.mxu0 0.0
  %5881 = vmatprep.subr.mxu0 0.0
  %5882 = vmatpush1.xpose.msra.mxu0 0.0
  %5883 = vmatprep.mubr.f32.mxu0 0.0
  %5884 = vmatmul.mubr.f32.gmra.mrb[0].mxu0 %v5815
  %v5885 = vpop.f32.mrb[0].mxu0
  %v5886 = vadd.f32 0.0, %v5885
  %v5887 = vpop.f32.mrb[0].mxu0
  %5888 = vdwg.mxu0
  %v5889 = vmul.f32 %v5652, 0.28867513
  %v5890 = vmul.f32 %v5730, 0.28867513
  %v5891 = vmul.f32 %v5808, 0.28867513
  %v5892 = vmul.f32 %v5886, 0.28867513
  %v5893 = vsel %vm716, %v5889, -inf
  %5894 = vmax.xlane.f32.xlu0 %v5893
  %v5895 = vpop.xlane.xlu0 %5894
  %v5896 = vsel %vm716, %v5890, -inf
  %5897 = vmax.xlane.f32.xlu0 %v5896
  %v5898 = vpop.xlane.xlu0 %5897
  %v5899 = vsel %vm716, %v5891, -inf
  %5900 = vmax.xlane.f32.xlu0 %v5899
  %v5901 = vpop.xlane.xlu0 %5900
  %v5902 = vsel %vm716, %v5892, -inf
  %5903 = vmax.xlane.f32.xlu0 %v5902
  %v5904 = vpop.xlane.xlu0 %5903
  %v5905 = vsub.f32 %v5889, %v5895
  %v5906 = vsub.f32 %v5890, %v5898
  %v5907 = vsub.f32 %v5891, %v5901
  %v5908 = vsub.f32 %v5892, %v5904
  %v5909 = vmul.f32 %v5905, 1.442695
  %v5910 = vpow.pop %v5909
  %v5911 = vmul.f32 %v5906, 1.442695
  %v5912 = vpow.pop %v5911
  %v5913 = vmul.f32 %v5907, 1.442695
  %v5914 = vpow.pop %v5913
  %v5915 = vmul.f32 %v5908, 1.442695
  %v5916 = vpow.pop %v5915
  %v5917 = vsel %vm716, %v5910, 0.0
  %5918 = vadd.xlane.f32.xlu0 %v5917
  %v5919 = vpop.xlane.xlu0 %5918
  %v5920 = vsel %vm716, %v5912, 0.0
  %5921 = vadd.xlane.f32.xlu0 %v5920
  %v5922 = vpop.xlane.xlu0 %5921
  %v5923 = vsel %vm716, %v5914, 0.0
  %5924 = vadd.xlane.f32.xlu0 %v5923
  %v5925 = vpop.xlane.xlu0 %5924
  %v5926 = vsel %vm716, %v5916, 0.0
  %5927 = vadd.xlane.f32.xlu0 %v5926
  %v5928 = vpop.xlane.xlu0 %5927
  %v5929 = vrcp.pop %v5919
  %v5930 = vmul.f32 %v5910, %v5929
  %v5931 = vrcp.pop %v5922
  %v5932 = vmul.f32 %v5912, %v5931
  %v5933 = vrcp.pop %v5925
  %v5934 = vmul.f32 %v5914, %v5933
  %v5935 = vrcp.pop %v5928
  %v5936 = vmul.f32 %v5916, %v5935
  %5938 = vrot.lane.b32.xlu0 %v4026, 8
  %v5939 = vpop.permute.xlu0 %5938
  %5940 = vrot.lane.b32.xlu0 %v4028, 8
  %v5941 = vpop.permute.xlu0 %5940
  %v5942 = vsel %vm716, %v5939, %v5941
  %v5945 = vsel %vm716, %v5930, 0
  %5947 = vmatprep.subr.mxu0 0.0
  %5948 = vmatpush1.msra.mxu0 %v5942
  %5949 = vmatprep.subr.mxu0 0.0
  %5950 = vmatpush1.msra.mxu0 0.0
  %5951 = vmatprep.subr.mxu0 0.0
  %5952 = vmatpush1.msra.mxu0 0.0
  %5953 = vmatprep.subr.mxu0 0.0
  %5954 = vmatpush1.msra.mxu0 0.0
  %5955 = vmatprep.subr.mxu0 0.0
  %5956 = vmatpush1.msra.mxu0 0.0
  %5957 = vmatprep.subr.mxu0 0.0
  %5958 = vmatpush1.msra.mxu0 0.0
  %5959 = vmatprep.subr.mxu0 0.0
  %5960 = vmatpush1.msra.mxu0 0.0
  %5961 = vmatprep.subr.mxu0 0.0
  %5962 = vmatpush1.msra.mxu0 0.0
  %5963 = vmatprep.subr.mxu0 0.0
  %5964 = vmatpush1.msra.mxu0 0.0
  %5965 = vmatprep.subr.mxu0 0.0
  %5966 = vmatpush1.msra.mxu0 0.0
  %5967 = vmatprep.subr.mxu0 0.0
  %5968 = vmatpush1.msra.mxu0 0.0
  %5969 = vmatprep.subr.mxu0 0.0
  %5970 = vmatpush1.msra.mxu0 0.0
  %5971 = vmatprep.subr.mxu0 0.0
  %5972 = vmatpush1.msra.mxu0 0.0
  %5973 = vmatprep.subr.mxu0 0.0
  %5974 = vmatpush1.msra.mxu0 0.0
  %5975 = vmatprep.subr.mxu0 0.0
  %5976 = vmatpush1.msra.mxu0 0.0
  %5977 = vmatprep.subr.mxu0 0.0
  %5978 = vmatpush1.msra.mxu0 0.0
  %5979 = vmatprep.subr.mxu0 0.0
  %5980 = vmatpush1.msra.mxu0 0.0
  %5981 = vmatprep.subr.mxu0 0.0
  %5982 = vmatpush1.msra.mxu0 0.0
  %5983 = vmatprep.subr.mxu0 0.0
  %5984 = vmatpush1.msra.mxu0 0.0
  %5985 = vmatprep.subr.mxu0 0.0
  %5986 = vmatpush1.msra.mxu0 0.0
  %5987 = vmatprep.subr.mxu0 0.0
  %5988 = vmatpush1.msra.mxu0 0.0
  %5989 = vmatprep.subr.mxu0 0.0
  %5990 = vmatpush1.msra.mxu0 0.0
  %5991 = vmatprep.subr.mxu0 0.0
  %5992 = vmatpush1.msra.mxu0 0.0
  %5993 = vmatprep.subr.mxu0 0.0
  %5994 = vmatpush1.msra.mxu0 0.0
  %5995 = vmatprep.subr.mxu0 0.0
  %5996 = vmatpush1.msra.mxu0 0.0
  %5997 = vmatprep.subr.mxu0 0.0
  %5998 = vmatpush1.msra.mxu0 0.0
  %5999 = vmatprep.subr.mxu0 0.0
  %6000 = vmatpush1.msra.mxu0 0.0
  %6001 = vmatprep.subr.mxu0 0.0
  %6002 = vmatpush1.msra.mxu0 0.0
  %6003 = vmatprep.subr.mxu0 0.0
  %6004 = vmatpush1.msra.mxu0 0.0
  %6005 = vmatprep.subr.mxu0 0.0
  %6006 = vmatpush1.msra.mxu0 0.0
  %6007 = vmatprep.subr.mxu0 0.0
  %6008 = vmatpush1.msra.mxu0 0.0
  %6009 = vmatprep.subr.mxu0 0.0
  %6010 = vmatpush1.msra.mxu0 0.0
  %6011 = vmatprep.mubr.f32.mxu0 0.0
  %6012 = vmatmul.mubr.f32.gmra.mrb[0].mxu0 %v5945
  %v6013 = vpop.f32.mrb[0].mxu0
  %v6014 = vadd.f32 0.0, %v6013
  %v6015 = vpop.f32.mrb[0].mxu0
  %6016 = vdwg.mxu0
  %6018 = vrot.lane.b32.xlu0 %v4032, 8
  %v6019 = vpop.permute.xlu0 %6018
  %6020 = vrot.lane.b32.xlu0 %v4034, 8
  %v6021 = vpop.permute.xlu0 %6020
  %v6022 = vsel %vm716, %v6019, %v6021
  %v6025 = vsel %vm716, %v5932, 0
  %6027 = vmatprep.subr.mxu0 0.0
  %6028 = vmatpush1.msra.mxu0 %v6022
  %6029 = vmatprep.subr.mxu0 0.0
  %6030 = vmatpush1.msra.mxu0 0.0
  %6031 = vmatprep.subr.mxu0 0.0
  %6032 = vmatpush1.msra.mxu0 0.0
  %6033 = vmatprep.subr.mxu0 0.0
  %6034 = vmatpush1.msra.mxu0 0.0
  %6035 = vmatprep.subr.mxu0 0.0
  %6036 = vmatpush1.msra.mxu0 0.0
  %6037 = vmatprep.subr.mxu0 0.0
  %6038 = vmatpush1.msra.mxu0 0.0
  %6039 = vmatprep.subr.mxu0 0.0
  %6040 = vmatpush1.msra.mxu0 0.0
  %6041 = vmatprep.subr.mxu0 0.0
  %6042 = vmatpush1.msra.mxu0 0.0
  %6043 = vmatprep.subr.mxu0 0.0
  %6044 = vmatpush1.msra.mxu0 0.0
  %6045 = vmatprep.subr.mxu0 0.0
  %6046 = vmatpush1.msra.mxu0 0.0
  %6047 = vmatprep.subr.mxu0 0.0
  %6048 = vmatpush1.msra.mxu0 0.0
  %6049 = vmatprep.subr.mxu0 0.0
  %6050 = vmatpush1.msra.mxu0 0.0
  %6051 = vmatprep.subr.mxu0 0.0
  %6052 = vmatpush1.msra.mxu0 0.0
  %6053 = vmatprep.subr.mxu0 0.0
  %6054 = vmatpush1.msra.mxu0 0.0
  %6055 = vmatprep.subr.mxu0 0.0
  %6056 = vmatpush1.msra.mxu0 0.0
  %6057 = vmatprep.subr.mxu0 0.0
  %6058 = vmatpush1.msra.mxu0 0.0
  %6059 = vmatprep.subr.mxu0 0.0
  %6060 = vmatpush1.msra.mxu0 0.0
  %6061 = vmatprep.subr.mxu0 0.0
  %6062 = vmatpush1.msra.mxu0 0.0
  %6063 = vmatprep.subr.mxu0 0.0
  %6064 = vmatpush1.msra.mxu0 0.0
  %6065 = vmatprep.subr.mxu0 0.0
  %6066 = vmatpush1.msra.mxu0 0.0
  %6067 = vmatprep.subr.mxu0 0.0
  %6068 = vmatpush1.msra.mxu0 0.0
  %6069 = vmatprep.subr.mxu0 0.0
  %6070 = vmatpush1.msra.mxu0 0.0
  %6071 = vmatprep.subr.mxu0 0.0
  %6072 = vmatpush1.msra.mxu0 0.0
  %6073 = vmatprep.subr.mxu0 0.0
  %6074 = vmatpush1.msra.mxu0 0.0
  %6075 = vmatprep.subr.mxu0 0.0
  %6076 = vmatpush1.msra.mxu0 0.0
  %6077 = vmatprep.subr.mxu0 0.0
  %6078 = vmatpush1.msra.mxu0 0.0
  %6079 = vmatprep.subr.mxu0 0.0
  %6080 = vmatpush1.msra.mxu0 0.0
  %6081 = vmatprep.subr.mxu0 0.0
  %6082 = vmatpush1.msra.mxu0 0.0
  %6083 = vmatprep.subr.mxu0 0.0
  %6084 = vmatpush1.msra.mxu0 0.0
  %6085 = vmatprep.subr.mxu0 0.0
  %6086 = vmatpush1.msra.mxu0 0.0
  %6087 = vmatprep.subr.mxu0 0.0
  %6088 = vmatpush1.msra.mxu0 0.0
  %6089 = vmatprep.subr.mxu0 0.0
  %6090 = vmatpush1.msra.mxu0 0.0
  %6091 = vmatprep.mubr.f32.mxu0 0.0
  %6092 = vmatmul.mubr.f32.gmra.mrb[0].mxu0 %v6025
  %v6093 = vpop.f32.mrb[0].mxu0
  %v6094 = vadd.f32 0.0, %v6093
  %v6095 = vpop.f32.mrb[0].mxu0
  %6096 = vdwg.mxu0
  %6098 = vrot.lane.b32.xlu0 %v4038, 8
  %v6099 = vpop.permute.xlu0 %6098
  %6100 = vrot.lane.b32.xlu0 %v4040, 8
  %v6101 = vpop.permute.xlu0 %6100
  %v6102 = vsel %vm716, %v6099, %v6101
  %v6105 = vsel %vm716, %v5934, 0
  %6107 = vmatprep.subr.mxu0 0.0
  %6108 = vmatpush1.msra.mxu0 %v6102
  %6109 = vmatprep.subr.mxu0 0.0
  %6110 = vmatpush1.msra.mxu0 0.0
  %6111 = vmatprep.subr.mxu0 0.0
  %6112 = vmatpush1.msra.mxu0 0.0
  %6113 = vmatprep.subr.mxu0 0.0
  %6114 = vmatpush1.msra.mxu0 0.0
  %6115 = vmatprep.subr.mxu0 0.0
  %6116 = vmatpush1.msra.mxu0 0.0
  %6117 = vmatprep.subr.mxu0 0.0
  %6118 = vmatpush1.msra.mxu0 0.0
  %6119 = vmatprep.subr.mxu0 0.0
  %6120 = vmatpush1.msra.mxu0 0.0
  %6121 = vmatprep.subr.mxu0 0.0
  %6122 = vmatpush1.msra.mxu0 0.0
  %6123 = vmatprep.subr.mxu0 0.0
  %6124 = vmatpush1.msra.mxu0 0.0
  %6125 = vmatprep.subr.mxu0 0.0
  %6126 = vmatpush1.msra.mxu0 0.0
  %6127 = vmatprep.subr.mxu0 0.0
  %6128 = vmatpush1.msra.mxu0 0.0
  %6129 = vmatprep.subr.mxu0 0.0
  %6130 = vmatpush1.msra.mxu0 0.0
  %6131 = vmatprep.subr.mxu0 0.0
  %6132 = vmatpush1.msra.mxu0 0.0
  %6133 = vmatprep.subr.mxu0 0.0
  %6134 = vmatpush1.msra.mxu0 0.0
  %6135 = vmatprep.subr.mxu0 0.0
  %6136 = vmatpush1.msra.mxu0 0.0
  %6137 = vmatprep.subr.mxu0 0.0
  %6138 = vmatpush1.msra.mxu0 0.0
  %6139 = vmatprep.subr.mxu0 0.0
  %6140 = vmatpush1.msra.mxu0 0.0
  %6141 = vmatprep.subr.mxu0 0.0
  %6142 = vmatpush1.msra.mxu0 0.0
  %6143 = vmatprep.subr.mxu0 0.0
  %6144 = vmatpush1.msra.mxu0 0.0
  %6145 = vmatprep.subr.mxu0 0.0
  %6146 = vmatpush1.msra.mxu0 0.0
  %6147 = vmatprep.subr.mxu0 0.0
  %6148 = vmatpush1.msra.mxu0 0.0
  %6149 = vmatprep.subr.mxu0 0.0
  %6150 = vmatpush1.msra.mxu0 0.0
  %6151 = vmatprep.subr.mxu0 0.0
  %6152 = vmatpush1.msra.mxu0 0.0
  %6153 = vmatprep.subr.mxu0 0.0
  %6154 = vmatpush1.msra.mxu0 0.0
  %6155 = vmatprep.subr.mxu0 0.0
  %6156 = vmatpush1.msra.mxu0 0.0
  %6157 = vmatprep.subr.mxu0 0.0
  %6158 = vmatpush1.msra.mxu0 0.0
  %6159 = vmatprep.subr.mxu0 0.0
  %6160 = vmatpush1.msra.mxu0 0.0
  %6161 = vmatprep.subr.mxu0 0.0
  %6162 = vmatpush1.msra.mxu0 0.0
  %6163 = vmatprep.subr.mxu0 0.0
  %6164 = vmatpush1.msra.mxu0 0.0
  %6165 = vmatprep.subr.mxu0 0.0
  %6166 = vmatpush1.msra.mxu0 0.0
  %6167 = vmatprep.subr.mxu0 0.0
  %6168 = vmatpush1.msra.mxu0 0.0
  %6169 = vmatprep.subr.mxu0 0.0
  %6170 = vmatpush1.msra.mxu0 0.0
  %6171 = vmatprep.mubr.f32.mxu0 0.0
  %6172 = vmatmul.mubr.f32.gmra.mrb[0].mxu0 %v6105
  %v6173 = vpop.f32.mrb[0].mxu0
  %v6174 = vadd.f32 0.0, %v6173
  %v6175 = vpop.f32.mrb[0].mxu0
  %6176 = vdwg.mxu0
  %6178 = vrot.lane.b32.xlu0 %v4044, 8
  %v6179 = vpop.permute.xlu0 %6178
  %6180 = vrot.lane.b32.xlu0 %v4046, 8
  %v6181 = vpop.permute.xlu0 %6180
  %v6182 = vsel %vm716, %v6179, %v6181
  %v6185 = vsel %vm716, %v5936, 0
  %6187 = vmatprep.subr.mxu0 0.0
  %6188 = vmatpush1.msra.mxu0 %v6182
  %6189 = vmatprep.subr.mxu0 0.0
  %6190 = vmatpush1.msra.mxu0 0.0
  %6191 = vmatprep.subr.mxu0 0.0
  %6192 = vmatpush1.msra.mxu0 0.0
  %6193 = vmatprep.subr.mxu0 0.0
  %6194 = vmatpush1.msra.mxu0 0.0
  %6195 = vmatprep.subr.mxu0 0.0
  %6196 = vmatpush1.msra.mxu0 0.0
  %6197 = vmatprep.subr.mxu0 0.0
  %6198 = vmatpush1.msra.mxu0 0.0
  %6199 = vmatprep.subr.mxu0 0.0
  %6200 = vmatpush1.msra.mxu0 0.0
  %6201 = vmatprep.subr.mxu0 0.0
  %6202 = vmatpush1.msra.mxu0 0.0
  %6203 = vmatprep.subr.mxu0 0.0
  %6204 = vmatpush1.msra.mxu0 0.0
  %6205 = vmatprep.subr.mxu0 0.0
  %6206 = vmatpush1.msra.mxu0 0.0
  %6207 = vmatprep.subr.mxu0 0.0
  %6208 = vmatpush1.msra.mxu0 0.0
  %6209 = vmatprep.subr.mxu0 0.0
  %6210 = vmatpush1.msra.mxu0 0.0
  %6211 = vmatprep.subr.mxu0 0.0
  %6212 = vmatpush1.msra.mxu0 0.0
  %6213 = vmatprep.subr.mxu0 0.0
  %6214 = vmatpush1.msra.mxu0 0.0
  %6215 = vmatprep.subr.mxu0 0.0
  %6216 = vmatpush1.msra.mxu0 0.0
  %6217 = vmatprep.subr.mxu0 0.0
  %6218 = vmatpush1.msra.mxu0 0.0
  %6219 = vmatprep.subr.mxu0 0.0
  %6220 = vmatpush1.msra.mxu0 0.0
  %6221 = vmatprep.subr.mxu0 0.0
  %6222 = vmatpush1.msra.mxu0 0.0
  %6223 = vmatprep.subr.mxu0 0.0
  %6224 = vmatpush1.msra.mxu0 0.0
  %6225 = vmatprep.subr.mxu0 0.0
  %6226 = vmatpush1.msra.mxu0 0.0
  %6227 = vmatprep.subr.mxu0 0.0
  %6228 = vmatpush1.msra.mxu0 0.0
  %6229 = vmatprep.subr.mxu0 0.0
  %6230 = vmatpush1.msra.mxu0 0.0
  %6231 = vmatprep.subr.mxu0 0.0
  %6232 = vmatpush1.msra.mxu0 0.0
  %6233 = vmatprep.subr.mxu0 0.0
  %6234 = vmatpush1.msra.mxu0 0.0
  %6235 = vmatprep.subr.mxu0 0.0
  %6236 = vmatpush1.msra.mxu0 0.0
  %6237 = vmatprep.subr.mxu0 0.0
  %6238 = vmatpush1.msra.mxu0 0.0
  %6239 = vmatprep.subr.mxu0 0.0
  %6240 = vmatpush1.msra.mxu0 0.0
  %6241 = vmatprep.subr.mxu0 0.0
  %6242 = vmatpush1.msra.mxu0 0.0
  %6243 = vmatprep.subr.mxu0 0.0
  %6244 = vmatpush1.msra.mxu0 0.0
  %6245 = vmatprep.subr.mxu0 0.0
  %6246 = vmatpush1.msra.mxu0 0.0
  %6247 = vmatprep.subr.mxu0 0.0
  %6248 = vmatpush1.msra.mxu0 0.0
  %6249 = vmatprep.subr.mxu0 0.0
  %6250 = vmatpush1.msra.mxu0 0.0
  %6251 = vmatprep.mubr.f32.mxu0 0.0
  %6252 = vmatmul.mubr.f32.gmra.mrb[0].mxu0 %v6185
  %v6253 = vpop.f32.mrb[0].mxu0
  %v6254 = vadd.f32 0.0, %v6253
  %v6255 = vpop.f32.mrb[0].mxu0
  %6256 = vdwg.mxu0
  %s6257 = scalar_lea.vmem %s47, 32
  %v6258 = vld [vmem:[%s6257] sm:$0xff]
  %v6259 = vld [vmem:[%s6257 + $0x8] sm:$0xf]
  %v6261 = vsel %vm406, %v6014, 0
  %v6264 = vsel %vm406, %v6094, 0
  %v6267 = vsel %vm406, %v6174, 0
  %v6270 = vsel %vm406, %v6254, 0
  %v6273 = vsel %vm1746, %v6259, 0
  %6275 = vmatprep.subr.mxu0 0.0
  %6276 = vmatpush1.msra.mxu0 %v6258
  %6277 = vmatprep.subr.mxu0 0.0
  %6278 = vmatpush1.msra.mxu0 %v6273
  %6279 = vmatprep.subr.mxu0 0.0
  %6280 = vmatpush1.msra.mxu0 0.0
  %6281 = vmatprep.subr.mxu0 0.0
  %6282 = vmatpush1.msra.mxu0 0.0
  %6283 = vmatprep.subr.mxu0 0.0
  %6284 = vmatpush1.msra.mxu0 0.0
  %6285 = vmatprep.subr.mxu0 0.0
  %6286 = vmatpush1.msra.mxu0 0.0
  %6287 = vmatprep.subr.mxu0 0.0
  %6288 = vmatpush1.msra.mxu0 0.0
  %6289 = vmatprep.subr.mxu0 0.0
  %6290 = vmatpush1.msra.mxu0 0.0
  %6291 = vmatprep.subr.mxu0 0.0
  %6292 = vmatpush1.msra.mxu0 0.0
  %6293 = vmatprep.subr.mxu0 0.0
  %6294 = vmatpush1.msra.mxu0 0.0
  %6295 = vmatprep.subr.mxu0 0.0
  %6296 = vmatpush1.msra.mxu0 0.0
  %6297 = vmatprep.subr.mxu0 0.0
  %6298 = vmatpush1.msra.mxu0 0.0
  %6299 = vmatprep.subr.mxu0 0.0
  %6300 = vmatpush1.msra.mxu0 0.0
  %6301 = vmatprep.subr.mxu0 0.0
  %6302 = vmatpush1.msra.mxu0 0.0
  %6303 = vmatprep.subr.mxu0 0.0
  %6304 = vmatpush1.msra.mxu0 0.0
  %6305 = vmatprep.subr.mxu0 0.0
  %6306 = vmatpush1.msra.mxu0 0.0
  %6307 = vmatprep.subr.mxu0 0.0
  %6308 = vmatpush1.msra.mxu0 0.0
  %6309 = vmatprep.subr.mxu0 0.0
  %6310 = vmatpush1.msra.mxu0 0.0
  %6311 = vmatprep.subr.mxu0 0.0
  %6312 = vmatpush1.msra.mxu0 0.0
  %6313 = vmatprep.subr.mxu0 0.0
  %6314 = vmatpush1.msra.mxu0 0.0
  %6315 = vmatprep.subr.mxu0 0.0
  %6316 = vmatpush1.msra.mxu0 0.0
  %6317 = vmatprep.subr.mxu0 0.0
  %6318 = vmatpush1.msra.mxu0 0.0
  %6319 = vmatprep.subr.mxu0 0.0
  %6320 = vmatpush1.msra.mxu0 0.0
  %6321 = vmatprep.subr.mxu0 0.0
  %6322 = vmatpush1.msra.mxu0 0.0
  %6323 = vmatprep.subr.mxu0 0.0
  %6324 = vmatpush1.msra.mxu0 0.0
  %6325 = vmatprep.subr.mxu0 0.0
  %6326 = vmatpush1.msra.mxu0 0.0
  %6327 = vmatprep.subr.mxu0 0.0
  %6328 = vmatpush1.msra.mxu0 0.0
  %6329 = vmatprep.subr.mxu0 0.0
  %6330 = vmatpush1.msra.mxu0 0.0
  %6331 = vmatprep.subr.mxu0 0.0
  %6332 = vmatpush1.msra.mxu0 0.0
  %6333 = vmatprep.subr.mxu0 0.0
  %6334 = vmatpush1.msra.mxu0 0.0
  %6335 = vmatprep.subr.mxu0 0.0
  %6336 = vmatpush1.msra.mxu0 0.0
  %6337 = vmatprep.subr.mxu0 0.0
  %6338 = vmatpush1.msra.mxu0 0.0
  %6339 = vmatprep.mubr.f32.mxu0 0.0
  %6340 = vmatmul.mubr.f32.gmra.mrb[0].mxu0 %v6261
  %v6341 = vpop.f32.mrb[0].mxu0
  %v6342 = vadd.f32 0.0, %v6341
  %v6343 = vpop.f32.mrb[0].mxu0
  %6344 = vmatprep.mubr.f32.mxu0 0.0
  %6345 = vmatmul.mubr.f32.gmra.mrb[0].mxu0 %v6264
  %v6346 = vpop.f32.mrb[0].mxu0
  %v6347 = vadd.f32 0.0, %v6346
  %v6348 = vpop.f32.mrb[0].mxu0
  %6349 = vmatprep.mubr.f32.mxu0 0.0
  %6350 = vmatmul.mubr.f32.gmra.mrb[0].mxu0 %v6267
  %v6351 = vpop.f32.mrb[0].mxu0
  %v6352 = vadd.f32 0.0, %v6351
  %v6353 = vpop.f32.mrb[0].mxu0
  %6354 = vmatprep.mubr.f32.mxu0 0.0
  %6355 = vmatmul.mubr.f32.gmra.mrb[0].mxu0 %v6270
  %v6356 = vpop.f32.mrb[0].mxu0
  %v6357 = vadd.f32 0.0, %v6356
  %v6358 = vpop.f32.mrb[0].mxu0
  %6359 = vdwg.mxu0
  %v6360 = vadd.f32 %v5559, %v6342
  %v6361 = vadd.f32 %v5564, %v6347
  %v6362 = vadd.f32 %v5569, %v6352
  %v6363 = vadd.f32 %v5574, %v6357
  %6364 = vrot.lane.b32.xlu0 %v4026, 92
  %v6365 = vpop.permute.xlu0 %6364
  %6366 = vrot.lane.b32.xlu0 %v4026, 44
  %v6367 = vpop.permute.xlu0 %6366
  %v6368 = vsel %vm406, %v6365, 0
  %v6370 = vsel %vm406, %v6367, 0
  %6372 = vmatprep.subr.mxu0 0.0
  %6373 = vmatpush1.xpose.msra.mxu0 %v6370
  %6374 = vmatprep.subr.mxu0 0.0
  %6375 = vmatpush1.xpose.msra.mxu0 0.0
  %6376 = vmatprep.subr.mxu0 0.0
  %6377 = vmatpush1.xpose.msra.mxu0 0.0
  %6378 = vmatprep.subr.mxu0 0.0
  %6379 = vmatpush1.xpose.msra.mxu0 0.0
  %6380 = vmatprep.subr.mxu0 0.0
  %6381 = vmatpush1.xpose.msra.mxu0 0.0
  %6382 = vmatprep.subr.mxu0 0.0
  %6383 = vmatpush1.xpose.msra.mxu0 0.0
  %6384 = vmatprep.subr.mxu0 0.0
  %6385 = vmatpush1.xpose.msra.mxu0 0.0
  %6386 = vmatprep.subr.mxu0 0.0
  %6387 = vmatpush1.xpose.msra.mxu0 0.0
  %6388 = vmatprep.subr.mxu0 0.0
  %6389 = vmatpush1.xpose.msra.mxu0 0.0
  %6390 = vmatprep.subr.mxu0 0.0
  %6391 = vmatpush1.xpose.msra.mxu0 0.0
  %6392 = vmatprep.subr.mxu0 0.0
  %6393 = vmatpush1.xpose.msra.mxu0 0.0
  %6394 = vmatprep.subr.mxu0 0.0
  %6395 = vmatpush1.xpose.msra.mxu0 0.0
  %6396 = vmatprep.subr.mxu0 0.0
  %6397 = vmatpush1.xpose.msra.mxu0 0.0
  %6398 = vmatprep.subr.mxu0 0.0
  %6399 = vmatpush1.xpose.msra.mxu0 0.0
  %6400 = vmatprep.subr.mxu0 0.0
  %6401 = vmatpush1.xpose.msra.mxu0 0.0
  %6402 = vmatprep.subr.mxu0 0.0
  %6403 = vmatpush1.xpose.msra.mxu0 0.0
  %6404 = vmatprep.subr.mxu0 0.0
  %6405 = vmatpush1.xpose.msra.mxu0 0.0
  %6406 = vmatprep.subr.mxu0 0.0
  %6407 = vmatpush1.xpose.msra.mxu0 0.0
  %6408 = vmatprep.subr.mxu0 0.0
  %6409 = vmatpush1.xpose.msra.mxu0 0.0
  %6410 = vmatprep.subr.mxu0 0.0
  %6411 = vmatpush1.xpose.msra.mxu0 0.0
  %6412 = vmatprep.subr.mxu0 0.0
  %6413 = vmatpush1.xpose.msra.mxu0 0.0
  %6414 = vmatprep.subr.mxu0 0.0
  %6415 = vmatpush1.xpose.msra.mxu0 0.0
  %6416 = vmatprep.subr.mxu0 0.0
  %6417 = vmatpush1.xpose.msra.mxu0 0.0
  %6418 = vmatprep.subr.mxu0 0.0
  %6419 = vmatpush1.xpose.msra.mxu0 0.0
  %6420 = vmatprep.subr.mxu0 0.0
  %6421 = vmatpush1.xpose.msra.mxu0 0.0
  %6422 = vmatprep.subr.mxu0 0.0
  %6423 = vmatpush1.xpose.msra.mxu0 0.0
  %6424 = vmatprep.subr.mxu0 0.0
  %6425 = vmatpush1.xpose.msra.mxu0 0.0
  %6426 = vmatprep.subr.mxu0 0.0
  %6427 = vmatpush1.xpose.msra.mxu0 0.0
  %6428 = vmatprep.subr.mxu0 0.0
  %6429 = vmatpush1.xpose.msra.mxu0 0.0
  %6430 = vmatprep.subr.mxu0 0.0
  %6431 = vmatpush1.xpose.msra.mxu0 0.0
  %6432 = vmatprep.subr.mxu0 0.0
  %6433 = vmatpush1.xpose.msra.mxu0 0.0
  %6434 = vmatprep.subr.mxu0 0.0
  %6435 = vmatpush1.xpose.msra.mxu0 0.0
  %6436 = vmatprep.mubr.f32.mxu0 0.0
  %6437 = vmatmul.mubr.f32.gmra.mrb[0].mxu0 %v6368
  %v6438 = vpop.f32.mrb[0].mxu0
  %v6439 = vadd.f32 0.0, %v6438
  %v6440 = vpop.f32.mrb[0].mxu0
  %6441 = vdwg.mxu0
  %6442 = vrot.lane.b32.xlu0 %v4032, 92
  %v6443 = vpop.permute.xlu0 %6442
  %6444 = vrot.lane.b32.xlu0 %v4032, 44
  %v6445 = vpop.permute.xlu0 %6444
  %v6446 = vsel %vm406, %v6443, 0
  %v6448 = vsel %vm406, %v6445, 0
  %6450 = vmatprep.subr.mxu0 0.0
  %6451 = vmatpush1.xpose.msra.mxu0 %v6448
  %6452 = vmatprep.subr.mxu0 0.0
  %6453 = vmatpush1.xpose.msra.mxu0 0.0
  %6454 = vmatprep.subr.mxu0 0.0
  %6455 = vmatpush1.xpose.msra.mxu0 0.0
  %6456 = vmatprep.subr.mxu0 0.0
  %6457 = vmatpush1.xpose.msra.mxu0 0.0
  %6458 = vmatprep.subr.mxu0 0.0
  %6459 = vmatpush1.xpose.msra.mxu0 0.0
  %6460 = vmatprep.subr.mxu0 0.0
  %6461 = vmatpush1.xpose.msra.mxu0 0.0
  %6462 = vmatprep.subr.mxu0 0.0
  %6463 = vmatpush1.xpose.msra.mxu0 0.0
  %6464 = vmatprep.subr.mxu0 0.0
  %6465 = vmatpush1.xpose.msra.mxu0 0.0
  %6466 = vmatprep.subr.mxu0 0.0
  %6467 = vmatpush1.xpose.msra.mxu0 0.0
  %6468 = vmatprep.subr.mxu0 0.0
  %6469 = vmatpush1.xpose.msra.mxu0 0.0
  %6470 = vmatprep.subr.mxu0 0.0
  %6471 = vmatpush1.xpose.msra.mxu0 0.0
  %6472 = vmatprep.subr.mxu0 0.0
  %6473 = vmatpush1.xpose.msra.mxu0 0.0
  %6474 = vmatprep.subr.mxu0 0.0
  %6475 = vmatpush1.xpose.msra.mxu0 0.0
  %6476 = vmatprep.subr.mxu0 0.0
  %6477 = vmatpush1.xpose.msra.mxu0 0.0
  %6478 = vmatprep.subr.mxu0 0.0
  %6479 = vmatpush1.xpose.msra.mxu0 0.0
  %6480 = vmatprep.subr.mxu0 0.0
  %6481 = vmatpush1.xpose.msra.mxu0 0.0
  %6482 = vmatprep.subr.mxu0 0.0
  %6483 = vmatpush1.xpose.msra.mxu0 0.0
  %6484 = vmatprep.subr.mxu0 0.0
  %6485 = vmatpush1.xpose.msra.mxu0 0.0
  %6486 = vmatprep.subr.mxu0 0.0
  %6487 = vmatpush1.xpose.msra.mxu0 0.0
  %6488 = vmatprep.subr.mxu0 0.0
  %6489 = vmatpush1.xpose.msra.mxu0 0.0
  %6490 = vmatprep.subr.mxu0 0.0
  %6491 = vmatpush1.xpose.msra.mxu0 0.0
  %6492 = vmatprep.subr.mxu0 0.0
  %6493 = vmatpush1.xpose.msra.mxu0 0.0
  %6494 = vmatprep.subr.mxu0 0.0
  %6495 = vmatpush1.xpose.msra.mxu0 0.0
  %6496 = vmatprep.subr.mxu0 0.0
  %6497 = vmatpush1.xpose.msra.mxu0 0.0
  %6498 = vmatprep.subr.mxu0 0.0
  %6499 = vmatpush1.xpose.msra.mxu0 0.0
  %6500 = vmatprep.subr.mxu0 0.0
  %6501 = vmatpush1.xpose.msra.mxu0 0.0
  %6502 = vmatprep.subr.mxu0 0.0
  %6503 = vmatpush1.xpose.msra.mxu0 0.0
  %6504 = vmatprep.subr.mxu0 0.0
  %6505 = vmatpush1.xpose.msra.mxu0 0.0
  %6506 = vmatprep.subr.mxu0 0.0
  %6507 = vmatpush1.xpose.msra.mxu0 0.0
  %6508 = vmatprep.subr.mxu0 0.0
  %6509 = vmatpush1.xpose.msra.mxu0 0.0
  %6510 = vmatprep.subr.mxu0 0.0
  %6511 = vmatpush1.xpose.msra.mxu0 0.0
  %6512 = vmatprep.subr.mxu0 0.0
  %6513 = vmatpush1.xpose.msra.mxu0 0.0
  %6514 = vmatprep.mubr.f32.mxu0 0.0
  %6515 = vmatmul.mubr.f32.gmra.mrb[0].mxu0 %v6446
  %v6516 = vpop.f32.mrb[0].mxu0
  %v6517 = vadd.f32 0.0, %v6516
  %v6518 = vpop.f32.mrb[0].mxu0
  %6519 = vdwg.mxu0
  %6520 = vrot.lane.b32.xlu0 %v4038, 92
  %v6521 = vpop.permute.xlu0 %6520
  %6522 = vrot.lane.b32.xlu0 %v4038, 44
  %v6523 = vpop.permute.xlu0 %6522
  %v6524 = vsel %vm406, %v6521, 0
  %v6526 = vsel %vm406, %v6523, 0
  %6528 = vmatprep.subr.mxu0 0.0
  %6529 = vmatpush1.xpose.msra.mxu0 %v6526
  %6530 = vmatprep.subr.mxu0 0.0
  %6531 = vmatpush1.xpose.msra.mxu0 0.0
  %6532 = vmatprep.subr.mxu0 0.0
  %6533 = vmatpush1.xpose.msra.mxu0 0.0
  %6534 = vmatprep.subr.mxu0 0.0
  %6535 = vmatpush1.xpose.msra.mxu0 0.0
  %6536 = vmatprep.subr.mxu0 0.0
  %6537 = vmatpush1.xpose.msra.mxu0 0.0
  %6538 = vmatprep.subr.mxu0 0.0
  %6539 = vmatpush1.xpose.msra.mxu0 0.0
  %6540 = vmatprep.subr.mxu0 0.0
  %6541 = vmatpush1.xpose.msra.mxu0 0.0
  %6542 = vmatprep.subr.mxu0 0.0
  %6543 = vmatpush1.xpose.msra.mxu0 0.0
  %6544 = vmatprep.subr.mxu0 0.0
  %6545 = vmatpush1.xpose.msra.mxu0 0.0
  %6546 = vmatprep.subr.mxu0 0.0
  %6547 = vmatpush1.xpose.msra.mxu0 0.0
  %6548 = vmatprep.subr.mxu0 0.0
  %6549 = vmatpush1.xpose.msra.mxu0 0.0
  %6550 = vmatprep.subr.mxu0 0.0
  %6551 = vmatpush1.xpose.msra.mxu0 0.0
  %6552 = vmatprep.subr.mxu0 0.0
  %6553 = vmatpush1.xpose.msra.mxu0 0.0
  %6554 = vmatprep.subr.mxu0 0.0
  %6555 = vmatpush1.xpose.msra.mxu0 0.0
  %6556 = vmatprep.subr.mxu0 0.0
  %6557 = vmatpush1.xpose.msra.mxu0 0.0
  %6558 = vmatprep.subr.mxu0 0.0
  %6559 = vmatpush1.xpose.msra.mxu0 0.0
  %6560 = vmatprep.subr.mxu0 0.0
  %6561 = vmatpush1.xpose.msra.mxu0 0.0
  %6562 = vmatprep.subr.mxu0 0.0
  %6563 = vmatpush1.xpose.msra.mxu0 0.0
  %6564 = vmatprep.subr.mxu0 0.0
  %6565 = vmatpush1.xpose.msra.mxu0 0.0
  %6566 = vmatprep.subr.mxu0 0.0
  %6567 = vmatpush1.xpose.msra.mxu0 0.0
  %6568 = vmatprep.subr.mxu0 0.0
  %6569 = vmatpush1.xpose.msra.mxu0 0.0
  %6570 = vmatprep.subr.mxu0 0.0
  %6571 = vmatpush1.xpose.msra.mxu0 0.0
  %6572 = vmatprep.subr.mxu0 0.0
  %6573 = vmatpush1.xpose.msra.mxu0 0.0
  %6574 = vmatprep.subr.mxu0 0.0
  %6575 = vmatpush1.xpose.msra.mxu0 0.0
  %6576 = vmatprep.subr.mxu0 0.0
  %6577 = vmatpush1.xpose.msra.mxu0 0.0
  %6578 = vmatprep.subr.mxu0 0.0
  %6579 = vmatpush1.xpose.msra.mxu0 0.0
  %6580 = vmatprep.subr.mxu0 0.0
  %6581 = vmatpush1.xpose.msra.mxu0 0.0
  %6582 = vmatprep.subr.mxu0 0.0
  %6583 = vmatpush1.xpose.msra.mxu0 0.0
  %6584 = vmatprep.subr.mxu0 0.0
  %6585 = vmatpush1.xpose.msra.mxu0 0.0
  %6586 = vmatprep.subr.mxu0 0.0
  %6587 = vmatpush1.xpose.msra.mxu0 0.0
  %6588 = vmatprep.subr.mxu0 0.0
  %6589 = vmatpush1.xpose.msra.mxu0 0.0
  %6590 = vmatprep.subr.mxu0 0.0
  %6591 = vmatpush1.xpose.msra.mxu0 0.0
  %6592 = vmatprep.mubr.f32.mxu0 0.0
  %6593 = vmatmul.mubr.f32.gmra.mrb[0].mxu0 %v6524
  %v6594 = vpop.f32.mrb[0].mxu0
  %v6595 = vadd.f32 0.0, %v6594
  %v6596 = vpop.f32.mrb[0].mxu0
  %6597 = vdwg.mxu0
  %6598 = vrot.lane.b32.xlu0 %v4044, 92
  %v6599 = vpop.permute.xlu0 %6598
  %6600 = vrot.lane.b32.xlu0 %v4044, 44
  %v6601 = vpop.permute.xlu0 %6600
  %v6602 = vsel %vm406, %v6599, 0
  %v6604 = vsel %vm406, %v6601, 0
  %6606 = vmatprep.subr.mxu0 0.0
  %6607 = vmatpush1.xpose.msra.mxu0 %v6604
  %6608 = vmatprep.subr.mxu0 0.0
  %6609 = vmatpush1.xpose.msra.mxu0 0.0
  %6610 = vmatprep.subr.mxu0 0.0
  %6611 = vmatpush1.xpose.msra.mxu0 0.0
  %6612 = vmatprep.subr.mxu0 0.0
  %6613 = vmatpush1.xpose.msra.mxu0 0.0
  %6614 = vmatprep.subr.mxu0 0.0
  %6615 = vmatpush1.xpose.msra.mxu0 0.0
  %6616 = vmatprep.subr.mxu0 0.0
  %6617 = vmatpush1.xpose.msra.mxu0 0.0
  %6618 = vmatprep.subr.mxu0 0.0
  %6619 = vmatpush1.xpose.msra.mxu0 0.0
  %6620 = vmatprep.subr.mxu0 0.0
  %6621 = vmatpush1.xpose.msra.mxu0 0.0
  %6622 = vmatprep.subr.mxu0 0.0
  %6623 = vmatpush1.xpose.msra.mxu0 0.0
  %6624 = vmatprep.subr.mxu0 0.0
  %6625 = vmatpush1.xpose.msra.mxu0 0.0
  %6626 = vmatprep.subr.mxu0 0.0
  %6627 = vmatpush1.xpose.msra.mxu0 0.0
  %6628 = vmatprep.subr.mxu0 0.0
  %6629 = vmatpush1.xpose.msra.mxu0 0.0
  %6630 = vmatprep.subr.mxu0 0.0
  %6631 = vmatpush1.xpose.msra.mxu0 0.0
  %6632 = vmatprep.subr.mxu0 0.0
  %6633 = vmatpush1.xpose.msra.mxu0 0.0
  %6634 = vmatprep.subr.mxu0 0.0
  %6635 = vmatpush1.xpose.msra.mxu0 0.0
  %6636 = vmatprep.subr.mxu0 0.0
  %6637 = vmatpush1.xpose.msra.mxu0 0.0
  %6638 = vmatprep.subr.mxu0 0.0
  %6639 = vmatpush1.xpose.msra.mxu0 0.0
  %6640 = vmatprep.subr.mxu0 0.0
  %6641 = vmatpush1.xpose.msra.mxu0 0.0
  %6642 = vmatprep.subr.mxu0 0.0
  %6643 = vmatpush1.xpose.msra.mxu0 0.0
  %6644 = vmatprep.subr.mxu0 0.0
  %6645 = vmatpush1.xpose.msra.mxu0 0.0
  %6646 = vmatprep.subr.mxu0 0.0
  %6647 = vmatpush1.xpose.msra.mxu0 0.0
  %6648 = vmatprep.subr.mxu0 0.0
  %6649 = vmatpush1.xpose.msra.mxu0 0.0
  %6650 = vmatprep.subr.mxu0 0.0
  %6651 = vmatpush1.xpose.msra.mxu0 0.0
  %6652 = vmatprep.subr.mxu0 0.0
  %6653 = vmatpush1.xpose.msra.mxu0 0.0
  %6654 = vmatprep.subr.mxu0 0.0
  %6655 = vmatpush1.xpose.msra.mxu0 0.0
  %6656 = vmatprep.subr.mxu0 0.0
  %6657 = vmatpush1.xpose.msra.mxu0 0.0
  %6658 = vmatprep.subr.mxu0 0.0
  %6659 = vmatpush1.xpose.msra.mxu0 0.0
  %6660 = vmatprep.subr.mxu0 0.0
  %6661 = vmatpush1.xpose.msra.mxu0 0.0
  %6662 = vmatprep.subr.mxu0 0.0
  %6663 = vmatpush1.xpose.msra.mxu0 0.0
  %6664 = vmatprep.subr.mxu0 0.0
  %6665 = vmatpush1.xpose.msra.mxu0 0.0
  %6666 = vmatprep.subr.mxu0 0.0
  %6667 = vmatpush1.xpose.msra.mxu0 0.0
  %6668 = vmatprep.subr.mxu0 0.0
  %6669 = vmatpush1.xpose.msra.mxu0 0.0
  %6670 = vmatprep.mubr.f32.mxu0 0.0
  %6671 = vmatmul.mubr.f32.gmra.mrb[0].mxu0 %v6602
  %v6672 = vpop.f32.mrb[0].mxu0
  %v6673 = vadd.f32 0.0, %v6672
  %v6674 = vpop.f32.mrb[0].mxu0
  %6675 = vdwg.mxu0
  %v6676 = vmul.f32 %v6439, 0.28867513
  %v6677 = vmul.f32 %v6517, 0.28867513
  %v6678 = vmul.f32 %v6595, 0.28867513
  %v6679 = vmul.f32 %v6673, 0.28867513
  %v6680 = vsel %vm716, %v6676, -inf
  %6681 = vmax.xlane.f32.xlu0 %v6680
  %v6682 = vpop.xlane.xlu0 %6681
  %v6683 = vsel %vm716, %v6677, -inf
  %6684 = vmax.xlane.f32.xlu0 %v6683
  %v6685 = vpop.xlane.xlu0 %6684
  %v6686 = vsel %vm716, %v6678, -inf
  %6687 = vmax.xlane.f32.xlu0 %v6686
  %v6688 = vpop.xlane.xlu0 %6687
  %v6689 = vsel %vm716, %v6679, -inf
  %6690 = vmax.xlane.f32.xlu0 %v6689
  %v6691 = vpop.xlane.xlu0 %6690
  %v6692 = vsub.f32 %v6676, %v6682
  %v6693 = vsub.f32 %v6677, %v6685
  %v6694 = vsub.f32 %v6678, %v6688
  %v6695 = vsub.f32 %v6679, %v6691
  %v6696 = vmul.f32 %v6692, 1.442695
  %v6697 = vpow.pop %v6696
  %v6698 = vmul.f32 %v6693, 1.442695
  %v6699 = vpow.pop %v6698
  %v6700 = vmul.f32 %v6694, 1.442695
  %v6701 = vpow.pop %v6700
  %v6702 = vmul.f32 %v6695, 1.442695
  %v6703 = vpow.pop %v6702
  %v6704 = vsel %vm716, %v6697, 0.0
  %6705 = vadd.xlane.f32.xlu0 %v6704
  %v6706 = vpop.xlane.xlu0 %6705
  %v6707 = vsel %vm716, %v6699, 0.0
  %6708 = vadd.xlane.f32.xlu0 %v6707
  %v6709 = vpop.xlane.xlu0 %6708
  %v6710 = vsel %vm716, %v6701, 0.0
  %6711 = vadd.xlane.f32.xlu0 %v6710
  %v6712 = vpop.xlane.xlu0 %6711
  %v6713 = vsel %vm716, %v6703, 0.0
  %6714 = vadd.xlane.f32.xlu0 %v6713
  %v6715 = vpop.xlane.xlu0 %6714
  %v6716 = vrcp.pop %v6706
  %v6717 = vmul.f32 %v6697, %v6716
  %v6718 = vrcp.pop %v6709
  %v6719 = vmul.f32 %v6699, %v6718
  %v6720 = vrcp.pop %v6712
  %v6721 = vmul.f32 %v6701, %v6720
  %v6722 = vrcp.pop %v6715
  %v6723 = vmul.f32 %v6703, %v6722
  %6724 = vrot.lane.b32.xlu0 %v4028, 124
  %v6725 = vpop.permute.xlu0 %6724
  %v6728 = vsel %vm716, %v6717, 0
  %6730 = vmatprep.subr.mxu0 0.0
  %6731 = vmatpush1.msra.mxu0 %v6725
  %6732 = vmatprep.subr.mxu0 0.0
  %6733 = vmatpush1.msra.mxu0 0.0
  %6734 = vmatprep.subr.mxu0 0.0
  %6735 = vmatpush1.msra.mxu0 0.0
  %6736 = vmatprep.subr.mxu0 0.0
  %6737 = vmatpush1.msra.mxu0 0.0
  %6738 = vmatprep.subr.mxu0 0.0
  %6739 = vmatpush1.msra.mxu0 0.0
  %6740 = vmatprep.subr.mxu0 0.0
  %6741 = vmatpush1.msra.mxu0 0.0
  %6742 = vmatprep.subr.mxu0 0.0
  %6743 = vmatpush1.msra.mxu0 0.0
  %6744 = vmatprep.subr.mxu0 0.0
  %6745 = vmatpush1.msra.mxu0 0.0
  %6746 = vmatprep.subr.mxu0 0.0
  %6747 = vmatpush1.msra.mxu0 0.0
  %6748 = vmatprep.subr.mxu0 0.0
  %6749 = vmatpush1.msra.mxu0 0.0
  %6750 = vmatprep.subr.mxu0 0.0
  %6751 = vmatpush1.msra.mxu0 0.0
  %6752 = vmatprep.subr.mxu0 0.0
  %6753 = vmatpush1.msra.mxu0 0.0
  %6754 = vmatprep.subr.mxu0 0.0
  %6755 = vmatpush1.msra.mxu0 0.0
  %6756 = vmatprep.subr.mxu0 0.0
  %6757 = vmatpush1.msra.mxu0 0.0
  %6758 = vmatprep.subr.mxu0 0.0
  %6759 = vmatpush1.msra.mxu0 0.0
  %6760 = vmatprep.subr.mxu0 0.0
  %6761 = vmatpush1.msra.mxu0 0.0
  %6762 = vmatprep.subr.mxu0 0.0
  %6763 = vmatpush1.msra.mxu0 0.0
  %6764 = vmatprep.subr.mxu0 0.0
  %6765 = vmatpush1.msra.mxu0 0.0
  %6766 = vmatprep.subr.mxu0 0.0
  %6767 = vmatpush1.msra.mxu0 0.0
  %6768 = vmatprep.subr.mxu0 0.0
  %6769 = vmatpush1.msra.mxu0 0.0
  %6770 = vmatprep.subr.mxu0 0.0
  %6771 = vmatpush1.msra.mxu0 0.0
  %6772 = vmatprep.subr.mxu0 0.0
  %6773 = vmatpush1.msra.mxu0 0.0
  %6774 = vmatprep.subr.mxu0 0.0
  %6775 = vmatpush1.msra.mxu0 0.0
  %6776 = vmatprep.subr.mxu0 0.0
  %6777 = vmatpush1.msra.mxu0 0.0
  %6778 = vmatprep.subr.mxu0 0.0
  %6779 = vmatpush1.msra.mxu0 0.0
  %6780 = vmatprep.subr.mxu0 0.0
  %6781 = vmatpush1.msra.mxu0 0.0
  %6782 = vmatprep.subr.mxu0 0.0
  %6783 = vmatpush1.msra.mxu0 0.0
  %6784 = vmatprep.subr.mxu0 0.0
  %6785 = vmatpush1.msra.mxu0 0.0
  %6786 = vmatprep.subr.mxu0 0.0
  %6787 = vmatpush1.msra.mxu0 0.0
  %6788 = vmatprep.subr.mxu0 0.0
  %6789 = vmatpush1.msra.mxu0 0.0
  %6790 = vmatprep.subr.mxu0 0.0
  %6791 = vmatpush1.msra.mxu0 0.0
  %6792 = vmatprep.subr.mxu0 0.0
  %6793 = vmatpush1.msra.mxu0 0.0
  %6794 = vmatprep.mubr.f32.mxu0 0.0
  %6795 = vmatmul.mubr.f32.gmra.mrb[0].mxu0 %v6728
  %v6796 = vpop.f32.mrb[0].mxu0
  %v6797 = vadd.f32 0.0, %v6796
  %v6798 = vpop.f32.mrb[0].mxu0
  %6799 = vdwg.mxu0
  %6800 = vrot.lane.b32.xlu0 %v4034, 124
  %v6801 = vpop.permute.xlu0 %6800
  %v6804 = vsel %vm716, %v6719, 0
  %6806 = vmatprep.subr.mxu0 0.0
  %6807 = vmatpush1.msra.mxu0 %v6801
  %6808 = vmatprep.subr.mxu0 0.0
  %6809 = vmatpush1.msra.mxu0 0.0
  %6810 = vmatprep.subr.mxu0 0.0
  %6811 = vmatpush1.msra.mxu0 0.0
  %6812 = vmatprep.subr.mxu0 0.0
  %6813 = vmatpush1.msra.mxu0 0.0
  %6814 = vmatprep.subr.mxu0 0.0
  %6815 = vmatpush1.msra.mxu0 0.0
  %6816 = vmatprep.subr.mxu0 0.0
  %6817 = vmatpush1.msra.mxu0 0.0
  %6818 = vmatprep.subr.mxu0 0.0
  %6819 = vmatpush1.msra.mxu0 0.0
  %6820 = vmatprep.subr.mxu0 0.0
  %6821 = vmatpush1.msra.mxu0 0.0
  %6822 = vmatprep.subr.mxu0 0.0
  %6823 = vmatpush1.msra.mxu0 0.0
  %6824 = vmatprep.subr.mxu0 0.0
  %6825 = vmatpush1.msra.mxu0 0.0
  %6826 = vmatprep.subr.mxu0 0.0
  %6827 = vmatpush1.msra.mxu0 0.0
  %6828 = vmatprep.subr.mxu0 0.0
  %6829 = vmatpush1.msra.mxu0 0.0
  %6830 = vmatprep.subr.mxu0 0.0
  %6831 = vmatpush1.msra.mxu0 0.0
  %6832 = vmatprep.subr.mxu0 0.0
  %6833 = vmatpush1.msra.mxu0 0.0
  %6834 = vmatprep.subr.mxu0 0.0
  %6835 = vmatpush1.msra.mxu0 0.0
  %6836 = vmatprep.subr.mxu0 0.0
  %6837 = vmatpush1.msra.mxu0 0.0
  %6838 = vmatprep.subr.mxu0 0.0
  %6839 = vmatpush1.msra.mxu0 0.0
  %6840 = vmatprep.subr.mxu0 0.0
  %6841 = vmatpush1.msra.mxu0 0.0
  %6842 = vmatprep.subr.mxu0 0.0
  %6843 = vmatpush1.msra.mxu0 0.0
  %6844 = vmatprep.subr.mxu0 0.0
  %6845 = vmatpush1.msra.mxu0 0.0
  %6846 = vmatprep.subr.mxu0 0.0
  %6847 = vmatpush1.msra.mxu0 0.0
  %6848 = vmatprep.subr.mxu0 0.0
  %6849 = vmatpush1.msra.mxu0 0.0
  %6850 = vmatprep.subr.mxu0 0.0
  %6851 = vmatpush1.msra.mxu0 0.0
  %6852 = vmatprep.subr.mxu0 0.0
  %6853 = vmatpush1.msra.mxu0 0.0
  %6854 = vmatprep.subr.mxu0 0.0
  %6855 = vmatpush1.msra.mxu0 0.0
  %6856 = vmatprep.subr.mxu0 0.0
  %6857 = vmatpush1.msra.mxu0 0.0
  %6858 = vmatprep.subr.mxu0 0.0
  %6859 = vmatpush1.msra.mxu0 0.0
  %6860 = vmatprep.subr.mxu0 0.0
  %6861 = vmatpush1.msra.mxu0 0.0
  %6862 = vmatprep.subr.mxu0 0.0
  %6863 = vmatpush1.msra.mxu0 0.0
  %6864 = vmatprep.subr.mxu0 0.0
  %6865 = vmatpush1.msra.mxu0 0.0
  %6866 = vmatprep.subr.mxu0 0.0
  %6867 = vmatpush1.msra.mxu0 0.0
  %6868 = vmatprep.subr.mxu0 0.0
  %6869 = vmatpush1.msra.mxu0 0.0
  %6870 = vmatprep.mubr.f32.mxu0 0.0
  %6871 = vmatmul.mubr.f32.gmra.mrb[0].mxu0 %v6804
  %v6872 = vpop.f32.mrb[0].mxu0
  %v6873 = vadd.f32 0.0, %v6872
  %v6874 = vpop.f32.mrb[0].mxu0
  %6875 = vdwg.mxu0
  %6876 = vrot.lane.b32.xlu0 %v4040, 124
  %v6877 = vpop.permute.xlu0 %6876
  %v6880 = vsel %vm716, %v6721, 0
  %6882 = vmatprep.subr.mxu0 0.0
  %6883 = vmatpush1.msra.mxu0 %v6877
  %6884 = vmatprep.subr.mxu0 0.0
  %6885 = vmatpush1.msra.mxu0 0.0
  %6886 = vmatprep.subr.mxu0 0.0
  %6887 = vmatpush1.msra.mxu0 0.0
  %6888 = vmatprep.subr.mxu0 0.0
  %6889 = vmatpush1.msra.mxu0 0.0
  %6890 = vmatprep.subr.mxu0 0.0
  %6891 = vmatpush1.msra.mxu0 0.0
  %6892 = vmatprep.subr.mxu0 0.0
  %6893 = vmatpush1.msra.mxu0 0.0
  %6894 = vmatprep.subr.mxu0 0.0
  %6895 = vmatpush1.msra.mxu0 0.0
  %6896 = vmatprep.subr.mxu0 0.0
  %6897 = vmatpush1.msra.mxu0 0.0
  %6898 = vmatprep.subr.mxu0 0.0
  %6899 = vmatpush1.msra.mxu0 0.0
  %6900 = vmatprep.subr.mxu0 0.0
  %6901 = vmatpush1.msra.mxu0 0.0
  %6902 = vmatprep.subr.mxu0 0.0
  %6903 = vmatpush1.msra.mxu0 0.0
  %6904 = vmatprep.subr.mxu0 0.0
  %6905 = vmatpush1.msra.mxu0 0.0
  %6906 = vmatprep.subr.mxu0 0.0
  %6907 = vmatpush1.msra.mxu0 0.0
  %6908 = vmatprep.subr.mxu0 0.0
  %6909 = vmatpush1.msra.mxu0 0.0
  %6910 = vmatprep.subr.mxu0 0.0
  %6911 = vmatpush1.msra.mxu0 0.0
  %6912 = vmatprep.subr.mxu0 0.0
  %6913 = vmatpush1.msra.mxu0 0.0
  %6914 = vmatprep.subr.mxu0 0.0
  %6915 = vmatpush1.msra.mxu0 0.0
  %6916 = vmatprep.subr.mxu0 0.0
  %6917 = vmatpush1.msra.mxu0 0.0
  %6918 = vmatprep.subr.mxu0 0.0
  %6919 = vmatpush1.msra.mxu0 0.0
  %6920 = vmatprep.subr.mxu0 0.0
  %6921 = vmatpush1.msra.mxu0 0.0
  %6922 = vmatprep.subr.mxu0 0.0
  %6923 = vmatpush1.msra.mxu0 0.0
  %6924 = vmatprep.subr.mxu0 0.0
  %6925 = vmatpush1.msra.mxu0 0.0
  %6926 = vmatprep.subr.mxu0 0.0
  %6927 = vmatpush1.msra.mxu0 0.0
  %6928 = vmatprep.subr.mxu0 0.0
  %6929 = vmatpush1.msra.mxu0 0.0
  %6930 = vmatprep.subr.mxu0 0.0
  %6931 = vmatpush1.msra.mxu0 0.0
  %6932 = vmatprep.subr.mxu0 0.0
  %6933 = vmatpush1.msra.mxu0 0.0
  %6934 = vmatprep.subr.mxu0 0.0
  %6935 = vmatpush1.msra.mxu0 0.0
  %6936 = vmatprep.subr.mxu0 0.0
  %6937 = vmatpush1.msra.mxu0 0.0
  %6938 = vmatprep.subr.mxu0 0.0
  %6939 = vmatpush1.msra.mxu0 0.0
  %6940 = vmatprep.subr.mxu0 0.0
  %6941 = vmatpush1.msra.mxu0 0.0
  %6942 = vmatprep.subr.mxu0 0.0
  %6943 = vmatpush1.msra.mxu0 0.0
  %6944 = vmatprep.subr.mxu0 0.0
  %6945 = vmatpush1.msra.mxu0 0.0
  %6946 = vmatprep.mubr.f32.mxu0 0.0
  %6947 = vmatmul.mubr.f32.gmra.mrb[0].mxu0 %v6880
  %v6948 = vpop.f32.mrb[0].mxu0
  %v6949 = vadd.f32 0.0, %v6948
  %v6950 = vpop.f32.mrb[0].mxu0
  %6951 = vdwg.mxu0
  %6952 = vrot.lane.b32.xlu0 %v4046, 124
  %v6953 = vpop.permute.xlu0 %6952
  %v6956 = vsel %vm716, %v6723, 0
  %6958 = vmatprep.subr.mxu0 0.0
  %6959 = vmatpush1.msra.mxu0 %v6953
  %6960 = vmatprep.subr.mxu0 0.0
  %6961 = vmatpush1.msra.mxu0 0.0
  %6962 = vmatprep.subr.mxu0 0.0
  %6963 = vmatpush1.msra.mxu0 0.0
  %6964 = vmatprep.subr.mxu0 0.0
  %6965 = vmatpush1.msra.mxu0 0.0
  %6966 = vmatprep.subr.mxu0 0.0
  %6967 = vmatpush1.msra.mxu0 0.0
  %6968 = vmatprep.subr.mxu0 0.0
  %6969 = vmatpush1.msra.mxu0 0.0
  %6970 = vmatprep.subr.mxu0 0.0
  %6971 = vmatpush1.msra.mxu0 0.0
  %6972 = vmatprep.subr.mxu0 0.0
  %6973 = vmatpush1.msra.mxu0 0.0
  %6974 = vmatprep.subr.mxu0 0.0
  %6975 = vmatpush1.msra.mxu0 0.0
  %6976 = vmatprep.subr.mxu0 0.0
  %6977 = vmatpush1.msra.mxu0 0.0
  %6978 = vmatprep.subr.mxu0 0.0
  %6979 = vmatpush1.msra.mxu0 0.0
  %6980 = vmatprep.subr.mxu0 0.0
  %6981 = vmatpush1.msra.mxu0 0.0
  %6982 = vmatprep.subr.mxu0 0.0
  %6983 = vmatpush1.msra.mxu0 0.0
  %6984 = vmatprep.subr.mxu0 0.0
  %6985 = vmatpush1.msra.mxu0 0.0
  %6986 = vmatprep.subr.mxu0 0.0
  %6987 = vmatpush1.msra.mxu0 0.0
  %6988 = vmatprep.subr.mxu0 0.0
  %6989 = vmatpush1.msra.mxu0 0.0
  %6990 = vmatprep.subr.mxu0 0.0
  %6991 = vmatpush1.msra.mxu0 0.0
  %6992 = vmatprep.subr.mxu0 0.0
  %6993 = vmatpush1.msra.mxu0 0.0
  %6994 = vmatprep.subr.mxu0 0.0
  %6995 = vmatpush1.msra.mxu0 0.0
  %6996 = vmatprep.subr.mxu0 0.0
  %6997 = vmatpush1.msra.mxu0 0.0
  %6998 = vmatprep.subr.mxu0 0.0
  %6999 = vmatpush1.msra.mxu0 0.0
  %7000 = vmatprep.subr.mxu0 0.0
  %7001 = vmatpush1.msra.mxu0 0.0
  %7002 = vmatprep.subr.mxu0 0.0
  %7003 = vmatpush1.msra.mxu0 0.0
  %7004 = vmatprep.subr.mxu0 0.0
  %7005 = vmatpush1.msra.mxu0 0.0
  %7006 = vmatprep.subr.mxu0 0.0
  %7007 = vmatpush1.msra.mxu0 0.0
  %7008 = vmatprep.subr.mxu0 0.0
  %7009 = vmatpush1.msra.mxu0 0.0
  %7010 = vmatprep.subr.mxu0 0.0
  %7011 = vmatpush1.msra.mxu0 0.0
  %7012 = vmatprep.subr.mxu0 0.0
  %7013 = vmatpush1.msra.mxu0 0.0
  %7014 = vmatprep.subr.mxu0 0.0
  %7015 = vmatpush1.msra.mxu0 0.0
  %7016 = vmatprep.subr.mxu0 0.0
  %7017 = vmatpush1.msra.mxu0 0.0
  %7018 = vmatprep.subr.mxu0 0.0
  %7019 = vmatpush1.msra.mxu0 0.0
  %7020 = vmatprep.subr.mxu0 0.0
  %7021 = vmatpush1.msra.mxu0 0.0
  %7022 = vmatprep.mubr.f32.mxu0 0.0
  %7023 = vmatmul.mubr.f32.gmra.mrb[0].mxu0 %v6956
  %v7024 = vpop.f32.mrb[0].mxu0
  %v7025 = vadd.f32 0.0, %v7024
  %v7026 = vpop.f32.mrb[0].mxu0
  %7027 = vdwg.mxu0
  %s7028 = scalar_lea.vmem %s47, 48
  %v7029 = vld [vmem:[%s7028] sm:$0xff]
  %v7030 = vld [vmem:[%s7028 + $0x8] sm:$0xf]
  %v7032 = vsel %vm406, %v6797, 0
  %v7035 = vsel %vm406, %v6873, 0
  %v7038 = vsel %vm406, %v6949, 0
  %v7041 = vsel %vm406, %v7025, 0
  %v7044 = vsel %vm1746, %v7030, 0
  %7046 = vmatprep.subr.mxu0 0.0
  %7047 = vmatpush1.msra.mxu0 %v7029
  %7048 = vmatprep.subr.mxu0 0.0
  %7049 = vmatpush1.msra.mxu0 %v7044
  %7050 = vmatprep.subr.mxu0 0.0
  %7051 = vmatpush1.msra.mxu0 0.0
  %7052 = vmatprep.subr.mxu0 0.0
  %7053 = vmatpush1.msra.mxu0 0.0
  %7054 = vmatprep.subr.mxu0 0.0
  %7055 = vmatpush1.msra.mxu0 0.0
  %7056 = vmatprep.subr.mxu0 0.0
  %7057 = vmatpush1.msra.mxu0 0.0
  %7058 = vmatprep.subr.mxu0 0.0
  %7059 = vmatpush1.msra.mxu0 0.0
  %7060 = vmatprep.subr.mxu0 0.0
  %7061 = vmatpush1.msra.mxu0 0.0
  %7062 = vmatprep.subr.mxu0 0.0
  %7063 = vmatpush1.msra.mxu0 0.0
  %7064 = vmatprep.subr.mxu0 0.0
  %7065 = vmatpush1.msra.mxu0 0.0
  %7066 = vmatprep.subr.mxu0 0.0
  %7067 = vmatpush1.msra.mxu0 0.0
  %7068 = vmatprep.subr.mxu0 0.0
  %7069 = vmatpush1.msra.mxu0 0.0
  %7070 = vmatprep.subr.mxu0 0.0
  %7071 = vmatpush1.msra.mxu0 0.0
  %7072 = vmatprep.subr.mxu0 0.0
  %7073 = vmatpush1.msra.mxu0 0.0
  %7074 = vmatprep.subr.mxu0 0.0
  %7075 = vmatpush1.msra.mxu0 0.0
  %7076 = vmatprep.subr.mxu0 0.0
  %7077 = vmatpush1.msra.mxu0 0.0
  %7078 = vmatprep.subr.mxu0 0.0
  %7079 = vmatpush1.msra.mxu0 0.0
  %7080 = vmatprep.subr.mxu0 0.0
  %7081 = vmatpush1.msra.mxu0 0.0
  %7082 = vmatprep.subr.mxu0 0.0
  %7083 = vmatpush1.msra.mxu0 0.0
  %7084 = vmatprep.subr.mxu0 0.0
  %7085 = vmatpush1.msra.mxu0 0.0
  %7086 = vmatprep.subr.mxu0 0.0
  %7087 = vmatpush1.msra.mxu0 0.0
  %7088 = vmatprep.subr.mxu0 0.0
  %7089 = vmatpush1.msra.mxu0 0.0
  %7090 = vmatprep.subr.mxu0 0.0
  %7091 = vmatpush1.msra.mxu0 0.0
  %7092 = vmatprep.subr.mxu0 0.0
  %7093 = vmatpush1.msra.mxu0 0.0
  %7094 = vmatprep.subr.mxu0 0.0
  %7095 = vmatpush1.msra.mxu0 0.0
  %7096 = vmatprep.subr.mxu0 0.0
  %7097 = vmatpush1.msra.mxu0 0.0
  %7098 = vmatprep.subr.mxu0 0.0
  %7099 = vmatpush1.msra.mxu0 0.0
  %7100 = vmatprep.subr.mxu0 0.0
  %7101 = vmatpush1.msra.mxu0 0.0
  %7102 = vmatprep.subr.mxu0 0.0
  %7103 = vmatpush1.msra.mxu0 0.0
  %7104 = vmatprep.subr.mxu0 0.0
  %7105 = vmatpush1.msra.mxu0 0.0
  %7106 = vmatprep.subr.mxu0 0.0
  %7107 = vmatpush1.msra.mxu0 0.0
  %7108 = vmatprep.subr.mxu0 0.0
  %7109 = vmatpush1.msra.mxu0 0.0
  %7110 = vmatprep.mubr.f32.mxu0 0.0
  %7111 = vmatmul.mubr.f32.gmra.mrb[0].mxu0 %v7032
  %v7112 = vpop.f32.mrb[0].mxu0
  %v7113 = vadd.f32 0.0, %v7112
  %v7114 = vpop.f32.mrb[0].mxu0
  %7115 = vmatprep.mubr.f32.mxu0 0.0
  %7116 = vmatmul.mubr.f32.gmra.mrb[0].mxu0 %v7035
  %v7117 = vpop.f32.mrb[0].mxu0
  %v7118 = vadd.f32 0.0, %v7117
  %v7119 = vpop.f32.mrb[0].mxu0
  %7120 = vmatprep.mubr.f32.mxu0 0.0
  %7121 = vmatmul.mubr.f32.gmra.mrb[0].mxu0 %v7038
  %v7122 = vpop.f32.mrb[0].mxu0
  %v7123 = vadd.f32 0.0, %v7122
  %v7124 = vpop.f32.mrb[0].mxu0
  %7125 = vmatprep.mubr.f32.mxu0 0.0
  %7126 = vmatmul.mubr.f32.gmra.mrb[0].mxu0 %v7041
  %v7127 = vpop.f32.mrb[0].mxu0
  %v7128 = vadd.f32 0.0, %v7127
  %v7129 = vpop.f32.mrb[0].mxu0
  %7130 = vdwg.mxu0
  %v7131 = vadd.f32 %v6360, %v7113
  %v7132 = vadd.f32 %v6361, %v7118
  %v7133 = vadd.f32 %v6362, %v7123
  %v7134 = vadd.f32 %v6363, %v7128
  %v7135 = vadd.f32 %v3845, %v7131
  %v7136 = vadd.f32 %v3846, %v7132
  %v7137 = vadd.f32 %v3847, %v7133
  %v7138 = vadd.f32 %v3848, %v7134
  %v7139 = vld [vmem:[%s49] sm:$0x1]
  %v7141 = vlaneseq
  %v7142 = vshrl.u32 %v7141, 7
  %v7143 = vsub.s32 0, %v7142
  %v7144 = vrot.slane %v7139, %v7143
  %v7146 = vadd.f32 %v7135, %v7144
  %v7147 = vadd.f32 %v7136, %v7144
  %v7148 = vadd.f32 %v7137, %v7144
  %v7149 = vadd.f32 %v7138, %v7144
  %v7150 = vld [vmem:[%s51] sm:$0x1]
  %v7151 = vld [vmem:[%s53] sm:$0x1]
  %v7152 = vsel %vm156, %v7146, 0.0
  %7153 = vadd.xlane.f32.xlu0 %v7152
  %v7154 = vpop.xlane.xlu0 %7153
  %v7155 = vsel %vm156, %v7147, 0.0
  %7156 = vadd.xlane.f32.xlu0 %v7155
  %v7157 = vpop.xlane.xlu0 %7156
  %v7158 = vsel %vm156, %v7148, 0.0
  %7159 = vadd.xlane.f32.xlu0 %v7158
  %v7160 = vpop.xlane.xlu0 %7159
  %v7161 = vsel %vm156, %v7149, 0.0
  %7162 = vadd.xlane.f32.xlu0 %v7161
  %v7163 = vpop.xlane.xlu0 %7162
  %v7164 = vmul.f32 %v7154, %v163
  %v7165 = vmul.f32 %v7157, %v163
  %v7166 = vmul.f32 %v7160, %v163
  %v7167 = vmul.f32 %v7163, %v163
  %v7168 = vsub.f32 %v7146, %v7164
  %v7169 = vsub.f32 %v7147, %v7165
  %v7170 = vsub.f32 %v7148, %v7166
  %v7171 = vsub.f32 %v7149, %v7167
  %v7172 = vmul.f32 %v7168, %v7168
  %v7173 = vmul.f32 %v7169, %v7169
  %v7174 = vmul.f32 %v7170, %v7170
  %v7175 = vmul.f32 %v7171, %v7171
  %v7176 = vsel %vm156, %v7172, 0.0
  %7177 = vadd.xlane.f32.xlu0 %v7176
  %v7178 = vpop.xlane.xlu0 %7177
  %v7179 = vsel %vm156, %v7173, 0.0
  %7180 = vadd.xlane.f32.xlu0 %v7179
  %v7181 = vpop.xlane.xlu0 %7180
  %v7182 = vsel %vm156, %v7174, 0.0
  %7183 = vadd.xlane.f32.xlu0 %v7182
  %v7184 = vpop.xlane.xlu0 %7183
  %v7185 = vsel %vm156, %v7175, 0.0
  %7186 = vadd.xlane.f32.xlu0 %v7185
  %v7187 = vpop.xlane.xlu0 %7186
  %v7188 = vmul.f32 %v7178, %v163
  %v7189 = vmul.f32 %v7181, %v163
  %v7190 = vmul.f32 %v7184, %v163
  %v7191 = vmul.f32 %v7187, %v163
  %v7192 = vadd.f32 %v7188, 1e-05
  %v7193 = vadd.f32 %v7189, 1e-05
  %v7194 = vadd.f32 %v7190, 1e-05
  %v7195 = vadd.f32 %v7191, 1e-05
  %v7196 = vrsqrt.pop %v7192
  %v7197 = vrsqrt.pop %v7193
  %v7198 = vrsqrt.pop %v7194
  %v7199 = vrsqrt.pop %v7195
  %v7200 = vmul.f32 %v7168, %v7196
  %v7201 = vmul.f32 %v7169, %v7197
  %v7202 = vmul.f32 %v7170, %v7198
  %v7203 = vmul.f32 %v7171, %v7199
  %v7205 = vlaneseq
  %v7206 = vshrl.u32 %v7205, 7
  %v7207 = vsub.s32 0, %v7206
  %v7208 = vrot.slane %v7150, %v7207
  %v7210 = vmul.f32 %v7200, %v7208
  %v7211 = vmul.f32 %v7201, %v7208
  %v7212 = vmul.f32 %v7202, %v7208
  %v7213 = vmul.f32 %v7203, %v7208
  %v7215 = vlaneseq
  %v7216 = vshrl.u32 %v7215, 7
  %v7217 = vsub.s32 0, %v7216
  %v7218 = vrot.slane %v7151, %v7217
  %v7220 = vadd.f32 %v7210, %v7218
  %v7221 = vadd.f32 %v7211, %v7218
  %v7222 = vadd.f32 %v7212, %v7218
  %v7223 = vadd.f32 %v7213, %v7218
  %v7224 = vld [vmem:[%s55] sm:$0xff]
  %v7225 = vld [vmem:[%s55 + $0x8] sm:$0xff]
  %v7226 = vld [vmem:[%s55 + $0x10] sm:$0xff]
  %v7227 = vld [vmem:[%s55 + $0x18] sm:$0xff]
  %v7228 = vld [vmem:[%s55 + $0x20] sm:$0xff]
  %v7229 = vld [vmem:[%s55 + $0x28] sm:$0xff]
  %v7230 = vld [vmem:[%s57] sm:$0x1]
  %v7232 = vlaneseq
  %v7233 = vshrl.u32 %v7232, 7
  %v7234 = vsub.s32 0, %v7233
  %v7235 = vrot.slane %v7230, %v7234
  %v7238 = vsel %vm156, %v7220, 0
  %v7241 = vsel %vm156, %v7221, 0
  %v7244 = vsel %vm156, %v7222, 0
  %v7247 = vsel %vm156, %v7223, 0
  %7249 = vmatprep.subr.mxu0 0.0
  %7250 = vmatpush1.msra.mxu0 %v7224
  %7251 = vmatprep.subr.mxu0 0.0
  %7252 = vmatpush1.msra.mxu0 %v7225
  %7253 = vmatprep.subr.mxu0 0.0
  %7254 = vmatpush1.msra.mxu0 %v7226
  %7255 = vmatprep.subr.mxu0 0.0
  %7256 = vmatpush1.msra.mxu0 %v7227
  %7257 = vmatprep.subr.mxu0 0.0
  %7258 = vmatpush1.msra.mxu0 %v7228
  %7259 = vmatprep.subr.mxu0 0.0
  %7260 = vmatpush1.msra.mxu0 %v7229
  %7261 = vmatprep.subr.mxu0 0.0
  %7262 = vmatpush1.msra.mxu0 0.0
  %7263 = vmatprep.subr.mxu0 0.0
  %7264 = vmatpush1.msra.mxu0 0.0
  %7265 = vmatprep.subr.mxu0 0.0
  %7266 = vmatpush1.msra.mxu0 0.0
  %7267 = vmatprep.subr.mxu0 0.0
  %7268 = vmatpush1.msra.mxu0 0.0
  %7269 = vmatprep.subr.mxu0 0.0
  %7270 = vmatpush1.msra.mxu0 0.0
  %7271 = vmatprep.subr.mxu0 0.0
  %7272 = vmatpush1.msra.mxu0 0.0
  %7273 = vmatprep.subr.mxu0 0.0
  %7274 = vmatpush1.msra.mxu0 0.0
  %7275 = vmatprep.subr.mxu0 0.0
  %7276 = vmatpush1.msra.mxu0 0.0
  %7277 = vmatprep.subr.mxu0 0.0
  %7278 = vmatpush1.msra.mxu0 0.0
  %7279 = vmatprep.subr.mxu0 0.0
  %7280 = vmatpush1.msra.mxu0 0.0
  %7281 = vmatprep.subr.mxu0 0.0
  %7282 = vmatpush1.msra.mxu0 0.0
  %7283 = vmatprep.subr.mxu0 0.0
  %7284 = vmatpush1.msra.mxu0 0.0
  %7285 = vmatprep.subr.mxu0 0.0
  %7286 = vmatpush1.msra.mxu0 0.0
  %7287 = vmatprep.subr.mxu0 0.0
  %7288 = vmatpush1.msra.mxu0 0.0
  %7289 = vmatprep.subr.mxu0 0.0
  %7290 = vmatpush1.msra.mxu0 0.0
  %7291 = vmatprep.subr.mxu0 0.0
  %7292 = vmatpush1.msra.mxu0 0.0
  %7293 = vmatprep.subr.mxu0 0.0
  %7294 = vmatpush1.msra.mxu0 0.0
  %7295 = vmatprep.subr.mxu0 0.0
  %7296 = vmatpush1.msra.mxu0 0.0
  %7297 = vmatprep.subr.mxu0 0.0
  %7298 = vmatpush1.msra.mxu0 0.0
  %7299 = vmatprep.subr.mxu0 0.0
  %7300 = vmatpush1.msra.mxu0 0.0
  %7301 = vmatprep.subr.mxu0 0.0
  %7302 = vmatpush1.msra.mxu0 0.0
  %7303 = vmatprep.subr.mxu0 0.0
  %7304 = vmatpush1.msra.mxu0 0.0
  %7305 = vmatprep.subr.mxu0 0.0
  %7306 = vmatpush1.msra.mxu0 0.0
  %7307 = vmatprep.subr.mxu0 0.0
  %7308 = vmatpush1.msra.mxu0 0.0
  %7309 = vmatprep.subr.mxu0 0.0
  %7310 = vmatpush1.msra.mxu0 0.0
  %7311 = vmatprep.subr.mxu0 0.0
  %7312 = vmatpush1.msra.mxu0 0.0
  %7313 = vmatprep.mubr.f32.mxu0 0.0
  %7314 = vmatmul.mubr.f32.gmra.mrb[0].mxu0 %v7238
  %v7315 = vpop.f32.mrb[0].mxu0
  %v7316 = vadd.f32 %v7235, %v7315
  %v7317 = vpop.f32.mrb[0].mxu0
  %7318 = vmatprep.mubr.f32.mxu0 0.0
  %7319 = vmatmul.mubr.f32.gmra.mrb[0].mxu0 %v7241
  %v7320 = vpop.f32.mrb[0].mxu0
  %v7321 = vadd.f32 %v7235, %v7320
  %v7322 = vpop.f32.mrb[0].mxu0
  %7323 = vmatprep.mubr.f32.mxu0 0.0
  %7324 = vmatmul.mubr.f32.gmra.mrb[0].mxu0 %v7244
  %v7325 = vpop.f32.mrb[0].mxu0
  %v7326 = vadd.f32 %v7235, %v7325
  %v7327 = vpop.f32.mrb[0].mxu0
  %7328 = vmatprep.mubr.f32.mxu0 0.0
  %7329 = vmatmul.mubr.f32.gmra.mrb[0].mxu0 %v7247
  %v7330 = vpop.f32.mrb[0].mxu0
  %v7331 = vadd.f32 %v7235, %v7330
  %v7332 = vpop.f32.mrb[0].mxu0
  %7333 = vdwg.mxu0
  %v7334 = vmul.f32 %v7316, %v7316
  %v7335 = vmul.f32 %v7321, %v7321
  %v7336 = vmul.f32 %v7326, %v7326
  %v7337 = vmul.f32 %v7331, %v7331
  %v7338 = vmul.f32 %v7316, %v7334
  %v7339 = vmul.f32 %v7321, %v7335
  %v7340 = vmul.f32 %v7326, %v7336
  %v7341 = vmul.f32 %v7331, %v7337
  %v7342 = vmul.f32 %v7338, 0.044715
  %v7343 = vmul.f32 %v7339, 0.044715
  %v7344 = vmul.f32 %v7340, 0.044715
  %v7345 = vmul.f32 %v7341, 0.044715
  %v7346 = vadd.f32 %v7316, %v7342
  %v7347 = vadd.f32 %v7321, %v7343
  %v7348 = vadd.f32 %v7326, %v7344
  %v7349 = vadd.f32 %v7331, %v7345
  %v7350 = vmul.f32 %v7346, 0.7978846
  %v7351 = vmul.f32 %v7347, 0.7978846
  %v7352 = vmul.f32 %v7348, 0.7978846
  %v7353 = vmul.f32 %v7349, 0.7978846
  %v7354 = vtanh.pop %v7350
  %v7355 = vtanh.pop %v7351
  %v7356 = vtanh.pop %v7352
  %v7357 = vtanh.pop %v7353
  %v7358 = vadd.f32 %v7354, 1.0
  %v7359 = vadd.f32 %v7355, 1.0
  %v7360 = vadd.f32 %v7356, 1.0
  %v7361 = vadd.f32 %v7357, 1.0
  %v7362 = vmul.f32 %v7358, 0.5
  %v7363 = vmul.f32 %v7359, 0.5
  %v7364 = vmul.f32 %v7360, 0.5
  %v7365 = vmul.f32 %v7361, 0.5
  %v7366 = vmul.f32 %v7316, %v7362
  %v7367 = vmul.f32 %v7321, %v7363
  %v7368 = vmul.f32 %v7326, %v7364
  %v7369 = vmul.f32 %v7331, %v7365
  %v7370 = vld [vmem:[%s59] sm:$0xff]
  %v7371 = vld [vmem:[%s59 + $0x8] sm:$0xff]
  %v7372 = vld [vmem:[%s59 + $0x10] sm:$0xff]
  %v7373 = vld [vmem:[%s59 + $0x18] sm:$0xff]
  %v7374 = vld [vmem:[%s59 + $0x20] sm:$0xff]
  %v7375 = vld [vmem:[%s59 + $0x28] sm:$0xff]
  %v7376 = vld [vmem:[%s59 + $0x30] sm:$0xff]
  %v7377 = vld [vmem:[%s59 + $0x38] sm:$0xff]
  %v7378 = vld [vmem:[%s59 + $0x40] sm:$0xff]
  %v7379 = vld [vmem:[%s59 + $0x48] sm:$0xff]
  %v7380 = vld [vmem:[%s59 + $0x50] sm:$0xff]
  %v7381 = vld [vmem:[%s59 + $0x58] sm:$0xff]
  %v7382 = vld [vmem:[%s61] sm:$0x1]
  %v7384 = vlaneseq
  %v7385 = vshrl.u32 %v7384, 7
  %v7386 = vsub.s32 0, %v7385
  %v7387 = vrot.slane %v7382, %v7386
  %v7390 = vsel %vm3747, %v7366, 0
  %v7393 = vsel %vm3747, %v7367, 0
  %v7396 = vsel %vm3747, %v7368, 0
  %v7399 = vsel %vm3747, %v7369, 0
  %7401 = vmatprep.subr.mxu0 0.0
  %7402 = vmatpush1.msra.mxu0 %v7370
  %7403 = vmatprep.subr.mxu0 0.0
  %7404 = vmatpush1.msra.mxu0 %v7371
  %7405 = vmatprep.subr.mxu0 0.0
  %7406 = vmatpush1.msra.mxu0 %v7372
  %7407 = vmatprep.subr.mxu0 0.0
  %7408 = vmatpush1.msra.mxu0 %v7373
  %7409 = vmatprep.subr.mxu0 0.0
  %7410 = vmatpush1.msra.mxu0 %v7374
  %7411 = vmatprep.subr.mxu0 0.0
  %7412 = vmatpush1.msra.mxu0 %v7375
  %7413 = vmatprep.subr.mxu0 0.0
  %7414 = vmatpush1.msra.mxu0 %v7376
  %7415 = vmatprep.subr.mxu0 0.0
  %7416 = vmatpush1.msra.mxu0 %v7377
  %7417 = vmatprep.subr.mxu0 0.0
  %7418 = vmatpush1.msra.mxu0 %v7378
  %7419 = vmatprep.subr.mxu0 0.0
  %7420 = vmatpush1.msra.mxu0 %v7379
  %7421 = vmatprep.subr.mxu0 0.0
  %7422 = vmatpush1.msra.mxu0 %v7380
  %7423 = vmatprep.subr.mxu0 0.0
  %7424 = vmatpush1.msra.mxu0 %v7381
  %7425 = vmatprep.subr.mxu0 0.0
  %7426 = vmatpush1.msra.mxu0 0.0
  %7427 = vmatprep.subr.mxu0 0.0
  %7428 = vmatpush1.msra.mxu0 0.0
  %7429 = vmatprep.subr.mxu0 0.0
  %7430 = vmatpush1.msra.mxu0 0.0
  %7431 = vmatprep.subr.mxu0 0.0
  %7432 = vmatpush1.msra.mxu0 0.0
  %7433 = vmatprep.subr.mxu0 0.0
  %7434 = vmatpush1.msra.mxu0 0.0
  %7435 = vmatprep.subr.mxu0 0.0
  %7436 = vmatpush1.msra.mxu0 0.0
  %7437 = vmatprep.subr.mxu0 0.0
  %7438 = vmatpush1.msra.mxu0 0.0
  %7439 = vmatprep.subr.mxu0 0.0
  %7440 = vmatpush1.msra.mxu0 0.0
  %7441 = vmatprep.subr.mxu0 0.0
  %7442 = vmatpush1.msra.mxu0 0.0
  %7443 = vmatprep.subr.mxu0 0.0
  %7444 = vmatpush1.msra.mxu0 0.0
  %7445 = vmatprep.subr.mxu0 0.0
  %7446 = vmatpush1.msra.mxu0 0.0
  %7447 = vmatprep.subr.mxu0 0.0
  %7448 = vmatpush1.msra.mxu0 0.0
  %7449 = vmatprep.subr.mxu0 0.0
  %7450 = vmatpush1.msra.mxu0 0.0
  %7451 = vmatprep.subr.mxu0 0.0
  %7452 = vmatpush1.msra.mxu0 0.0
  %7453 = vmatprep.subr.mxu0 0.0
  %7454 = vmatpush1.msra.mxu0 0.0
  %7455 = vmatprep.subr.mxu0 0.0
  %7456 = vmatpush1.msra.mxu0 0.0
  %7457 = vmatprep.subr.mxu0 0.0
  %7458 = vmatpush1.msra.mxu0 0.0
  %7459 = vmatprep.subr.mxu0 0.0
  %7460 = vmatpush1.msra.mxu0 0.0
  %7461 = vmatprep.subr.mxu0 0.0
  %7462 = vmatpush1.msra.mxu0 0.0
  %7463 = vmatprep.subr.mxu0 0.0
  %7464 = vmatpush1.msra.mxu0 0.0
  %7465 = vmatprep.mubr.f32.mxu0 0.0
  %7466 = vmatmul.mubr.f32.gmra.mrb[0].mxu0 %v7390
  %v7467 = vpop.f32.mrb[0].mxu0
  %v7468 = vadd.f32 %v7387, %v7467
  %v7469 = vpop.f32.mrb[0].mxu0
  %7470 = vmatprep.mubr.f32.mxu0 0.0
  %7471 = vmatmul.mubr.f32.gmra.mrb[0].mxu0 %v7393
  %v7472 = vpop.f32.mrb[0].mxu0
  %v7473 = vadd.f32 %v7387, %v7472
  %v7474 = vpop.f32.mrb[0].mxu0
  %7475 = vmatprep.mubr.f32.mxu0 0.0
  %7476 = vmatmul.mubr.f32.gmra.mrb[0].mxu0 %v7396
  %v7477 = vpop.f32.mrb[0].mxu0
  %v7478 = vadd.f32 %v7387, %v7477
  %v7479 = vpop.f32.mrb[0].mxu0
  %7480 = vmatprep.mubr.f32.mxu0 0.0
  %7481 = vmatmul.mubr.f32.gmra.mrb[0].mxu0 %v7399
  %v7482 = vpop.f32.mrb[0].mxu0
  %v7483 = vadd.f32 %v7387, %v7482
  %v7484 = vpop.f32.mrb[0].mxu0
  %7485 = vdwg.mxu0
  %v7486 = vadd.f32 %v7146, %v7468
  %v7487 = vadd.f32 %v7147, %v7473
  %v7488 = vadd.f32 %v7148, %v7478
  %v7489 = vadd.f32 %v7149, %v7483
  %v7490 = vadd.f32 %v7486, %v198
  %v7491 = vadd.f32 %v7487, %v199
  %v7492 = vadd.f32 %v7488, %v154
  %v7493 = vadd.f32 %v7489, %v155
  %v7494 = vadd.f32 %v152, %v154
  %v7495 = vadd.f32 %v153, %v155
  %v7496 = vsel %vm156, %v7490, 0.0
  %7497 = vadd.xlane.f32.xlu0 %v7496
  %v7498 = vpop.xlane.xlu0 %7497
  %v7499 = vsel %vm156, %v7491, 0.0
  %7500 = vadd.xlane.f32.xlu0 %v7499
  %v7501 = vpop.xlane.xlu0 %7500
  %v7502 = vsel %vm156, %v7492, 0.0
  %7503 = vadd.xlane.f32.xlu0 %v7502
  %v7504 = vpop.xlane.xlu0 %7503
  %v7505 = vsel %vm156, %v7493, 0.0
  %7506 = vadd.xlane.f32.xlu0 %v7505
  %v7507 = vpop.xlane.xlu0 %7506
  %v7508 = vsel %vm156, %v7494, 0.0
  %7509 = vadd.xlane.f32.xlu0 %v7508
  %v7510 = vpop.xlane.xlu0 %7509
  %v7511 = vsel %vm156, %v7495, 0.0
  %7512 = vadd.xlane.f32.xlu0 %v7511
  %v7513 = vpop.xlane.xlu0 %7512
  %v7514 = vmul.f32 %v7498, %v163
  %v7515 = vmul.f32 %v7501, %v163
  %v7516 = vmul.f32 %v7504, %v163
  %v7517 = vmul.f32 %v7507, %v163
  %v7518 = vmul.f32 %v7510, %v163
  %v7519 = vmul.f32 %v7513, %v163
  %v7520 = vsub.f32 %v7490, %v7514
  %v7521 = vsub.f32 %v7491, %v7515
  %v7522 = vsub.f32 %v7492, %v7516
  %v7523 = vsub.f32 %v7493, %v7517
  %v7524 = vsub.f32 %v7494, %v7518
  %v7525 = vsub.f32 %v7495, %v7519
  %v7526 = vmul.f32 %v7520, %v7520
  %v7527 = vmul.f32 %v7521, %v7521
  %v7528 = vmul.f32 %v7522, %v7522
  %v7529 = vmul.f32 %v7523, %v7523
  %v7530 = vmul.f32 %v7524, %v7524
  %v7531 = vmul.f32 %v7525, %v7525
  %v7532 = vsel %vm156, %v7526, 0.0
  %7533 = vadd.xlane.f32.xlu0 %v7532
  %v7534 = vpop.xlane.xlu0 %7533
  %v7535 = vsel %vm156, %v7527, 0.0
  %7536 = vadd.xlane.f32.xlu0 %v7535
  %v7537 = vpop.xlane.xlu0 %7536
  %v7538 = vsel %vm156, %v7528, 0.0
  %7539 = vadd.xlane.f32.xlu0 %v7538
  %v7540 = vpop.xlane.xlu0 %7539
  %v7541 = vsel %vm156, %v7529, 0.0
  %7542 = vadd.xlane.f32.xlu0 %v7541
  %v7543 = vpop.xlane.xlu0 %7542
  %v7544 = vsel %vm156, %v7530, 0.0
  %7545 = vadd.xlane.f32.xlu0 %v7544
  %v7546 = vpop.xlane.xlu0 %7545
  %v7547 = vsel %vm156, %v7531, 0.0
  %7548 = vadd.xlane.f32.xlu0 %v7547
  %v7549 = vpop.xlane.xlu0 %7548
  %v7550 = vmul.f32 %v7534, %v163
  %v7551 = vmul.f32 %v7537, %v163
  %v7552 = vmul.f32 %v7540, %v163
  %v7553 = vmul.f32 %v7543, %v163
  %v7554 = vmul.f32 %v7546, %v163
  %v7555 = vmul.f32 %v7549, %v163
  %v7556 = vadd.f32 %v7550, 1e-05
  %v7557 = vadd.f32 %v7551, 1e-05
  %v7558 = vadd.f32 %v7552, 1e-05
  %v7559 = vadd.f32 %v7553, 1e-05
  %v7560 = vadd.f32 %v7554, 1e-05
  %v7561 = vadd.f32 %v7555, 1e-05
  %v7562 = vrsqrt.pop %v7556
  %v7563 = vrsqrt.pop %v7557
  %v7564 = vrsqrt.pop %v7558
  %v7565 = vrsqrt.pop %v7559
  %v7566 = vrsqrt.pop %v7560
  %v7567 = vrsqrt.pop %v7561
  %v7568 = vmul.f32 %v7520, %v7562
  %v7569 = vmul.f32 %v7521, %v7563
  %v7570 = vmul.f32 %v7522, %v7564
  %v7571 = vmul.f32 %v7523, %v7565
  %v7572 = vmul.f32 %v7524, %v7566
  %v7573 = vmul.f32 %v7525, %v7567
  %v7574 = vmul.f32 %v7568, %v188
  %v7575 = vmul.f32 %v7569, %v188
  %v7576 = vmul.f32 %v7570, %v188
  %v7577 = vmul.f32 %v7571, %v188
  %v7578 = vmul.f32 %v7572, %v188
  %v7579 = vmul.f32 %v7573, %v188
  %v7580 = vadd.f32 %v7574, %v196
  %v7581 = vadd.f32 %v7575, %v196
  %v7582 = vadd.f32 %v7576, %v196
  %v7583 = vadd.f32 %v7577, %v196
  %v7584 = vadd.f32 %v7578, %v196
  %v7585 = vadd.f32 %v7579, %v196
  %v7586 = vld [vmem:[%s63] sm:$0xff]
  %v7587 = vld [vmem:[%s63 + $0x8] sm:$0xff]
  %v7588 = vld [vmem:[%s63 + $0x10] sm:$0xff]
  %v7589 = vld [vmem:[%s63 + $0x18] sm:$0xff]
  %v7590 = vld [vmem:[%s63 + $0x20] sm:$0xff]
  %v7591 = vld [vmem:[%s63 + $0x28] sm:$0xff]
  %v7592 = vld [vmem:[%s63 + $0x30] sm:$0xff]
  %v7593 = vld [vmem:[%s63 + $0x38] sm:$0xff]
  %v7594 = vld [vmem:[%s63 + $0x40] sm:$0xff]
  %v7595 = vld [vmem:[%s63 + $0x48] sm:$0xff]
  %v7596 = vld [vmem:[%s63 + $0x50] sm:$0xff]
  %v7597 = vld [vmem:[%s63 + $0x58] sm:$0xff]
  %v7604 = vrot.slane %v7580, 1
  %vm7605 = vcmask 1041409
  %v7606 = vsel %vm7605, %v7581, %v7604
  %v7607 = vrot.slane %v7582, 7
  %vm7608 = vcmask 1042434
  %v7609 = vsel %vm7608, %v7607, %v7606
  %v7610 = vrot.slane %v7583, 6
  %vm7611 = vcmask 1043459
  %v7612 = vsel %vm7611, %v7610, %v7609
  %v7613 = vrot.slane %v7584, 5
  %vm7614 = vcmask 1044484
  %v7615 = vsel %vm7614, %v7613, %v7612
  %v7616 = vrot.slane %v7585, 4
  %vm7617 = vcmask 1045509
  %v7618 = vsel %vm7617, %v7616, %v7615
  %v7619 = vsel %vm156, %v7618, 0
  %7621 = vmatprep.subr.mxu0 0.0
  %7622 = vmatpush1.msra.mxu0 %v7592
  %7623 = vmatprep.subr.mxu0 0.0
  %7624 = vmatpush1.msra.mxu0 %v7593
  %7625 = vmatprep.subr.mxu0 0.0
  %7626 = vmatpush1.msra.mxu0 %v7594
  %7627 = vmatprep.subr.mxu0 0.0
  %7628 = vmatpush1.msra.mxu0 %v7595
  %7629 = vmatprep.subr.mxu0 0.0
  %7630 = vmatpush1.msra.mxu0 %v7596
  %7631 = vmatprep.subr.mxu0 0.0
  %7632 = vmatpush1.msra.mxu0 %v7597
  %7633 = vmatprep.subr.mxu0 0.0
  %7634 = vmatpush1.msra.mxu0 0.0
  %7635 = vmatprep.subr.mxu0 0.0
  %7636 = vmatpush1.msra.mxu0 0.0
  %7637 = vmatprep.subr.mxu0 0.0
  %7638 = vmatpush1.msra.mxu0 0.0
  %7639 = vmatprep.subr.mxu0 0.0
  %7640 = vmatpush1.msra.mxu0 0.0
  %7641 = vmatprep.subr.mxu0 0.0
  %7642 = vmatpush1.msra.mxu0 0.0
  %7643 = vmatprep.subr.mxu0 0.0
  %7644 = vmatpush1.msra.mxu0 0.0
  %7645 = vmatprep.subr.mxu0 0.0
  %7646 = vmatpush1.msra.mxu0 0.0
  %7647 = vmatprep.subr.mxu0 0.0
  %7648 = vmatpush1.msra.mxu0 0.0
  %7649 = vmatprep.subr.mxu0 0.0
  %7650 = vmatpush1.msra.mxu0 0.0
  %7651 = vmatprep.subr.mxu0 0.0
  %7652 = vmatpush1.msra.mxu0 0.0
  %7653 = vmatprep.subr.mxu0 0.0
  %7654 = vmatpush1.msra.mxu0 0.0
  %7655 = vmatprep.subr.mxu0 0.0
  %7656 = vmatpush1.msra.mxu0 0.0
  %7657 = vmatprep.subr.mxu0 0.0
  %7658 = vmatpush1.msra.mxu0 0.0
  %7659 = vmatprep.subr.mxu0 0.0
  %7660 = vmatpush1.msra.mxu0 0.0
  %7661 = vmatprep.subr.mxu0 0.0
  %7662 = vmatpush1.msra.mxu0 0.0
  %7663 = vmatprep.subr.mxu0 0.0
  %7664 = vmatpush1.msra.mxu0 0.0
  %7665 = vmatprep.subr.mxu0 0.0
  %7666 = vmatpush1.msra.mxu0 0.0
  %7667 = vmatprep.subr.mxu0 0.0
  %7668 = vmatpush1.msra.mxu0 0.0
  %7669 = vmatprep.subr.mxu0 0.0
  %7670 = vmatpush1.msra.mxu0 0.0
  %7671 = vmatprep.subr.mxu0 0.0
  %7672 = vmatpush1.msra.mxu0 0.0
  %7673 = vmatprep.subr.mxu0 0.0
  %7674 = vmatpush1.msra.mxu0 0.0
  %7675 = vmatprep.subr.mxu0 0.0
  %7676 = vmatpush1.msra.mxu0 0.0
  %7677 = vmatprep.subr.mxu0 0.0
  %7678 = vmatpush1.msra.mxu0 0.0
  %7679 = vmatprep.subr.mxu0 0.0
  %7680 = vmatpush1.msra.mxu0 0.0
  %7681 = vmatprep.subr.mxu0 0.0
  %7682 = vmatpush1.msra.mxu0 0.0
  %7683 = vmatprep.subr.mxu0 0.0
  %7684 = vmatpush1.msra.mxu0 0.0
  %7685 = vmatprep.mubr.f32.mxu0 0.0
  %7686 = vmatmul.mubr.f32.gmra.mrb[0].mxu0 %v7619
  %v7687 = vpop.f32.mrb[0].mxu0
  %v7688 = vadd.f32 0.0, %v7687
  %v7689 = vpop.f32.mrb[0].mxu0
  %7690 = vdwg.mxu0
  %v7691 = vrot.slane %v7581, 7
  %v7692 = vsel %vm7605, %v7691, %v7580
  %v7693 = vrot.slane %v7582, 6
  %v7694 = vsel %vm7608, %v7693, %v7692
  %v7695 = vrot.slane %v7583, 5
  %v7696 = vsel %vm7611, %v7695, %v7694
  %v7697 = vrot.slane %v7584, 4
  %v7698 = vsel %vm7614, %v7697, %v7696
  %v7699 = vrot.slane %v7585, 3
  %v7700 = vsel %vm7617, %v7699, %v7698
  %v7701 = vsel %vm156, %v7700, 0
  %7703 = vmatprep.subr.mxu0 0.0
  %7704 = vmatpush1.msra.mxu0 %v7586
  %7705 = vmatprep.subr.mxu0 0.0
  %7706 = vmatpush1.msra.mxu0 %v7587
  %7707 = vmatprep.subr.mxu0 0.0
  %7708 = vmatpush1.msra.mxu0 %v7588
  %7709 = vmatprep.subr.mxu0 0.0
  %7710 = vmatpush1.msra.mxu0 %v7589
  %7711 = vmatprep.subr.mxu0 0.0
  %7712 = vmatpush1.msra.mxu0 %v7590
  %7713 = vmatprep.subr.mxu0 0.0
  %7714 = vmatpush1.msra.mxu0 %v7591
  %7715 = vmatprep.subr.mxu0 0.0
  %7716 = vmatpush1.msra.mxu0 0.0
  %7717 = vmatprep.subr.mxu0 0.0
  %7718 = vmatpush1.msra.mxu0 0.0
  %7719 = vmatprep.subr.mxu0 0.0
  %7720 = vmatpush1.msra.mxu0 0.0
  %7721 = vmatprep.subr.mxu0 0.0
  %7722 = vmatpush1.msra.mxu0 0.0
  %7723 = vmatprep.subr.mxu0 0.0
  %7724 = vmatpush1.msra.mxu0 0.0
  %7725 = vmatprep.subr.mxu0 0.0
  %7726 = vmatpush1.msra.mxu0 0.0
  %7727 = vmatprep.subr.mxu0 0.0
  %7728 = vmatpush1.msra.mxu0 0.0
  %7729 = vmatprep.subr.mxu0 0.0
  %7730 = vmatpush1.msra.mxu0 0.0
  %7731 = vmatprep.subr.mxu0 0.0
  %7732 = vmatpush1.msra.mxu0 0.0
  %7733 = vmatprep.subr.mxu0 0.0
  %7734 = vmatpush1.msra.mxu0 0.0
  %7735 = vmatprep.subr.mxu0 0.0
  %7736 = vmatpush1.msra.mxu0 0.0
  %7737 = vmatprep.subr.mxu0 0.0
  %7738 = vmatpush1.msra.mxu0 0.0
  %7739 = vmatprep.subr.mxu0 0.0
  %7740 = vmatpush1.msra.mxu0 0.0
  %7741 = vmatprep.subr.mxu0 0.0
  %7742 = vmatpush1.msra.mxu0 0.0
  %7743 = vmatprep.subr.mxu0 0.0
  %7744 = vmatpush1.msra.mxu0 0.0
  %7745 = vmatprep.subr.mxu0 0.0
  %7746 = vmatpush1.msra.mxu0 0.0
  %7747 = vmatprep.subr.mxu0 0.0
  %7748 = vmatpush1.msra.mxu0 0.0
  %7749 = vmatprep.subr.mxu0 0.0
  %7750 = vmatpush1.msra.mxu0 0.0
  %7751 = vmatprep.subr.mxu0 0.0
  %7752 = vmatpush1.msra.mxu0 0.0
  %7753 = vmatprep.subr.mxu0 0.0
  %7754 = vmatpush1.msra.mxu0 0.0
  %7755 = vmatprep.subr.mxu0 0.0
  %7756 = vmatpush1.msra.mxu0 0.0
  %7757 = vmatprep.subr.mxu0 0.0
  %7758 = vmatpush1.msra.mxu0 0.0
  %7759 = vmatprep.subr.mxu0 0.0
  %7760 = vmatpush1.msra.mxu0 0.0
  %7761 = vmatprep.subr.mxu0 0.0
  %7762 = vmatpush1.msra.mxu0 0.0
  %7763 = vmatprep.subr.mxu0 0.0
  %7764 = vmatpush1.msra.mxu0 0.0
  %7765 = vmatprep.subr.mxu0 0.0
  %7766 = vmatpush1.msra.mxu0 0.0
  %7767 = vmatprep.mubr.f32.mxu0 0.0
  %7768 = vmatmul.mubr.f32.gmra.mrb[0].mxu0 %v7701
  %v7769 = vpop.f32.mrb[0].mxu0
  %v7770 = vadd.f32 %v7688, %v7769
  %v7771 = vpop.f32.mrb[0].mxu0
  %7772 = vdwg.mxu0
  %v7773 = vld [vmem:[%s63 + $0x60] sm:$0xff]
  %v7774 = vld [vmem:[%s63 + $0x68] sm:$0xff]
  %v7775 = vld [vmem:[%s63 + $0x70] sm:$0xff]
  %v7776 = vld [vmem:[%s63 + $0x78] sm:$0xff]
  %v7777 = vld [vmem:[%s63 + $0x80] sm:$0xff]
  %v7778 = vld [vmem:[%s63 + $0x88] sm:$0xff]
  %v7779 = vrot.slane %v7580, 2
  %v7780 = vrot.slane %v7581, 1
  %v7781 = vsel %vm7605, %v7780, %v7779
  %v7782 = vsel %vm7608, %v7582, %v7781
  %v7783 = vrot.slane %v7583, 7
  %v7784 = vsel %vm7611, %v7783, %v7782
  %v7785 = vrot.slane %v7584, 6
  %v7786 = vsel %vm7614, %v7785, %v7784
  %v7787 = vrot.slane %v7585, 5
  %v7788 = vsel %vm7617, %v7787, %v7786
  %v7789 = vsel %vm156, %v7788, 0
  %7791 = vmatprep.subr.mxu0 0.0
  %7792 = vmatpush1.msra.mxu0 %v7773
  %7793 = vmatprep.subr.mxu0 0.0
  %7794 = vmatpush1.msra.mxu0 %v7774
  %7795 = vmatprep.subr.mxu0 0.0
  %7796 = vmatpush1.msra.mxu0 %v7775
  %7797 = vmatprep.subr.mxu0 0.0
  %7798 = vmatpush1.msra.mxu0 %v7776
  %7799 = vmatprep.subr.mxu0 0.0
  %7800 = vmatpush1.msra.mxu0 %v7777
  %7801 = vmatprep.subr.mxu0 0.0
  %7802 = vmatpush1.msra.mxu0 %v7778
  %7803 = vmatprep.subr.mxu0 0.0
  %7804 = vmatpush1.msra.mxu0 0.0
  %7805 = vmatprep.subr.mxu0 0.0
  %7806 = vmatpush1.msra.mxu0 0.0
  %7807 = vmatprep.subr.mxu0 0.0
  %7808 = vmatpush1.msra.mxu0 0.0
  %7809 = vmatprep.subr.mxu0 0.0
  %7810 = vmatpush1.msra.mxu0 0.0
  %7811 = vmatprep.subr.mxu0 0.0
  %7812 = vmatpush1.msra.mxu0 0.0
  %7813 = vmatprep.subr.mxu0 0.0
  %7814 = vmatpush1.msra.mxu0 0.0
  %7815 = vmatprep.subr.mxu0 0.0
  %7816 = vmatpush1.msra.mxu0 0.0
  %7817 = vmatprep.subr.mxu0 0.0
  %7818 = vmatpush1.msra.mxu0 0.0
  %7819 = vmatprep.subr.mxu0 0.0
  %7820 = vmatpush1.msra.mxu0 0.0
  %7821 = vmatprep.subr.mxu0 0.0
  %7822 = vmatpush1.msra.mxu0 0.0
  %7823 = vmatprep.subr.mxu0 0.0
  %7824 = vmatpush1.msra.mxu0 0.0
  %7825 = vmatprep.subr.mxu0 0.0
  %7826 = vmatpush1.msra.mxu0 0.0
  %7827 = vmatprep.subr.mxu0 0.0
  %7828 = vmatpush1.msra.mxu0 0.0
  %7829 = vmatprep.subr.mxu0 0.0
  %7830 = vmatpush1.msra.mxu0 0.0
  %7831 = vmatprep.subr.mxu0 0.0
  %7832 = vmatpush1.msra.mxu0 0.0
  %7833 = vmatprep.subr.mxu0 0.0
  %7834 = vmatpush1.msra.mxu0 0.0
  %7835 = vmatprep.subr.mxu0 0.0
  %7836 = vmatpush1.msra.mxu0 0.0
  %7837 = vmatprep.subr.mxu0 0.0
  %7838 = vmatpush1.msra.mxu0 0.0
  %7839 = vmatprep.subr.mxu0 0.0
  %7840 = vmatpush1.msra.mxu0 0.0
  %7841 = vmatprep.subr.mxu0 0.0
  %7842 = vmatpush1.msra.mxu0 0.0
  %7843 = vmatprep.subr.mxu0 0.0
  %7844 = vmatpush1.msra.mxu0 0.0
  %7845 = vmatprep.subr.mxu0 0.0
  %7846 = vmatpush1.msra.mxu0 0.0
  %7847 = vmatprep.subr.mxu0 0.0
  %7848 = vmatpush1.msra.mxu0 0.0
  %7849 = vmatprep.subr.mxu0 0.0
  %7850 = vmatpush1.msra.mxu0 0.0
  %7851 = vmatprep.subr.mxu0 0.0
  %7852 = vmatpush1.msra.mxu0 0.0
  %7853 = vmatprep.subr.mxu0 0.0
  %7854 = vmatpush1.msra.mxu0 0.0
  %7855 = vmatprep.mubr.f32.mxu0 0.0
  %7856 = vmatmul.mubr.f32.gmra.mrb[0].mxu0 %v7789
  %v7857 = vpop.f32.mrb[0].mxu0
  %v7858 = vadd.f32 0.0, %v7857
  %v7859 = vpop.f32.mrb[0].mxu0
  %7860 = vdwg.mxu0
  %v7861 = vadd.f32 %v7770, %v7858
  %v7862 = vld [vmem:[%s63 + $0x90] sm:$0xff]
  %v7863 = vld [vmem:[%s63 + $0x98] sm:$0xff]
  %v7864 = vld [vmem:[%s63 + $0xa0] sm:$0xff]
  %v7865 = vld [vmem:[%s63 + $0xa8] sm:$0xff]
  %v7866 = vld [vmem:[%s63 + $0xb0] sm:$0xff]
  %v7867 = vld [vmem:[%s63 + $0xb8] sm:$0xff]
  %v7868 = vrot.slane %v7580, 3
  %v7869 = vrot.slane %v7581, 2
  %v7870 = vsel %vm7605, %v7869, %v7868
  %v7871 = vrot.slane %v7582, 1
  %v7872 = vsel %vm7608, %v7871, %v7870
  %v7873 = vsel %vm7611, %v7583, %v7872
  %v7874 = vrot.slane %v7584, 7
  %v7875 = vsel %vm7614, %v7874, %v7873
  %v7876 = vrot.slane %v7585, 6
  %v7877 = vsel %vm7617, %v7876, %v7875
  %v7878 = vsel %vm156, %v7877, 0
  %7880 = vmatprep.subr.mxu0 0.0
  %7881 = vmatpush1.msra.mxu0 %v7862
  %7882 = vmatprep.subr.mxu0 0.0
  %7883 = vmatpush1.msra.mxu0 %v7863
  %7884 = vmatprep.subr.mxu0 0.0
  %7885 = vmatpush1.msra.mxu0 %v7864
  %7886 = vmatprep.subr.mxu0 0.0
  %7887 = vmatpush1.msra.mxu0 %v7865
  %7888 = vmatprep.subr.mxu0 0.0
  %7889 = vmatpush1.msra.mxu0 %v7866
  %7890 = vmatprep.subr.mxu0 0.0
  %7891 = vmatpush1.msra.mxu0 %v7867
  %7892 = vmatprep.subr.mxu0 0.0
  %7893 = vmatpush1.msra.mxu0 0.0
  %7894 = vmatprep.subr.mxu0 0.0
  %7895 = vmatpush1.msra.mxu0 0.0
  %7896 = vmatprep.subr.mxu0 0.0
  %7897 = vmatpush1.msra.mxu0 0.0
  %7898 = vmatprep.subr.mxu0 0.0
  %7899 = vmatpush1.msra.mxu0 0.0
  %7900 = vmatprep.subr.mxu0 0.0
  %7901 = vmatpush1.msra.mxu0 0.0
  %7902 = vmatprep.subr.mxu0 0.0
  %7903 = vmatpush1.msra.mxu0 0.0
  %7904 = vmatprep.subr.mxu0 0.0
  %7905 = vmatpush1.msra.mxu0 0.0
  %7906 = vmatprep.subr.mxu0 0.0
  %7907 = vmatpush1.msra.mxu0 0.0
  %7908 = vmatprep.subr.mxu0 0.0
  %7909 = vmatpush1.msra.mxu0 0.0
  %7910 = vmatprep.subr.mxu0 0.0
  %7911 = vmatpush1.msra.mxu0 0.0
  %7912 = vmatprep.subr.mxu0 0.0
  %7913 = vmatpush1.msra.mxu0 0.0
  %7914 = vmatprep.subr.mxu0 0.0
  %7915 = vmatpush1.msra.mxu0 0.0
  %7916 = vmatprep.subr.mxu0 0.0
  %7917 = vmatpush1.msra.mxu0 0.0
  %7918 = vmatprep.subr.mxu0 0.0
  %7919 = vmatpush1.msra.mxu0 0.0
  %7920 = vmatprep.subr.mxu0 0.0
  %7921 = vmatpush1.msra.mxu0 0.0
  %7922 = vmatprep.subr.mxu0 0.0
  %7923 = vmatpush1.msra.mxu0 0.0
  %7924 = vmatprep.subr.mxu0 0.0
  %7925 = vmatpush1.msra.mxu0 0.0
  %7926 = vmatprep.subr.mxu0 0.0
  %7927 = vmatpush1.msra.mxu0 0.0
  %7928 = vmatprep.subr.mxu0 0.0
  %7929 = vmatpush1.msra.mxu0 0.0
  %7930 = vmatprep.subr.mxu0 0.0
  %7931 = vmatpush1.msra.mxu0 0.0
  %7932 = vmatprep.subr.mxu0 0.0
  %7933 = vmatpush1.msra.mxu0 0.0
  %7934 = vmatprep.subr.mxu0 0.0
  %7935 = vmatpush1.msra.mxu0 0.0
  %7936 = vmatprep.subr.mxu0 0.0
  %7937 = vmatpush1.msra.mxu0 0.0
  %7938 = vmatprep.subr.mxu0 0.0
  %7939 = vmatpush1.msra.mxu0 0.0
  %7940 = vmatprep.subr.mxu0 0.0
  %7941 = vmatpush1.msra.mxu0 0.0
  %7942 = vmatprep.subr.mxu0 0.0
  %7943 = vmatpush1.msra.mxu0 0.0
  %7944 = vmatprep.mubr.f32.mxu0 0.0
  %7945 = vmatmul.mubr.f32.gmra.mrb[0].mxu0 %v7878
  %v7946 = vpop.f32.mrb[0].mxu0
  %v7947 = vadd.f32 0.0, %v7946
  %v7948 = vpop.f32.mrb[0].mxu0
  %7949 = vdwg.mxu0
  %v7950 = vadd.f32 %v7861, %v7947
  %v7951 = vld [vmem:[%s63 + $0xc0] sm:$0xff]
  %v7952 = vld [vmem:[%s63 + $0xc8] sm:$0xff]
  %v7953 = vld [vmem:[%s63 + $0xd0] sm:$0xff]
  %v7954 = vld [vmem:[%s63 + $0xd8] sm:$0xff]
  %v7955 = vld [vmem:[%s63 + $0xe0] sm:$0xff]
  %v7956 = vld [vmem:[%s63 + $0xe8] sm:$0xff]
  %v7957 = vrot.slane %v7580, 4
  %v7958 = vrot.slane %v7581, 3
  %v7959 = vsel %vm7605, %v7958, %v7957
  %v7960 = vrot.slane %v7582, 2
  %v7961 = vsel %vm7608, %v7960, %v7959
  %v7962 = vrot.slane %v7583, 1
  %v7963 = vsel %vm7611, %v7962, %v7961
  %v7964 = vsel %vm7614, %v7584, %v7963
  %v7965 = vrot.slane %v7585, 7
  %v7966 = vsel %vm7617, %v7965, %v7964
  %v7967 = vsel %vm156, %v7966, 0
  %7969 = vmatprep.subr.mxu0 0.0
  %7970 = vmatpush1.msra.mxu0 %v7951
  %7971 = vmatprep.subr.mxu0 0.0
  %7972 = vmatpush1.msra.mxu0 %v7952
  %7973 = vmatprep.subr.mxu0 0.0
  %7974 = vmatpush1.msra.mxu0 %v7953
  %7975 = vmatprep.subr.mxu0 0.0
  %7976 = vmatpush1.msra.mxu0 %v7954
  %7977 = vmatprep.subr.mxu0 0.0
  %7978 = vmatpush1.msra.mxu0 %v7955
  %7979 = vmatprep.subr.mxu0 0.0
  %7980 = vmatpush1.msra.mxu0 %v7956
  %7981 = vmatprep.subr.mxu0 0.0
  %7982 = vmatpush1.msra.mxu0 0.0
  %7983 = vmatprep.subr.mxu0 0.0
  %7984 = vmatpush1.msra.mxu0 0.0
  %7985 = vmatprep.subr.mxu0 0.0
  %7986 = vmatpush1.msra.mxu0 0.0
  %7987 = vmatprep.subr.mxu0 0.0
  %7988 = vmatpush1.msra.mxu0 0.0
  %7989 = vmatprep.subr.mxu0 0.0
  %7990 = vmatpush1.msra.mxu0 0.0
  %7991 = vmatprep.subr.mxu0 0.0
  %7992 = vmatpush1.msra.mxu0 0.0
  %7993 = vmatprep.subr.mxu0 0.0
  %7994 = vmatpush1.msra.mxu0 0.0
  %7995 = vmatprep.subr.mxu0 0.0
  %7996 = vmatpush1.msra.mxu0 0.0
  %7997 = vmatprep.subr.mxu0 0.0
  %7998 = vmatpush1.msra.mxu0 0.0
  %7999 = vmatprep.subr.mxu0 0.0
  %8000 = vmatpush1.msra.mxu0 0.0
  %8001 = vmatprep.subr.mxu0 0.0
  %8002 = vmatpush1.msra.mxu0 0.0
  %8003 = vmatprep.subr.mxu0 0.0
  %8004 = vmatpush1.msra.mxu0 0.0
  %8005 = vmatprep.subr.mxu0 0.0
  %8006 = vmatpush1.msra.mxu0 0.0
  %8007 = vmatprep.subr.mxu0 0.0
  %8008 = vmatpush1.msra.mxu0 0.0
  %8009 = vmatprep.subr.mxu0 0.0
  %8010 = vmatpush1.msra.mxu0 0.0
  %8011 = vmatprep.subr.mxu0 0.0
  %8012 = vmatpush1.msra.mxu0 0.0
  %8013 = vmatprep.subr.mxu0 0.0
  %8014 = vmatpush1.msra.mxu0 0.0
  %8015 = vmatprep.subr.mxu0 0.0
  %8016 = vmatpush1.msra.mxu0 0.0
  %8017 = vmatprep.subr.mxu0 0.0
  %8018 = vmatpush1.msra.mxu0 0.0
  %8019 = vmatprep.subr.mxu0 0.0
  %8020 = vmatpush1.msra.mxu0 0.0
  %8021 = vmatprep.subr.mxu0 0.0
  %8022 = vmatpush1.msra.mxu0 0.0
  %8023 = vmatprep.subr.mxu0 0.0
  %8024 = vmatpush1.msra.mxu0 0.0
  %8025 = vmatprep.subr.mxu0 0.0
  %8026 = vmatpush1.msra.mxu0 0.0
  %8027 = vmatprep.subr.mxu0 0.0
  %8028 = vmatpush1.msra.mxu0 0.0
  %8029 = vmatprep.subr.mxu0 0.0
  %8030 = vmatpush1.msra.mxu0 0.0
  %8031 = vmatprep.subr.mxu0 0.0
  %8032 = vmatpush1.msra.mxu0 0.0
  %8033 = vmatprep.mubr.f32.mxu0 0.0
  %8034 = vmatmul.mubr.f32.gmra.mrb[0].mxu0 %v7967
  %v8035 = vpop.f32.mrb[0].mxu0
  %v8036 = vadd.f32 0.0, %v8035
  %v8037 = vpop.f32.mrb[0].mxu0
  %8038 = vdwg.mxu0
  %v8039 = vadd.f32 %v7950, %v8036
  %v8040 = vld [vmem:[%s63 + $0xf0] sm:$0xff]
  %v8041 = vld [vmem:[%s63 + $0xf8] sm:$0xff]
  %v8042 = vld [vmem:[%s63 + $0x100] sm:$0xff]
  %v8043 = vld [vmem:[%s63 + $0x108] sm:$0xff]
  %v8044 = vld [vmem:[%s63 + $0x110] sm:$0xff]
  %v8045 = vld [vmem:[%s63 + $0x118] sm:$0xff]
  %v8046 = vrot.slane %v7580, 5
  %v8047 = vrot.slane %v7581, 4
  %v8048 = vsel %vm7605, %v8047, %v8046
  %v8049 = vrot.slane %v7582, 3
  %v8050 = vsel %vm7608, %v8049, %v8048
  %v8051 = vrot.slane %v7583, 2
  %v8052 = vsel %vm7611, %v8051, %v8050
  %v8053 = vrot.slane %v7584, 1
  %v8054 = vsel %vm7614, %v8053, %v8052
  %v8055 = vsel %vm7617, %v7585, %v8054
  %v8056 = vsel %vm156, %v8055, 0
  %8058 = vmatprep.subr.mxu0 0.0
  %8059 = vmatpush1.msra.mxu0 %v8040
  %8060 = vmatprep.subr.mxu0 0.0
  %8061 = vmatpush1.msra.mxu0 %v8041
  %8062 = vmatprep.subr.mxu0 0.0
  %8063 = vmatpush1.msra.mxu0 %v8042
  %8064 = vmatprep.subr.mxu0 0.0
  %8065 = vmatpush1.msra.mxu0 %v8043
  %8066 = vmatprep.subr.mxu0 0.0
  %8067 = vmatpush1.msra.mxu0 %v8044
  %8068 = vmatprep.subr.mxu0 0.0
  %8069 = vmatpush1.msra.mxu0 %v8045
  %8070 = vmatprep.subr.mxu0 0.0
  %8071 = vmatpush1.msra.mxu0 0.0
  %8072 = vmatprep.subr.mxu0 0.0
  %8073 = vmatpush1.msra.mxu0 0.0
  %8074 = vmatprep.subr.mxu0 0.0
  %8075 = vmatpush1.msra.mxu0 0.0
  %8076 = vmatprep.subr.mxu0 0.0
  %8077 = vmatpush1.msra.mxu0 0.0
  %8078 = vmatprep.subr.mxu0 0.0
  %8079 = vmatpush1.msra.mxu0 0.0
  %8080 = vmatprep.subr.mxu0 0.0
  %8081 = vmatpush1.msra.mxu0 0.0
  %8082 = vmatprep.subr.mxu0 0.0
  %8083 = vmatpush1.msra.mxu0 0.0
  %8084 = vmatprep.subr.mxu0 0.0
  %8085 = vmatpush1.msra.mxu0 0.0
  %8086 = vmatprep.subr.mxu0 0.0
  %8087 = vmatpush1.msra.mxu0 0.0
  %8088 = vmatprep.subr.mxu0 0.0
  %8089 = vmatpush1.msra.mxu0 0.0
  %8090 = vmatprep.subr.mxu0 0.0
  %8091 = vmatpush1.msra.mxu0 0.0
  %8092 = vmatprep.subr.mxu0 0.0
  %8093 = vmatpush1.msra.mxu0 0.0
  %8094 = vmatprep.subr.mxu0 0.0
  %8095 = vmatpush1.msra.mxu0 0.0
  %8096 = vmatprep.subr.mxu0 0.0
  %8097 = vmatpush1.msra.mxu0 0.0
  %8098 = vmatprep.subr.mxu0 0.0
  %8099 = vmatpush1.msra.mxu0 0.0
  %8100 = vmatprep.subr.mxu0 0.0
  %8101 = vmatpush1.msra.mxu0 0.0
  %8102 = vmatprep.subr.mxu0 0.0
  %8103 = vmatpush1.msra.mxu0 0.0
  %8104 = vmatprep.subr.mxu0 0.0
  %8105 = vmatpush1.msra.mxu0 0.0
  %8106 = vmatprep.subr.mxu0 0.0
  %8107 = vmatpush1.msra.mxu0 0.0
  %8108 = vmatprep.subr.mxu0 0.0
  %8109 = vmatpush1.msra.mxu0 0.0
  %8110 = vmatprep.subr.mxu0 0.0
  %8111 = vmatpush1.msra.mxu0 0.0
  %8112 = vmatprep.subr.mxu0 0.0
  %8113 = vmatpush1.msra.mxu0 0.0
  %8114 = vmatprep.subr.mxu0 0.0
  %8115 = vmatpush1.msra.mxu0 0.0
  %8116 = vmatprep.subr.mxu0 0.0
  %8117 = vmatpush1.msra.mxu0 0.0
  %8118 = vmatprep.subr.mxu0 0.0
  %8119 = vmatpush1.msra.mxu0 0.0
  %8120 = vmatprep.subr.mxu0 0.0
  %8121 = vmatpush1.msra.mxu0 0.0
  %8122 = vmatprep.mubr.f32.mxu0 0.0
  %8123 = vmatmul.mubr.f32.gmra.mrb[0].mxu0 %v8056
  %v8124 = vpop.f32.mrb[0].mxu0
  %v8125 = vadd.f32 0.0, %v8124
  %v8126 = vpop.f32.mrb[0].mxu0
  %8127 = vdwg.mxu0
  %v8128 = vadd.f32 %v8039, %v8125
  %v8129 = vld [vmem:[%s63 + $0x120] sm:$0xff]
  %v8130 = vld [vmem:[%s63 + $0x128] sm:$0xff]
  %v8131 = vld [vmem:[%s63 + $0x130] sm:$0xff]
  %v8132 = vld [vmem:[%s63 + $0x138] sm:$0xff]
  %v8133 = vld [vmem:[%s63 + $0x140] sm:$0xff]
  %v8134 = vld [vmem:[%s63 + $0x148] sm:$0xff]
  %v8135 = vrot.slane %v7580, 6
  %v8136 = vrot.slane %v7581, 5
  %v8137 = vsel %vm7605, %v8136, %v8135
  %v8138 = vrot.slane %v7582, 4
  %v8139 = vsel %vm7608, %v8138, %v8137
  %v8140 = vrot.slane %v7583, 3
  %v8141 = vsel %vm7611, %v8140, %v8139
  %v8142 = vrot.slane %v7584, 2
  %v8143 = vsel %vm7614, %v8142, %v8141
  %v8144 = vrot.slane %v7585, 1
  %v8145 = vsel %vm7617, %v8144, %v8143
  %v8146 = vsel %vm156, %v8145, 0
  %8148 = vmatprep.subr.mxu0 0.0
  %8149 = vmatpush1.msra.mxu0 %v8129
  %8150 = vmatprep.subr.mxu0 0.0
  %8151 = vmatpush1.msra.mxu0 %v8130
  %8152 = vmatprep.subr.mxu0 0.0
  %8153 = vmatpush1.msra.mxu0 %v8131
  %8154 = vmatprep.subr.mxu0 0.0
  %8155 = vmatpush1.msra.mxu0 %v8132
  %8156 = vmatprep.subr.mxu0 0.0
  %8157 = vmatpush1.msra.mxu0 %v8133
  %8158 = vmatprep.subr.mxu0 0.0
  %8159 = vmatpush1.msra.mxu0 %v8134
  %8160 = vmatprep.subr.mxu0 0.0
  %8161 = vmatpush1.msra.mxu0 0.0
  %8162 = vmatprep.subr.mxu0 0.0
  %8163 = vmatpush1.msra.mxu0 0.0
  %8164 = vmatprep.subr.mxu0 0.0
  %8165 = vmatpush1.msra.mxu0 0.0
  %8166 = vmatprep.subr.mxu0 0.0
  %8167 = vmatpush1.msra.mxu0 0.0
  %8168 = vmatprep.subr.mxu0 0.0
  %8169 = vmatpush1.msra.mxu0 0.0
  %8170 = vmatprep.subr.mxu0 0.0
  %8171 = vmatpush1.msra.mxu0 0.0
  %8172 = vmatprep.subr.mxu0 0.0
  %8173 = vmatpush1.msra.mxu0 0.0
  %8174 = vmatprep.subr.mxu0 0.0
  %8175 = vmatpush1.msra.mxu0 0.0
  %8176 = vmatprep.subr.mxu0 0.0
  %8177 = vmatpush1.msra.mxu0 0.0
  %8178 = vmatprep.subr.mxu0 0.0
  %8179 = vmatpush1.msra.mxu0 0.0
  %8180 = vmatprep.subr.mxu0 0.0
  %8181 = vmatpush1.msra.mxu0 0.0
  %8182 = vmatprep.subr.mxu0 0.0
  %8183 = vmatpush1.msra.mxu0 0.0
  %8184 = vmatprep.subr.mxu0 0.0
  %8185 = vmatpush1.msra.mxu0 0.0
  %8186 = vmatprep.subr.mxu0 0.0
  %8187 = vmatpush1.msra.mxu0 0.0
  %8188 = vmatprep.subr.mxu0 0.0
  %8189 = vmatpush1.msra.mxu0 0.0
  %8190 = vmatprep.subr.mxu0 0.0
  %8191 = vmatpush1.msra.mxu0 0.0
  %8192 = vmatprep.subr.mxu0 0.0
  %8193 = vmatpush1.msra.mxu0 0.0
  %8194 = vmatprep.subr.mxu0 0.0
  %8195 = vmatpush1.msra.mxu0 0.0
  %8196 = vmatprep.subr.mxu0 0.0
  %8197 = vmatpush1.msra.mxu0 0.0
  %8198 = vmatprep.subr.mxu0 0.0
  %8199 = vmatpush1.msra.mxu0 0.0
  %8200 = vmatprep.subr.mxu0 0.0
  %8201 = vmatpush1.msra.mxu0 0.0
  %8202 = vmatprep.subr.mxu0 0.0
  %8203 = vmatpush1.msra.mxu0 0.0
  %8204 = vmatprep.subr.mxu0 0.0
  %8205 = vmatpush1.msra.mxu0 0.0
  %8206 = vmatprep.subr.mxu0 0.0
  %8207 = vmatpush1.msra.mxu0 0.0
  %8208 = vmatprep.subr.mxu0 0.0
  %8209 = vmatpush1.msra.mxu0 0.0
  %8210 = vmatprep.subr.mxu0 0.0
  %8211 = vmatpush1.msra.mxu0 0.0
  %8212 = vmatprep.mubr.f32.mxu0 0.0
  %8213 = vmatmul.mubr.f32.gmra.mrb[0].mxu0 %v8146
  %v8214 = vpop.f32.mrb[0].mxu0
  %v8215 = vadd.f32 0.0, %v8214
  %v8216 = vpop.f32.mrb[0].mxu0
  %8217 = vdwg.mxu0
  %v8218 = vadd.f32 %v8128, %v8215
  %v8219 = vld [vmem:[%s63 + $0x150] sm:$0xff]
  %v8220 = vld [vmem:[%s63 + $0x158] sm:$0xff]
  %v8221 = vld [vmem:[%s63 + $0x160] sm:$0xff]
  %v8222 = vld [vmem:[%s63 + $0x168] sm:$0xff]
  %v8223 = vld [vmem:[%s63 + $0x170] sm:$0xff]
  %v8224 = vld [vmem:[%s63 + $0x178] sm:$0xff]
  %v8225 = vrot.slane %v7580, 7
  %v8226 = vrot.slane %v7581, 6
  %v8227 = vsel %vm7605, %v8226, %v8225
  %v8228 = vrot.slane %v7582, 5
  %v8229 = vsel %vm7608, %v8228, %v8227
  %v8230 = vrot.slane %v7583, 4
  %v8231 = vsel %vm7611, %v8230, %v8229
  %v8232 = vrot.slane %v7584, 3
  %v8233 = vsel %vm7614, %v8232, %v8231
  %v8234 = vrot.slane %v7585, 2
  %v8235 = vsel %vm7617, %v8234, %v8233
  %v8236 = vsel %vm156, %v8235, 0
  %8238 = vmatprep.subr.mxu0 0.0
  %8239 = vmatpush1.msra.mxu0 %v8219
  %8240 = vmatprep.subr.mxu0 0.0
  %8241 = vmatpush1.msra.mxu0 %v8220
  %8242 = vmatprep.subr.mxu0 0.0
  %8243 = vmatpush1.msra.mxu0 %v8221
  %8244 = vmatprep.subr.mxu0 0.0
  %8245 = vmatpush1.msra.mxu0 %v8222
  %8246 = vmatprep.subr.mxu0 0.0
  %8247 = vmatpush1.msra.mxu0 %v8223
  %8248 = vmatprep.subr.mxu0 0.0
  %8249 = vmatpush1.msra.mxu0 %v8224
  %8250 = vmatprep.subr.mxu0 0.0
  %8251 = vmatpush1.msra.mxu0 0.0
  %8252 = vmatprep.subr.mxu0 0.0
  %8253 = vmatpush1.msra.mxu0 0.0
  %8254 = vmatprep.subr.mxu0 0.0
  %8255 = vmatpush1.msra.mxu0 0.0
  %8256 = vmatprep.subr.mxu0 0.0
  %8257 = vmatpush1.msra.mxu0 0.0
  %8258 = vmatprep.subr.mxu0 0.0
  %8259 = vmatpush1.msra.mxu0 0.0
  %8260 = vmatprep.subr.mxu0 0.0
  %8261 = vmatpush1.msra.mxu0 0.0
  %8262 = vmatprep.subr.mxu0 0.0
  %8263 = vmatpush1.msra.mxu0 0.0
  %8264 = vmatprep.subr.mxu0 0.0
  %8265 = vmatpush1.msra.mxu0 0.0
  %8266 = vmatprep.subr.mxu0 0.0
  %8267 = vmatpush1.msra.mxu0 0.0
  %8268 = vmatprep.subr.mxu0 0.0
  %8269 = vmatpush1.msra.mxu0 0.0
  %8270 = vmatprep.subr.mxu0 0.0
  %8271 = vmatpush1.msra.mxu0 0.0
  %8272 = vmatprep.subr.mxu0 0.0
  %8273 = vmatpush1.msra.mxu0 0.0
  %8274 = vmatprep.subr.mxu0 0.0
  %8275 = vmatpush1.msra.mxu0 0.0
  %8276 = vmatprep.subr.mxu0 0.0
  %8277 = vmatpush1.msra.mxu0 0.0
  %8278 = vmatprep.subr.mxu0 0.0
  %8279 = vmatpush1.msra.mxu0 0.0
  %8280 = vmatprep.subr.mxu0 0.0
  %8281 = vmatpush1.msra.mxu0 0.0
  %8282 = vmatprep.subr.mxu0 0.0
  %8283 = vmatpush1.msra.mxu0 0.0
  %8284 = vmatprep.subr.mxu0 0.0
  %8285 = vmatpush1.msra.mxu0 0.0
  %8286 = vmatprep.subr.mxu0 0.0
  %8287 = vmatpush1.msra.mxu0 0.0
  %8288 = vmatprep.subr.mxu0 0.0
  %8289 = vmatpush1.msra.mxu0 0.0
  %8290 = vmatprep.subr.mxu0 0.0
  %8291 = vmatpush1.msra.mxu0 0.0
  %8292 = vmatprep.subr.mxu0 0.0
  %8293 = vmatpush1.msra.mxu0 0.0
  %8294 = vmatprep.subr.mxu0 0.0
  %8295 = vmatpush1.msra.mxu0 0.0
  %8296 = vmatprep.subr.mxu0 0.0
  %8297 = vmatpush1.msra.mxu0 0.0
  %8298 = vmatprep.subr.mxu0 0.0
  %8299 = vmatpush1.msra.mxu0 0.0
  %8300 = vmatprep.subr.mxu0 0.0
  %8301 = vmatpush1.msra.mxu0 0.0
  %8302 = vmatprep.mubr.f32.mxu0 0.0
  %8303 = vmatmul.mubr.f32.gmra.mrb[0].mxu0 %v8236
  %v8304 = vpop.f32.mrb[0].mxu0
  %v8305 = vadd.f32 0.0, %v8304
  %v8306 = vpop.f32.mrb[0].mxu0
  %8307 = vdwg.mxu0
  %v8308 = vadd.f32 %v8218, %v8305
  %v8309 = vld [vmem:[%s65] sm:$0x1]
  %v8311 = vlaneseq
  %v8312 = vshrl.u32 %v8311, 7
  %v8313 = vsub.s32 0, %v8312
  %v8314 = vrot.slane %v8309, %v8313
  %v8316 = vadd.f32 %v8308, %v8314
  %v8317 = vmax.f32 %v8316, 0.0
  %v8318 = vld [vmem:[%s67] sm:$0xff]
  %v8319 = vld [vmem:[%s67 + $0x8] sm:$0xff]
  %v8320 = vld [vmem:[%s67 + $0x10] sm:$0xff]
  %v8321 = vld [vmem:[%s67 + $0x18] sm:$0xff]
  %v8322 = vld [vmem:[%s67 + $0x20] sm:$0xff]
  %v8323 = vld [vmem:[%s67 + $0x28] sm:$0xff]
  %v8324 = vld [vmem:[%s67 + $0x30] sm:$0xff]
  %v8325 = vld [vmem:[%s67 + $0x38] sm:$0xff]
  %v8326 = vld [vmem:[%s69] sm:$0x1]
  %v8328 = vlaneseq
  %v8329 = vshrl.u32 %v8328, 7
  %v8330 = vsub.s32 0, %v8329
  %v8331 = vrot.slane %v8326, %v8330
  %vm8333 = vcmask 523264
  %v8335 = vsel %vm8333, %v8317, 0
  %8337 = vmatprep.subr.mxu0 0.0
  %8338 = vmatpush1.msra.mxu0 %v8318
  %8339 = vmatprep.subr.mxu0 0.0
  %8340 = vmatpush1.msra.mxu0 %v8319
  %8341 = vmatprep.subr.mxu0 0.0
  %8342 = vmatpush1.msra.mxu0 %v8320
  %8343 = vmatprep.subr.mxu0 0.0
  %8344 = vmatpush1.msra.mxu0 %v8321
  %8345 = vmatprep.subr.mxu0 0.0
  %8346 = vmatpush1.msra.mxu0 %v8322
  %8347 = vmatprep.subr.mxu0 0.0
  %8348 = vmatpush1.msra.mxu0 %v8323
  %8349 = vmatprep.subr.mxu0 0.0
  %8350 = vmatpush1.msra.mxu0 %v8324
  %8351 = vmatprep.subr.mxu0 0.0
  %8352 = vmatpush1.msra.mxu0 %v8325
  %8353 = vmatprep.subr.mxu0 0.0
  %8354 = vmatpush1.msra.mxu0 0.0
  %8355 = vmatprep.subr.mxu0 0.0
  %8356 = vmatpush1.msra.mxu0 0.0
  %8357 = vmatprep.subr.mxu0 0.0
  %8358 = vmatpush1.msra.mxu0 0.0
  %8359 = vmatprep.subr.mxu0 0.0
  %8360 = vmatpush1.msra.mxu0 0.0
  %8361 = vmatprep.subr.mxu0 0.0
  %8362 = vmatpush1.msra.mxu0 0.0
  %8363 = vmatprep.subr.mxu0 0.0
  %8364 = vmatpush1.msra.mxu0 0.0
  %8365 = vmatprep.subr.mxu0 0.0
  %8366 = vmatpush1.msra.mxu0 0.0
  %8367 = vmatprep.subr.mxu0 0.0
  %8368 = vmatpush1.msra.mxu0 0.0
  %8369 = vmatprep.subr.mxu0 0.0
  %8370 = vmatpush1.msra.mxu0 0.0
  %8371 = vmatprep.subr.mxu0 0.0
  %8372 = vmatpush1.msra.mxu0 0.0
  %8373 = vmatprep.subr.mxu0 0.0
  %8374 = vmatpush1.msra.mxu0 0.0
  %8375 = vmatprep.subr.mxu0 0.0
  %8376 = vmatpush1.msra.mxu0 0.0
  %8377 = vmatprep.subr.mxu0 0.0
  %8378 = vmatpush1.msra.mxu0 0.0
  %8379 = vmatprep.subr.mxu0 0.0
  %8380 = vmatpush1.msra.mxu0 0.0
  %8381 = vmatprep.subr.mxu0 0.0
  %8382 = vmatpush1.msra.mxu0 0.0
  %8383 = vmatprep.subr.mxu0 0.0
  %8384 = vmatpush1.msra.mxu0 0.0
  %8385 = vmatprep.subr.mxu0 0.0
  %8386 = vmatpush1.msra.mxu0 0.0
  %8387 = vmatprep.subr.mxu0 0.0
  %8388 = vmatpush1.msra.mxu0 0.0
  %8389 = vmatprep.subr.mxu0 0.0
  %8390 = vmatpush1.msra.mxu0 0.0
  %8391 = vmatprep.subr.mxu0 0.0
  %8392 = vmatpush1.msra.mxu0 0.0
  %8393 = vmatprep.subr.mxu0 0.0
  %8394 = vmatpush1.msra.mxu0 0.0
  %8395 = vmatprep.subr.mxu0 0.0
  %8396 = vmatpush1.msra.mxu0 0.0
  %8397 = vmatprep.subr.mxu0 0.0
  %8398 = vmatpush1.msra.mxu0 0.0
  %8399 = vmatprep.subr.mxu0 0.0
  %8400 = vmatpush1.msra.mxu0 0.0
  %8401 = vmatprep.mubr.f32.mxu0 0.0
  %8402 = vmatmul.mubr.f32.gmra.mrb[0].mxu0 %v8335
  %v8403 = vpop.f32.mrb[0].mxu0
  %v8404 = vadd.f32 %v8331, %v8403
  %v8405 = vpop.f32.mrb[0].mxu0
  %8406 = vdwg.mxu0
  %vm8407 = vcmask 29696
  %8408 = vst.msk [vmem:[%s71] sm:$0x3f] %vm8407, %v8404
  // Predicated region
  $region142: #{auxiliary_classifier_forward.1} parent=0 // pred_check
    _
  $region143: #{auxiliary_classifier_forward.1} parent=0 // pred_check_branch
    %8410 = sbr.rel (0) target = $region145
  $region144: #{auxiliary_classifier_forward.1} parent=0 // pred_region
    _
  $region145: #{auxiliary_classifier_forward.1} parent=0 // pred_fallthru
    _
  // Predicated region
  $region146: #{auxiliary_classifier_forward.1} parent=0 // pred_check
    _
  $region147: #{auxiliary_classifier_forward.1} parent=0 // pred_check_branch
    %8412 = sbr.rel (0) target = $region149
  $region148: #{auxiliary_classifier_forward.1} parent=0 // pred_region
    _
  $region149: #{auxiliary_classifier_forward.1} parent=0 // pred_fallthru
    _

</llo_original>
